<compile_context>
chip_gen: v7x
topology: tpu7x:2x2x1
jax: 0.10.0
libtpu: 0.0.40
codegen_flags: <defaults>
</compile_context>

<pallas_src>
import functools
import math

import jax
import jax.numpy as jnp
from jax import lax
from jax.experimental import pallas as pl
from jax.experimental.pallas import tpu as pltpu


def _block_kernel(x_ref, n1w_ref, n1b_ref, wq_ref, wk_ref, wv_ref,
                  projw_ref, projb_ref, n2w_ref, n2b_ref,
                  fc1w_ref, fc1b_ref, fc2w_ref, fc2b_ref,
                  o_ref, k_scr, v_scr, *, num_heads, tq, eps):
    qi = pl.program_id(1)
    N, C = x_ref.shape                      # full sequence block (squeezed batch)

    def layernorm(z, w, b):                  # f32 row-wise LayerNorm
        mu = jnp.mean(z, axis=-1, keepdims=True)
        var = jnp.mean(jnp.square(z - mu), axis=-1, keepdims=True)
        return (z - mu) * lax.rsqrt(var + eps) * w + b

    g1, b1 = n1w_ref[0], n1b_ref[0]
    g2, b2 = n2w_ref[0], n2b_ref[0]

    # ---- K/V for the whole sequence: computed once per batch, kept in VMEM ----
    @pl.when(qi == 0)
    def _():
        xf = x_ref[...].astype(jnp.float32)                       # (N, C)
        xn = layernorm(xf, g1, b1).astype(jnp.bfloat16)
        for h in range(num_heads):                                # static unroll
            k_scr[h] = jnp.dot(xn, wk_ref[h],
                               preferred_element_type=jnp.float32).astype(jnp.bfloat16)
            v_scr[h] = jnp.dot(xn, wv_ref[h],
                               preferred_element_type=jnp.float32).astype(jnp.bfloat16)

    # ---- query tile ----
    qs = pl.multiple_of(qi * tq, tq)
    x_t = x_ref[pl.ds(qs, tq), :].astype(jnp.float32)             # (TQ, C)
    xn_t = layernorm(x_t, g1, b1).astype(jnp.bfloat16)

    # ---- attention (per head; no column slices, no k.T, no concat) ----
    attn = jnp.zeros((tq, C), jnp.float32)
    for h in range(num_heads):
        # softmax scale is already folded into wq in the wrapper
        qh = jnp.dot(xn_t, wq_ref[h],
                     preferred_element_type=jnp.float32).astype(jnp.bfloat16)  # (TQ, hd)
        s = lax.dot_general(qh, k_scr[h],
                            dimension_numbers=(((1,), (1,)), ((), ())),
                            preferred_element_type=jnp.float32)                # (TQ, N)
        s = s - jnp.max(s, axis=-1, keepdims=True)
        p = jnp.exp(s)
        p = p * pl.reciprocal(jnp.sum(p, axis=-1, keepdims=True), approx=True)
        oh = jnp.dot(p.astype(jnp.bfloat16), v_scr[h],
                     preferred_element_type=jnp.float32)                       # (TQ, hd)
        attn = attn + jnp.dot(oh.astype(jnp.bfloat16), projw_ref[h],
                              preferred_element_type=jnp.float32)              # (TQ, C)

    y = x_t + attn + projb_ref[0]                                 # residual 1

    # ---- MLP: fc1 -> exact GELU (matches nn.GELU) -> fc2 ----
    yn = layernorm(y, g2, b2).astype(jnp.bfloat16)
    h1 = jnp.dot(yn, fc1w_ref[...],
                 preferred_element_type=jnp.float32) + fc1b_ref[0]
    h1 = 0.5 * h1 * (1.0 + lax.erf(h1 * (1.0 / math.sqrt(2.0))))
    h2 = jnp.dot(h1.astype(jnp.bfloat16), fc2w_ref[...],
                 preferred_element_type=jnp.float32) + fc2b_ref[0]

    o_ref[...] = (y + h2).astype(o_ref.dtype)                     # residual 2


def _full_spec(a):
    nd = a.ndim
    return pl.BlockSpec(a.shape, lambda *args, _nd=nd: (0,) * _nd)


def block_forward(x, params, *, num_heads, eps=1e-5, tq=128):
    """x: (B, N, C) float32. params: dict of parameter arrays (PyTorch layout)."""
    B, N, C = x.shape
    Hm = params["fc1_w"].shape[0]                 # mlp hidden
    assert C % num_heads == 0
    hd = C // num_heads
    scale = hd ** (-0.5)

    if N % tq != 0:                               # fall back to one query tile
        tq = N
    n_qt = N // tq

    f32, bf16 = jnp.float32, jnp.bfloat16

    # --- weight prep (wrapper-side, outside the kernel) ---
    W = params["qkv_w"].astype(f32)                                   # (3C, C)
    wq = (jnp.transpose(W[0:C].reshape(num_heads, hd, C), (0, 2, 1)) * scale).astype(bf16)
    wk = jnp.transpose(W[C:2 * C].reshape(num_heads, hd, C), (0, 2, 1)).astype(bf16)
    wv = jnp.transpose(W[2 * C:3 * C].reshape(num_heads, hd, C), (0, 2, 1)).astype(bf16)
    projw = params["proj_w"].T.reshape(num_heads, hd, C).astype(bf16)  # (H, hd, C)
    fc1w = params["fc1_w"].T.astype(bf16)                              # (C, Hm)
    fc2w = params["fc2_w"].T.astype(bf16)                              # (Hm, C)

    n1w = params["norm1_w"].reshape(1, C).astype(f32)
    n1b = params["norm1_b"].reshape(1, C).astype(f32)
    n2w = params["norm2_w"].reshape(1, C).astype(f32)
    n2b = params["norm2_b"].reshape(1, C).astype(f32)
    projb = params["proj_b"].reshape(1, C).astype(f32)
    fc1b = params["fc1_b"].reshape(1, Hm).astype(f32)
    fc2b = params["fc2_b"].reshape(1, C).astype(f32)

    kernel = functools.partial(_block_kernel, num_heads=num_heads, tq=tq, eps=eps)

    flops = int(B * (2 * N * C * (3 * C) + 4 * N * N * C + 2 * N * C * C + 4 * N * C * Hm))
    transcendentals = int(B * (num_heads * N * N + N * Hm))
    weight_bytes = 2 * (wq.size + wk.size + wv.size + projw.size + fc1w.size + fc2w.size)
    bytes_accessed = int(2 * B * N * C * 4 + weight_bytes + 4 * (5 * C + Hm))

    return pl.pallas_call(
        kernel,
        out_shape=jax.ShapeDtypeStruct((B, N, C), x.dtype),
        grid_spec=pltpu.PrefetchScalarGridSpec(
            num_scalar_prefetch=0,
            grid=(B, n_qt),
            in_specs=[
                # full sequence for this batch, resident across query tiles
                pl.BlockSpec((None, N, C), lambda b, q: (b, 0, 0)),
                _full_spec(n1w), _full_spec(n1b),
                _full_spec(wq), _full_spec(wk), _full_spec(wv),
                _full_spec(projw), _full_spec(projb),
                _full_spec(n2w), _full_spec(n2b),
                _full_spec(fc1w), _full_spec(fc1b),
                _full_spec(fc2w), _full_spec(fc2b),
            ],
            out_specs=pl.BlockSpec((None, tq, C), lambda b, q: (b, q, 0)),
            scratch_shapes=[
                pltpu.VMEM((num_heads, N, hd), bf16),   # K, per head, bf16 resident
                pltpu.VMEM((num_heads, N, hd), bf16),   # V, per head, bf16 resident
            ],
        ),
        compiler_params=pltpu.CompilerParams(
            dimension_semantics=("parallel", "arbitrary"),
            vmem_limit_bytes=48 * 1024 * 1024,
        ),
        cost_estimate=pl.CostEstimate(flops=flops,
                                      transcendentals=transcendentals,
                                      bytes_accessed=bytes_accessed),
    )(x, n1w, n1b, wq, wk, wv, projw, projb, n2w, n2b, fc1w, fc1b, fc2w, fc2b)


def block_reference(x, params, *, num_heads, eps=1e-5):
    """Pure-JAX f32 reference mirroring the PyTorch Block.forward (eval mode)."""
    B, N, C = x.shape
    hd = C // num_heads
    scale = hd ** (-0.5)

    def ln(z, w, b):
        mu = jnp.mean(z, axis=-1, keepdims=True)
        var = jnp.mean((z - mu) ** 2, axis=-1, keepdims=True)
        return (z - mu) / jnp.sqrt(var + eps) * w + b

    xn = ln(x, params["norm1_w"], params["norm1_b"])
    qkv = xn @ params["qkv_w"].T                                    # (B,N,3C)
    qkv = qkv.reshape(B, N, 3, num_heads, hd).transpose(2, 0, 3, 1, 4)
    q, k, v = qkv[0], qkv[1], qkv[2]                                # (B,h,N,hd)
    attn = jnp.einsum("bhnd,bhmd->bhnm", q, k) * scale
    attn = jax.nn.softmax(attn, axis=-1)
    y = jnp.einsum("bhnm,bhmd->bhnd", attn, v).transpose(0, 2, 1, 3).reshape(B, N, C)
    y = y @ params["proj_w"].T + params["proj_b"]
    x = x + y
    xn2 = ln(x, params["norm2_w"], params["norm2_b"])
    h1 = xn2 @ params["fc1_w"].T + params["fc1_b"]
    h1 = 0.5 * h1 * (1.0 + lax.erf(h1 / jnp.sqrt(2.0)))
    h2 = h1 @ params["fc2_w"].T + params["fc2_b"]
    return x + h2


if __name__ == "__main__":
    # Lane-friendly small config: C, 3C, Hm multiples of 128; N tiled by TQ=128.
    B, N, C = 2, 256, 128
    num_heads = 4
    mlp_ratio = 4.0
    Hm = int(C * mlp_ratio)

    key = jax.random.PRNGKey(0)
    ks = jax.random.split(key, 12)

    params = {
        "norm1_w": jnp.ones((C,), jnp.float32) + 0.05 * jax.random.normal(ks[0], (C,)),
        "norm1_b": 0.05 * jax.random.normal(ks[1], (C,)),
        "qkv_w": 0.1 * jax.random.normal(ks[2], (3 * C, C)),     # qkv_bias=False
        "proj_w": 0.1 * jax.random.normal(ks[3], (C, C)),
        "proj_b": 0.05 * jax.random.normal(ks[4], (C,)),
        "norm2_w": jnp.ones((C,), jnp.float32) + 0.05 * jax.random.normal(ks[5], (C,)),
        "norm2_b": 0.05 * jax.random.normal(ks[6], (C,)),
        "fc1_w": 0.1 * jax.random.normal(ks[7], (Hm, C)),
        "fc1_b": 0.05 * jax.random.normal(ks[8], (Hm,)),
        "fc2_w": 0.1 * jax.random.normal(ks[9], (C, Hm)),
        "fc2_b": 0.05 * jax.random.normal(ks[10], (C,)),
    }
    params = {k: v.astype(jnp.float32) for k, v in params.items()}

    x = jax.random.normal(ks[11], (B, N, C), jnp.float32)

    out = jax.block_until_ready(block_forward(x, params, num_heads=num_heads))
    ref = block_reference(x, params, num_heads=num_heads)

    assert out.shape == (B, N, C)
    max_err = float(jnp.max(jnp.abs(out - ref)))
    # bf16 MXU operands + approx reciprocal => loosened tolerance vs f32 reference
    assert jnp.allclose(out, ref, rtol=5e-2, atol=5e-2), max_err

    print("KERNEL_OK")
</pallas_src>

<mosaic_0001>
module attributes {stable_mosaic.version = 11 : i64} {
  func.func @_block_kernel(%arg0: i32, %arg1: i32, %arg2: memref<1x256x128xf32, #tpu.memory_space<vmem>>, %arg3: memref<1x128xf32, #tpu.memory_space<vmem>>, %arg4: memref<1x128xf32, #tpu.memory_space<vmem>>, %arg5: memref<4x128x32xbf16, #tpu.memory_space<vmem>>, %arg6: memref<4x128x32xbf16, #tpu.memory_space<vmem>>, %arg7: memref<4x128x32xbf16, #tpu.memory_space<vmem>>, %arg8: memref<4x32x128xbf16, #tpu.memory_space<vmem>>, %arg9: memref<1x128xf32, #tpu.memory_space<vmem>>, %arg10: memref<1x128xf32, #tpu.memory_space<vmem>>, %arg11: memref<1x128xf32, #tpu.memory_space<vmem>>, %arg12: memref<128x512xbf16, #tpu.memory_space<vmem>>, %arg13: memref<1x512xf32, #tpu.memory_space<vmem>>, %arg14: memref<512x128xbf16, #tpu.memory_space<vmem>>, %arg15: memref<1x128xf32, #tpu.memory_space<vmem>>, %arg16: memref<1x128x128xf32, #tpu.memory_space<vmem>>, %arg17: memref<4x256x32xbf16, #tpu.memory_space<vmem>>, %arg18: memref<4x256x32xbf16, #tpu.memory_space<vmem>>) attributes {dimension_semantics = [#tpu.dimension_semantics<parallel>, #tpu.dimension_semantics<arbitrary>], iteration_bounds = array<i64: 2, 2>, scalar_prefetch = 0 : i64, scratch_operands = 2 : i64, tpu.core_type = #tpu.core_type<tc>, window_params = [{transform_indices = @transform_0, window_bounds = array<i64: 1, 256, 128>}, {pipeline_mode = #tpu.pipeline_mode<synchronous>, transform_indices = @transform_1, window_bounds = array<i64: 1, 128>}, {pipeline_mode = #tpu.pipeline_mode<synchronous>, transform_indices = @transform_2, window_bounds = array<i64: 1, 128>}, {pipeline_mode = #tpu.pipeline_mode<synchronous>, transform_indices = @transform_3, window_bounds = array<i64: 4, 128, 32>}, {pipeline_mode = #tpu.pipeline_mode<synchronous>, transform_indices = @transform_4, window_bounds = array<i64: 4, 128, 32>}, {pipeline_mode = #tpu.pipeline_mode<synchronous>, transform_indices = @transform_5, window_bounds = array<i64: 4, 128, 32>}, {pipeline_mode = #tpu.pipeline_mode<synchronous>, transform_indices = @transform_6, window_bounds = array<i64: 4, 32, 128>}, {pipeline_mode = #tpu.pipeline_mode<synchronous>, transform_indices = @transform_7, window_bounds = array<i64: 1, 128>}, {pipeline_mode = #tpu.pipeline_mode<synchronous>, transform_indices = @transform_8, window_bounds = array<i64: 1, 128>}, {pipeline_mode = #tpu.pipeline_mode<synchronous>, transform_indices = @transform_9, window_bounds = array<i64: 1, 128>}, {pipeline_mode = #tpu.pipeline_mode<synchronous>, transform_indices = @transform_10, window_bounds = array<i64: 128, 512>}, {pipeline_mode = #tpu.pipeline_mode<synchronous>, transform_indices = @transform_11, window_bounds = array<i64: 1, 512>}, {pipeline_mode = #tpu.pipeline_mode<synchronous>, transform_indices = @transform_12, window_bounds = array<i64: 512, 128>}, {pipeline_mode = #tpu.pipeline_mode<synchronous>, transform_indices = @transform_13, window_bounds = array<i64: 1, 128>}, {transform_indices = @transform_14, window_bounds = array<i64: 1, 128, 128>}]} {
    %c0 = arith.constant 0 : index
    %c0_0 = arith.constant 0 : index
    %0 = vector.load %arg3[%c0, %c0_0] : memref<1x128xf32, #tpu.memory_space<vmem>>, vector<1x128xf32>
    %1 = vector.shape_cast %0 : vector<1x128xf32> to vector<128xf32>
    %c0_1 = arith.constant 0 : index
    %c0_2 = arith.constant 0 : index
    %2 = vector.load %arg4[%c0_1, %c0_2] : memref<1x128xf32, #tpu.memory_space<vmem>>, vector<1x128xf32>
    %3 = vector.shape_cast %2 : vector<1x128xf32> to vector<128xf32>
    %c0_3 = arith.constant 0 : index
    %c0_4 = arith.constant 0 : index
    %4 = vector.load %arg10[%c0_3, %c0_4] : memref<1x128xf32, #tpu.memory_space<vmem>>, vector<1x128xf32>
    %5 = vector.shape_cast %4 : vector<1x128xf32> to vector<128xf32>
    %c0_5 = arith.constant 0 : index
    %c0_6 = arith.constant 0 : index
    %6 = vector.load %arg11[%c0_5, %c0_6] : memref<1x128xf32, #tpu.memory_space<vmem>>, vector<1x128xf32>
    %7 = vector.shape_cast %6 : vector<1x128xf32> to vector<128xf32>
    %c0_i32 = arith.constant 0 : i32
    %8 = arith.cmpi eq, %arg1, %c0_i32 : i32
    %9 = arith.extui %8 : i1 to i32
    %c0_i32_7 = arith.constant 0 : i32
    %10 = arith.cmpi ne, %9, %c0_i32_7 : i32
    scf.if %10 {
      %c0_107 = arith.constant 0 : index
      %c0_108 = arith.constant 0 : index
      %c0_109 = arith.constant 0 : index
      %204 = vector.load %arg2[%c0_107, %c0_108, %c0_109] : memref<1x256x128xf32, #tpu.memory_space<vmem>>, vector<1x256x128xf32>
      %205 = vector.shape_cast %204 : vector<1x256x128xf32> to vector<256x128xf32>
      %cst_110 = arith.constant dense<0.000000e+00> : vector<256xf32>
      %206 = vector.multi_reduction <add>, %205, %cst_110 [1] : vector<256x128xf32> to vector<256xf32>
      %207 = vector.shape_cast %206 : vector<256xf32> to vector<256x1xf32>
      %cst_111 = arith.constant 1.280000e+02 : f32
      %208 = vector.broadcast %cst_111 : f32 to vector<256x1xf32>
      %209 = arith.divf %207, %208 : vector<256x1xf32>
      %210 = vector.broadcast %209 : vector<256x1xf32> to vector<256x128xf32>
      %211 = arith.subf %205, %210 : vector<256x128xf32>
      %212 = arith.mulf %211, %211 : vector<256x128xf32>
      %cst_112 = arith.constant dense<0.000000e+00> : vector<256xf32>
      %213 = vector.multi_reduction <add>, %212, %cst_112 [1] : vector<256x128xf32> to vector<256xf32>
      %214 = vector.shape_cast %213 : vector<256xf32> to vector<256x1xf32>
      %cst_113 = arith.constant 1.280000e+02 : f32
      %215 = vector.broadcast %cst_113 : f32 to vector<256x1xf32>
      %216 = arith.divf %214, %215 : vector<256x1xf32>
      %217 = vector.broadcast %209 : vector<256x1xf32> to vector<256x128xf32>
      %218 = arith.subf %205, %217 : vector<256x128xf32>
      %cst_114 = arith.constant 9.99999974E-6 : f32
      %219 = vector.broadcast %cst_114 : f32 to vector<256x1xf32>
      %220 = arith.addf %216, %219 : vector<256x1xf32>
      %221 = math.rsqrt %220 : vector<256x1xf32>
      %222 = vector.broadcast %221 : vector<256x1xf32> to vector<256x128xf32>
      %223 = arith.mulf %218, %222 : vector<256x128xf32>
      %224 = vector.shape_cast %1 : vector<128xf32> to vector<1x128xf32>
      %225 = vector.broadcast %224 : vector<1x128xf32> to vector<256x128xf32>
      %226 = arith.mulf %223, %225 : vector<256x128xf32>
      %227 = vector.shape_cast %3 : vector<128xf32> to vector<1x128xf32>
      %228 = vector.broadcast %227 : vector<1x128xf32> to vector<256x128xf32>
      %229 = arith.addf %226, %228 : vector<256x128xf32>
      %230 = arith.truncf %229 : vector<256x128xf32> to vector<256x128xbf16>
      %c0_115 = arith.constant 0 : index
      %c0_116 = arith.constant 0 : index
      %c0_117 = arith.constant 0 : index
      %231 = vector.load %arg6[%c0_115, %c0_116, %c0_117] : memref<4x128x32xbf16, #tpu.memory_space<vmem>>, vector<1x128x32xbf16>
      %232 = vector.shape_cast %231 : vector<1x128x32xbf16> to vector<128x32xbf16>
      %cst_118 = arith.constant dense<0.000000e+00> : vector<256x32xf32>
      %233 = tpu.matmul %230, %232, %cst_118 {dimension_numbers = #tpu.dot_dimension_numbers<[1], [0], [0], [1], [0, 0, 1, 1], [], []>} : vector<256x128xbf16>, vector<128x32xbf16>, vector<256x32xf32> -> vector<256x32xf32>
      %234 = arith.truncf %233 : vector<256x32xf32> to vector<256x32xbf16>
      %c0_119 = arith.constant 0 : index
      %c0_120 = arith.constant 0 : index
      %c0_121 = arith.constant 0 : index
      %235 = vector.load %arg17[%c0_119, %c0_120, %c0_121] : memref<4x256x32xbf16, #tpu.memory_space<vmem>>, vector<1x256x32xbf16>
      %236 = vector.shape_cast %235 : vector<1x256x32xbf16> to vector<256x32xbf16>
      %237 = vector.shape_cast %234 : vector<256x32xbf16> to vector<1x256x32xbf16>
      tpu.vector_store %arg17[%c0_119, %c0_120, %c0_121], %237 {strides = array<i32>} : memref<4x256x32xbf16, #tpu.memory_space<vmem>>, vector<1x256x32xbf16>,
      %c0_122 = arith.constant 0 : index
      %c0_123 = arith.constant 0 : index
      %c0_124 = arith.constant 0 : index
      %238 = vector.load %arg7[%c0_122, %c0_123, %c0_124] : memref<4x128x32xbf16, #tpu.memory_space<vmem>>, vector<1x128x32xbf16>
      %239 = vector.shape_cast %238 : vector<1x128x32xbf16> to vector<128x32xbf16>
      %cst_125 = arith.constant dense<0.000000e+00> : vector<256x32xf32>
      %240 = tpu.matmul %230, %239, %cst_125 {dimension_numbers = #tpu.dot_dimension_numbers<[1], [0], [0], [1], [0, 0, 1, 1], [], []>} : vector<256x128xbf16>, vector<128x32xbf16>, vector<256x32xf32> -> vector<256x32xf32>
      %241 = arith.truncf %240 : vector<256x32xf32> to vector<256x32xbf16>
      %c0_126 = arith.constant 0 : index
      %c0_127 = arith.constant 0 : index
      %c0_128 = arith.constant 0 : index
      %242 = vector.load %arg18[%c0_126, %c0_127, %c0_128] : memref<4x256x32xbf16, #tpu.memory_space<vmem>>, vector<1x256x32xbf16>
      %243 = vector.shape_cast %242 : vector<1x256x32xbf16> to vector<256x32xbf16>
      %244 = vector.shape_cast %241 : vector<256x32xbf16> to vector<1x256x32xbf16>
      tpu.vector_store %arg18[%c0_126, %c0_127, %c0_128], %244 {strides = array<i32>} : memref<4x256x32xbf16, #tpu.memory_space<vmem>>, vector<1x256x32xbf16>,
      %c1_129 = arith.constant 1 : index
      %c0_130 = arith.constant 0 : index
      %c0_131 = arith.constant 0 : index
      %245 = vector.load %arg6[%c1_129, %c0_130, %c0_131] : memref<4x128x32xbf16, #tpu.memory_space<vmem>>, vector<1x128x32xbf16>
      %246 = vector.shape_cast %245 : vector<1x128x32xbf16> to vector<128x32xbf16>
      %cst_132 = arith.constant dense<0.000000e+00> : vector<256x32xf32>
      %247 = tpu.matmul %230, %246, %cst_132 {dimension_numbers = #tpu.dot_dimension_numbers<[1], [0], [0], [1], [0, 0, 1, 1], [], []>} : vector<256x128xbf16>, vector<128x32xbf16>, vector<256x32xf32> -> vector<256x32xf32>
      %248 = arith.truncf %247 : vector<256x32xf32> to vector<256x32xbf16>
      %c1_133 = arith.constant 1 : index
      %c0_134 = arith.constant 0 : index
      %c0_135 = arith.constant 0 : index
      %249 = vector.load %arg17[%c1_133, %c0_134, %c0_135] : memref<4x256x32xbf16, #tpu.memory_space<vmem>>, vector<1x256x32xbf16>
      %250 = vector.shape_cast %249 : vector<1x256x32xbf16> to vector<256x32xbf16>
      %251 = vector.shape_cast %248 : vector<256x32xbf16> to vector<1x256x32xbf16>
      tpu.vector_store %arg17[%c1_133, %c0_134, %c0_135], %251 {strides = array<i32>} : memref<4x256x32xbf16, #tpu.memory_space<vmem>>, vector<1x256x32xbf16>,
      %c1_136 = arith.constant 1 : index
      %c0_137 = arith.constant 0 : index
      %c0_138 = arith.constant 0 : index
      %252 = vector.load %arg7[%c1_136, %c0_137, %c0_138] : memref<4x128x32xbf16, #tpu.memory_space<vmem>>, vector<1x128x32xbf16>
      %253 = vector.shape_cast %252 : vector<1x128x32xbf16> to vector<128x32xbf16>
      %cst_139 = arith.constant dense<0.000000e+00> : vector<256x32xf32>
      %254 = tpu.matmul %230, %253, %cst_139 {dimension_numbers = #tpu.dot_dimension_numbers<[1], [0], [0], [1], [0, 0, 1, 1], [], []>} : vector<256x128xbf16>, vector<128x32xbf16>, vector<256x32xf32> -> vector<256x32xf32>
      %255 = arith.truncf %254 : vector<256x32xf32> to vector<256x32xbf16>
      %c1_140 = arith.constant 1 : index
      %c0_141 = arith.constant 0 : index
      %c0_142 = arith.constant 0 : index
      %256 = vector.load %arg18[%c1_140, %c0_141, %c0_142] : memref<4x256x32xbf16, #tpu.memory_space<vmem>>, vector<1x256x32xbf16>
      %257 = vector.shape_cast %256 : vector<1x256x32xbf16> to vector<256x32xbf16>
      %258 = vector.shape_cast %255 : vector<256x32xbf16> to vector<1x256x32xbf16>
      tpu.vector_store %arg18[%c1_140, %c0_141, %c0_142], %258 {strides = array<i32>} : memref<4x256x32xbf16, #tpu.memory_space<vmem>>, vector<1x256x32xbf16>,
      %c2_143 = arith.constant 2 : index
      %c0_144 = arith.constant 0 : index
      %c0_145 = arith.constant 0 : index
      %259 = vector.load %arg6[%c2_143, %c0_144, %c0_145] : memref<4x128x32xbf16, #tpu.memory_space<vmem>>, vector<1x128x32xbf16>
      %260 = vector.shape_cast %259 : vector<1x128x32xbf16> to vector<128x32xbf16>
      %cst_146 = arith.constant dense<0.000000e+00> : vector<256x32xf32>
      %261 = tpu.matmul %230, %260, %cst_146 {dimension_numbers = #tpu.dot_dimension_numbers<[1], [0], [0], [1], [0, 0, 1, 1], [], []>} : vector<256x128xbf16>, vector<128x32xbf16>, vector<256x32xf32> -> vector<256x32xf32>
      %262 = arith.truncf %261 : vector<256x32xf32> to vector<256x32xbf16>
      %c2_147 = arith.constant 2 : index
      %c0_148 = arith.constant 0 : index
      %c0_149 = arith.constant 0 : index
      %263 = vector.load %arg17[%c2_147, %c0_148, %c0_149] : memref<4x256x32xbf16, #tpu.memory_space<vmem>>, vector<1x256x32xbf16>
      %264 = vector.shape_cast %263 : vector<1x256x32xbf16> to vector<256x32xbf16>
      %265 = vector.shape_cast %262 : vector<256x32xbf16> to vector<1x256x32xbf16>
      tpu.vector_store %arg17[%c2_147, %c0_148, %c0_149], %265 {strides = array<i32>} : memref<4x256x32xbf16, #tpu.memory_space<vmem>>, vector<1x256x32xbf16>,
      %c2_150 = arith.constant 2 : index
      %c0_151 = arith.constant 0 : index
      %c0_152 = arith.constant 0 : index
      %266 = vector.load %arg7[%c2_150, %c0_151, %c0_152] : memref<4x128x32xbf16, #tpu.memory_space<vmem>>, vector<1x128x32xbf16>
      %267 = vector.shape_cast %266 : vector<1x128x32xbf16> to vector<128x32xbf16>
      %cst_153 = arith.constant dense<0.000000e+00> : vector<256x32xf32>
      %268 = tpu.matmul %230, %267, %cst_153 {dimension_numbers = #tpu.dot_dimension_numbers<[1], [0], [0], [1], [0, 0, 1, 1], [], []>} : vector<256x128xbf16>, vector<128x32xbf16>, vector<256x32xf32> -> vector<256x32xf32>
      %269 = arith.truncf %268 : vector<256x32xf32> to vector<256x32xbf16>
      %c2_154 = arith.constant 2 : index
      %c0_155 = arith.constant 0 : index
      %c0_156 = arith.constant 0 : index
      %270 = vector.load %arg18[%c2_154, %c0_155, %c0_156] : memref<4x256x32xbf16, #tpu.memory_space<vmem>>, vector<1x256x32xbf16>
      %271 = vector.shape_cast %270 : vector<1x256x32xbf16> to vector<256x32xbf16>
      %272 = vector.shape_cast %269 : vector<256x32xbf16> to vector<1x256x32xbf16>
      tpu.vector_store %arg18[%c2_154, %c0_155, %c0_156], %272 {strides = array<i32>} : memref<4x256x32xbf16, #tpu.memory_space<vmem>>, vector<1x256x32xbf16>,
      %c3_157 = arith.constant 3 : index
      %c0_158 = arith.constant 0 : index
      %c0_159 = arith.constant 0 : index
      %273 = vector.load %arg6[%c3_157, %c0_158, %c0_159] : memref<4x128x32xbf16, #tpu.memory_space<vmem>>, vector<1x128x32xbf16>
      %274 = vector.shape_cast %273 : vector<1x128x32xbf16> to vector<128x32xbf16>
      %cst_160 = arith.constant dense<0.000000e+00> : vector<256x32xf32>
      %275 = tpu.matmul %230, %274, %cst_160 {dimension_numbers = #tpu.dot_dimension_numbers<[1], [0], [0], [1], [0, 0, 1, 1], [], []>} : vector<256x128xbf16>, vector<128x32xbf16>, vector<256x32xf32> -> vector<256x32xf32>
      %276 = arith.truncf %275 : vector<256x32xf32> to vector<256x32xbf16>
      %c3_161 = arith.constant 3 : index
      %c0_162 = arith.constant 0 : index
      %c0_163 = arith.constant 0 : index
      %277 = vector.load %arg17[%c3_161, %c0_162, %c0_163] : memref<4x256x32xbf16, #tpu.memory_space<vmem>>, vector<1x256x32xbf16>
      %278 = vector.shape_cast %277 : vector<1x256x32xbf16> to vector<256x32xbf16>
      %279 = vector.shape_cast %276 : vector<256x32xbf16> to vector<1x256x32xbf16>
      tpu.vector_store %arg17[%c3_161, %c0_162, %c0_163], %279 {strides = array<i32>} : memref<4x256x32xbf16, #tpu.memory_space<vmem>>, vector<1x256x32xbf16>,
      %c3_164 = arith.constant 3 : index
      %c0_165 = arith.constant 0 : index
      %c0_166 = arith.constant 0 : index
      %280 = vector.load %arg7[%c3_164, %c0_165, %c0_166] : memref<4x128x32xbf16, #tpu.memory_space<vmem>>, vector<1x128x32xbf16>
      %281 = vector.shape_cast %280 : vector<1x128x32xbf16> to vector<128x32xbf16>
      %cst_167 = arith.constant dense<0.000000e+00> : vector<256x32xf32>
      %282 = tpu.matmul %230, %281, %cst_167 {dimension_numbers = #tpu.dot_dimension_numbers<[1], [0], [0], [1], [0, 0, 1, 1], [], []>} : vector<256x128xbf16>, vector<128x32xbf16>, vector<256x32xf32> -> vector<256x32xf32>
      %283 = arith.truncf %282 : vector<256x32xf32> to vector<256x32xbf16>
      %c3_168 = arith.constant 3 : index
      %c0_169 = arith.constant 0 : index
      %c0_170 = arith.constant 0 : index
      %284 = vector.load %arg18[%c3_168, %c0_169, %c0_170] : memref<4x256x32xbf16, #tpu.memory_space<vmem>>, vector<1x256x32xbf16>
      %285 = vector.shape_cast %284 : vector<1x256x32xbf16> to vector<256x32xbf16>
      %286 = vector.shape_cast %283 : vector<256x32xbf16> to vector<1x256x32xbf16>
      tpu.vector_store %arg18[%c3_168, %c0_169, %c0_170], %286 {strides = array<i32>} : memref<4x256x32xbf16, #tpu.memory_space<vmem>>, vector<1x256x32xbf16>,
    } else {
    }
    %c128_i32 = arith.constant 128 : i32
    %11 = arith.muli %arg1, %c128_i32 : i32
    %12 = tpu.assume_multiple %11, 128 : i32
    %c0_8 = arith.constant 0 : index
    %13 = arith.index_cast %12 : i32 to index
    %c0_9 = arith.constant 0 : index
    %14 = vector.load %arg2[%c0_8, %13, %c0_9] : memref<1x256x128xf32, #tpu.memory_space<vmem>>, vector<1x128x128xf32>
    %15 = vector.shape_cast %14 : vector<1x128x128xf32> to vector<128x128xf32>
    %cst = arith.constant dense<0.000000e+00> : vector<128xf32>
    %16 = vector.multi_reduction <add>, %15, %cst [1] : vector<128x128xf32> to vector<128xf32>
    %17 = vector.shape_cast %16 : vector<128xf32> to vector<128x1xf32>
    %cst_10 = arith.constant 1.280000e+02 : f32
    %18 = vector.broadcast %cst_10 : f32 to vector<128x1xf32>
    %19 = arith.divf %17, %18 : vector<128x1xf32>
    %20 = vector.broadcast %19 : vector<128x1xf32> to vector<128x128xf32>
    %21 = arith.subf %15, %20 : vector<128x128xf32>
    %22 = arith.mulf %21, %21 : vector<128x128xf32>
    %cst_11 = arith.constant dense<0.000000e+00> : vector<128xf32>
    %23 = vector.multi_reduction <add>, %22, %cst_11 [1] : vector<128x128xf32> to vector<128xf32>
    %24 = vector.shape_cast %23 : vector<128xf32> to vector<128x1xf32>
    %cst_12 = arith.constant 1.280000e+02 : f32
    %25 = vector.broadcast %cst_12 : f32 to vector<128x1xf32>
    %26 = arith.divf %24, %25 : vector<128x1xf32>
    %27 = vector.broadcast %19 : vector<128x1xf32> to vector<128x128xf32>
    %28 = arith.subf %15, %27 : vector<128x128xf32>
    %cst_13 = arith.constant 9.99999974E-6 : f32
    %29 = vector.broadcast %cst_13 : f32 to vector<128x1xf32>
    %30 = arith.addf %26, %29 : vector<128x1xf32>
    %31 = math.rsqrt %30 : vector<128x1xf32>
    %32 = vector.broadcast %31 : vector<128x1xf32> to vector<128x128xf32>
    %33 = arith.mulf %28, %32 : vector<128x128xf32>
    %34 = vector.shape_cast %1 : vector<128xf32> to vector<1x128xf32>
    %35 = vector.broadcast %34 : vector<1x128xf32> to vector<128x128xf32>
    %36 = arith.mulf %33, %35 : vector<128x128xf32>
    %37 = vector.shape_cast %3 : vector<128xf32> to vector<1x128xf32>
    %38 = vector.broadcast %37 : vector<1x128xf32> to vector<128x128xf32>
    %39 = arith.addf %36, %38 : vector<128x128xf32>
    %40 = arith.truncf %39 : vector<128x128xf32> to vector<128x128xbf16>
    %cst_14 = arith.constant 0.000000e+00 : f32
    %41 = vector.broadcast %cst_14 : f32 to vector<128x128xf32>
    %c0_15 = arith.constant 0 : index
    %c0_16 = arith.constant 0 : index
    %c0_17 = arith.constant 0 : index
    %42 = vector.load %arg5[%c0_15, %c0_16, %c0_17] : memref<4x128x32xbf16, #tpu.memory_space<vmem>>, vector<1x128x32xbf16>
    %43 = vector.shape_cast %42 : vector<1x128x32xbf16> to vector<128x32xbf16>
    %cst_18 = arith.constant dense<0.000000e+00> : vector<128x32xf32>
    %44 = tpu.matmul %40, %43, %cst_18 {dimension_numbers = #tpu.dot_dimension_numbers<[1], [0], [0], [1], [0, 0, 1, 1], [], []>} : vector<128x128xbf16>, vector<128x32xbf16>, vector<128x32xf32> -> vector<128x32xf32>
    %45 = arith.truncf %44 : vector<128x32xf32> to vector<128x32xbf16>
    %c0_19 = arith.constant 0 : index
    %c0_20 = arith.constant 0 : index
    %c0_21 = arith.constant 0 : index
    %46 = vector.load %arg17[%c0_19, %c0_20, %c0_21] : memref<4x256x32xbf16, #tpu.memory_space<vmem>>, vector<1x256x32xbf16>
    %47 = vector.shape_cast %46 : vector<1x256x32xbf16> to vector<256x32xbf16>
    %cst_22 = arith.constant dense<0.000000e+00> : vector<128x256xf32>
    %48 = tpu.matmul %45, %47, %cst_22 {dimension_numbers = #tpu.dot_dimension_numbers<[1], [1], [0], [0], [0, 0, 1, 0], [], []>} : vector<128x32xbf16>, vector<256x32xbf16>, vector<128x256xf32> -> vector<128x256xf32>
    %cst_23 = arith.constant dense<0xFF800000> : vector<128xf32>
    %49 = vector.multi_reduction <maximumf>, %48, %cst_23 [1] : vector<128x256xf32> to vector<128xf32>
    %50 = vector.shape_cast %49 : vector<128xf32> to vector<128x1xf32>
    %51 = vector.broadcast %50 : vector<128x1xf32> to vector<128x256xf32>
    %52 = arith.subf %48, %51 : vector<128x256xf32>
    %53 = math.exp %52 : vector<128x256xf32>
    %cst_24 = arith.constant dense<0.000000e+00> : vector<128xf32>
    %54 = vector.multi_reduction <add>, %53, %cst_24 [1] : vector<128x256xf32> to vector<128xf32>
    %55 = vector.shape_cast %54 : vector<128xf32> to vector<128x1xf32>
    %56 = tpu.reciprocal %55 {approx = true} : vector<128x1xf32> -> vector<128x1xf32>
    %57 = vector.broadcast %56 : vector<128x1xf32> to vector<128x256xf32>
    %58 = arith.mulf %53, %57 : vector<128x256xf32>
    %59 = arith.truncf %58 : vector<128x256xf32> to vector<128x256xbf16>
    %c0_25 = arith.constant 0 : index
    %c0_26 = arith.constant 0 : index
    %c0_27 = arith.constant 0 : index
    %60 = vector.load %arg18[%c0_25, %c0_26, %c0_27] : memref<4x256x32xbf16, #tpu.memory_space<vmem>>, vector<1x256x32xbf16>
    %61 = vector.shape_cast %60 : vector<1x256x32xbf16> to vector<256x32xbf16>
    %cst_28 = arith.constant dense<0.000000e+00> : vector<128x32xf32>
    %62 = tpu.matmul %59, %61, %cst_28 {dimension_numbers = #tpu.dot_dimension_numbers<[1], [0], [0], [1], [0, 0, 1, 1], [], []>} : vector<128x256xbf16>, vector<256x32xbf16>, vector<128x32xf32> -> vector<128x32xf32>
    %63 = arith.truncf %62 : vector<128x32xf32> to vector<128x32xbf16>
    %c0_29 = arith.constant 0 : index
    %c0_30 = arith.constant 0 : index
    %c0_31 = arith.constant 0 : index
    %64 = vector.load %arg8[%c0_29, %c0_30, %c0_31] : memref<4x32x128xbf16, #tpu.memory_space<vmem>>, vector<1x32x128xbf16>
    %65 = vector.shape_cast %64 : vector<1x32x128xbf16> to vector<32x128xbf16>
    %cst_32 = arith.constant dense<0.000000e+00> : vector<128x128xf32>
    %66 = tpu.matmul %63, %65, %cst_32 {dimension_numbers = #tpu.dot_dimension_numbers<[1], [0], [0], [1], [0, 0, 1, 1], [], []>} : vector<128x32xbf16>, vector<32x128xbf16>, vector<128x128xf32> -> vector<128x128xf32>
    %67 = arith.addf %41, %66 : vector<128x128xf32>
    %c1 = arith.constant 1 : index
    %c0_33 = arith.constant 0 : index
    %c0_34 = arith.constant 0 : index
    %68 = vector.load %arg5[%c1, %c0_33, %c0_34] : memref<4x128x32xbf16, #tpu.memory_space<vmem>>, vector<1x128x32xbf16>
    %69 = vector.shape_cast %68 : vector<1x128x32xbf16> to vector<128x32xbf16>
    %cst_35 = arith.constant dense<0.000000e+00> : vector<128x32xf32>
    %70 = tpu.matmul %40, %69, %cst_35 {dimension_numbers = #tpu.dot_dimension_numbers<[1], [0], [0], [1], [0, 0, 1, 1], [], []>} : vector<128x128xbf16>, vector<128x32xbf16>, vector<128x32xf32> -> vector<128x32xf32>
    %71 = arith.truncf %70 : vector<128x32xf32> to vector<128x32xbf16>
    %c1_36 = arith.constant 1 : index
    %c0_37 = arith.constant 0 : index
    %c0_38 = arith.constant 0 : index
    %72 = vector.load %arg17[%c1_36, %c0_37, %c0_38] : memref<4x256x32xbf16, #tpu.memory_space<vmem>>, vector<1x256x32xbf16>
    %73 = vector.shape_cast %72 : vector<1x256x32xbf16> to vector<256x32xbf16>
    %cst_39 = arith.constant dense<0.000000e+00> : vector<128x256xf32>
    %74 = tpu.matmul %71, %73, %cst_39 {dimension_numbers = #tpu.dot_dimension_numbers<[1], [1], [0], [0], [0, 0, 1, 0], [], []>} : vector<128x32xbf16>, vector<256x32xbf16>, vector<128x256xf32> -> vector<128x256xf32>
    %cst_40 = arith.constant dense<0xFF800000> : vector<128xf32>
    %75 = vector.multi_reduction <maximumf>, %74, %cst_40 [1] : vector<128x256xf32> to vector<128xf32>
    %76 = vector.shape_cast %75 : vector<128xf32> to vector<128x1xf32>
    %77 = vector.broadcast %76 : vector<128x1xf32> to vector<128x256xf32>
    %78 = arith.subf %74, %77 : vector<128x256xf32>
    %79 = math.exp %78 : vector<128x256xf32>
    %cst_41 = arith.constant dense<0.000000e+00> : vector<128xf32>
    %80 = vector.multi_reduction <add>, %79, %cst_41 [1] : vector<128x256xf32> to vector<128xf32>
    %81 = vector.shape_cast %80 : vector<128xf32> to vector<128x1xf32>
    %82 = tpu.reciprocal %81 {approx = true} : vector<128x1xf32> -> vector<128x1xf32>
    %83 = vector.broadcast %82 : vector<128x1xf32> to vector<128x256xf32>
    %84 = arith.mulf %79, %83 : vector<128x256xf32>
    %85 = arith.truncf %84 : vector<128x256xf32> to vector<128x256xbf16>
    %c1_42 = arith.constant 1 : index
    %c0_43 = arith.constant 0 : index
    %c0_44 = arith.constant 0 : index
    %86 = vector.load %arg18[%c1_42, %c0_43, %c0_44] : memref<4x256x32xbf16, #tpu.memory_space<vmem>>, vector<1x256x32xbf16>
    %87 = vector.shape_cast %86 : vector<1x256x32xbf16> to vector<256x32xbf16>
    %cst_45 = arith.constant dense<0.000000e+00> : vector<128x32xf32>
    %88 = tpu.matmul %85, %87, %cst_45 {dimension_numbers = #tpu.dot_dimension_numbers<[1], [0], [0], [1], [0, 0, 1, 1], [], []>} : vector<128x256xbf16>, vector<256x32xbf16>, vector<128x32xf32> -> vector<128x32xf32>
    %89 = arith.truncf %88 : vector<128x32xf32> to vector<128x32xbf16>
    %c1_46 = arith.constant 1 : index
    %c0_47 = arith.constant 0 : index
    %c0_48 = arith.constant 0 : index
    %90 = vector.load %arg8[%c1_46, %c0_47, %c0_48] : memref<4x32x128xbf16, #tpu.memory_space<vmem>>, vector<1x32x128xbf16>
    %91 = vector.shape_cast %90 : vector<1x32x128xbf16> to vector<32x128xbf16>
    %cst_49 = arith.constant dense<0.000000e+00> : vector<128x128xf32>
    %92 = tpu.matmul %89, %91, %cst_49 {dimension_numbers = #tpu.dot_dimension_numbers<[1], [0], [0], [1], [0, 0, 1, 1], [], []>} : vector<128x32xbf16>, vector<32x128xbf16>, vector<128x128xf32> -> vector<128x128xf32>
    %93 = arith.addf %67, %92 : vector<128x128xf32>
    %c2 = arith.constant 2 : index
    %c0_50 = arith.constant 0 : index
    %c0_51 = arith.constant 0 : index
    %94 = vector.load %arg5[%c2, %c0_50, %c0_51] : memref<4x128x32xbf16, #tpu.memory_space<vmem>>, vector<1x128x32xbf16>
    %95 = vector.shape_cast %94 : vector<1x128x32xbf16> to vector<128x32xbf16>
    %cst_52 = arith.constant dense<0.000000e+00> : vector<128x32xf32>
    %96 = tpu.matmul %40, %95, %cst_52 {dimension_numbers = #tpu.dot_dimension_numbers<[1], [0], [0], [1], [0, 0, 1, 1], [], []>} : vector<128x128xbf16>, vector<128x32xbf16>, vector<128x32xf32> -> vector<128x32xf32>
    %97 = arith.truncf %96 : vector<128x32xf32> to vector<128x32xbf16>
    %c2_53 = arith.constant 2 : index
    %c0_54 = arith.constant 0 : index
    %c0_55 = arith.constant 0 : index
    %98 = vector.load %arg17[%c2_53, %c0_54, %c0_55] : memref<4x256x32xbf16, #tpu.memory_space<vmem>>, vector<1x256x32xbf16>
    %99 = vector.shape_cast %98 : vector<1x256x32xbf16> to vector<256x32xbf16>
    %cst_56 = arith.constant dense<0.000000e+00> : vector<128x256xf32>
    %100 = tpu.matmul %97, %99, %cst_56 {dimension_numbers = #tpu.dot_dimension_numbers<[1], [1], [0], [0], [0, 0, 1, 0], [], []>} : vector<128x32xbf16>, vector<256x32xbf16>, vector<128x256xf32> -> vector<128x256xf32>
    %cst_57 = arith.constant dense<0xFF800000> : vector<128xf32>
    %101 = vector.multi_reduction <maximumf>, %100, %cst_57 [1] : vector<128x256xf32> to vector<128xf32>
    %102 = vector.shape_cast %101 : vector<128xf32> to vector<128x1xf32>
    %103 = vector.broadcast %102 : vector<128x1xf32> to vector<128x256xf32>
    %104 = arith.subf %100, %103 : vector<128x256xf32>
    %105 = math.exp %104 : vector<128x256xf32>
    %cst_58 = arith.constant dense<0.000000e+00> : vector<128xf32>
    %106 = vector.multi_reduction <add>, %105, %cst_58 [1] : vector<128x256xf32> to vector<128xf32>
    %107 = vector.shape_cast %106 : vector<128xf32> to vector<128x1xf32>
    %108 = tpu.reciprocal %107 {approx = true} : vector<128x1xf32> -> vector<128x1xf32>
    %109 = vector.broadcast %108 : vector<128x1xf32> to vector<128x256xf32>
    %110 = arith.mulf %105, %109 : vector<128x256xf32>
    %111 = arith.truncf %110 : vector<128x256xf32> to vector<128x256xbf16>
    %c2_59 = arith.constant 2 : index
    %c0_60 = arith.constant 0 : index
    %c0_61 = arith.constant 0 : index
    %112 = vector.load %arg18[%c2_59, %c0_60, %c0_61] : memref<4x256x32xbf16, #tpu.memory_space<vmem>>, vector<1x256x32xbf16>
    %113 = vector.shape_cast %112 : vector<1x256x32xbf16> to vector<256x32xbf16>
    %cst_62 = arith.constant dense<0.000000e+00> : vector<128x32xf32>
    %114 = tpu.matmul %111, %113, %cst_62 {dimension_numbers = #tpu.dot_dimension_numbers<[1], [0], [0], [1], [0, 0, 1, 1], [], []>} : vector<128x256xbf16>, vector<256x32xbf16>, vector<128x32xf32> -> vector<128x32xf32>
    %115 = arith.truncf %114 : vector<128x32xf32> to vector<128x32xbf16>
    %c2_63 = arith.constant 2 : index
    %c0_64 = arith.constant 0 : index
    %c0_65 = arith.constant 0 : index
    %116 = vector.load %arg8[%c2_63, %c0_64, %c0_65] : memref<4x32x128xbf16, #tpu.memory_space<vmem>>, vector<1x32x128xbf16>
    %117 = vector.shape_cast %116 : vector<1x32x128xbf16> to vector<32x128xbf16>
    %cst_66 = arith.constant dense<0.000000e+00> : vector<128x128xf32>
    %118 = tpu.matmul %115, %117, %cst_66 {dimension_numbers = #tpu.dot_dimension_numbers<[1], [0], [0], [1], [0, 0, 1, 1], [], []>} : vector<128x32xbf16>, vector<32x128xbf16>, vector<128x128xf32> -> vector<128x128xf32>
    %119 = arith.addf %93, %118 : vector<128x128xf32>
    %c3 = arith.constant 3 : index
    %c0_67 = arith.constant 0 : index
    %c0_68 = arith.constant 0 : index
    %120 = vector.load %arg5[%c3, %c0_67, %c0_68] : memref<4x128x32xbf16, #tpu.memory_space<vmem>>, vector<1x128x32xbf16>
    %121 = vector.shape_cast %120 : vector<1x128x32xbf16> to vector<128x32xbf16>
    %cst_69 = arith.constant dense<0.000000e+00> : vector<128x32xf32>
    %122 = tpu.matmul %40, %121, %cst_69 {dimension_numbers = #tpu.dot_dimension_numbers<[1], [0], [0], [1], [0, 0, 1, 1], [], []>} : vector<128x128xbf16>, vector<128x32xbf16>, vector<128x32xf32> -> vector<128x32xf32>
    %123 = arith.truncf %122 : vector<128x32xf32> to vector<128x32xbf16>
    %c3_70 = arith.constant 3 : index
    %c0_71 = arith.constant 0 : index
    %c0_72 = arith.constant 0 : index
    %124 = vector.load %arg17[%c3_70, %c0_71, %c0_72] : memref<4x256x32xbf16, #tpu.memory_space<vmem>>, vector<1x256x32xbf16>
    %125 = vector.shape_cast %124 : vector<1x256x32xbf16> to vector<256x32xbf16>
    %cst_73 = arith.constant dense<0.000000e+00> : vector<128x256xf32>
    %126 = tpu.matmul %123, %125, %cst_73 {dimension_numbers = #tpu.dot_dimension_numbers<[1], [1], [0], [0], [0, 0, 1, 0], [], []>} : vector<128x32xbf16>, vector<256x32xbf16>, vector<128x256xf32> -> vector<128x256xf32>
    %cst_74 = arith.constant dense<0xFF800000> : vector<128xf32>
    %127 = vector.multi_reduction <maximumf>, %126, %cst_74 [1] : vector<128x256xf32> to vector<128xf32>
    %128 = vector.shape_cast %127 : vector<128xf32> to vector<128x1xf32>
    %129 = vector.broadcast %128 : vector<128x1xf32> to vector<128x256xf32>
    %130 = arith.subf %126, %129 : vector<128x256xf32>
    %131 = math.exp %130 : vector<128x256xf32>
    %cst_75 = arith.constant dense<0.000000e+00> : vector<128xf32>
    %132 = vector.multi_reduction <add>, %131, %cst_75 [1] : vector<128x256xf32> to vector<128xf32>
    %133 = vector.shape_cast %132 : vector<128xf32> to vector<128x1xf32>
    %134 = tpu.reciprocal %133 {approx = true} : vector<128x1xf32> -> vector<128x1xf32>
    %135 = vector.broadcast %134 : vector<128x1xf32> to vector<128x256xf32>
    %136 = arith.mulf %131, %135 : vector<128x256xf32>
    %137 = arith.truncf %136 : vector<128x256xf32> to vector<128x256xbf16>
    %c3_76 = arith.constant 3 : index
    %c0_77 = arith.constant 0 : index
    %c0_78 = arith.constant 0 : index
    %138 = vector.load %arg18[%c3_76, %c0_77, %c0_78] : memref<4x256x32xbf16, #tpu.memory_space<vmem>>, vector<1x256x32xbf16>
    %139 = vector.shape_cast %138 : vector<1x256x32xbf16> to vector<256x32xbf16>
    %cst_79 = arith.constant dense<0.000000e+00> : vector<128x32xf32>
    %140 = tpu.matmul %137, %139, %cst_79 {dimension_numbers = #tpu.dot_dimension_numbers<[1], [0], [0], [1], [0, 0, 1, 1], [], []>} : vector<128x256xbf16>, vector<256x32xbf16>, vector<128x32xf32> -> vector<128x32xf32>
    %141 = arith.truncf %140 : vector<128x32xf32> to vector<128x32xbf16>
    %c3_80 = arith.constant 3 : index
    %c0_81 = arith.constant 0 : index
    %c0_82 = arith.constant 0 : index
    %142 = vector.load %arg8[%c3_80, %c0_81, %c0_82] : memref<4x32x128xbf16, #tpu.memory_space<vmem>>, vector<1x32x128xbf16>
    %143 = vector.shape_cast %142 : vector<1x32x128xbf16> to vector<32x128xbf16>
    %cst_83 = arith.constant dense<0.000000e+00> : vector<128x128xf32>
    %144 = tpu.matmul %141, %143, %cst_83 {dimension_numbers = #tpu.dot_dimension_numbers<[1], [0], [0], [1], [0, 0, 1, 1], [], []>} : vector<128x32xbf16>, vector<32x128xbf16>, vector<128x128xf32> -> vector<128x128xf32>
    %145 = arith.addf %119, %144 : vector<128x128xf32>
    %146 = arith.addf %15, %145 : vector<128x128xf32>
    %c0_84 = arith.constant 0 : index
    %c0_85 = arith.constant 0 : index
    %147 = vector.load %arg9[%c0_84, %c0_85] : memref<1x128xf32, #tpu.memory_space<vmem>>, vector<1x128xf32>
    %148 = vector.shape_cast %147 : vector<1x128xf32> to vector<128xf32>
    %149 = vector.shape_cast %148 : vector<128xf32> to vector<1x128xf32>
    %150 = vector.broadcast %149 : vector<1x128xf32> to vector<128x128xf32>
    %151 = arith.addf %146, %150 : vector<128x128xf32>
    %cst_86 = arith.constant dense<0.000000e+00> : vector<128xf32>
    %152 = vector.multi_reduction <add>, %151, %cst_86 [1] : vector<128x128xf32> to vector<128xf32>
    %153 = vector.shape_cast %152 : vector<128xf32> to vector<128x1xf32>
    %cst_87 = arith.constant 1.280000e+02 : f32
    %154 = vector.broadcast %cst_87 : f32 to vector<128x1xf32>
    %155 = arith.divf %153, %154 : vector<128x1xf32>
    %156 = vector.broadcast %155 : vector<128x1xf32> to vector<128x128xf32>
    %157 = arith.subf %151, %156 : vector<128x128xf32>
    %158 = arith.mulf %157, %157 : vector<128x128xf32>
    %cst_88 = arith.constant dense<0.000000e+00> : vector<128xf32>
    %159 = vector.multi_reduction <add>, %158, %cst_88 [1] : vector<128x128xf32> to vector<128xf32>
    %160 = vector.shape_cast %159 : vector<128xf32> to vector<128x1xf32>
    %cst_89 = arith.constant 1.280000e+02 : f32
    %161 = vector.broadcast %cst_89 : f32 to vector<128x1xf32>
    %162 = arith.divf %160, %161 : vector<128x1xf32>
    %163 = vector.broadcast %155 : vector<128x1xf32> to vector<128x128xf32>
    %164 = arith.subf %151, %163 : vector<128x128xf32>
    %cst_90 = arith.constant 9.99999974E-6 : f32
    %165 = vector.broadcast %cst_90 : f32 to vector<128x1xf32>
    %166 = arith.addf %162, %165 : vector<128x1xf32>
    %167 = math.rsqrt %166 : vector<128x1xf32>
    %168 = vector.broadcast %167 : vector<128x1xf32> to vector<128x128xf32>
    %169 = arith.mulf %164, %168 : vector<128x128xf32>
    %170 = vector.shape_cast %5 : vector<128xf32> to vector<1x128xf32>
    %171 = vector.broadcast %170 : vector<1x128xf32> to vector<128x128xf32>
    %172 = arith.mulf %169, %171 : vector<128x128xf32>
    %173 = vector.shape_cast %7 : vector<128xf32> to vector<1x128xf32>
    %174 = vector.broadcast %173 : vector<1x128xf32> to vector<128x128xf32>
    %175 = arith.addf %172, %174 : vector<128x128xf32>
    %176 = arith.truncf %175 : vector<128x128xf32> to vector<128x128xbf16>
    %c0_91 = arith.constant 0 : index
    %c0_92 = arith.constant 0 : index
    %177 = vector.load %arg12[%c0_91, %c0_92] : memref<128x512xbf16, #tpu.memory_space<vmem>>, vector<128x512xbf16>
    %cst_93 = arith.constant dense<0.000000e+00> : vector<128x512xf32>
    %178 = tpu.matmul %176, %177, %cst_93 {dimension_numbers = #tpu.dot_dimension_numbers<[1], [0], [0], [1], [0, 0, 1, 1], [], []>} : vector<128x128xbf16>, vector<128x512xbf16>, vector<128x512xf32> -> vector<128x512xf32>
    %c0_94 = arith.constant 0 : index
    %c0_95 = arith.constant 0 : index
    %179 = vector.load %arg13[%c0_94, %c0_95] : memref<1x512xf32, #tpu.memory_space<vmem>>, vector<1x512xf32>
    %180 = vector.shape_cast %179 : vector<1x512xf32> to vector<512xf32>
    %181 = vector.shape_cast %180 : vector<512xf32> to vector<1x512xf32>
    %182 = vector.broadcast %181 : vector<1x512xf32> to vector<128x512xf32>
    %183 = arith.addf %178, %182 : vector<128x512xf32>
    %cst_96 = arith.constant 5.000000e-01 : f32
    %184 = vector.broadcast %cst_96 : f32 to vector<128x512xf32>
    %185 = arith.mulf %184, %183 : vector<128x512xf32>
    %cst_97 = arith.constant 0.707106769 : f32
    %186 = vector.broadcast %cst_97 : f32 to vector<128x512xf32>
    %187 = arith.mulf %183, %186 : vector<128x512xf32>
    %188 = math.erf %187 : vector<128x512xf32>
    %cst_98 = arith.constant 1.000000e+00 : f32
    %189 = vector.broadcast %cst_98 : f32 to vector<128x512xf32>
    %190 = arith.addf %189, %188 : vector<128x512xf32>
    %191 = arith.mulf %185, %190 : vector<128x512xf32>
    %192 = arith.truncf %191 : vector<128x512xf32> to vector<128x512xbf16>
    %c0_99 = arith.constant 0 : index
    %c0_100 = arith.constant 0 : index
    %193 = vector.load %arg14[%c0_99, %c0_100] : memref<512x128xbf16, #tpu.memory_space<vmem>>, vector<512x128xbf16>
    %cst_101 = arith.constant dense<0.000000e+00> : vector<128x128xf32>
    %194 = tpu.matmul %192, %193, %cst_101 {dimension_numbers = #tpu.dot_dimension_numbers<[1], [0], [0], [1], [0, 0, 1, 1], [], []>} : vector<128x512xbf16>, vector<512x128xbf16>, vector<128x128xf32> -> vector<128x128xf32>
    %c0_102 = arith.constant 0 : index
    %c0_103 = arith.constant 0 : index
    %195 = vector.load %arg15[%c0_102, %c0_103] : memref<1x128xf32, #tpu.memory_space<vmem>>, vector<1x128xf32>
    %196 = vector.shape_cast %195 : vector<1x128xf32> to vector<128xf32>
    %197 = vector.shape_cast %196 : vector<128xf32> to vector<1x128xf32>
    %198 = vector.broadcast %197 : vector<1x128xf32> to vector<128x128xf32>
    %199 = arith.addf %194, %198 : vector<128x128xf32>
    %200 = arith.addf %151, %199 : vector<128x128xf32>
    %c0_104 = arith.constant 0 : index
    %c0_105 = arith.constant 0 : index
    %c0_106 = arith.constant 0 : index
    %201 = vector.load %arg16[%c0_104, %c0_105, %c0_106] : memref<1x128x128xf32, #tpu.memory_space<vmem>>, vector<1x128x128xf32>
    %202 = vector.shape_cast %201 : vector<1x128x128xf32> to vector<128x128xf32>
    %203 = vector.shape_cast %200 : vector<128x128xf32> to vector<1x128x128xf32>
    tpu.vector_store %arg16[%c0_104, %c0_105, %c0_106], %203 {strides = array<i32>} : memref<1x128x128xf32, #tpu.memory_space<vmem>>, vector<1x128x128xf32>,
    return
  }
  func.func @transform_0(%arg0: i32, %arg1: i32) -> (i32, i32, i32) {
    %c0_i32 = arith.constant 0 : i32
    %c0_i32_0 = arith.constant 0 : i32
    %c0_i32_1 = arith.constant 0 : i32
    return %arg0, %c0_i32, %c0_i32_0 : i32, i32, i32
  }
  func.func @transform_1(%arg0: i32, %arg1: i32) -> (i32, i32) {
    %c0_i32 = arith.constant 0 : i32
    %c0_i32_0 = arith.constant 0 : i32
    %c0_i32_1 = arith.constant 0 : i32
    return %c0_i32, %c0_i32_0 : i32, i32
  }
  func.func @transform_2(%arg0: i32, %arg1: i32) -> (i32, i32) {
    %c0_i32 = arith.constant 0 : i32
    %c0_i32_0 = arith.constant 0 : i32
    %c0_i32_1 = arith.constant 0 : i32
    return %c0_i32, %c0_i32_0 : i32, i32
  }
  func.func @transform_3(%arg0: i32, %arg1: i32) -> (i32, i32, i32) {
    %c0_i32 = arith.constant 0 : i32
    %c0_i32_0 = arith.constant 0 : i32
    %c0_i32_1 = arith.constant 0 : i32
    %c0_i32_2 = arith.constant 0 : i32
    return %c0_i32, %c0_i32_0, %c0_i32_1 : i32, i32, i32
  }
  func.func @transform_4(%arg0: i32, %arg1: i32) -> (i32, i32, i32) {
    %c0_i32 = arith.constant 0 : i32
    %c0_i32_0 = arith.constant 0 : i32
    %c0_i32_1 = arith.constant 0 : i32
    %c0_i32_2 = arith.constant 0 : i32
    return %c0_i32, %c0_i32_0, %c0_i32_1 : i32, i32, i32
  }
  func.func @transform_5(%arg0: i32, %arg1: i32) -> (i32, i32, i32) {
    %c0_i32 = arith.constant 0 : i32
    %c0_i32_0 = arith.constant 0 : i32
    %c0_i32_1 = arith.constant 0 : i32
    %c0_i32_2 = arith.constant 0 : i32
    return %c0_i32, %c0_i32_0, %c0_i32_1 : i32, i32, i32
  }
  func.func @transform_6(%arg0: i32, %arg1: i32) -> (i32, i32, i32) {
    %c0_i32 = arith.constant 0 : i32
    %c0_i32_0 = arith.constant 0 : i32
    %c0_i32_1 = arith.constant 0 : i32
    %c0_i32_2 = arith.constant 0 : i32
    return %c0_i32, %c0_i32_0, %c0_i32_1 : i32, i32, i32
  }
  func.func @transform_7(%arg0: i32, %arg1: i32) -> (i32, i32) {
    %c0_i32 = arith.constant 0 : i32
    %c0_i32_0 = arith.constant 0 : i32
    %c0_i32_1 = arith.constant 0 : i32
    return %c0_i32, %c0_i32_0 : i32, i32
  }
  func.func @transform_8(%arg0: i32, %arg1: i32) -> (i32, i32) {
    %c0_i32 = arith.constant 0 : i32
    %c0_i32_0 = arith.constant 0 : i32
    %c0_i32_1 = arith.constant 0 : i32
    return %c0_i32, %c0_i32_0 : i32, i32
  }
  func.func @transform_9(%arg0: i32, %arg1: i32) -> (i32, i32) {
    %c0_i32 = arith.constant 0 : i32
    %c0_i32_0 = arith.constant 0 : i32
    %c0_i32_1 = arith.constant 0 : i32
    return %c0_i32, %c0_i32_0 : i32, i32
  }
  func.func @transform_10(%arg0: i32, %arg1: i32) -> (i32, i32) {
    %c0_i32 = arith.constant 0 : i32
    %c0_i32_0 = arith.constant 0 : i32
    %c0_i32_1 = arith.constant 0 : i32
    return %c0_i32, %c0_i32_0 : i32, i32
  }
  func.func @transform_11(%arg0: i32, %arg1: i32) -> (i32, i32) {
    %c0_i32 = arith.constant 0 : i32
    %c0_i32_0 = arith.constant 0 : i32
    %c0_i32_1 = arith.constant 0 : i32
    return %c0_i32, %c0_i32_0 : i32, i32
  }
  func.func @transform_12(%arg0: i32, %arg1: i32) -> (i32, i32) {
    %c0_i32 = arith.constant 0 : i32
    %c0_i32_0 = arith.constant 0 : i32
    %c0_i32_1 = arith.constant 0 : i32
    return %c0_i32, %c0_i32_0 : i32, i32
  }
  func.func @transform_13(%arg0: i32, %arg1: i32) -> (i32, i32) {
    %c0_i32 = arith.constant 0 : i32
    %c0_i32_0 = arith.constant 0 : i32
    %c0_i32_1 = arith.constant 0 : i32
    return %c0_i32, %c0_i32_0 : i32, i32
  }
  func.func @transform_14(%arg0: i32, %arg1: i32) -> (i32, i32, i32) {
    %c0_i32 = arith.constant 0 : i32
    %c0_i32_0 = arith.constant 0 : i32
    return %arg0, %arg1, %c0_i32 : i32, i32, i32
  }
}

</mosaic_0001>

<llo_original>
// kernel: tpu_custom_call.1
$region0: #{tpu_custom_call.1}
  #allocation0 [shape = 'u32[]', space=smem, size = 0x4, offset = 0x4, fixed_abs, tag = 'smem constant byte address 0x4 - core index']
  #allocation1 [shape = 'u32[144,128]{1,0:T(1,128)}', space=vmem, size = 0x12000, scoped, tag = 'internal scratch']
  #allocation2 [shape = 'bf16[4,256,32]{2,1,0:T(16,128)(2,1)}', space=vmem, size = 0x40000, scoped, tag = 'scratch operand']
  #allocation3 [shape = 'bf16[4,256,32]{2,1,0:T(16,128)(2,1)}', space=vmem, size = 0x40000, scoped, tag = 'scratch operand']
  %s0 = inlined_call_operand.vmem [shape: f32[2,256,128], index: 0, kind: input, shape index: {}]
  %s1 = inlined_call_operand.hbm [shape: f32[1,128], index: 1, kind: input, shape index: {}]
  %s2 = inlined_call_operand.hbm [shape: f32[1,128], index: 2, kind: input, shape index: {}]
  %s3 = inlined_call_operand.vmem [shape: bf16[4,128,32], index: 3, kind: input, shape index: {}]
  %s4 = inlined_call_operand.vmem [shape: bf16[4,128,32], index: 4, kind: input, shape index: {}]
  %s5 = inlined_call_operand.vmem [shape: bf16[4,128,32], index: 5, kind: input, shape index: {}]
  %s6 = inlined_call_operand.vmem [shape: bf16[4,32,128], index: 6, kind: input, shape index: {}]
  %s7 = inlined_call_operand.vmem [shape: f32[1,128], index: 7, kind: input, shape index: {}]
  %s8 = inlined_call_operand.vmem [shape: f32[1,128], index: 8, kind: input, shape index: {}]
  %s9 = inlined_call_operand.vmem [shape: f32[1,128], index: 9, kind: input, shape index: {}]
  %s10 = inlined_call_operand.vmem [shape: bf16[128,512], index: 10, kind: input, shape index: {}]
  %s11 = inlined_call_operand.vmem [shape: f32[1,512], index: 11, kind: input, shape index: {}]
  %s12 = inlined_call_operand.hbm [shape: bf16[512,128], index: 12, kind: input, shape index: {}]
  %s13 = inlined_call_operand.vmem [shape: f32[1,128], index: 13, kind: input, shape index: {}]
  %s14 = inlined_call_operand.hbm [shape: f32[2,256,128], index: 14, kind: output, shape index: {}]
  %s15 = sld [smem:[#allocation0]]
  $region105: #{tpu_custom_call.1} parent=0
    _
  %s17 = ssub.s32 1, %s15
  %s18 = scalar_select 0, %s17, %s15
  $region1: #{tpu_custom_call.1} parent=0
    #allocation4 [shape = 'u8[512]{0}', space=vmem, size = 0x400, scoped, tag = 'input window, operand 1, single buffered']
    #allocation5 [shape = 's32[2]{0}', space=sflag, size = 0x8, scoped, tag = 'scoped memory for tpu_custom_call.1']
    #allocation6 [shape = 's32[2]{0}', space=sflag, size = 0x8, scoped, tag = 'scoped memory for tpu_custom_call.1']
    #allocation7 [shape = 'u8[512]{0}', space=vmem, size = 0x400, scoped, tag = 'input window, operand 2, single buffered']
    #allocation8 [shape = 's32[1]{0}', space=sflag, size = 0x4, scoped, tag = 'scoped memory for tpu_custom_call.1']
    #allocation9 [shape = 'u8[131072]{0}', space=vmem, size = 0x20000, scoped, tag = 'input window, operand 12, single buffered']
    #allocation10 [shape = 'u8[131072]{0}', space=vmem, size = 0x20000, scoped, tag = 'output window, operand 0']
    %19 = vsyncpa [#allocation5], 0
    %20 = vsyncpa [#allocation8], 0
    %21 = vsyncpa [#allocation6], 0
    %s22 = scalar_lea.sflag [#allocation6], 1
    %23 = vsyncpa %s22, 0
    loop: start=0, step=1, limit=6
    $region2: #{tpu_custom_call.1} parent=1 // loop_pre_header
      _
    $region3: #{tpu_custom_call.1} parent=1 // loop_header
      %s25 = sphi 0, %s29
      %p26 = scmp.ge.s32.totalorder %s25, 6
      %s32 = sphi 0, %s44
      %s33 = sphi 0, %s40
      %s34 = sphi 0, %s32
      %s35 = sphi 0, %s33
      %s36 = sphi 0, %s34
      %s37 = sphi 0, %s35
      %s47 = sphi 0, %s49
      %s50 = sphi 0, %s47
      %s51 = sphi 0, %s50
      %s67 = sphi 0, %s51
      %s71 = sphi 0, %s71
      %s73 = sphi 0, %s71
      %s74 = sphi 0, %s73
      %s88 = sphi 0, %s74
      %s92 = sphi 0, %s92
      %s94 = sphi 0, %s92
      %s95 = sphi 0, %s94
      %s109 = sphi 0, %s95
      %s113 = sphi 0, %s113
      %s115 = sphi 0, %s113
      %s116 = sphi 0, %s115
      %s130 = sphi 0, %s116
      %s134 = sphi 0, %s134
      %s136 = sphi 0, %s134
      %s137 = sphi 0, %s136
      %s151 = sphi 0, %s137
      %s155 = sphi 0, %s155
      %s157 = sphi 0, %s155
      %s158 = sphi 0, %s157
      %s172 = sphi 0, %s158
      %s176 = sphi 0, %s176
      %s178 = sphi 0, %s176
      %s179 = sphi 0, %s178
      %s193 = sphi 0, %s179
      %s197 = sphi 0, %s197
      %s199 = sphi 0, %s197
      %s200 = sphi 0, %s199
      %s214 = sphi 0, %s200
      %s218 = sphi 0, %s218
      %s220 = sphi 0, %s218
      %s221 = sphi 0, %s220
      %s235 = sphi 0, %s221
      %s239 = sphi 0, %s239
      %s241 = sphi 0, %s239
      %s242 = sphi 0, %s241
      %s256 = sphi 0, %s242
      %s260 = sphi 0, %s260
      %s262 = sphi 0, %s260
      %s263 = sphi 0, %s262
      %s277 = sphi 0, %s263
      %s281 = sphi 0, %s281
      %s283 = sphi 0, %s281
      %s284 = sphi 0, %s283
      %s298 = sphi 0, %s284
      %s302 = sphi 0, %s302
      %s304 = sphi 0, %s302
      %s305 = sphi 0, %s304
      %s319 = sphi 0, %s305
      %s323 = sphi 0, %s323
      %s325 = sphi 0, %s323
      %s326 = sphi 0, %s325
      %s340 = sphi 0, %s326
      %s348 = sphi 0, %s350
      %s351 = sphi 0, %s348
      %s352 = sphi 0, %s351
      %s368 = sphi 0, %s352
    $region4: #{tpu_custom_call.1} parent=1 // loop_header_branch
      %28 = sbr.rel (%p26) target = $region8
    $region5: #{tpu_custom_call.1} parent=1 // loop_body
      %s30 = ssub.s32 %s25, 1
      %s31 = ssub.s32 %s25, 2
      %s38 = sadd.s32 1, %s33
      %p39 = scmp.ge.s32.totalorder %s38, 2
      %s40 = scalar_select %p39, 0, %s38
      %s41 = sadd.s32 1, %s32
      %s42 = scalar_select %p39, %s41, %s32
      %p43 = scmp.ge.s32.totalorder %s42, 2
      %s44 = scalar_select %p43, 0, %s42
      %s45 = ssub.s32 %s32, %s44
      %p46 = scmp.eq.s32.totalorder %s45, 0
      %s48 = sadd.s32 %s47, 1
      %s49 = scalar_select %p46, %s47, %s48
      %p52 = pneg %p46
      %p53 = scmp.eq.s32.totalorder %s25, 3
      %p54 = por %p52, %p53
      %p55 = scmp.ne.s32.totalorder %s47, %s50
      %p56 = scmp.eq.s32.totalorder %s25, 0
      %p57 = por %p55, %p56
      %p58 = scmp.ne.s32.totalorder %s47, %s50
      %p59 = scmp.eq.s32.totalorder %s30, 3
      %p60 = por %p58, %p59
      %p61 = scmp.ne.s32.totalorder %s50, %s51
      %p62 = scmp.eq.s32.totalorder %s30, 0
      %p63 = por %p61, %p62
      %p64 = scmp.ne.s32.totalorder %s50, %s51
      %p65 = scmp.eq.s32.totalorder %s31, 3
      %p66 = por %p64, %p65
      %p68 = scmp.ne.s32.totalorder %s51, %s67
      %p69 = scmp.eq.s32.totalorder %s31, 0
      %p70 = por %p68, %p69
      %s72 = sadd.s32 %s71, 1
      %p75 = scmp.eq.s32.totalorder %s25, 3
      %p76 = scmp.ne.s32.totalorder %s71, %s73
      %p77 = scmp.eq.s32.totalorder %s25, 0
      %p78 = por %p76, %p77
      %p79 = scmp.ne.s32.totalorder %s71, %s73
      %p80 = scmp.eq.s32.totalorder %s30, 3
      %p81 = por %p79, %p80
      %p82 = scmp.ne.s32.totalorder %s73, %s74
      %p83 = scmp.eq.s32.totalorder %s30, 0
      %p84 = por %p82, %p83
      %p85 = scmp.ne.s32.totalorder %s73, %s74
      %p86 = scmp.eq.s32.totalorder %s31, 3
      %p87 = por %p85, %p86
      %p89 = scmp.ne.s32.totalorder %s74, %s88
      %p90 = scmp.eq.s32.totalorder %s31, 0
      %p91 = por %p89, %p90
      %s93 = sadd.s32 %s92, 1
      %p96 = scmp.eq.s32.totalorder %s25, 3
      %p97 = scmp.ne.s32.totalorder %s92, %s94
      %p98 = scmp.eq.s32.totalorder %s25, 0
      %p99 = por %p97, %p98
      %p100 = scmp.ne.s32.totalorder %s92, %s94
      %p101 = scmp.eq.s32.totalorder %s30, 3
      %p102 = por %p100, %p101
      %p103 = scmp.ne.s32.totalorder %s94, %s95
      %p104 = scmp.eq.s32.totalorder %s30, 0
      %p105 = por %p103, %p104
      %p106 = scmp.ne.s32.totalorder %s94, %s95
      %p107 = scmp.eq.s32.totalorder %s31, 3
      %p108 = por %p106, %p107
      %p110 = scmp.ne.s32.totalorder %s95, %s109
      %p111 = scmp.eq.s32.totalorder %s31, 0
      %p112 = por %p110, %p111
      %s114 = sadd.s32 %s113, 1
      %p117 = scmp.eq.s32.totalorder %s25, 3
      %p118 = scmp.ne.s32.totalorder %s113, %s115
      %p119 = scmp.eq.s32.totalorder %s25, 0
      %p120 = por %p118, %p119
      %p121 = scmp.ne.s32.totalorder %s113, %s115
      %p122 = scmp.eq.s32.totalorder %s30, 3
      %p123 = por %p121, %p122
      %p124 = scmp.ne.s32.totalorder %s115, %s116
      %p125 = scmp.eq.s32.totalorder %s30, 0
      %p126 = por %p124, %p125
      %p127 = scmp.ne.s32.totalorder %s115, %s116
      %p128 = scmp.eq.s32.totalorder %s31, 3
      %p129 = por %p127, %p128
      %p131 = scmp.ne.s32.totalorder %s116, %s130
      %p132 = scmp.eq.s32.totalorder %s31, 0
      %p133 = por %p131, %p132
      %s135 = sadd.s32 %s134, 1
      %p138 = scmp.eq.s32.totalorder %s25, 3
      %p139 = scmp.ne.s32.totalorder %s134, %s136
      %p140 = scmp.eq.s32.totalorder %s25, 0
      %p141 = por %p139, %p140
      %p142 = scmp.ne.s32.totalorder %s134, %s136
      %p143 = scmp.eq.s32.totalorder %s30, 3
      %p144 = por %p142, %p143
      %p145 = scmp.ne.s32.totalorder %s136, %s137
      %p146 = scmp.eq.s32.totalorder %s30, 0
      %p147 = por %p145, %p146
      %p148 = scmp.ne.s32.totalorder %s136, %s137
      %p149 = scmp.eq.s32.totalorder %s31, 3
      %p150 = por %p148, %p149
      %p152 = scmp.ne.s32.totalorder %s137, %s151
      %p153 = scmp.eq.s32.totalorder %s31, 0
      %p154 = por %p152, %p153
      %s156 = sadd.s32 %s155, 1
      %p159 = scmp.eq.s32.totalorder %s25, 3
      %p160 = scmp.ne.s32.totalorder %s155, %s157
      %p161 = scmp.eq.s32.totalorder %s25, 0
      %p162 = por %p160, %p161
      %p163 = scmp.ne.s32.totalorder %s155, %s157
      %p164 = scmp.eq.s32.totalorder %s30, 3
      %p165 = por %p163, %p164
      %p166 = scmp.ne.s32.totalorder %s157, %s158
      %p167 = scmp.eq.s32.totalorder %s30, 0
      %p168 = por %p166, %p167
      %p169 = scmp.ne.s32.totalorder %s157, %s158
      %p170 = scmp.eq.s32.totalorder %s31, 3
      %p171 = por %p169, %p170
      %p173 = scmp.ne.s32.totalorder %s158, %s172
      %p174 = scmp.eq.s32.totalorder %s31, 0
      %p175 = por %p173, %p174
      %s177 = sadd.s32 %s176, 1
      %p180 = scmp.eq.s32.totalorder %s25, 3
      %p181 = scmp.ne.s32.totalorder %s176, %s178
      %p182 = scmp.eq.s32.totalorder %s25, 0
      %p183 = por %p181, %p182
      %p184 = scmp.ne.s32.totalorder %s176, %s178
      %p185 = scmp.eq.s32.totalorder %s30, 3
      %p186 = por %p184, %p185
      %p187 = scmp.ne.s32.totalorder %s178, %s179
      %p188 = scmp.eq.s32.totalorder %s30, 0
      %p189 = por %p187, %p188
      %p190 = scmp.ne.s32.totalorder %s178, %s179
      %p191 = scmp.eq.s32.totalorder %s31, 3
      %p192 = por %p190, %p191
      %p194 = scmp.ne.s32.totalorder %s179, %s193
      %p195 = scmp.eq.s32.totalorder %s31, 0
      %p196 = por %p194, %p195
      %s198 = sadd.s32 %s197, 1
      %p201 = scmp.eq.s32.totalorder %s25, 3
      %p202 = scmp.ne.s32.totalorder %s197, %s199
      %p203 = scmp.eq.s32.totalorder %s25, 0
      %p204 = por %p202, %p203
      %p205 = scmp.ne.s32.totalorder %s197, %s199
      %p206 = scmp.eq.s32.totalorder %s30, 3
      %p207 = por %p205, %p206
      %p208 = scmp.ne.s32.totalorder %s199, %s200
      %p209 = scmp.eq.s32.totalorder %s30, 0
      %p210 = por %p208, %p209
      %p211 = scmp.ne.s32.totalorder %s199, %s200
      %p212 = scmp.eq.s32.totalorder %s31, 3
      %p213 = por %p211, %p212
      %p215 = scmp.ne.s32.totalorder %s200, %s214
      %p216 = scmp.eq.s32.totalorder %s31, 0
      %p217 = por %p215, %p216
      %s219 = sadd.s32 %s218, 1
      %p222 = scmp.eq.s32.totalorder %s25, 3
      %p223 = scmp.ne.s32.totalorder %s218, %s220
      %p224 = scmp.eq.s32.totalorder %s25, 0
      %p225 = por %p223, %p224
      %p226 = scmp.ne.s32.totalorder %s218, %s220
      %p227 = scmp.eq.s32.totalorder %s30, 3
      %p228 = por %p226, %p227
      %p229 = scmp.ne.s32.totalorder %s220, %s221
      %p230 = scmp.eq.s32.totalorder %s30, 0
      %p231 = por %p229, %p230
      %p232 = scmp.ne.s32.totalorder %s220, %s221
      %p233 = scmp.eq.s32.totalorder %s31, 3
      %p234 = por %p232, %p233
      %p236 = scmp.ne.s32.totalorder %s221, %s235
      %p237 = scmp.eq.s32.totalorder %s31, 0
      %p238 = por %p236, %p237
      %s240 = sadd.s32 %s239, 1
      %p243 = scmp.eq.s32.totalorder %s25, 3
      %p244 = scmp.ne.s32.totalorder %s239, %s241
      %p245 = scmp.eq.s32.totalorder %s25, 0
      %p246 = por %p244, %p245
      %p247 = scmp.ne.s32.totalorder %s239, %s241
      %p248 = scmp.eq.s32.totalorder %s30, 3
      %p249 = por %p247, %p248
      %p250 = scmp.ne.s32.totalorder %s241, %s242
      %p251 = scmp.eq.s32.totalorder %s30, 0
      %p252 = por %p250, %p251
      %p253 = scmp.ne.s32.totalorder %s241, %s242
      %p254 = scmp.eq.s32.totalorder %s31, 3
      %p255 = por %p253, %p254
      %p257 = scmp.ne.s32.totalorder %s242, %s256
      %p258 = scmp.eq.s32.totalorder %s31, 0
      %p259 = por %p257, %p258
      %s261 = sadd.s32 %s260, 1
      %p264 = scmp.eq.s32.totalorder %s25, 3
      %p265 = scmp.ne.s32.totalorder %s260, %s262
      %p266 = scmp.eq.s32.totalorder %s25, 0
      %p267 = por %p265, %p266
      %p268 = scmp.ne.s32.totalorder %s260, %s262
      %p269 = scmp.eq.s32.totalorder %s30, 3
      %p270 = por %p268, %p269
      %p271 = scmp.ne.s32.totalorder %s262, %s263
      %p272 = scmp.eq.s32.totalorder %s30, 0
      %p273 = por %p271, %p272
      %p274 = scmp.ne.s32.totalorder %s262, %s263
      %p275 = scmp.eq.s32.totalorder %s31, 3
      %p276 = por %p274, %p275
      %p278 = scmp.ne.s32.totalorder %s263, %s277
      %p279 = scmp.eq.s32.totalorder %s31, 0
      %p280 = por %p278, %p279
      %s282 = sadd.s32 %s281, 1
      %p285 = scmp.eq.s32.totalorder %s25, 3
      %p286 = scmp.ne.s32.totalorder %s281, %s283
      %p287 = scmp.eq.s32.totalorder %s25, 0
      %p288 = por %p286, %p287
      %p289 = scmp.ne.s32.totalorder %s281, %s283
      %p290 = scmp.eq.s32.totalorder %s30, 3
      %p291 = por %p289, %p290
      %p292 = scmp.ne.s32.totalorder %s283, %s284
      %p293 = scmp.eq.s32.totalorder %s30, 0
      %p294 = por %p292, %p293
      %p295 = scmp.ne.s32.totalorder %s283, %s284
      %p296 = scmp.eq.s32.totalorder %s31, 3
      %p297 = por %p295, %p296
      %p299 = scmp.ne.s32.totalorder %s284, %s298
      %p300 = scmp.eq.s32.totalorder %s31, 0
      %p301 = por %p299, %p300
      %s303 = sadd.s32 %s302, 1
      %p306 = scmp.eq.s32.totalorder %s25, 3
      %p307 = scmp.ne.s32.totalorder %s302, %s304
      %p308 = scmp.eq.s32.totalorder %s25, 0
      %p309 = por %p307, %p308
      %p310 = scmp.ne.s32.totalorder %s302, %s304
      %p311 = scmp.eq.s32.totalorder %s30, 3
      %p312 = por %p310, %p311
      %p313 = scmp.ne.s32.totalorder %s304, %s305
      %p314 = scmp.eq.s32.totalorder %s30, 0
      %p315 = por %p313, %p314
      %p316 = scmp.ne.s32.totalorder %s304, %s305
      %p317 = scmp.eq.s32.totalorder %s31, 3
      %p318 = por %p316, %p317
      %p320 = scmp.ne.s32.totalorder %s305, %s319
      %p321 = scmp.eq.s32.totalorder %s31, 0
      %p322 = por %p320, %p321
      %s324 = sadd.s32 %s323, 1
      %p327 = scmp.eq.s32.totalorder %s25, 3
      %p328 = scmp.ne.s32.totalorder %s323, %s325
      %p329 = scmp.eq.s32.totalorder %s25, 0
      %p330 = por %p328, %p329
      %p331 = scmp.ne.s32.totalorder %s323, %s325
      %p332 = scmp.eq.s32.totalorder %s30, 3
      %p333 = por %p331, %p332
      %p334 = scmp.ne.s32.totalorder %s325, %s326
      %p335 = scmp.eq.s32.totalorder %s30, 0
      %p336 = por %p334, %p335
      %p337 = scmp.ne.s32.totalorder %s325, %s326
      %p338 = scmp.eq.s32.totalorder %s31, 3
      %p339 = por %p337, %p338
      %p341 = scmp.ne.s32.totalorder %s326, %s340
      %p342 = scmp.eq.s32.totalorder %s31, 0
      %p343 = por %p341, %p342
      %s344 = ssub.s32 %s32, %s44
      %s345 = ssub.s32 %s33, %s40
      %s346 = sor.u32 %s344, %s345
      %p347 = scmp.eq.s32.totalorder %s346, 0
      %s349 = sadd.s32 %s348, 1
      %s350 = scalar_select %p347, %s348, %s349
      %p353 = pneg %p347
      %p354 = scmp.eq.s32.totalorder %s25, 3
      %p355 = por %p353, %p354
      %p356 = scmp.ne.s32.totalorder %s348, %s351
      %p357 = scmp.eq.s32.totalorder %s25, 0
      %p358 = por %p356, %p357
      %p359 = scmp.ne.s32.totalorder %s348, %s351
      %p360 = scmp.eq.s32.totalorder %s30, 3
      %p361 = por %p359, %p360
      %p362 = scmp.ne.s32.totalorder %s351, %s352
      %p363 = scmp.eq.s32.totalorder %s30, 0
      %p364 = por %p362, %p363
      %p365 = scmp.ne.s32.totalorder %s351, %s352
      %p366 = scmp.eq.s32.totalorder %s31, 3
      %p367 = por %p365, %p366
      %p369 = scmp.ne.s32.totalorder %s352, %s368
      %p370 = scmp.eq.s32.totalorder %s31, 0
      %p371 = por %p369, %p370
      %p372 = scmp.le.s32.totalorder 1, %s25
      %p373 = scmp.lt.s32.totalorder %s25, 5
      %p374 = pnand %p372, %p373
      %p375 = pneg %p374
      // Predicated region
      $region9: #{tpu_custom_call.1} parent=5 // pred_check
        _
      $region10: #{tpu_custom_call.1} parent=5 // pred_check_branch
        %377 = sbr.rel (%p374) target = $region12
      $region11: #{tpu_custom_call.1} parent=5 // pred_region
        %s378 = ssub.s32 %s25, 1
        // Predicated region
        $region13: #{tpu_custom_call.1} parent=11 // pred_check
          %p379 = pneg %p84
        $region14: #{tpu_custom_call.1} parent=11 // pred_check_branch
          %381 = sbr.rel (%p379) target = $region16
        $region15: #{tpu_custom_call.1} parent=11 // pred_region
          %s383 = ssub.s32 16, 16
          %384 = vsyncadd [#allocation5], %s383
          %s386 = sshll.u32 [#allocation4], 4
          %s387 = int_to_ptr.vmem [resolvable:$true] %s386
          %389 = dma.hbm_to_vmem [thread:$0]  %s1, 16, %s387, [#allocation5]
        $region16: #{tpu_custom_call.1} parent=11 // pred_fallthru
          _
        // Predicated region
        $region17: #{tpu_custom_call.1} parent=11 // pred_check
          %p390 = pneg %p105
        $region18: #{tpu_custom_call.1} parent=11 // pred_check_branch
          %392 = sbr.rel (%p390) target = $region20
        $region19: #{tpu_custom_call.1} parent=11 // pred_region
          %s394 = ssub.s32 16, 16
          %395 = vsyncadd [#allocation8], %s394
          %s397 = sshll.u32 [#allocation7], 4
          %s398 = int_to_ptr.vmem [resolvable:$true] %s397
          %400 = dma.hbm_to_vmem [thread:$0]  %s2, 16, %s398, [#allocation8]
        $region20: #{tpu_custom_call.1} parent=11 // pred_fallthru
          _
        // Predicated region
        $region21: #{tpu_custom_call.1} parent=11 // pred_check
          %p401 = pneg %p126
        $region22: #{tpu_custom_call.1} parent=11 // pred_check_branch
          %403 = sbr.rel (%p401) target = $region24
        $region23: #{tpu_custom_call.1} parent=11 // pred_region
          _
        $region24: #{tpu_custom_call.1} parent=11 // pred_fallthru
          _
        // Predicated region
        $region25: #{tpu_custom_call.1} parent=11 // pred_check
          %p404 = pneg %p147
        $region26: #{tpu_custom_call.1} parent=11 // pred_check_branch
          %406 = sbr.rel (%p404) target = $region28
        $region27: #{tpu_custom_call.1} parent=11 // pred_region
          _
        $region28: #{tpu_custom_call.1} parent=11 // pred_fallthru
          _
        // Predicated region
        $region29: #{tpu_custom_call.1} parent=11 // pred_check
          %p407 = pneg %p168
        $region30: #{tpu_custom_call.1} parent=11 // pred_check_branch
          %409 = sbr.rel (%p407) target = $region32
        $region31: #{tpu_custom_call.1} parent=11 // pred_region
          _
        $region32: #{tpu_custom_call.1} parent=11 // pred_fallthru
          _
        // Predicated region
        $region33: #{tpu_custom_call.1} parent=11 // pred_check
          %p410 = pneg %p189
        $region34: #{tpu_custom_call.1} parent=11 // pred_check_branch
          %412 = sbr.rel (%p410) target = $region36
        $region35: #{tpu_custom_call.1} parent=11 // pred_region
          _
        $region36: #{tpu_custom_call.1} parent=11 // pred_fallthru
          _
        // Predicated region
        $region37: #{tpu_custom_call.1} parent=11 // pred_check
          %p413 = pneg %p210
        $region38: #{tpu_custom_call.1} parent=11 // pred_check_branch
          %415 = sbr.rel (%p413) target = $region40
        $region39: #{tpu_custom_call.1} parent=11 // pred_region
          _
        $region40: #{tpu_custom_call.1} parent=11 // pred_fallthru
          _
        // Predicated region
        $region41: #{tpu_custom_call.1} parent=11 // pred_check
          %p416 = pneg %p231
        $region42: #{tpu_custom_call.1} parent=11 // pred_check_branch
          %418 = sbr.rel (%p416) target = $region44
        $region43: #{tpu_custom_call.1} parent=11 // pred_region
          _
        $region44: #{tpu_custom_call.1} parent=11 // pred_fallthru
          _
        // Predicated region
        $region45: #{tpu_custom_call.1} parent=11 // pred_check
          %p419 = pneg %p252
        $region46: #{tpu_custom_call.1} parent=11 // pred_check_branch
          %421 = sbr.rel (%p419) target = $region48
        $region47: #{tpu_custom_call.1} parent=11 // pred_region
          _
        $region48: #{tpu_custom_call.1} parent=11 // pred_fallthru
          _
        // Predicated region
        $region49: #{tpu_custom_call.1} parent=11 // pred_check
          %p422 = pneg %p273
        $region50: #{tpu_custom_call.1} parent=11 // pred_check_branch
          %424 = sbr.rel (%p422) target = $region52
        $region51: #{tpu_custom_call.1} parent=11 // pred_region
          _
        $region52: #{tpu_custom_call.1} parent=11 // pred_fallthru
          _
        // Predicated region
        $region53: #{tpu_custom_call.1} parent=11 // pred_check
          %p425 = pneg %p294
        $region54: #{tpu_custom_call.1} parent=11 // pred_check_branch
          %427 = sbr.rel (%p425) target = $region56
        $region55: #{tpu_custom_call.1} parent=11 // pred_region
          _
        $region56: #{tpu_custom_call.1} parent=11 // pred_fallthru
          _
        // Predicated region
        $region57: #{tpu_custom_call.1} parent=11 // pred_check
          %p428 = pneg %p315
        $region58: #{tpu_custom_call.1} parent=11 // pred_check_branch
          %430 = sbr.rel (%p428) target = $region60
        $region59: #{tpu_custom_call.1} parent=11 // pred_region
          %s432 = ssub.s32 4096, 4096
          %433 = vsyncadd [#allocation8], %s432
          %s434 = sshll.u32 [#allocation9], 4
          %s435 = int_to_ptr.vmem [resolvable:$true] %s434
          %440 = dma.hbm_to_vmem [thread:$0]  %s12, 4096, %s435, [#allocation8], 64, 64, 4
        $region60: #{tpu_custom_call.1} parent=11 // pred_fallthru
          _
        // Predicated region
        $region61: #{tpu_custom_call.1} parent=11 // pred_check
          %p441 = pneg %p336
        $region62: #{tpu_custom_call.1} parent=11 // pred_check_branch
          %443 = sbr.rel (%p441) target = $region64
        $region63: #{tpu_custom_call.1} parent=11 // pred_region
          _
        $region64: #{tpu_custom_call.1} parent=11 // pred_fallthru
          _
      $region12: #{tpu_custom_call.1} parent=5 // pred_fallthru
        _
      %p444 = scmp.lt.s32.totalorder %s25, 4
      // Predicated region
      $region65: #{tpu_custom_call.1} parent=5 // pred_check
        %p445 = pneg %p444
      $region66: #{tpu_custom_call.1} parent=5 // pred_check_branch
        %447 = sbr.rel (%p445) target = $region68
      $region67: #{tpu_custom_call.1} parent=5 // pred_region
        // Predicated region
        $region69: #{tpu_custom_call.1} parent=67 // pred_check
          %p448 = pneg %p57
        $region70: #{tpu_custom_call.1} parent=67 // pred_check_branch
          %450 = sbr.rel (%p448) target = $region72
        $region71: #{tpu_custom_call.1} parent=67 // pred_region
          %p451 = scmp.lt.s32.totalorder %s32, 1
          %s452 = scalar_select %p451, %s32, 1
          %s453 = smul.addr %s452, 32
          %s454 = smul.addr %s453, 8
          %s455 = scalar_lea.vmem %s0, %s454
        $region72: #{tpu_custom_call.1} parent=67 // pred_fallthru
          _
      $region68: #{tpu_custom_call.1} parent=5 // pred_fallthru
        _
      %p456 = scmp.le.s32.totalorder 1, %s25
      %p457 = scmp.lt.s32.totalorder %s25, 5
      %p458 = pnand %p456, %p457
      %p459 = pneg %p458
      // Predicated region
      $region73: #{tpu_custom_call.1} parent=5 // pred_check
        _
      $region74: #{tpu_custom_call.1} parent=5 // pred_check_branch
        %461 = sbr.rel (%p458) target = $region76
      $region75: #{tpu_custom_call.1} parent=5 // pred_region
        %s462 = ssub.s32 %s25, 1
        // Predicated region
        $region77: #{tpu_custom_call.1} parent=75 // pred_check
          %p463 = pneg %p84
        $region78: #{tpu_custom_call.1} parent=75 // pred_check_branch
          %465 = sbr.rel (%p463) target = $region80
        $region79: #{tpu_custom_call.1} parent=75 // pred_region
          %466 = dma.done [#allocation5], 16
        $region80: #{tpu_custom_call.1} parent=75 // pred_fallthru
          _
        // Predicated region
        $region81: #{tpu_custom_call.1} parent=75 // pred_check
          %p467 = pneg %p105
        $region82: #{tpu_custom_call.1} parent=75 // pred_check_branch
          %469 = sbr.rel (%p467) target = $region84
        $region83: #{tpu_custom_call.1} parent=75 // pred_region
          %470 = dma.done [#allocation8], 16
        $region84: #{tpu_custom_call.1} parent=75 // pred_fallthru
          _
        // Predicated region
        $region85: #{tpu_custom_call.1} parent=75 // pred_check
          %p471 = pneg %p315
        $region86: #{tpu_custom_call.1} parent=75 // pred_check_branch
          %473 = sbr.rel (%p471) target = $region88
        $region87: #{tpu_custom_call.1} parent=75 // pred_region
          %474 = dma.done [#allocation8], 4096
        $region88: #{tpu_custom_call.1} parent=75 // pred_fallthru
          _
        %p475 = scmp.lt.s32.totalorder %s34, 1
        %s476 = scalar_select %p475, %s34, 1
        %s477 = smul.addr %s476, 32
        %s478 = smul.addr %s477, 8
        %s479 = scalar_lea.vmem %s0, %s478
        %p480 = pneg %p63
        %p481 = pneg %p60
        %p482 = pneg %p84
        %p483 = pneg %p81
        %p484 = pneg %p105
        %p485 = pneg %p102
        %p486 = pneg %p126
        %p487 = pneg %p123
        %p488 = pneg %p147
        %p489 = pneg %p144
        %p490 = pneg %p168
        %p491 = pneg %p165
        %p492 = pneg %p189
        %p493 = pneg %p186
        %p494 = pneg %p210
        %p495 = pneg %p207
        %p496 = pneg %p231
        %p497 = pneg %p228
        %p498 = pneg %p252
        %p499 = pneg %p249
        %p500 = pneg %p273
        %p501 = pneg %p270
        %p502 = pneg %p294
        %p503 = pneg %p291
        %p504 = pneg %p315
        %p505 = pneg %p312
        %p506 = pneg %p336
        %p507 = pneg %p333
        %p508 = pneg %p364
        %p509 = pneg %p361
        %s510 = sand.u32 %s351, 1
        %s511 = scalar_lea.sflag [#allocation6], %s510
        %s512 = sand.u32 %s351, 1
        %s513 = smul.addr %s512, 128
        %s514 = scalar_lea.vmem [#allocation10], %s513
        %p515 = scmp.lt.s32.totalorder %s34, 1
        %s516 = scalar_select %p515, %s34, 1
        %s517 = smul.addr %s516, 32
        %s518 = smul.addr %s517, 8
        %s519 = scalar_lea.vmem %s0, %s518
        %s520 = smul.u32 16, %s35
        %v522 = vld [vmem:[#allocation4] sm:$0x1]
        %v523 = vld [vmem:[#allocation7] sm:$0x1]
        %v524 = vld [vmem:[%s8] sm:$0x1]
        %v525 = vld [vmem:[%s9] sm:$0x1]
        %p526 = scmp.eq.s32.totalorder %s35, 0
        // Predicated region
        $region89: #{tpu_custom_call.1} parent=75 // pred_check
          %p527 = pneg %p526
        $region90: #{tpu_custom_call.1} parent=75 // pred_check_branch
          %529 = sbr.rel (%p527) target = $region92
        $region91: #{tpu_custom_call.1} parent=75 // pred_region
          %v530 = vld [vmem:[%s519] sm:$0xff]
          %v531 = vld [vmem:[%s519 + $0x8] sm:$0xff]
          %v532 = vld [vmem:[%s519 + $0x10] sm:$0xff]
          %v533 = vld [vmem:[%s519 + $0x18] sm:$0xff]
          %v534 = vld [vmem:[%s519 + $0x20] sm:$0xff]
          %v535 = vld [vmem:[%s519 + $0x28] sm:$0xff]
          %v536 = vld [vmem:[%s519 + $0x30] sm:$0xff]
          %v537 = vld [vmem:[%s519 + $0x38] sm:$0xff]
          %v538 = vld [vmem:[%s519 + $0x40] sm:$0xff]
          %v539 = vld [vmem:[%s519 + $0x48] sm:$0xff]
          %v540 = vld [vmem:[%s519 + $0x50] sm:$0xff]
          %v541 = vld [vmem:[%s519 + $0x58] sm:$0xff]
          %v542 = vld [vmem:[%s519 + $0x60] sm:$0xff]
          %v543 = vld [vmem:[%s519 + $0x68] sm:$0xff]
          %v544 = vld [vmem:[%s519 + $0x70] sm:$0xff]
          %v545 = vld [vmem:[%s519 + $0x78] sm:$0xff]
          %v546 = vld [vmem:[%s519 + $0x80] sm:$0xff]
          %v547 = vld [vmem:[%s519 + $0x88] sm:$0xff]
          %v548 = vld [vmem:[%s519 + $0x90] sm:$0xff]
          %v549 = vld [vmem:[%s519 + $0x98] sm:$0xff]
          %v550 = vld [vmem:[%s519 + $0xa0] sm:$0xff]
          %v551 = vld [vmem:[%s519 + $0xa8] sm:$0xff]
          %v552 = vld [vmem:[%s519 + $0xb0] sm:$0xff]
          %v553 = vld [vmem:[%s519 + $0xb8] sm:$0xff]
          %v554 = vld [vmem:[%s519 + $0xc0] sm:$0xff]
          %v555 = vld [vmem:[%s519 + $0xc8] sm:$0xff]
          %v556 = vld [vmem:[%s519 + $0xd0] sm:$0xff]
          %v557 = vld [vmem:[%s519 + $0xd8] sm:$0xff]
          %v558 = vld [vmem:[%s519 + $0xe0] sm:$0xff]
          %v559 = vld [vmem:[%s519 + $0xe8] sm:$0xff]
          %v560 = vld [vmem:[%s519 + $0xf0] sm:$0xff]
          %v561 = vld [vmem:[%s519 + $0xf8] sm:$0xff]
          %562 = vadd.xlane.f32.xlu0 %v530
          %v563 = vpop.xlane.xlu0 %562
          %564 = vadd.xlane.f32.xlu0 %v531
          %v565 = vpop.xlane.xlu0 %564
          %566 = vadd.xlane.f32.xlu0 %v532
          %v567 = vpop.xlane.xlu0 %566
          %568 = vadd.xlane.f32.xlu0 %v533
          %v569 = vpop.xlane.xlu0 %568
          %570 = vadd.xlane.f32.xlu0 %v534
          %v571 = vpop.xlane.xlu0 %570
          %572 = vadd.xlane.f32.xlu0 %v535
          %v573 = vpop.xlane.xlu0 %572
          %574 = vadd.xlane.f32.xlu0 %v536
          %v575 = vpop.xlane.xlu0 %574
          %576 = vadd.xlane.f32.xlu0 %v537
          %v577 = vpop.xlane.xlu0 %576
          %578 = vadd.xlane.f32.xlu0 %v538
          %v579 = vpop.xlane.xlu0 %578
          %580 = vadd.xlane.f32.xlu0 %v539
          %v581 = vpop.xlane.xlu0 %580
          %582 = vadd.xlane.f32.xlu0 %v540
          %v583 = vpop.xlane.xlu0 %582
          %584 = vadd.xlane.f32.xlu0 %v541
          %v585 = vpop.xlane.xlu0 %584
          %586 = vadd.xlane.f32.xlu0 %v542
          %v587 = vpop.xlane.xlu0 %586
          %588 = vadd.xlane.f32.xlu0 %v543
          %v589 = vpop.xlane.xlu0 %588
          %590 = vadd.xlane.f32.xlu0 %v544
          %v591 = vpop.xlane.xlu0 %590
          %592 = vadd.xlane.f32.xlu0 %v545
          %v593 = vpop.xlane.xlu0 %592
          %594 = vadd.xlane.f32.xlu0 %v546
          %v595 = vpop.xlane.xlu0 %594
          %596 = vadd.xlane.f32.xlu0 %v547
          %v597 = vpop.xlane.xlu0 %596
          %598 = vadd.xlane.f32.xlu0 %v548
          %v599 = vpop.xlane.xlu0 %598
          %600 = vadd.xlane.f32.xlu0 %v549
          %v601 = vpop.xlane.xlu0 %600
          %602 = vadd.xlane.f32.xlu0 %v550
          %v603 = vpop.xlane.xlu0 %602
          %604 = vadd.xlane.f32.xlu0 %v551
          %v605 = vpop.xlane.xlu0 %604
          %606 = vadd.xlane.f32.xlu0 %v552
          %v607 = vpop.xlane.xlu0 %606
          %608 = vadd.xlane.f32.xlu0 %v553
          %v609 = vpop.xlane.xlu0 %608
          %610 = vadd.xlane.f32.xlu0 %v554
          %v611 = vpop.xlane.xlu0 %610
          %612 = vadd.xlane.f32.xlu0 %v555
          %v613 = vpop.xlane.xlu0 %612
          %614 = vadd.xlane.f32.xlu0 %v556
          %v615 = vpop.xlane.xlu0 %614
          %616 = vadd.xlane.f32.xlu0 %v557
          %v617 = vpop.xlane.xlu0 %616
          %618 = vadd.xlane.f32.xlu0 %v558
          %v619 = vpop.xlane.xlu0 %618
          %620 = vadd.xlane.f32.xlu0 %v559
          %v621 = vpop.xlane.xlu0 %620
          %622 = vadd.xlane.f32.xlu0 %v560
          %v623 = vpop.xlane.xlu0 %622
          %624 = vadd.xlane.f32.xlu0 %v561
          %v625 = vpop.xlane.xlu0 %624
          %v626 = vrcp.pop 128.0
          %v627 = vmul.f32 %v563, %v626
          %v628 = vmul.f32 %v565, %v626
          %v629 = vmul.f32 %v567, %v626
          %v630 = vmul.f32 %v569, %v626
          %v631 = vmul.f32 %v571, %v626
          %v632 = vmul.f32 %v573, %v626
          %v633 = vmul.f32 %v575, %v626
          %v634 = vmul.f32 %v577, %v626
          %v635 = vmul.f32 %v579, %v626
          %v636 = vmul.f32 %v581, %v626
          %v637 = vmul.f32 %v583, %v626
          %v638 = vmul.f32 %v585, %v626
          %v639 = vmul.f32 %v587, %v626
          %v640 = vmul.f32 %v589, %v626
          %v641 = vmul.f32 %v591, %v626
          %v642 = vmul.f32 %v593, %v626
          %v643 = vmul.f32 %v595, %v626
          %v644 = vmul.f32 %v597, %v626
          %v645 = vmul.f32 %v599, %v626
          %v646 = vmul.f32 %v601, %v626
          %v647 = vmul.f32 %v603, %v626
          %v648 = vmul.f32 %v605, %v626
          %v649 = vmul.f32 %v607, %v626
          %v650 = vmul.f32 %v609, %v626
          %v651 = vmul.f32 %v611, %v626
          %v652 = vmul.f32 %v613, %v626
          %v653 = vmul.f32 %v615, %v626
          %v654 = vmul.f32 %v617, %v626
          %v655 = vmul.f32 %v619, %v626
          %v656 = vmul.f32 %v621, %v626
          %v657 = vmul.f32 %v623, %v626
          %v658 = vmul.f32 %v625, %v626
          %v659 = vsub.f32 %v530, %v627
          %v660 = vsub.f32 %v531, %v628
          %v661 = vsub.f32 %v532, %v629
          %v662 = vsub.f32 %v533, %v630
          %v663 = vsub.f32 %v534, %v631
          %v664 = vsub.f32 %v535, %v632
          %v665 = vsub.f32 %v536, %v633
          %v666 = vsub.f32 %v537, %v634
          %v667 = vsub.f32 %v538, %v635
          %v668 = vsub.f32 %v539, %v636
          %v669 = vsub.f32 %v540, %v637
          %v670 = vsub.f32 %v541, %v638
          %v671 = vsub.f32 %v542, %v639
          %v672 = vsub.f32 %v543, %v640
          %v673 = vsub.f32 %v544, %v641
          %v674 = vsub.f32 %v545, %v642
          %v675 = vsub.f32 %v546, %v643
          %v676 = vsub.f32 %v547, %v644
          %v677 = vsub.f32 %v548, %v645
          %v678 = vsub.f32 %v549, %v646
          %v679 = vsub.f32 %v550, %v647
          %v680 = vsub.f32 %v551, %v648
          %v681 = vsub.f32 %v552, %v649
          %v682 = vsub.f32 %v553, %v650
          %v683 = vsub.f32 %v554, %v651
          %v684 = vsub.f32 %v555, %v652
          %v685 = vsub.f32 %v556, %v653
          %v686 = vsub.f32 %v557, %v654
          %v687 = vsub.f32 %v558, %v655
          %v688 = vsub.f32 %v559, %v656
          %v689 = vsub.f32 %v560, %v657
          %v690 = vsub.f32 %v561, %v658
          %v691 = vmul.f32 %v659, %v659
          %v692 = vmul.f32 %v660, %v660
          %v693 = vmul.f32 %v661, %v661
          %v694 = vmul.f32 %v662, %v662
          %v695 = vmul.f32 %v663, %v663
          %v696 = vmul.f32 %v664, %v664
          %v697 = vmul.f32 %v665, %v665
          %v698 = vmul.f32 %v666, %v666
          %v699 = vmul.f32 %v667, %v667
          %v700 = vmul.f32 %v668, %v668
          %v701 = vmul.f32 %v669, %v669
          %v702 = vmul.f32 %v670, %v670
          %v703 = vmul.f32 %v671, %v671
          %v704 = vmul.f32 %v672, %v672
          %v705 = vmul.f32 %v673, %v673
          %v706 = vmul.f32 %v674, %v674
          %v707 = vmul.f32 %v675, %v675
          %v708 = vmul.f32 %v676, %v676
          %v709 = vmul.f32 %v677, %v677
          %v710 = vmul.f32 %v678, %v678
          %v711 = vmul.f32 %v679, %v679
          %v712 = vmul.f32 %v680, %v680
          %v713 = vmul.f32 %v681, %v681
          %v714 = vmul.f32 %v682, %v682
          %v715 = vmul.f32 %v683, %v683
          %v716 = vmul.f32 %v684, %v684
          %v717 = vmul.f32 %v685, %v685
          %v718 = vmul.f32 %v686, %v686
          %v719 = vmul.f32 %v687, %v687
          %v720 = vmul.f32 %v688, %v688
          %v721 = vmul.f32 %v689, %v689
          %v722 = vmul.f32 %v690, %v690
          %723 = vadd.xlane.f32.xlu0 %v691
          %v724 = vpop.xlane.xlu0 %723
          %725 = vadd.xlane.f32.xlu0 %v692
          %v726 = vpop.xlane.xlu0 %725
          %727 = vadd.xlane.f32.xlu0 %v693
          %v728 = vpop.xlane.xlu0 %727
          %729 = vadd.xlane.f32.xlu0 %v694
          %v730 = vpop.xlane.xlu0 %729
          %731 = vadd.xlane.f32.xlu0 %v695
          %v732 = vpop.xlane.xlu0 %731
          %733 = vadd.xlane.f32.xlu0 %v696
          %v734 = vpop.xlane.xlu0 %733
          %735 = vadd.xlane.f32.xlu0 %v697
          %v736 = vpop.xlane.xlu0 %735
          %737 = vadd.xlane.f32.xlu0 %v698
          %v738 = vpop.xlane.xlu0 %737
          %739 = vadd.xlane.f32.xlu0 %v699
          %v740 = vpop.xlane.xlu0 %739
          %741 = vadd.xlane.f32.xlu0 %v700
          %v742 = vpop.xlane.xlu0 %741
          %743 = vadd.xlane.f32.xlu0 %v701
          %v744 = vpop.xlane.xlu0 %743
          %745 = vadd.xlane.f32.xlu0 %v702
          %v746 = vpop.xlane.xlu0 %745
          %747 = vadd.xlane.f32.xlu0 %v703
          %v748 = vpop.xlane.xlu0 %747
          %749 = vadd.xlane.f32.xlu0 %v704
          %v750 = vpop.xlane.xlu0 %749
          %751 = vadd.xlane.f32.xlu0 %v705
          %v752 = vpop.xlane.xlu0 %751
          %753 = vadd.xlane.f32.xlu0 %v706
          %v754 = vpop.xlane.xlu0 %753
          %755 = vadd.xlane.f32.xlu0 %v707
          %v756 = vpop.xlane.xlu0 %755
          %757 = vadd.xlane.f32.xlu0 %v708
          %v758 = vpop.xlane.xlu0 %757
          %759 = vadd.xlane.f32.xlu0 %v709
          %v760 = vpop.xlane.xlu0 %759
          %761 = vadd.xlane.f32.xlu0 %v710
          %v762 = vpop.xlane.xlu0 %761
          %763 = vadd.xlane.f32.xlu0 %v711
          %v764 = vpop.xlane.xlu0 %763
          %765 = vadd.xlane.f32.xlu0 %v712
          %v766 = vpop.xlane.xlu0 %765
          %767 = vadd.xlane.f32.xlu0 %v713
          %v768 = vpop.xlane.xlu0 %767
          %769 = vadd.xlane.f32.xlu0 %v714
          %v770 = vpop.xlane.xlu0 %769
          %771 = vadd.xlane.f32.xlu0 %v715
          %v772 = vpop.xlane.xlu0 %771
          %773 = vadd.xlane.f32.xlu0 %v716
          %v774 = vpop.xlane.xlu0 %773
          %775 = vadd.xlane.f32.xlu0 %v717
          %v776 = vpop.xlane.xlu0 %775
          %777 = vadd.xlane.f32.xlu0 %v718
          %v778 = vpop.xlane.xlu0 %777
          %779 = vadd.xlane.f32.xlu0 %v719
          %v780 = vpop.xlane.xlu0 %779
          %781 = vadd.xlane.f32.xlu0 %v720
          %v782 = vpop.xlane.xlu0 %781
          %783 = vadd.xlane.f32.xlu0 %v721
          %v784 = vpop.xlane.xlu0 %783
          %785 = vadd.xlane.f32.xlu0 %v722
          %v786 = vpop.xlane.xlu0 %785
          %v787 = vmul.f32 %v724, %v626
          %v788 = vmul.f32 %v726, %v626
          %v789 = vmul.f32 %v728, %v626
          %v790 = vmul.f32 %v730, %v626
          %v791 = vmul.f32 %v732, %v626
          %v792 = vmul.f32 %v734, %v626
          %v793 = vmul.f32 %v736, %v626
          %v794 = vmul.f32 %v738, %v626
          %v795 = vmul.f32 %v740, %v626
          %v796 = vmul.f32 %v742, %v626
          %v797 = vmul.f32 %v744, %v626
          %v798 = vmul.f32 %v746, %v626
          %v799 = vmul.f32 %v748, %v626
          %v800 = vmul.f32 %v750, %v626
          %v801 = vmul.f32 %v752, %v626
          %v802 = vmul.f32 %v754, %v626
          %v803 = vmul.f32 %v756, %v626
          %v804 = vmul.f32 %v758, %v626
          %v805 = vmul.f32 %v760, %v626
          %v806 = vmul.f32 %v762, %v626
          %v807 = vmul.f32 %v764, %v626
          %v808 = vmul.f32 %v766, %v626
          %v809 = vmul.f32 %v768, %v626
          %v810 = vmul.f32 %v770, %v626
          %v811 = vmul.f32 %v772, %v626
          %v812 = vmul.f32 %v774, %v626
          %v813 = vmul.f32 %v776, %v626
          %v814 = vmul.f32 %v778, %v626
          %v815 = vmul.f32 %v780, %v626
          %v816 = vmul.f32 %v782, %v626
          %v817 = vmul.f32 %v784, %v626
          %v818 = vmul.f32 %v786, %v626
          %v819 = vadd.f32 %v787, 1e-05
          %v820 = vadd.f32 %v788, 1e-05
          %v821 = vadd.f32 %v789, 1e-05
          %v822 = vadd.f32 %v790, 1e-05
          %v823 = vadd.f32 %v791, 1e-05
          %v824 = vadd.f32 %v792, 1e-05
          %v825 = vadd.f32 %v793, 1e-05
          %v826 = vadd.f32 %v794, 1e-05
          %v827 = vadd.f32 %v795, 1e-05
          %v828 = vadd.f32 %v796, 1e-05
          %v829 = vadd.f32 %v797, 1e-05
          %v830 = vadd.f32 %v798, 1e-05
          %v831 = vadd.f32 %v799, 1e-05
          %v832 = vadd.f32 %v800, 1e-05
          %v833 = vadd.f32 %v801, 1e-05
          %v834 = vadd.f32 %v802, 1e-05
          %v835 = vadd.f32 %v803, 1e-05
          %v836 = vadd.f32 %v804, 1e-05
          %v837 = vadd.f32 %v805, 1e-05
          %v838 = vadd.f32 %v806, 1e-05
          %v839 = vadd.f32 %v807, 1e-05
          %v840 = vadd.f32 %v808, 1e-05
          %v841 = vadd.f32 %v809, 1e-05
          %v842 = vadd.f32 %v810, 1e-05
          %v843 = vadd.f32 %v811, 1e-05
          %v844 = vadd.f32 %v812, 1e-05
          %v845 = vadd.f32 %v813, 1e-05
          %v846 = vadd.f32 %v814, 1e-05
          %v847 = vadd.f32 %v815, 1e-05
          %v848 = vadd.f32 %v816, 1e-05
          %v849 = vadd.f32 %v817, 1e-05
          %v850 = vadd.f32 %v818, 1e-05
          %v851 = vrsqrt.pop %v819
          %v852 = vrsqrt.pop %v820
          %v853 = vrsqrt.pop %v821
          %v854 = vrsqrt.pop %v822
          %v855 = vrsqrt.pop %v823
          %v856 = vrsqrt.pop %v824
          %v857 = vrsqrt.pop %v825
          %v858 = vrsqrt.pop %v826
          %v859 = vrsqrt.pop %v827
          %v860 = vrsqrt.pop %v828
          %v861 = vrsqrt.pop %v829
          %v862 = vrsqrt.pop %v830
          %v863 = vrsqrt.pop %v831
          %v864 = vrsqrt.pop %v832
          %v865 = vrsqrt.pop %v833
          %v866 = vrsqrt.pop %v834
          %v867 = vrsqrt.pop %v835
          %v868 = vrsqrt.pop %v836
          %v869 = vrsqrt.pop %v837
          %v870 = vrsqrt.pop %v838
          %v871 = vrsqrt.pop %v839
          %v872 = vrsqrt.pop %v840
          %v873 = vrsqrt.pop %v841
          %v874 = vrsqrt.pop %v842
          %v875 = vrsqrt.pop %v843
          %v876 = vrsqrt.pop %v844
          %v877 = vrsqrt.pop %v845
          %v878 = vrsqrt.pop %v846
          %v879 = vrsqrt.pop %v847
          %v880 = vrsqrt.pop %v848
          %v881 = vrsqrt.pop %v849
          %v882 = vrsqrt.pop %v850
          %v883 = vmul.f32 %v659, %v851
          %v884 = vmul.f32 %v660, %v852
          %v885 = vmul.f32 %v661, %v853
          %v886 = vmul.f32 %v662, %v854
          %v887 = vmul.f32 %v663, %v855
          %v888 = vmul.f32 %v664, %v856
          %v889 = vmul.f32 %v665, %v857
          %v890 = vmul.f32 %v666, %v858
          %v891 = vmul.f32 %v667, %v859
          %v892 = vmul.f32 %v668, %v860
          %v893 = vmul.f32 %v669, %v861
          %v894 = vmul.f32 %v670, %v862
          %v895 = vmul.f32 %v671, %v863
          %v896 = vmul.f32 %v672, %v864
          %v897 = vmul.f32 %v673, %v865
          %v898 = vmul.f32 %v674, %v866
          %v899 = vmul.f32 %v675, %v867
          %v900 = vmul.f32 %v676, %v868
          %v901 = vmul.f32 %v677, %v869
          %v902 = vmul.f32 %v678, %v870
          %v903 = vmul.f32 %v679, %v871
          %v904 = vmul.f32 %v680, %v872
          %v905 = vmul.f32 %v681, %v873
          %v906 = vmul.f32 %v682, %v874
          %v907 = vmul.f32 %v683, %v875
          %v908 = vmul.f32 %v684, %v876
          %v909 = vmul.f32 %v685, %v877
          %v910 = vmul.f32 %v686, %v878
          %v911 = vmul.f32 %v687, %v879
          %v912 = vmul.f32 %v688, %v880
          %v913 = vmul.f32 %v689, %v881
          %v914 = vmul.f32 %v690, %v882
          %v916 = vlaneseq
          %v917 = vshrl.u32 %v916, 7
          %v918 = vsub.s32 0, %v917
          %v919 = vrot.slane %v522, %v918
          %v921 = vmul.f32 %v883, %v919
          %v922 = vmul.f32 %v884, %v919
          %v923 = vmul.f32 %v885, %v919
          %v924 = vmul.f32 %v886, %v919
          %v925 = vmul.f32 %v887, %v919
          %v926 = vmul.f32 %v888, %v919
          %v927 = vmul.f32 %v889, %v919
          %v928 = vmul.f32 %v890, %v919
          %v929 = vmul.f32 %v891, %v919
          %v930 = vmul.f32 %v892, %v919
          %v931 = vmul.f32 %v893, %v919
          %v932 = vmul.f32 %v894, %v919
          %v933 = vmul.f32 %v895, %v919
          %v934 = vmul.f32 %v896, %v919
          %v935 = vmul.f32 %v897, %v919
          %v936 = vmul.f32 %v898, %v919
          %v937 = vmul.f32 %v899, %v919
          %v938 = vmul.f32 %v900, %v919
          %v939 = vmul.f32 %v901, %v919
          %v940 = vmul.f32 %v902, %v919
          %v941 = vmul.f32 %v903, %v919
          %v942 = vmul.f32 %v904, %v919
          %v943 = vmul.f32 %v905, %v919
          %v944 = vmul.f32 %v906, %v919
          %v945 = vmul.f32 %v907, %v919
          %v946 = vmul.f32 %v908, %v919
          %v947 = vmul.f32 %v909, %v919
          %v948 = vmul.f32 %v910, %v919
          %v949 = vmul.f32 %v911, %v919
          %v950 = vmul.f32 %v912, %v919
          %v951 = vmul.f32 %v913, %v919
          %v952 = vmul.f32 %v914, %v919
          %v954 = vlaneseq
          %v955 = vshrl.u32 %v954, 7
          %v956 = vsub.s32 0, %v955
          %v957 = vrot.slane %v523, %v956
          %v959 = vadd.f32 %v921, %v957
          %v960 = vadd.f32 %v922, %v957
          %v961 = vadd.f32 %v923, %v957
          %v962 = vadd.f32 %v924, %v957
          %v963 = vadd.f32 %v925, %v957
          %v964 = vadd.f32 %v926, %v957
          %v965 = vadd.f32 %v927, %v957
          %v966 = vadd.f32 %v928, %v957
          %v967 = vadd.f32 %v929, %v957
          %v968 = vadd.f32 %v930, %v957
          %v969 = vadd.f32 %v931, %v957
          %v970 = vadd.f32 %v932, %v957
          %v971 = vadd.f32 %v933, %v957
          %v972 = vadd.f32 %v934, %v957
          %v973 = vadd.f32 %v935, %v957
          %v974 = vadd.f32 %v936, %v957
          %v975 = vadd.f32 %v937, %v957
          %v976 = vadd.f32 %v938, %v957
          %v977 = vadd.f32 %v939, %v957
          %v978 = vadd.f32 %v940, %v957
          %v979 = vadd.f32 %v941, %v957
          %v980 = vadd.f32 %v942, %v957
          %v981 = vadd.f32 %v943, %v957
          %v982 = vadd.f32 %v944, %v957
          %v983 = vadd.f32 %v945, %v957
          %v984 = vadd.f32 %v946, %v957
          %v985 = vadd.f32 %v947, %v957
          %v986 = vadd.f32 %v948, %v957
          %v987 = vadd.f32 %v949, %v957
          %v988 = vadd.f32 %v950, %v957
          %v989 = vadd.f32 %v951, %v957
          %v990 = vadd.f32 %v952, %v957
          %v991 = vpack.c.bf16 %v960, %v959
          %v992 = vpack.c.bf16 %v962, %v961
          %v993 = vpack.c.bf16 %v964, %v963
          %v994 = vpack.c.bf16 %v966, %v965
          %v995 = vpack.c.bf16 %v968, %v967
          %v996 = vpack.c.bf16 %v970, %v969
          %v997 = vpack.c.bf16 %v972, %v971
          %v998 = vpack.c.bf16 %v974, %v973
          %v999 = vpack.c.bf16 %v976, %v975
          %v1000 = vpack.c.bf16 %v978, %v977
          %v1001 = vpack.c.bf16 %v980, %v979
          %v1002 = vpack.c.bf16 %v982, %v981
          %v1003 = vpack.c.bf16 %v984, %v983
          %v1004 = vpack.c.bf16 %v986, %v985
          %v1005 = vpack.c.bf16 %v988, %v987
          %v1006 = vpack.c.bf16 %v990, %v989
          %v1007 = vld [vmem:[%s4] sm:$0xf]
          %v1008 = vld [vmem:[%s4 + $0x4] sm:$0xf]
          %v1009 = vld [vmem:[%s4 + $0x8] sm:$0xf]
          %v1010 = vld [vmem:[%s4 + $0xc] sm:$0xf]
          %v1011 = vld [vmem:[%s4 + $0x10] sm:$0xf]
          %v1012 = vld [vmem:[%s4 + $0x14] sm:$0xf]
          %v1013 = vld [vmem:[%s4 + $0x18] sm:$0xf]
          %v1014 = vld [vmem:[%s4 + $0x1c] sm:$0xf]
          %v1015 = vld [vmem:[%s4 + $0x20] sm:$0xf]
          %v1016 = vld [vmem:[%s4 + $0x24] sm:$0xf]
          %v1017 = vld [vmem:[%s4 + $0x28] sm:$0xf]
          %v1018 = vld [vmem:[%s4 + $0x2c] sm:$0xf]
          %v1019 = vld [vmem:[%s4 + $0x30] sm:$0xf]
          %v1020 = vld [vmem:[%s4 + $0x34] sm:$0xf]
          %v1021 = vld [vmem:[%s4 + $0x38] sm:$0xf]
          %v1022 = vld [vmem:[%s4 + $0x3c] sm:$0xf]
          %v1039 = vunpack.c.l.b16 %v1007
          %v1040 = vunpack.c.l.b16 %v1008
          %v1041 = vunpack.c.l.b16 %v1009
          %v1042 = vunpack.c.l.b16 %v1010
          %v1043 = vunpack.c.l.b16 %v1011
          %v1044 = vunpack.c.l.b16 %v1012
          %v1045 = vunpack.c.l.b16 %v1013
          %v1046 = vunpack.c.l.b16 %v1014
          %v1047 = vunpack.c.l.b16 %v1015
          %v1048 = vunpack.c.l.b16 %v1016
          %v1049 = vunpack.c.l.b16 %v1017
          %v1050 = vunpack.c.l.b16 %v1018
          %v1051 = vunpack.c.l.b16 %v1019
          %v1052 = vunpack.c.l.b16 %v1020
          %v1053 = vunpack.c.l.b16 %v1021
          %v1054 = vunpack.c.l.b16 %v1022
          %v1055 = vpack.c.b16 %v1040, %v1039
          %v1056 = vpack.c.b16 %v1042, %v1041
          %v1057 = vpack.c.b16 %v1044, %v1043
          %v1058 = vpack.c.b16 %v1046, %v1045
          %v1059 = vpack.c.b16 %v1048, %v1047
          %v1060 = vpack.c.b16 %v1050, %v1049
          %v1061 = vpack.c.b16 %v1052, %v1051
          %v1062 = vpack.c.b16 %v1054, %v1053
          %1071 = vmatprep.subr.bf16.mxu0 0
          %1072 = vmatpush1.bf16.msra.mxu0 %v1055
          %1073 = vmatprep.subr.bf16.mxu0 0
          %1074 = vmatpush1.bf16.msra.mxu0 %v1056
          %1075 = vmatprep.subr.bf16.mxu0 0
          %1076 = vmatpush1.bf16.msra.mxu0 %v1057
          %1077 = vmatprep.subr.bf16.mxu0 0
          %1078 = vmatpush1.bf16.msra.mxu0 %v1058
          %1079 = vmatprep.subr.bf16.mxu0 0
          %1080 = vmatpush1.bf16.msra.mxu0 %v1059
          %1081 = vmatprep.subr.bf16.mxu0 0
          %1082 = vmatpush1.bf16.msra.mxu0 %v1060
          %1083 = vmatprep.subr.bf16.mxu0 0
          %1084 = vmatpush1.bf16.msra.mxu0 %v1061
          %1085 = vmatprep.subr.bf16.mxu0 0
          %1086 = vmatpush1.bf16.msra.mxu0 %v1062
          %1087 = vmatprep.subr.bf16.mxu0 0
          %1088 = vmatpush1.bf16.msra.mxu0 0
          %1089 = vmatprep.subr.bf16.mxu0 0
          %1090 = vmatpush1.bf16.msra.mxu0 0
          %1091 = vmatprep.subr.bf16.mxu0 0
          %1092 = vmatpush1.bf16.msra.mxu0 0
          %1093 = vmatprep.subr.bf16.mxu0 0
          %1094 = vmatpush1.bf16.msra.mxu0 0
          %1095 = vmatprep.subr.bf16.mxu0 0
          %1096 = vmatpush1.bf16.msra.mxu0 0
          %1097 = vmatprep.subr.bf16.mxu0 0
          %1098 = vmatpush1.bf16.msra.mxu0 0
          %1099 = vmatprep.subr.bf16.mxu0 0
          %1100 = vmatpush1.bf16.msra.mxu0 0
          %1101 = vmatprep.subr.bf16.mxu0 0
          %1102 = vmatpush1.bf16.msra.mxu0 0
          %1103 = vmatprep.mubr.bf16.mxu0 0
          %1104 = vmatmul.mubr.bf16.gmra.mrb[0].mxu0 %v991
          %v1105 = vpop.f32.mrb[0].mxu0
          %v1106 = vadd.f32 0.0, %v1105
          %v1107 = vpop.f32.mrb[0].mxu0
          %v1108 = vpop.f32.mrb[0].mxu0
          %v1109 = vadd.f32 0.0, %v1108
          %v1110 = vpop.f32.mrb[0].mxu0
          %1111 = vmatprep.mubr.bf16.mxu0 0
          %1112 = vmatmul.mubr.bf16.gmra.mrb[0].mxu0 %v992
          %v1113 = vpop.f32.mrb[0].mxu0
          %v1114 = vadd.f32 0.0, %v1113
          %v1115 = vpop.f32.mrb[0].mxu0
          %v1116 = vpop.f32.mrb[0].mxu0
          %v1117 = vadd.f32 0.0, %v1116
          %v1118 = vpop.f32.mrb[0].mxu0
          %1119 = vmatprep.mubr.bf16.mxu0 0
          %1120 = vmatmul.mubr.bf16.gmra.mrb[0].mxu0 %v993
          %v1121 = vpop.f32.mrb[0].mxu0
          %v1122 = vadd.f32 0.0, %v1121
          %v1123 = vpop.f32.mrb[0].mxu0
          %v1124 = vpop.f32.mrb[0].mxu0
          %v1125 = vadd.f32 0.0, %v1124
          %v1126 = vpop.f32.mrb[0].mxu0
          %1127 = vmatprep.mubr.bf16.mxu0 0
          %1128 = vmatmul.mubr.bf16.gmra.mrb[0].mxu0 %v994
          %v1129 = vpop.f32.mrb[0].mxu0
          %v1130 = vadd.f32 0.0, %v1129
          %v1131 = vpop.f32.mrb[0].mxu0
          %v1132 = vpop.f32.mrb[0].mxu0
          %v1133 = vadd.f32 0.0, %v1132
          %v1134 = vpop.f32.mrb[0].mxu0
          %1135 = vmatprep.mubr.bf16.mxu0 0
          %1136 = vmatmul.mubr.bf16.gmra.mrb[0].mxu0 %v995
          %v1137 = vpop.f32.mrb[0].mxu0
          %v1138 = vadd.f32 0.0, %v1137
          %v1139 = vpop.f32.mrb[0].mxu0
          %v1140 = vpop.f32.mrb[0].mxu0
          %v1141 = vadd.f32 0.0, %v1140
          %v1142 = vpop.f32.mrb[0].mxu0
          %1143 = vmatprep.mubr.bf16.mxu0 0
          %1144 = vmatmul.mubr.bf16.gmra.mrb[0].mxu0 %v996
          %v1145 = vpop.f32.mrb[0].mxu0
          %v1146 = vadd.f32 0.0, %v1145
          %v1147 = vpop.f32.mrb[0].mxu0
          %v1148 = vpop.f32.mrb[0].mxu0
          %v1149 = vadd.f32 0.0, %v1148
          %v1150 = vpop.f32.mrb[0].mxu0
          %1151 = vmatprep.mubr.bf16.mxu0 0
          %1152 = vmatmul.mubr.bf16.gmra.mrb[0].mxu0 %v997
          %v1153 = vpop.f32.mrb[0].mxu0
          %v1154 = vadd.f32 0.0, %v1153
          %v1155 = vpop.f32.mrb[0].mxu0
          %v1156 = vpop.f32.mrb[0].mxu0
          %v1157 = vadd.f32 0.0, %v1156
          %v1158 = vpop.f32.mrb[0].mxu0
          %1159 = vmatprep.mubr.bf16.mxu0 0
          %1160 = vmatmul.mubr.bf16.gmra.mrb[0].mxu0 %v998
          %v1161 = vpop.f32.mrb[0].mxu0
          %v1162 = vadd.f32 0.0, %v1161
          %v1163 = vpop.f32.mrb[0].mxu0
          %v1164 = vpop.f32.mrb[0].mxu0
          %v1165 = vadd.f32 0.0, %v1164
          %v1166 = vpop.f32.mrb[0].mxu0
          %1167 = vmatprep.mubr.bf16.mxu0 0
          %1168 = vmatmul.mubr.bf16.gmra.mrb[0].mxu0 %v999
          %v1169 = vpop.f32.mrb[0].mxu0
          %v1170 = vadd.f32 0.0, %v1169
          %v1171 = vpop.f32.mrb[0].mxu0
          %v1172 = vpop.f32.mrb[0].mxu0
          %v1173 = vadd.f32 0.0, %v1172
          %v1174 = vpop.f32.mrb[0].mxu0
          %1175 = vmatprep.mubr.bf16.mxu0 0
          %1176 = vmatmul.mubr.bf16.gmra.mrb[0].mxu0 %v1000
          %v1177 = vpop.f32.mrb[0].mxu0
          %v1178 = vadd.f32 0.0, %v1177
          %v1179 = vpop.f32.mrb[0].mxu0
          %v1180 = vpop.f32.mrb[0].mxu0
          %v1181 = vadd.f32 0.0, %v1180
          %v1182 = vpop.f32.mrb[0].mxu0
          %1183 = vmatprep.mubr.bf16.mxu0 0
          %1184 = vmatmul.mubr.bf16.gmra.mrb[0].mxu0 %v1001
          %v1185 = vpop.f32.mrb[0].mxu0
          %v1186 = vadd.f32 0.0, %v1185
          %v1187 = vpop.f32.mrb[0].mxu0
          %v1188 = vpop.f32.mrb[0].mxu0
          %v1189 = vadd.f32 0.0, %v1188
          %v1190 = vpop.f32.mrb[0].mxu0
          %1191 = vmatprep.mubr.bf16.mxu0 0
          %1192 = vmatmul.mubr.bf16.gmra.mrb[0].mxu0 %v1002
          %v1193 = vpop.f32.mrb[0].mxu0
          %v1194 = vadd.f32 0.0, %v1193
          %v1195 = vpop.f32.mrb[0].mxu0
          %v1196 = vpop.f32.mrb[0].mxu0
          %v1197 = vadd.f32 0.0, %v1196
          %v1198 = vpop.f32.mrb[0].mxu0
          %1199 = vmatprep.mubr.bf16.mxu0 0
          %1200 = vmatmul.mubr.bf16.gmra.mrb[0].mxu0 %v1003
          %v1201 = vpop.f32.mrb[0].mxu0
          %v1202 = vadd.f32 0.0, %v1201
          %v1203 = vpop.f32.mrb[0].mxu0
          %v1204 = vpop.f32.mrb[0].mxu0
          %v1205 = vadd.f32 0.0, %v1204
          %v1206 = vpop.f32.mrb[0].mxu0
          %1207 = vmatprep.mubr.bf16.mxu0 0
          %1208 = vmatmul.mubr.bf16.gmra.mrb[0].mxu0 %v1004
          %v1209 = vpop.f32.mrb[0].mxu0
          %v1210 = vadd.f32 0.0, %v1209
          %v1211 = vpop.f32.mrb[0].mxu0
          %v1212 = vpop.f32.mrb[0].mxu0
          %v1213 = vadd.f32 0.0, %v1212
          %v1214 = vpop.f32.mrb[0].mxu0
          %1215 = vmatprep.mubr.bf16.mxu0 0
          %1216 = vmatmul.mubr.bf16.gmra.mrb[0].mxu0 %v1005
          %v1217 = vpop.f32.mrb[0].mxu0
          %v1218 = vadd.f32 0.0, %v1217
          %v1219 = vpop.f32.mrb[0].mxu0
          %v1220 = vpop.f32.mrb[0].mxu0
          %v1221 = vadd.f32 0.0, %v1220
          %v1222 = vpop.f32.mrb[0].mxu0
          %1223 = vmatprep.mubr.bf16.mxu0 0
          %1224 = vmatmul.mubr.bf16.gmra.mrb[0].mxu0 %v1006
          %v1225 = vpop.f32.mrb[0].mxu0
          %v1226 = vadd.f32 0.0, %v1225
          %v1227 = vpop.f32.mrb[0].mxu0
          %v1228 = vpop.f32.mrb[0].mxu0
          %v1229 = vadd.f32 0.0, %v1228
          %v1230 = vpop.f32.mrb[0].mxu0
          %1231 = vdwg.mxu0
          %v1232 = vpack.c.bf16 %v1109, %v1106
          %v1233 = vpack.c.bf16 %v1117, %v1114
          %v1234 = vpack.c.bf16 %v1125, %v1122
          %v1235 = vpack.c.bf16 %v1133, %v1130
          %v1236 = vpack.c.bf16 %v1141, %v1138
          %v1237 = vpack.c.bf16 %v1149, %v1146
          %v1238 = vpack.c.bf16 %v1157, %v1154
          %v1239 = vpack.c.bf16 %v1165, %v1162
          %v1240 = vpack.c.bf16 %v1173, %v1170
          %v1241 = vpack.c.bf16 %v1181, %v1178
          %v1242 = vpack.c.bf16 %v1189, %v1186
          %v1243 = vpack.c.bf16 %v1197, %v1194
          %v1244 = vpack.c.bf16 %v1205, %v1202
          %v1245 = vpack.c.bf16 %v1213, %v1210
          %v1246 = vpack.c.bf16 %v1221, %v1218
          %v1247 = vpack.c.bf16 %v1229, %v1226
          %vm1248 = vcmask 261120
          %1249 = vst.msk [vmem:[#allocation2] sm:$0xff] %vm1248, %v1232
          %1250 = vst.msk [vmem:[#allocation2 + $0x8] sm:$0xff] %vm1248, %v1233
          %1251 = vst.msk [vmem:[#allocation2 + $0x10] sm:$0xff] %vm1248, %v1234
          %1252 = vst.msk [vmem:[#allocation2 + $0x18] sm:$0xff] %vm1248, %v1235
          %1253 = vst.msk [vmem:[#allocation2 + $0x20] sm:$0xff] %vm1248, %v1236
          %1254 = vst.msk [vmem:[#allocation2 + $0x28] sm:$0xff] %vm1248, %v1237
          %1255 = vst.msk [vmem:[#allocation2 + $0x30] sm:$0xff] %vm1248, %v1238
          %1256 = vst.msk [vmem:[#allocation2 + $0x38] sm:$0xff] %vm1248, %v1239
          %1257 = vst.msk [vmem:[#allocation2 + $0x40] sm:$0xff] %vm1248, %v1240
          %1258 = vst.msk [vmem:[#allocation2 + $0x48] sm:$0xff] %vm1248, %v1241
          %1259 = vst.msk [vmem:[#allocation2 + $0x50] sm:$0xff] %vm1248, %v1242
          %1260 = vst.msk [vmem:[#allocation2 + $0x58] sm:$0xff] %vm1248, %v1243
          %1261 = vst.msk [vmem:[#allocation2 + $0x60] sm:$0xff] %vm1248, %v1244
          %1262 = vst.msk [vmem:[#allocation2 + $0x68] sm:$0xff] %vm1248, %v1245
          %1263 = vst.msk [vmem:[#allocation2 + $0x70] sm:$0xff] %vm1248, %v1246
          %1264 = vst.msk [vmem:[#allocation2 + $0x78] sm:$0xff] %vm1248, %v1247
          %v1265 = vld [vmem:[%s5] sm:$0xf]
          %v1266 = vld [vmem:[%s5 + $0x4] sm:$0xf]
          %v1267 = vld [vmem:[%s5 + $0x8] sm:$0xf]
          %v1268 = vld [vmem:[%s5 + $0xc] sm:$0xf]
          %v1269 = vld [vmem:[%s5 + $0x10] sm:$0xf]
          %v1270 = vld [vmem:[%s5 + $0x14] sm:$0xf]
          %v1271 = vld [vmem:[%s5 + $0x18] sm:$0xf]
          %v1272 = vld [vmem:[%s5 + $0x1c] sm:$0xf]
          %v1273 = vld [vmem:[%s5 + $0x20] sm:$0xf]
          %v1274 = vld [vmem:[%s5 + $0x24] sm:$0xf]
          %v1275 = vld [vmem:[%s5 + $0x28] sm:$0xf]
          %v1276 = vld [vmem:[%s5 + $0x2c] sm:$0xf]
          %v1277 = vld [vmem:[%s5 + $0x30] sm:$0xf]
          %v1278 = vld [vmem:[%s5 + $0x34] sm:$0xf]
          %v1279 = vld [vmem:[%s5 + $0x38] sm:$0xf]
          %v1280 = vld [vmem:[%s5 + $0x3c] sm:$0xf]
          %v1297 = vunpack.c.l.b16 %v1265
          %v1298 = vunpack.c.l.b16 %v1266
          %v1299 = vunpack.c.l.b16 %v1267
          %v1300 = vunpack.c.l.b16 %v1268
          %v1301 = vunpack.c.l.b16 %v1269
          %v1302 = vunpack.c.l.b16 %v1270
          %v1303 = vunpack.c.l.b16 %v1271
          %v1304 = vunpack.c.l.b16 %v1272
          %v1305 = vunpack.c.l.b16 %v1273
          %v1306 = vunpack.c.l.b16 %v1274
          %v1307 = vunpack.c.l.b16 %v1275
          %v1308 = vunpack.c.l.b16 %v1276
          %v1309 = vunpack.c.l.b16 %v1277
          %v1310 = vunpack.c.l.b16 %v1278
          %v1311 = vunpack.c.l.b16 %v1279
          %v1312 = vunpack.c.l.b16 %v1280
          %v1313 = vpack.c.b16 %v1298, %v1297
          %v1314 = vpack.c.b16 %v1300, %v1299
          %v1315 = vpack.c.b16 %v1302, %v1301
          %v1316 = vpack.c.b16 %v1304, %v1303
          %v1317 = vpack.c.b16 %v1306, %v1305
          %v1318 = vpack.c.b16 %v1308, %v1307
          %v1319 = vpack.c.b16 %v1310, %v1309
          %v1320 = vpack.c.b16 %v1312, %v1311
          %1329 = vmatprep.subr.bf16.mxu0 0
          %1330 = vmatpush1.bf16.msra.mxu0 %v1313
          %1331 = vmatprep.subr.bf16.mxu0 0
          %1332 = vmatpush1.bf16.msra.mxu0 %v1314
          %1333 = vmatprep.subr.bf16.mxu0 0
          %1334 = vmatpush1.bf16.msra.mxu0 %v1315
          %1335 = vmatprep.subr.bf16.mxu0 0
          %1336 = vmatpush1.bf16.msra.mxu0 %v1316
          %1337 = vmatprep.subr.bf16.mxu0 0
          %1338 = vmatpush1.bf16.msra.mxu0 %v1317
          %1339 = vmatprep.subr.bf16.mxu0 0
          %1340 = vmatpush1.bf16.msra.mxu0 %v1318
          %1341 = vmatprep.subr.bf16.mxu0 0
          %1342 = vmatpush1.bf16.msra.mxu0 %v1319
          %1343 = vmatprep.subr.bf16.mxu0 0
          %1344 = vmatpush1.bf16.msra.mxu0 %v1320
          %1345 = vmatprep.subr.bf16.mxu0 0
          %1346 = vmatpush1.bf16.msra.mxu0 0
          %1347 = vmatprep.subr.bf16.mxu0 0
          %1348 = vmatpush1.bf16.msra.mxu0 0
          %1349 = vmatprep.subr.bf16.mxu0 0
          %1350 = vmatpush1.bf16.msra.mxu0 0
          %1351 = vmatprep.subr.bf16.mxu0 0
          %1352 = vmatpush1.bf16.msra.mxu0 0
          %1353 = vmatprep.subr.bf16.mxu0 0
          %1354 = vmatpush1.bf16.msra.mxu0 0
          %1355 = vmatprep.subr.bf16.mxu0 0
          %1356 = vmatpush1.bf16.msra.mxu0 0
          %1357 = vmatprep.subr.bf16.mxu0 0
          %1358 = vmatpush1.bf16.msra.mxu0 0
          %1359 = vmatprep.subr.bf16.mxu0 0
          %1360 = vmatpush1.bf16.msra.mxu0 0
          %1361 = vmatprep.mubr.bf16.mxu0 0
          %1362 = vmatmul.mubr.bf16.gmra.mrb[0].mxu0 %v991
          %v1363 = vpop.f32.mrb[0].mxu0
          %v1364 = vadd.f32 0.0, %v1363
          %v1365 = vpop.f32.mrb[0].mxu0
          %v1366 = vpop.f32.mrb[0].mxu0
          %v1367 = vadd.f32 0.0, %v1366
          %v1368 = vpop.f32.mrb[0].mxu0
          %1369 = vmatprep.mubr.bf16.mxu0 0
          %1370 = vmatmul.mubr.bf16.gmra.mrb[0].mxu0 %v992
          %v1371 = vpop.f32.mrb[0].mxu0
          %v1372 = vadd.f32 0.0, %v1371
          %v1373 = vpop.f32.mrb[0].mxu0
          %v1374 = vpop.f32.mrb[0].mxu0
          %v1375 = vadd.f32 0.0, %v1374
          %v1376 = vpop.f32.mrb[0].mxu0
          %1377 = vmatprep.mubr.bf16.mxu0 0
          %1378 = vmatmul.mubr.bf16.gmra.mrb[0].mxu0 %v993
          %v1379 = vpop.f32.mrb[0].mxu0
          %v1380 = vadd.f32 0.0, %v1379
          %v1381 = vpop.f32.mrb[0].mxu0
          %v1382 = vpop.f32.mrb[0].mxu0
          %v1383 = vadd.f32 0.0, %v1382
          %v1384 = vpop.f32.mrb[0].mxu0
          %1385 = vmatprep.mubr.bf16.mxu0 0
          %1386 = vmatmul.mubr.bf16.gmra.mrb[0].mxu0 %v994
          %v1387 = vpop.f32.mrb[0].mxu0
          %v1388 = vadd.f32 0.0, %v1387
          %v1389 = vpop.f32.mrb[0].mxu0
          %v1390 = vpop.f32.mrb[0].mxu0
          %v1391 = vadd.f32 0.0, %v1390
          %v1392 = vpop.f32.mrb[0].mxu0
          %1393 = vmatprep.mubr.bf16.mxu0 0
          %1394 = vmatmul.mubr.bf16.gmra.mrb[0].mxu0 %v995
          %v1395 = vpop.f32.mrb[0].mxu0
          %v1396 = vadd.f32 0.0, %v1395
          %v1397 = vpop.f32.mrb[0].mxu0
          %v1398 = vpop.f32.mrb[0].mxu0
          %v1399 = vadd.f32 0.0, %v1398
          %v1400 = vpop.f32.mrb[0].mxu0
          %1401 = vmatprep.mubr.bf16.mxu0 0
          %1402 = vmatmul.mubr.bf16.gmra.mrb[0].mxu0 %v996
          %v1403 = vpop.f32.mrb[0].mxu0
          %v1404 = vadd.f32 0.0, %v1403
          %v1405 = vpop.f32.mrb[0].mxu0
          %v1406 = vpop.f32.mrb[0].mxu0
          %v1407 = vadd.f32 0.0, %v1406
          %v1408 = vpop.f32.mrb[0].mxu0
          %1409 = vmatprep.mubr.bf16.mxu0 0
          %1410 = vmatmul.mubr.bf16.gmra.mrb[0].mxu0 %v997
          %v1411 = vpop.f32.mrb[0].mxu0
          %v1412 = vadd.f32 0.0, %v1411
          %v1413 = vpop.f32.mrb[0].mxu0
          %v1414 = vpop.f32.mrb[0].mxu0
          %v1415 = vadd.f32 0.0, %v1414
          %v1416 = vpop.f32.mrb[0].mxu0
          %1417 = vmatprep.mubr.bf16.mxu0 0
          %1418 = vmatmul.mubr.bf16.gmra.mrb[0].mxu0 %v998
          %v1419 = vpop.f32.mrb[0].mxu0
          %v1420 = vadd.f32 0.0, %v1419
          %v1421 = vpop.f32.mrb[0].mxu0
          %v1422 = vpop.f32.mrb[0].mxu0
          %v1423 = vadd.f32 0.0, %v1422
          %v1424 = vpop.f32.mrb[0].mxu0
          %1425 = vmatprep.mubr.bf16.mxu0 0
          %1426 = vmatmul.mubr.bf16.gmra.mrb[0].mxu0 %v999
          %v1427 = vpop.f32.mrb[0].mxu0
          %v1428 = vadd.f32 0.0, %v1427
          %v1429 = vpop.f32.mrb[0].mxu0
          %v1430 = vpop.f32.mrb[0].mxu0
          %v1431 = vadd.f32 0.0, %v1430
          %v1432 = vpop.f32.mrb[0].mxu0
          %1433 = vmatprep.mubr.bf16.mxu0 0
          %1434 = vmatmul.mubr.bf16.gmra.mrb[0].mxu0 %v1000
          %v1435 = vpop.f32.mrb[0].mxu0
          %v1436 = vadd.f32 0.0, %v1435
          %v1437 = vpop.f32.mrb[0].mxu0
          %v1438 = vpop.f32.mrb[0].mxu0
          %v1439 = vadd.f32 0.0, %v1438
          %v1440 = vpop.f32.mrb[0].mxu0
          %1441 = vmatprep.mubr.bf16.mxu0 0
          %1442 = vmatmul.mubr.bf16.gmra.mrb[0].mxu0 %v1001
          %v1443 = vpop.f32.mrb[0].mxu0
          %v1444 = vadd.f32 0.0, %v1443
          %v1445 = vpop.f32.mrb[0].mxu0
          %v1446 = vpop.f32.mrb[0].mxu0
          %v1447 = vadd.f32 0.0, %v1446
          %v1448 = vpop.f32.mrb[0].mxu0
          %1449 = vmatprep.mubr.bf16.mxu0 0
          %1450 = vmatmul.mubr.bf16.gmra.mrb[0].mxu0 %v1002
          %v1451 = vpop.f32.mrb[0].mxu0
          %v1452 = vadd.f32 0.0, %v1451
          %v1453 = vpop.f32.mrb[0].mxu0
          %v1454 = vpop.f32.mrb[0].mxu0
          %v1455 = vadd.f32 0.0, %v1454
          %v1456 = vpop.f32.mrb[0].mxu0
          %1457 = vmatprep.mubr.bf16.mxu0 0
          %1458 = vmatmul.mubr.bf16.gmra.mrb[0].mxu0 %v1003
          %v1459 = vpop.f32.mrb[0].mxu0
          %v1460 = vadd.f32 0.0, %v1459
          %v1461 = vpop.f32.mrb[0].mxu0
          %v1462 = vpop.f32.mrb[0].mxu0
          %v1463 = vadd.f32 0.0, %v1462
          %v1464 = vpop.f32.mrb[0].mxu0
          %1465 = vmatprep.mubr.bf16.mxu0 0
          %1466 = vmatmul.mubr.bf16.gmra.mrb[0].mxu0 %v1004
          %v1467 = vpop.f32.mrb[0].mxu0
          %v1468 = vadd.f32 0.0, %v1467
          %v1469 = vpop.f32.mrb[0].mxu0
          %v1470 = vpop.f32.mrb[0].mxu0
          %v1471 = vadd.f32 0.0, %v1470
          %v1472 = vpop.f32.mrb[0].mxu0
          %1473 = vmatprep.mubr.bf16.mxu0 0
          %1474 = vmatmul.mubr.bf16.gmra.mrb[0].mxu0 %v1005
          %v1475 = vpop.f32.mrb[0].mxu0
          %v1476 = vadd.f32 0.0, %v1475
          %v1477 = vpop.f32.mrb[0].mxu0
          %v1478 = vpop.f32.mrb[0].mxu0
          %v1479 = vadd.f32 0.0, %v1478
          %v1480 = vpop.f32.mrb[0].mxu0
          %1481 = vmatprep.mubr.bf16.mxu0 0
          %1482 = vmatmul.mubr.bf16.gmra.mrb[0].mxu0 %v1006
          %v1483 = vpop.f32.mrb[0].mxu0
          %v1484 = vadd.f32 0.0, %v1483
          %v1485 = vpop.f32.mrb[0].mxu0
          %v1486 = vpop.f32.mrb[0].mxu0
          %v1487 = vadd.f32 0.0, %v1486
          %v1488 = vpop.f32.mrb[0].mxu0
          %1489 = vdwg.mxu0
          %v1490 = vpack.c.bf16 %v1367, %v1364
          %v1491 = vpack.c.bf16 %v1375, %v1372
          %v1492 = vpack.c.bf16 %v1383, %v1380
          %v1493 = vpack.c.bf16 %v1391, %v1388
          %v1494 = vpack.c.bf16 %v1399, %v1396
          %v1495 = vpack.c.bf16 %v1407, %v1404
          %v1496 = vpack.c.bf16 %v1415, %v1412
          %v1497 = vpack.c.bf16 %v1423, %v1420
          %v1498 = vpack.c.bf16 %v1431, %v1428
          %v1499 = vpack.c.bf16 %v1439, %v1436
          %v1500 = vpack.c.bf16 %v1447, %v1444
          %v1501 = vpack.c.bf16 %v1455, %v1452
          %v1502 = vpack.c.bf16 %v1463, %v1460
          %v1503 = vpack.c.bf16 %v1471, %v1468
          %v1504 = vpack.c.bf16 %v1479, %v1476
          %v1505 = vpack.c.bf16 %v1487, %v1484
          %1506 = vst.msk [vmem:[#allocation3] sm:$0xff] %vm1248, %v1490
          %1507 = vst.msk [vmem:[#allocation3 + $0x8] sm:$0xff] %vm1248, %v1491
          %1508 = vst.msk [vmem:[#allocation3 + $0x10] sm:$0xff] %vm1248, %v1492
          %1509 = vst.msk [vmem:[#allocation3 + $0x18] sm:$0xff] %vm1248, %v1493
          %1510 = vst.msk [vmem:[#allocation3 + $0x20] sm:$0xff] %vm1248, %v1494
          %1511 = vst.msk [vmem:[#allocation3 + $0x28] sm:$0xff] %vm1248, %v1495
          %1512 = vst.msk [vmem:[#allocation3 + $0x30] sm:$0xff] %vm1248, %v1496
          %1513 = vst.msk [vmem:[#allocation3 + $0x38] sm:$0xff] %vm1248, %v1497
          %1514 = vst.msk [vmem:[#allocation3 + $0x40] sm:$0xff] %vm1248, %v1498
          %1515 = vst.msk [vmem:[#allocation3 + $0x48] sm:$0xff] %vm1248, %v1499
          %1516 = vst.msk [vmem:[#allocation3 + $0x50] sm:$0xff] %vm1248, %v1500
          %1517 = vst.msk [vmem:[#allocation3 + $0x58] sm:$0xff] %vm1248, %v1501
          %1518 = vst.msk [vmem:[#allocation3 + $0x60] sm:$0xff] %vm1248, %v1502
          %1519 = vst.msk [vmem:[#allocation3 + $0x68] sm:$0xff] %vm1248, %v1503
          %1520 = vst.msk [vmem:[#allocation3 + $0x70] sm:$0xff] %vm1248, %v1504
          %1521 = vst.msk [vmem:[#allocation3 + $0x78] sm:$0xff] %vm1248, %v1505
          %s1522 = scalar_lea.vmem %s4, 64
          %v1523 = vld [vmem:[%s1522] sm:$0xf]
          %v1524 = vld [vmem:[%s1522 + $0x4] sm:$0xf]
          %v1525 = vld [vmem:[%s1522 + $0x8] sm:$0xf]
          %v1526 = vld [vmem:[%s1522 + $0xc] sm:$0xf]
          %v1527 = vld [vmem:[%s1522 + $0x10] sm:$0xf]
          %v1528 = vld [vmem:[%s1522 + $0x14] sm:$0xf]
          %v1529 = vld [vmem:[%s1522 + $0x18] sm:$0xf]
          %v1530 = vld [vmem:[%s1522 + $0x1c] sm:$0xf]
          %v1531 = vld [vmem:[%s1522 + $0x20] sm:$0xf]
          %v1532 = vld [vmem:[%s1522 + $0x24] sm:$0xf]
          %v1533 = vld [vmem:[%s1522 + $0x28] sm:$0xf]
          %v1534 = vld [vmem:[%s1522 + $0x2c] sm:$0xf]
          %v1535 = vld [vmem:[%s1522 + $0x30] sm:$0xf]
          %v1536 = vld [vmem:[%s1522 + $0x34] sm:$0xf]
          %v1537 = vld [vmem:[%s1522 + $0x38] sm:$0xf]
          %v1538 = vld [vmem:[%s1522 + $0x3c] sm:$0xf]
          %v1555 = vunpack.c.l.b16 %v1523
          %v1556 = vunpack.c.l.b16 %v1524
          %v1557 = vunpack.c.l.b16 %v1525
          %v1558 = vunpack.c.l.b16 %v1526
          %v1559 = vunpack.c.l.b16 %v1527
          %v1560 = vunpack.c.l.b16 %v1528
          %v1561 = vunpack.c.l.b16 %v1529
          %v1562 = vunpack.c.l.b16 %v1530
          %v1563 = vunpack.c.l.b16 %v1531
          %v1564 = vunpack.c.l.b16 %v1532
          %v1565 = vunpack.c.l.b16 %v1533
          %v1566 = vunpack.c.l.b16 %v1534
          %v1567 = vunpack.c.l.b16 %v1535
          %v1568 = vunpack.c.l.b16 %v1536
          %v1569 = vunpack.c.l.b16 %v1537
          %v1570 = vunpack.c.l.b16 %v1538
          %v1571 = vpack.c.b16 %v1556, %v1555
          %v1572 = vpack.c.b16 %v1558, %v1557
          %v1573 = vpack.c.b16 %v1560, %v1559
          %v1574 = vpack.c.b16 %v1562, %v1561
          %v1575 = vpack.c.b16 %v1564, %v1563
          %v1576 = vpack.c.b16 %v1566, %v1565
          %v1577 = vpack.c.b16 %v1568, %v1567
          %v1578 = vpack.c.b16 %v1570, %v1569
          %1587 = vmatprep.subr.bf16.mxu0 0
          %1588 = vmatpush1.bf16.msra.mxu0 %v1571
          %1589 = vmatprep.subr.bf16.mxu0 0
          %1590 = vmatpush1.bf16.msra.mxu0 %v1572
          %1591 = vmatprep.subr.bf16.mxu0 0
          %1592 = vmatpush1.bf16.msra.mxu0 %v1573
          %1593 = vmatprep.subr.bf16.mxu0 0
          %1594 = vmatpush1.bf16.msra.mxu0 %v1574
          %1595 = vmatprep.subr.bf16.mxu0 0
          %1596 = vmatpush1.bf16.msra.mxu0 %v1575
          %1597 = vmatprep.subr.bf16.mxu0 0
          %1598 = vmatpush1.bf16.msra.mxu0 %v1576
          %1599 = vmatprep.subr.bf16.mxu0 0
          %1600 = vmatpush1.bf16.msra.mxu0 %v1577
          %1601 = vmatprep.subr.bf16.mxu0 0
          %1602 = vmatpush1.bf16.msra.mxu0 %v1578
          %1603 = vmatprep.subr.bf16.mxu0 0
          %1604 = vmatpush1.bf16.msra.mxu0 0
          %1605 = vmatprep.subr.bf16.mxu0 0
          %1606 = vmatpush1.bf16.msra.mxu0 0
          %1607 = vmatprep.subr.bf16.mxu0 0
          %1608 = vmatpush1.bf16.msra.mxu0 0
          %1609 = vmatprep.subr.bf16.mxu0 0
          %1610 = vmatpush1.bf16.msra.mxu0 0
          %1611 = vmatprep.subr.bf16.mxu0 0
          %1612 = vmatpush1.bf16.msra.mxu0 0
          %1613 = vmatprep.subr.bf16.mxu0 0
          %1614 = vmatpush1.bf16.msra.mxu0 0
          %1615 = vmatprep.subr.bf16.mxu0 0
          %1616 = vmatpush1.bf16.msra.mxu0 0
          %1617 = vmatprep.subr.bf16.mxu0 0
          %1618 = vmatpush1.bf16.msra.mxu0 0
          %1619 = vmatprep.mubr.bf16.mxu0 0
          %1620 = vmatmul.mubr.bf16.gmra.mrb[0].mxu0 %v991
          %v1621 = vpop.f32.mrb[0].mxu0
          %v1622 = vadd.f32 0.0, %v1621
          %v1623 = vpop.f32.mrb[0].mxu0
          %v1624 = vpop.f32.mrb[0].mxu0
          %v1625 = vadd.f32 0.0, %v1624
          %v1626 = vpop.f32.mrb[0].mxu0
          %1627 = vmatprep.mubr.bf16.mxu0 0
          %1628 = vmatmul.mubr.bf16.gmra.mrb[0].mxu0 %v992
          %v1629 = vpop.f32.mrb[0].mxu0
          %v1630 = vadd.f32 0.0, %v1629
          %v1631 = vpop.f32.mrb[0].mxu0
          %v1632 = vpop.f32.mrb[0].mxu0
          %v1633 = vadd.f32 0.0, %v1632
          %v1634 = vpop.f32.mrb[0].mxu0
          %1635 = vmatprep.mubr.bf16.mxu0 0
          %1636 = vmatmul.mubr.bf16.gmra.mrb[0].mxu0 %v993
          %v1637 = vpop.f32.mrb[0].mxu0
          %v1638 = vadd.f32 0.0, %v1637
          %v1639 = vpop.f32.mrb[0].mxu0
          %v1640 = vpop.f32.mrb[0].mxu0
          %v1641 = vadd.f32 0.0, %v1640
          %v1642 = vpop.f32.mrb[0].mxu0
          %1643 = vmatprep.mubr.bf16.mxu0 0
          %1644 = vmatmul.mubr.bf16.gmra.mrb[0].mxu0 %v994
          %v1645 = vpop.f32.mrb[0].mxu0
          %v1646 = vadd.f32 0.0, %v1645
          %v1647 = vpop.f32.mrb[0].mxu0
          %v1648 = vpop.f32.mrb[0].mxu0
          %v1649 = vadd.f32 0.0, %v1648
          %v1650 = vpop.f32.mrb[0].mxu0
          %1651 = vmatprep.mubr.bf16.mxu0 0
          %1652 = vmatmul.mubr.bf16.gmra.mrb[0].mxu0 %v995
          %v1653 = vpop.f32.mrb[0].mxu0
          %v1654 = vadd.f32 0.0, %v1653
          %v1655 = vpop.f32.mrb[0].mxu0
          %v1656 = vpop.f32.mrb[0].mxu0
          %v1657 = vadd.f32 0.0, %v1656
          %v1658 = vpop.f32.mrb[0].mxu0
          %1659 = vmatprep.mubr.bf16.mxu0 0
          %1660 = vmatmul.mubr.bf16.gmra.mrb[0].mxu0 %v996
          %v1661 = vpop.f32.mrb[0].mxu0
          %v1662 = vadd.f32 0.0, %v1661
          %v1663 = vpop.f32.mrb[0].mxu0
          %v1664 = vpop.f32.mrb[0].mxu0
          %v1665 = vadd.f32 0.0, %v1664
          %v1666 = vpop.f32.mrb[0].mxu0
          %1667 = vmatprep.mubr.bf16.mxu0 0
          %1668 = vmatmul.mubr.bf16.gmra.mrb[0].mxu0 %v997
          %v1669 = vpop.f32.mrb[0].mxu0
          %v1670 = vadd.f32 0.0, %v1669
          %v1671 = vpop.f32.mrb[0].mxu0
          %v1672 = vpop.f32.mrb[0].mxu0
          %v1673 = vadd.f32 0.0, %v1672
          %v1674 = vpop.f32.mrb[0].mxu0
          %1675 = vmatprep.mubr.bf16.mxu0 0
          %1676 = vmatmul.mubr.bf16.gmra.mrb[0].mxu0 %v998
          %v1677 = vpop.f32.mrb[0].mxu0
          %v1678 = vadd.f32 0.0, %v1677
          %v1679 = vpop.f32.mrb[0].mxu0
          %v1680 = vpop.f32.mrb[0].mxu0
          %v1681 = vadd.f32 0.0, %v1680
          %v1682 = vpop.f32.mrb[0].mxu0
          %1683 = vmatprep.mubr.bf16.mxu0 0
          %1684 = vmatmul.mubr.bf16.gmra.mrb[0].mxu0 %v999
          %v1685 = vpop.f32.mrb[0].mxu0
          %v1686 = vadd.f32 0.0, %v1685
          %v1687 = vpop.f32.mrb[0].mxu0
          %v1688 = vpop.f32.mrb[0].mxu0
          %v1689 = vadd.f32 0.0, %v1688
          %v1690 = vpop.f32.mrb[0].mxu0
          %1691 = vmatprep.mubr.bf16.mxu0 0
          %1692 = vmatmul.mubr.bf16.gmra.mrb[0].mxu0 %v1000
          %v1693 = vpop.f32.mrb[0].mxu0
          %v1694 = vadd.f32 0.0, %v1693
          %v1695 = vpop.f32.mrb[0].mxu0
          %v1696 = vpop.f32.mrb[0].mxu0
          %v1697 = vadd.f32 0.0, %v1696
          %v1698 = vpop.f32.mrb[0].mxu0
          %1699 = vmatprep.mubr.bf16.mxu0 0
          %1700 = vmatmul.mubr.bf16.gmra.mrb[0].mxu0 %v1001
          %v1701 = vpop.f32.mrb[0].mxu0
          %v1702 = vadd.f32 0.0, %v1701
          %v1703 = vpop.f32.mrb[0].mxu0
          %v1704 = vpop.f32.mrb[0].mxu0
          %v1705 = vadd.f32 0.0, %v1704
          %v1706 = vpop.f32.mrb[0].mxu0
          %1707 = vmatprep.mubr.bf16.mxu0 0
          %1708 = vmatmul.mubr.bf16.gmra.mrb[0].mxu0 %v1002
          %v1709 = vpop.f32.mrb[0].mxu0
          %v1710 = vadd.f32 0.0, %v1709
          %v1711 = vpop.f32.mrb[0].mxu0
          %v1712 = vpop.f32.mrb[0].mxu0
          %v1713 = vadd.f32 0.0, %v1712
          %v1714 = vpop.f32.mrb[0].mxu0
          %1715 = vmatprep.mubr.bf16.mxu0 0
          %1716 = vmatmul.mubr.bf16.gmra.mrb[0].mxu0 %v1003
          %v1717 = vpop.f32.mrb[0].mxu0
          %v1718 = vadd.f32 0.0, %v1717
          %v1719 = vpop.f32.mrb[0].mxu0
          %v1720 = vpop.f32.mrb[0].mxu0
          %v1721 = vadd.f32 0.0, %v1720
          %v1722 = vpop.f32.mrb[0].mxu0
          %1723 = vmatprep.mubr.bf16.mxu0 0
          %1724 = vmatmul.mubr.bf16.gmra.mrb[0].mxu0 %v1004
          %v1725 = vpop.f32.mrb[0].mxu0
          %v1726 = vadd.f32 0.0, %v1725
          %v1727 = vpop.f32.mrb[0].mxu0
          %v1728 = vpop.f32.mrb[0].mxu0
          %v1729 = vadd.f32 0.0, %v1728
          %v1730 = vpop.f32.mrb[0].mxu0
          %1731 = vmatprep.mubr.bf16.mxu0 0
          %1732 = vmatmul.mubr.bf16.gmra.mrb[0].mxu0 %v1005
          %v1733 = vpop.f32.mrb[0].mxu0
          %v1734 = vadd.f32 0.0, %v1733
          %v1735 = vpop.f32.mrb[0].mxu0
          %v1736 = vpop.f32.mrb[0].mxu0
          %v1737 = vadd.f32 0.0, %v1736
          %v1738 = vpop.f32.mrb[0].mxu0
          %1739 = vmatprep.mubr.bf16.mxu0 0
          %1740 = vmatmul.mubr.bf16.gmra.mrb[0].mxu0 %v1006
          %v1741 = vpop.f32.mrb[0].mxu0
          %v1742 = vadd.f32 0.0, %v1741
          %v1743 = vpop.f32.mrb[0].mxu0
          %v1744 = vpop.f32.mrb[0].mxu0
          %v1745 = vadd.f32 0.0, %v1744
          %v1746 = vpop.f32.mrb[0].mxu0
          %1747 = vdwg.mxu0
          %v1748 = vpack.c.bf16 %v1625, %v1622
          %v1749 = vpack.c.bf16 %v1633, %v1630
          %v1750 = vpack.c.bf16 %v1641, %v1638
          %v1751 = vpack.c.bf16 %v1649, %v1646
          %v1752 = vpack.c.bf16 %v1657, %v1654
          %v1753 = vpack.c.bf16 %v1665, %v1662
          %v1754 = vpack.c.bf16 %v1673, %v1670
          %v1755 = vpack.c.bf16 %v1681, %v1678
          %v1756 = vpack.c.bf16 %v1689, %v1686
          %v1757 = vpack.c.bf16 %v1697, %v1694
          %v1758 = vpack.c.bf16 %v1705, %v1702
          %v1759 = vpack.c.bf16 %v1713, %v1710
          %v1760 = vpack.c.bf16 %v1721, %v1718
          %v1761 = vpack.c.bf16 %v1729, %v1726
          %v1762 = vpack.c.bf16 %v1737, %v1734
          %v1763 = vpack.c.bf16 %v1745, %v1742
          %s1764 = scalar_lea.vmem [#allocation2], 128
          %1765 = vst.msk [vmem:[%s1764] sm:$0xff] %vm1248, %v1748
          %1766 = vst.msk [vmem:[%s1764 + $0x8] sm:$0xff] %vm1248, %v1749
          %1767 = vst.msk [vmem:[%s1764 + $0x10] sm:$0xff] %vm1248, %v1750
          %1768 = vst.msk [vmem:[%s1764 + $0x18] sm:$0xff] %vm1248, %v1751
          %1769 = vst.msk [vmem:[%s1764 + $0x20] sm:$0xff] %vm1248, %v1752
          %1770 = vst.msk [vmem:[%s1764 + $0x28] sm:$0xff] %vm1248, %v1753
          %1771 = vst.msk [vmem:[%s1764 + $0x30] sm:$0xff] %vm1248, %v1754
          %1772 = vst.msk [vmem:[%s1764 + $0x38] sm:$0xff] %vm1248, %v1755
          %1773 = vst.msk [vmem:[%s1764 + $0x40] sm:$0xff] %vm1248, %v1756
          %1774 = vst.msk [vmem:[%s1764 + $0x48] sm:$0xff] %vm1248, %v1757
          %1775 = vst.msk [vmem:[%s1764 + $0x50] sm:$0xff] %vm1248, %v1758
          %1776 = vst.msk [vmem:[%s1764 + $0x58] sm:$0xff] %vm1248, %v1759
          %1777 = vst.msk [vmem:[%s1764 + $0x60] sm:$0xff] %vm1248, %v1760
          %1778 = vst.msk [vmem:[%s1764 + $0x68] sm:$0xff] %vm1248, %v1761
          %1779 = vst.msk [vmem:[%s1764 + $0x70] sm:$0xff] %vm1248, %v1762
          %1780 = vst.msk [vmem:[%s1764 + $0x78] sm:$0xff] %vm1248, %v1763
          %s1781 = scalar_lea.vmem %s5, 64
          %v1782 = vld [vmem:[%s1781] sm:$0xf]
          %v1783 = vld [vmem:[%s1781 + $0x4] sm:$0xf]
          %v1784 = vld [vmem:[%s1781 + $0x8] sm:$0xf]
          %v1785 = vld [vmem:[%s1781 + $0xc] sm:$0xf]
          %v1786 = vld [vmem:[%s1781 + $0x10] sm:$0xf]
          %v1787 = vld [vmem:[%s1781 + $0x14] sm:$0xf]
          %v1788 = vld [vmem:[%s1781 + $0x18] sm:$0xf]
          %v1789 = vld [vmem:[%s1781 + $0x1c] sm:$0xf]
          %v1790 = vld [vmem:[%s1781 + $0x20] sm:$0xf]
          %v1791 = vld [vmem:[%s1781 + $0x24] sm:$0xf]
          %v1792 = vld [vmem:[%s1781 + $0x28] sm:$0xf]
          %v1793 = vld [vmem:[%s1781 + $0x2c] sm:$0xf]
          %v1794 = vld [vmem:[%s1781 + $0x30] sm:$0xf]
          %v1795 = vld [vmem:[%s1781 + $0x34] sm:$0xf]
          %v1796 = vld [vmem:[%s1781 + $0x38] sm:$0xf]
          %v1797 = vld [vmem:[%s1781 + $0x3c] sm:$0xf]
          %v1814 = vunpack.c.l.b16 %v1782
          %v1815 = vunpack.c.l.b16 %v1783
          %v1816 = vunpack.c.l.b16 %v1784
          %v1817 = vunpack.c.l.b16 %v1785
          %v1818 = vunpack.c.l.b16 %v1786
          %v1819 = vunpack.c.l.b16 %v1787
          %v1820 = vunpack.c.l.b16 %v1788
          %v1821 = vunpack.c.l.b16 %v1789
          %v1822 = vunpack.c.l.b16 %v1790
          %v1823 = vunpack.c.l.b16 %v1791
          %v1824 = vunpack.c.l.b16 %v1792
          %v1825 = vunpack.c.l.b16 %v1793
          %v1826 = vunpack.c.l.b16 %v1794
          %v1827 = vunpack.c.l.b16 %v1795
          %v1828 = vunpack.c.l.b16 %v1796
          %v1829 = vunpack.c.l.b16 %v1797
          %v1830 = vpack.c.b16 %v1815, %v1814
          %v1831 = vpack.c.b16 %v1817, %v1816
          %v1832 = vpack.c.b16 %v1819, %v1818
          %v1833 = vpack.c.b16 %v1821, %v1820
          %v1834 = vpack.c.b16 %v1823, %v1822
          %v1835 = vpack.c.b16 %v1825, %v1824
          %v1836 = vpack.c.b16 %v1827, %v1826
          %v1837 = vpack.c.b16 %v1829, %v1828
          %1846 = vmatprep.subr.bf16.mxu0 0
          %1847 = vmatpush1.bf16.msra.mxu0 %v1830
          %1848 = vmatprep.subr.bf16.mxu0 0
          %1849 = vmatpush1.bf16.msra.mxu0 %v1831
          %1850 = vmatprep.subr.bf16.mxu0 0
          %1851 = vmatpush1.bf16.msra.mxu0 %v1832
          %1852 = vmatprep.subr.bf16.mxu0 0
          %1853 = vmatpush1.bf16.msra.mxu0 %v1833
          %1854 = vmatprep.subr.bf16.mxu0 0
          %1855 = vmatpush1.bf16.msra.mxu0 %v1834
          %1856 = vmatprep.subr.bf16.mxu0 0
          %1857 = vmatpush1.bf16.msra.mxu0 %v1835
          %1858 = vmatprep.subr.bf16.mxu0 0
          %1859 = vmatpush1.bf16.msra.mxu0 %v1836
          %1860 = vmatprep.subr.bf16.mxu0 0
          %1861 = vmatpush1.bf16.msra.mxu0 %v1837
          %1862 = vmatprep.subr.bf16.mxu0 0
          %1863 = vmatpush1.bf16.msra.mxu0 0
          %1864 = vmatprep.subr.bf16.mxu0 0
          %1865 = vmatpush1.bf16.msra.mxu0 0
          %1866 = vmatprep.subr.bf16.mxu0 0
          %1867 = vmatpush1.bf16.msra.mxu0 0
          %1868 = vmatprep.subr.bf16.mxu0 0
          %1869 = vmatpush1.bf16.msra.mxu0 0
          %1870 = vmatprep.subr.bf16.mxu0 0
          %1871 = vmatpush1.bf16.msra.mxu0 0
          %1872 = vmatprep.subr.bf16.mxu0 0
          %1873 = vmatpush1.bf16.msra.mxu0 0
          %1874 = vmatprep.subr.bf16.mxu0 0
          %1875 = vmatpush1.bf16.msra.mxu0 0
          %1876 = vmatprep.subr.bf16.mxu0 0
          %1877 = vmatpush1.bf16.msra.mxu0 0
          %1878 = vmatprep.mubr.bf16.mxu0 0
          %1879 = vmatmul.mubr.bf16.gmra.mrb[0].mxu0 %v991
          %v1880 = vpop.f32.mrb[0].mxu0
          %v1881 = vadd.f32 0.0, %v1880
          %v1882 = vpop.f32.mrb[0].mxu0
          %v1883 = vpop.f32.mrb[0].mxu0
          %v1884 = vadd.f32 0.0, %v1883
          %v1885 = vpop.f32.mrb[0].mxu0
          %1886 = vmatprep.mubr.bf16.mxu0 0
          %1887 = vmatmul.mubr.bf16.gmra.mrb[0].mxu0 %v992
          %v1888 = vpop.f32.mrb[0].mxu0
          %v1889 = vadd.f32 0.0, %v1888
          %v1890 = vpop.f32.mrb[0].mxu0
          %v1891 = vpop.f32.mrb[0].mxu0
          %v1892 = vadd.f32 0.0, %v1891
          %v1893 = vpop.f32.mrb[0].mxu0
          %1894 = vmatprep.mubr.bf16.mxu0 0
          %1895 = vmatmul.mubr.bf16.gmra.mrb[0].mxu0 %v993
          %v1896 = vpop.f32.mrb[0].mxu0
          %v1897 = vadd.f32 0.0, %v1896
          %v1898 = vpop.f32.mrb[0].mxu0
          %v1899 = vpop.f32.mrb[0].mxu0
          %v1900 = vadd.f32 0.0, %v1899
          %v1901 = vpop.f32.mrb[0].mxu0
          %1902 = vmatprep.mubr.bf16.mxu0 0
          %1903 = vmatmul.mubr.bf16.gmra.mrb[0].mxu0 %v994
          %v1904 = vpop.f32.mrb[0].mxu0
          %v1905 = vadd.f32 0.0, %v1904
          %v1906 = vpop.f32.mrb[0].mxu0
          %v1907 = vpop.f32.mrb[0].mxu0
          %v1908 = vadd.f32 0.0, %v1907
          %v1909 = vpop.f32.mrb[0].mxu0
          %1910 = vmatprep.mubr.bf16.mxu0 0
          %1911 = vmatmul.mubr.bf16.gmra.mrb[0].mxu0 %v995
          %v1912 = vpop.f32.mrb[0].mxu0
          %v1913 = vadd.f32 0.0, %v1912
          %v1914 = vpop.f32.mrb[0].mxu0
          %v1915 = vpop.f32.mrb[0].mxu0
          %v1916 = vadd.f32 0.0, %v1915
          %v1917 = vpop.f32.mrb[0].mxu0
          %1918 = vmatprep.mubr.bf16.mxu0 0
          %1919 = vmatmul.mubr.bf16.gmra.mrb[0].mxu0 %v996
          %v1920 = vpop.f32.mrb[0].mxu0
          %v1921 = vadd.f32 0.0, %v1920
          %v1922 = vpop.f32.mrb[0].mxu0
          %v1923 = vpop.f32.mrb[0].mxu0
          %v1924 = vadd.f32 0.0, %v1923
          %v1925 = vpop.f32.mrb[0].mxu0
          %1926 = vmatprep.mubr.bf16.mxu0 0
          %1927 = vmatmul.mubr.bf16.gmra.mrb[0].mxu0 %v997
          %v1928 = vpop.f32.mrb[0].mxu0
          %v1929 = vadd.f32 0.0, %v1928
          %v1930 = vpop.f32.mrb[0].mxu0
          %v1931 = vpop.f32.mrb[0].mxu0
          %v1932 = vadd.f32 0.0, %v1931
          %v1933 = vpop.f32.mrb[0].mxu0
          %1934 = vmatprep.mubr.bf16.mxu0 0
          %1935 = vmatmul.mubr.bf16.gmra.mrb[0].mxu0 %v998
          %v1936 = vpop.f32.mrb[0].mxu0
          %v1937 = vadd.f32 0.0, %v1936
          %v1938 = vpop.f32.mrb[0].mxu0
          %v1939 = vpop.f32.mrb[0].mxu0
          %v1940 = vadd.f32 0.0, %v1939
          %v1941 = vpop.f32.mrb[0].mxu0
          %1942 = vmatprep.mubr.bf16.mxu0 0
          %1943 = vmatmul.mubr.bf16.gmra.mrb[0].mxu0 %v999
          %v1944 = vpop.f32.mrb[0].mxu0
          %v1945 = vadd.f32 0.0, %v1944
          %v1946 = vpop.f32.mrb[0].mxu0
          %v1947 = vpop.f32.mrb[0].mxu0
          %v1948 = vadd.f32 0.0, %v1947
          %v1949 = vpop.f32.mrb[0].mxu0
          %1950 = vmatprep.mubr.bf16.mxu0 0
          %1951 = vmatmul.mubr.bf16.gmra.mrb[0].mxu0 %v1000
          %v1952 = vpop.f32.mrb[0].mxu0
          %v1953 = vadd.f32 0.0, %v1952
          %v1954 = vpop.f32.mrb[0].mxu0
          %v1955 = vpop.f32.mrb[0].mxu0
          %v1956 = vadd.f32 0.0, %v1955
          %v1957 = vpop.f32.mrb[0].mxu0
          %1958 = vmatprep.mubr.bf16.mxu0 0
          %1959 = vmatmul.mubr.bf16.gmra.mrb[0].mxu0 %v1001
          %v1960 = vpop.f32.mrb[0].mxu0
          %v1961 = vadd.f32 0.0, %v1960
          %v1962 = vpop.f32.mrb[0].mxu0
          %v1963 = vpop.f32.mrb[0].mxu0
          %v1964 = vadd.f32 0.0, %v1963
          %v1965 = vpop.f32.mrb[0].mxu0
          %1966 = vmatprep.mubr.bf16.mxu0 0
          %1967 = vmatmul.mubr.bf16.gmra.mrb[0].mxu0 %v1002
          %v1968 = vpop.f32.mrb[0].mxu0
          %v1969 = vadd.f32 0.0, %v1968
          %v1970 = vpop.f32.mrb[0].mxu0
          %v1971 = vpop.f32.mrb[0].mxu0
          %v1972 = vadd.f32 0.0, %v1971
          %v1973 = vpop.f32.mrb[0].mxu0
          %1974 = vmatprep.mubr.bf16.mxu0 0
          %1975 = vmatmul.mubr.bf16.gmra.mrb[0].mxu0 %v1003
          %v1976 = vpop.f32.mrb[0].mxu0
          %v1977 = vadd.f32 0.0, %v1976
          %v1978 = vpop.f32.mrb[0].mxu0
          %v1979 = vpop.f32.mrb[0].mxu0
          %v1980 = vadd.f32 0.0, %v1979
          %v1981 = vpop.f32.mrb[0].mxu0
          %1982 = vmatprep.mubr.bf16.mxu0 0
          %1983 = vmatmul.mubr.bf16.gmra.mrb[0].mxu0 %v1004
          %v1984 = vpop.f32.mrb[0].mxu0
          %v1985 = vadd.f32 0.0, %v1984
          %v1986 = vpop.f32.mrb[0].mxu0
          %v1987 = vpop.f32.mrb[0].mxu0
          %v1988 = vadd.f32 0.0, %v1987
          %v1989 = vpop.f32.mrb[0].mxu0
          %1990 = vmatprep.mubr.bf16.mxu0 0
          %1991 = vmatmul.mubr.bf16.gmra.mrb[0].mxu0 %v1005
          %v1992 = vpop.f32.mrb[0].mxu0
          %v1993 = vadd.f32 0.0, %v1992
          %v1994 = vpop.f32.mrb[0].mxu0
          %v1995 = vpop.f32.mrb[0].mxu0
          %v1996 = vadd.f32 0.0, %v1995
          %v1997 = vpop.f32.mrb[0].mxu0
          %1998 = vmatprep.mubr.bf16.mxu0 0
          %1999 = vmatmul.mubr.bf16.gmra.mrb[0].mxu0 %v1006
          %v2000 = vpop.f32.mrb[0].mxu0
          %v2001 = vadd.f32 0.0, %v2000
          %v2002 = vpop.f32.mrb[0].mxu0
          %v2003 = vpop.f32.mrb[0].mxu0
          %v2004 = vadd.f32 0.0, %v2003
          %v2005 = vpop.f32.mrb[0].mxu0
          %2006 = vdwg.mxu0
          %v2007 = vpack.c.bf16 %v1884, %v1881
          %v2008 = vpack.c.bf16 %v1892, %v1889
          %v2009 = vpack.c.bf16 %v1900, %v1897
          %v2010 = vpack.c.bf16 %v1908, %v1905
          %v2011 = vpack.c.bf16 %v1916, %v1913
          %v2012 = vpack.c.bf16 %v1924, %v1921
          %v2013 = vpack.c.bf16 %v1932, %v1929
          %v2014 = vpack.c.bf16 %v1940, %v1937
          %v2015 = vpack.c.bf16 %v1948, %v1945
          %v2016 = vpack.c.bf16 %v1956, %v1953
          %v2017 = vpack.c.bf16 %v1964, %v1961
          %v2018 = vpack.c.bf16 %v1972, %v1969
          %v2019 = vpack.c.bf16 %v1980, %v1977
          %v2020 = vpack.c.bf16 %v1988, %v1985
          %v2021 = vpack.c.bf16 %v1996, %v1993
          %v2022 = vpack.c.bf16 %v2004, %v2001
          %s2023 = scalar_lea.vmem [#allocation3], 128
          %2024 = vst.msk [vmem:[%s2023] sm:$0xff] %vm1248, %v2007
          %2025 = vst.msk [vmem:[%s2023 + $0x8] sm:$0xff] %vm1248, %v2008
          %2026 = vst.msk [vmem:[%s2023 + $0x10] sm:$0xff] %vm1248, %v2009
          %2027 = vst.msk [vmem:[%s2023 + $0x18] sm:$0xff] %vm1248, %v2010
          %2028 = vst.msk [vmem:[%s2023 + $0x20] sm:$0xff] %vm1248, %v2011
          %2029 = vst.msk [vmem:[%s2023 + $0x28] sm:$0xff] %vm1248, %v2012
          %2030 = vst.msk [vmem:[%s2023 + $0x30] sm:$0xff] %vm1248, %v2013
          %2031 = vst.msk [vmem:[%s2023 + $0x38] sm:$0xff] %vm1248, %v2014
          %2032 = vst.msk [vmem:[%s2023 + $0x40] sm:$0xff] %vm1248, %v2015
          %2033 = vst.msk [vmem:[%s2023 + $0x48] sm:$0xff] %vm1248, %v2016
          %2034 = vst.msk [vmem:[%s2023 + $0x50] sm:$0xff] %vm1248, %v2017
          %2035 = vst.msk [vmem:[%s2023 + $0x58] sm:$0xff] %vm1248, %v2018
          %2036 = vst.msk [vmem:[%s2023 + $0x60] sm:$0xff] %vm1248, %v2019
          %2037 = vst.msk [vmem:[%s2023 + $0x68] sm:$0xff] %vm1248, %v2020
          %2038 = vst.msk [vmem:[%s2023 + $0x70] sm:$0xff] %vm1248, %v2021
          %2039 = vst.msk [vmem:[%s2023 + $0x78] sm:$0xff] %vm1248, %v2022
          %s2040 = scalar_lea.vmem %s4, 128
          %v2041 = vld [vmem:[%s2040] sm:$0xf]
          %v2042 = vld [vmem:[%s2040 + $0x4] sm:$0xf]
          %v2043 = vld [vmem:[%s2040 + $0x8] sm:$0xf]
          %v2044 = vld [vmem:[%s2040 + $0xc] sm:$0xf]
          %v2045 = vld [vmem:[%s2040 + $0x10] sm:$0xf]
          %v2046 = vld [vmem:[%s2040 + $0x14] sm:$0xf]
          %v2047 = vld [vmem:[%s2040 + $0x18] sm:$0xf]
          %v2048 = vld [vmem:[%s2040 + $0x1c] sm:$0xf]
          %v2049 = vld [vmem:[%s2040 + $0x20] sm:$0xf]
          %v2050 = vld [vmem:[%s2040 + $0x24] sm:$0xf]
          %v2051 = vld [vmem:[%s2040 + $0x28] sm:$0xf]
          %v2052 = vld [vmem:[%s2040 + $0x2c] sm:$0xf]
          %v2053 = vld [vmem:[%s2040 + $0x30] sm:$0xf]
          %v2054 = vld [vmem:[%s2040 + $0x34] sm:$0xf]
          %v2055 = vld [vmem:[%s2040 + $0x38] sm:$0xf]
          %v2056 = vld [vmem:[%s2040 + $0x3c] sm:$0xf]
          %v2073 = vunpack.c.l.b16 %v2041
          %v2074 = vunpack.c.l.b16 %v2042
          %v2075 = vunpack.c.l.b16 %v2043
          %v2076 = vunpack.c.l.b16 %v2044
          %v2077 = vunpack.c.l.b16 %v2045
          %v2078 = vunpack.c.l.b16 %v2046
          %v2079 = vunpack.c.l.b16 %v2047
          %v2080 = vunpack.c.l.b16 %v2048
          %v2081 = vunpack.c.l.b16 %v2049
          %v2082 = vunpack.c.l.b16 %v2050
          %v2083 = vunpack.c.l.b16 %v2051
          %v2084 = vunpack.c.l.b16 %v2052
          %v2085 = vunpack.c.l.b16 %v2053
          %v2086 = vunpack.c.l.b16 %v2054
          %v2087 = vunpack.c.l.b16 %v2055
          %v2088 = vunpack.c.l.b16 %v2056
          %v2089 = vpack.c.b16 %v2074, %v2073
          %v2090 = vpack.c.b16 %v2076, %v2075
          %v2091 = vpack.c.b16 %v2078, %v2077
          %v2092 = vpack.c.b16 %v2080, %v2079
          %v2093 = vpack.c.b16 %v2082, %v2081
          %v2094 = vpack.c.b16 %v2084, %v2083
          %v2095 = vpack.c.b16 %v2086, %v2085
          %v2096 = vpack.c.b16 %v2088, %v2087
          %2105 = vmatprep.subr.bf16.mxu0 0
          %2106 = vmatpush1.bf16.msra.mxu0 %v2089
          %2107 = vmatprep.subr.bf16.mxu0 0
          %2108 = vmatpush1.bf16.msra.mxu0 %v2090
          %2109 = vmatprep.subr.bf16.mxu0 0
          %2110 = vmatpush1.bf16.msra.mxu0 %v2091
          %2111 = vmatprep.subr.bf16.mxu0 0
          %2112 = vmatpush1.bf16.msra.mxu0 %v2092
          %2113 = vmatprep.subr.bf16.mxu0 0
          %2114 = vmatpush1.bf16.msra.mxu0 %v2093
          %2115 = vmatprep.subr.bf16.mxu0 0
          %2116 = vmatpush1.bf16.msra.mxu0 %v2094
          %2117 = vmatprep.subr.bf16.mxu0 0
          %2118 = vmatpush1.bf16.msra.mxu0 %v2095
          %2119 = vmatprep.subr.bf16.mxu0 0
          %2120 = vmatpush1.bf16.msra.mxu0 %v2096
          %2121 = vmatprep.subr.bf16.mxu0 0
          %2122 = vmatpush1.bf16.msra.mxu0 0
          %2123 = vmatprep.subr.bf16.mxu0 0
          %2124 = vmatpush1.bf16.msra.mxu0 0
          %2125 = vmatprep.subr.bf16.mxu0 0
          %2126 = vmatpush1.bf16.msra.mxu0 0
          %2127 = vmatprep.subr.bf16.mxu0 0
          %2128 = vmatpush1.bf16.msra.mxu0 0
          %2129 = vmatprep.subr.bf16.mxu0 0
          %2130 = vmatpush1.bf16.msra.mxu0 0
          %2131 = vmatprep.subr.bf16.mxu0 0
          %2132 = vmatpush1.bf16.msra.mxu0 0
          %2133 = vmatprep.subr.bf16.mxu0 0
          %2134 = vmatpush1.bf16.msra.mxu0 0
          %2135 = vmatprep.subr.bf16.mxu0 0
          %2136 = vmatpush1.bf16.msra.mxu0 0
          %2137 = vmatprep.mubr.bf16.mxu0 0
          %2138 = vmatmul.mubr.bf16.gmra.mrb[0].mxu0 %v991
          %v2139 = vpop.f32.mrb[0].mxu0
          %v2140 = vadd.f32 0.0, %v2139
          %v2141 = vpop.f32.mrb[0].mxu0
          %v2142 = vpop.f32.mrb[0].mxu0
          %v2143 = vadd.f32 0.0, %v2142
          %v2144 = vpop.f32.mrb[0].mxu0
          %2145 = vmatprep.mubr.bf16.mxu0 0
          %2146 = vmatmul.mubr.bf16.gmra.mrb[0].mxu0 %v992
          %v2147 = vpop.f32.mrb[0].mxu0
          %v2148 = vadd.f32 0.0, %v2147
          %v2149 = vpop.f32.mrb[0].mxu0
          %v2150 = vpop.f32.mrb[0].mxu0
          %v2151 = vadd.f32 0.0, %v2150
          %v2152 = vpop.f32.mrb[0].mxu0
          %2153 = vmatprep.mubr.bf16.mxu0 0
          %2154 = vmatmul.mubr.bf16.gmra.mrb[0].mxu0 %v993
          %v2155 = vpop.f32.mrb[0].mxu0
          %v2156 = vadd.f32 0.0, %v2155
          %v2157 = vpop.f32.mrb[0].mxu0
          %v2158 = vpop.f32.mrb[0].mxu0
          %v2159 = vadd.f32 0.0, %v2158
          %v2160 = vpop.f32.mrb[0].mxu0
          %2161 = vmatprep.mubr.bf16.mxu0 0
          %2162 = vmatmul.mubr.bf16.gmra.mrb[0].mxu0 %v994
          %v2163 = vpop.f32.mrb[0].mxu0
          %v2164 = vadd.f32 0.0, %v2163
          %v2165 = vpop.f32.mrb[0].mxu0
          %v2166 = vpop.f32.mrb[0].mxu0
          %v2167 = vadd.f32 0.0, %v2166
          %v2168 = vpop.f32.mrb[0].mxu0
          %2169 = vmatprep.mubr.bf16.mxu0 0
          %2170 = vmatmul.mubr.bf16.gmra.mrb[0].mxu0 %v995
          %v2171 = vpop.f32.mrb[0].mxu0
          %v2172 = vadd.f32 0.0, %v2171
          %v2173 = vpop.f32.mrb[0].mxu0
          %v2174 = vpop.f32.mrb[0].mxu0
          %v2175 = vadd.f32 0.0, %v2174
          %v2176 = vpop.f32.mrb[0].mxu0
          %2177 = vmatprep.mubr.bf16.mxu0 0
          %2178 = vmatmul.mubr.bf16.gmra.mrb[0].mxu0 %v996
          %v2179 = vpop.f32.mrb[0].mxu0
          %v2180 = vadd.f32 0.0, %v2179
          %v2181 = vpop.f32.mrb[0].mxu0
          %v2182 = vpop.f32.mrb[0].mxu0
          %v2183 = vadd.f32 0.0, %v2182
          %v2184 = vpop.f32.mrb[0].mxu0
          %2185 = vmatprep.mubr.bf16.mxu0 0
          %2186 = vmatmul.mubr.bf16.gmra.mrb[0].mxu0 %v997
          %v2187 = vpop.f32.mrb[0].mxu0
          %v2188 = vadd.f32 0.0, %v2187
          %v2189 = vpop.f32.mrb[0].mxu0
          %v2190 = vpop.f32.mrb[0].mxu0
          %v2191 = vadd.f32 0.0, %v2190
          %v2192 = vpop.f32.mrb[0].mxu0
          %2193 = vmatprep.mubr.bf16.mxu0 0
          %2194 = vmatmul.mubr.bf16.gmra.mrb[0].mxu0 %v998
          %v2195 = vpop.f32.mrb[0].mxu0
          %v2196 = vadd.f32 0.0, %v2195
          %v2197 = vpop.f32.mrb[0].mxu0
          %v2198 = vpop.f32.mrb[0].mxu0
          %v2199 = vadd.f32 0.0, %v2198
          %v2200 = vpop.f32.mrb[0].mxu0
          %2201 = vmatprep.mubr.bf16.mxu0 0
          %2202 = vmatmul.mubr.bf16.gmra.mrb[0].mxu0 %v999
          %v2203 = vpop.f32.mrb[0].mxu0
          %v2204 = vadd.f32 0.0, %v2203
          %v2205 = vpop.f32.mrb[0].mxu0
          %v2206 = vpop.f32.mrb[0].mxu0
          %v2207 = vadd.f32 0.0, %v2206
          %v2208 = vpop.f32.mrb[0].mxu0
          %2209 = vmatprep.mubr.bf16.mxu0 0
          %2210 = vmatmul.mubr.bf16.gmra.mrb[0].mxu0 %v1000
          %v2211 = vpop.f32.mrb[0].mxu0
          %v2212 = vadd.f32 0.0, %v2211
          %v2213 = vpop.f32.mrb[0].mxu0
          %v2214 = vpop.f32.mrb[0].mxu0
          %v2215 = vadd.f32 0.0, %v2214
          %v2216 = vpop.f32.mrb[0].mxu0
          %2217 = vmatprep.mubr.bf16.mxu0 0
          %2218 = vmatmul.mubr.bf16.gmra.mrb[0].mxu0 %v1001
          %v2219 = vpop.f32.mrb[0].mxu0
          %v2220 = vadd.f32 0.0, %v2219
          %v2221 = vpop.f32.mrb[0].mxu0
          %v2222 = vpop.f32.mrb[0].mxu0
          %v2223 = vadd.f32 0.0, %v2222
          %v2224 = vpop.f32.mrb[0].mxu0
          %2225 = vmatprep.mubr.bf16.mxu0 0
          %2226 = vmatmul.mubr.bf16.gmra.mrb[0].mxu0 %v1002
          %v2227 = vpop.f32.mrb[0].mxu0
          %v2228 = vadd.f32 0.0, %v2227
          %v2229 = vpop.f32.mrb[0].mxu0
          %v2230 = vpop.f32.mrb[0].mxu0
          %v2231 = vadd.f32 0.0, %v2230
          %v2232 = vpop.f32.mrb[0].mxu0
          %2233 = vmatprep.mubr.bf16.mxu0 0
          %2234 = vmatmul.mubr.bf16.gmra.mrb[0].mxu0 %v1003
          %v2235 = vpop.f32.mrb[0].mxu0
          %v2236 = vadd.f32 0.0, %v2235
          %v2237 = vpop.f32.mrb[0].mxu0
          %v2238 = vpop.f32.mrb[0].mxu0
          %v2239 = vadd.f32 0.0, %v2238
          %v2240 = vpop.f32.mrb[0].mxu0
          %2241 = vmatprep.mubr.bf16.mxu0 0
          %2242 = vmatmul.mubr.bf16.gmra.mrb[0].mxu0 %v1004
          %v2243 = vpop.f32.mrb[0].mxu0
          %v2244 = vadd.f32 0.0, %v2243
          %v2245 = vpop.f32.mrb[0].mxu0
          %v2246 = vpop.f32.mrb[0].mxu0
          %v2247 = vadd.f32 0.0, %v2246
          %v2248 = vpop.f32.mrb[0].mxu0
          %2249 = vmatprep.mubr.bf16.mxu0 0
          %2250 = vmatmul.mubr.bf16.gmra.mrb[0].mxu0 %v1005
          %v2251 = vpop.f32.mrb[0].mxu0
          %v2252 = vadd.f32 0.0, %v2251
          %v2253 = vpop.f32.mrb[0].mxu0
          %v2254 = vpop.f32.mrb[0].mxu0
          %v2255 = vadd.f32 0.0, %v2254
          %v2256 = vpop.f32.mrb[0].mxu0
          %2257 = vmatprep.mubr.bf16.mxu0 0
          %2258 = vmatmul.mubr.bf16.gmra.mrb[0].mxu0 %v1006
          %v2259 = vpop.f32.mrb[0].mxu0
          %v2260 = vadd.f32 0.0, %v2259
          %v2261 = vpop.f32.mrb[0].mxu0
          %v2262 = vpop.f32.mrb[0].mxu0
          %v2263 = vadd.f32 0.0, %v2262
          %v2264 = vpop.f32.mrb[0].mxu0
          %2265 = vdwg.mxu0
          %v2266 = vpack.c.bf16 %v2143, %v2140
          %v2267 = vpack.c.bf16 %v2151, %v2148
          %v2268 = vpack.c.bf16 %v2159, %v2156
          %v2269 = vpack.c.bf16 %v2167, %v2164
          %v2270 = vpack.c.bf16 %v2175, %v2172
          %v2271 = vpack.c.bf16 %v2183, %v2180
          %v2272 = vpack.c.bf16 %v2191, %v2188
          %v2273 = vpack.c.bf16 %v2199, %v2196
          %v2274 = vpack.c.bf16 %v2207, %v2204
          %v2275 = vpack.c.bf16 %v2215, %v2212
          %v2276 = vpack.c.bf16 %v2223, %v2220
          %v2277 = vpack.c.bf16 %v2231, %v2228
          %v2278 = vpack.c.bf16 %v2239, %v2236
          %v2279 = vpack.c.bf16 %v2247, %v2244
          %v2280 = vpack.c.bf16 %v2255, %v2252
          %v2281 = vpack.c.bf16 %v2263, %v2260
          %s2282 = scalar_lea.vmem [#allocation2], 256
          %2283 = vst.msk [vmem:[%s2282] sm:$0xff] %vm1248, %v2266
          %2284 = vst.msk [vmem:[%s2282 + $0x8] sm:$0xff] %vm1248, %v2267
          %2285 = vst.msk [vmem:[%s2282 + $0x10] sm:$0xff] %vm1248, %v2268
          %2286 = vst.msk [vmem:[%s2282 + $0x18] sm:$0xff] %vm1248, %v2269
          %2287 = vst.msk [vmem:[%s2282 + $0x20] sm:$0xff] %vm1248, %v2270
          %2288 = vst.msk [vmem:[%s2282 + $0x28] sm:$0xff] %vm1248, %v2271
          %2289 = vst.msk [vmem:[%s2282 + $0x30] sm:$0xff] %vm1248, %v2272
          %2290 = vst.msk [vmem:[%s2282 + $0x38] sm:$0xff] %vm1248, %v2273
          %2291 = vst.msk [vmem:[%s2282 + $0x40] sm:$0xff] %vm1248, %v2274
          %2292 = vst.msk [vmem:[%s2282 + $0x48] sm:$0xff] %vm1248, %v2275
          %2293 = vst.msk [vmem:[%s2282 + $0x50] sm:$0xff] %vm1248, %v2276
          %2294 = vst.msk [vmem:[%s2282 + $0x58] sm:$0xff] %vm1248, %v2277
          %2295 = vst.msk [vmem:[%s2282 + $0x60] sm:$0xff] %vm1248, %v2278
          %2296 = vst.msk [vmem:[%s2282 + $0x68] sm:$0xff] %vm1248, %v2279
          %2297 = vst.msk [vmem:[%s2282 + $0x70] sm:$0xff] %vm1248, %v2280
          %2298 = vst.msk [vmem:[%s2282 + $0x78] sm:$0xff] %vm1248, %v2281
          %s2299 = scalar_lea.vmem %s5, 128
          %v2300 = vld [vmem:[%s2299] sm:$0xf]
          %v2301 = vld [vmem:[%s2299 + $0x4] sm:$0xf]
          %v2302 = vld [vmem:[%s2299 + $0x8] sm:$0xf]
          %v2303 = vld [vmem:[%s2299 + $0xc] sm:$0xf]
          %v2304 = vld [vmem:[%s2299 + $0x10] sm:$0xf]
          %v2305 = vld [vmem:[%s2299 + $0x14] sm:$0xf]
          %v2306 = vld [vmem:[%s2299 + $0x18] sm:$0xf]
          %v2307 = vld [vmem:[%s2299 + $0x1c] sm:$0xf]
          %v2308 = vld [vmem:[%s2299 + $0x20] sm:$0xf]
          %v2309 = vld [vmem:[%s2299 + $0x24] sm:$0xf]
          %v2310 = vld [vmem:[%s2299 + $0x28] sm:$0xf]
          %v2311 = vld [vmem:[%s2299 + $0x2c] sm:$0xf]
          %v2312 = vld [vmem:[%s2299 + $0x30] sm:$0xf]
          %v2313 = vld [vmem:[%s2299 + $0x34] sm:$0xf]
          %v2314 = vld [vmem:[%s2299 + $0x38] sm:$0xf]
          %v2315 = vld [vmem:[%s2299 + $0x3c] sm:$0xf]
          %v2332 = vunpack.c.l.b16 %v2300
          %v2333 = vunpack.c.l.b16 %v2301
          %v2334 = vunpack.c.l.b16 %v2302
          %v2335 = vunpack.c.l.b16 %v2303
          %v2336 = vunpack.c.l.b16 %v2304
          %v2337 = vunpack.c.l.b16 %v2305
          %v2338 = vunpack.c.l.b16 %v2306
          %v2339 = vunpack.c.l.b16 %v2307
          %v2340 = vunpack.c.l.b16 %v2308
          %v2341 = vunpack.c.l.b16 %v2309
          %v2342 = vunpack.c.l.b16 %v2310
          %v2343 = vunpack.c.l.b16 %v2311
          %v2344 = vunpack.c.l.b16 %v2312
          %v2345 = vunpack.c.l.b16 %v2313
          %v2346 = vunpack.c.l.b16 %v2314
          %v2347 = vunpack.c.l.b16 %v2315
          %v2348 = vpack.c.b16 %v2333, %v2332
          %v2349 = vpack.c.b16 %v2335, %v2334
          %v2350 = vpack.c.b16 %v2337, %v2336
          %v2351 = vpack.c.b16 %v2339, %v2338
          %v2352 = vpack.c.b16 %v2341, %v2340
          %v2353 = vpack.c.b16 %v2343, %v2342
          %v2354 = vpack.c.b16 %v2345, %v2344
          %v2355 = vpack.c.b16 %v2347, %v2346
          %2364 = vmatprep.subr.bf16.mxu0 0
          %2365 = vmatpush1.bf16.msra.mxu0 %v2348
          %2366 = vmatprep.subr.bf16.mxu0 0
          %2367 = vmatpush1.bf16.msra.mxu0 %v2349
          %2368 = vmatprep.subr.bf16.mxu0 0
          %2369 = vmatpush1.bf16.msra.mxu0 %v2350
          %2370 = vmatprep.subr.bf16.mxu0 0
          %2371 = vmatpush1.bf16.msra.mxu0 %v2351
          %2372 = vmatprep.subr.bf16.mxu0 0
          %2373 = vmatpush1.bf16.msra.mxu0 %v2352
          %2374 = vmatprep.subr.bf16.mxu0 0
          %2375 = vmatpush1.bf16.msra.mxu0 %v2353
          %2376 = vmatprep.subr.bf16.mxu0 0
          %2377 = vmatpush1.bf16.msra.mxu0 %v2354
          %2378 = vmatprep.subr.bf16.mxu0 0
          %2379 = vmatpush1.bf16.msra.mxu0 %v2355
          %2380 = vmatprep.subr.bf16.mxu0 0
          %2381 = vmatpush1.bf16.msra.mxu0 0
          %2382 = vmatprep.subr.bf16.mxu0 0
          %2383 = vmatpush1.bf16.msra.mxu0 0
          %2384 = vmatprep.subr.bf16.mxu0 0
          %2385 = vmatpush1.bf16.msra.mxu0 0
          %2386 = vmatprep.subr.bf16.mxu0 0
          %2387 = vmatpush1.bf16.msra.mxu0 0
          %2388 = vmatprep.subr.bf16.mxu0 0
          %2389 = vmatpush1.bf16.msra.mxu0 0
          %2390 = vmatprep.subr.bf16.mxu0 0
          %2391 = vmatpush1.bf16.msra.mxu0 0
          %2392 = vmatprep.subr.bf16.mxu0 0
          %2393 = vmatpush1.bf16.msra.mxu0 0
          %2394 = vmatprep.subr.bf16.mxu0 0
          %2395 = vmatpush1.bf16.msra.mxu0 0
          %2396 = vmatprep.mubr.bf16.mxu0 0
          %2397 = vmatmul.mubr.bf16.gmra.mrb[0].mxu0 %v991
          %v2398 = vpop.f32.mrb[0].mxu0
          %v2399 = vadd.f32 0.0, %v2398
          %v2400 = vpop.f32.mrb[0].mxu0
          %v2401 = vpop.f32.mrb[0].mxu0
          %v2402 = vadd.f32 0.0, %v2401
          %v2403 = vpop.f32.mrb[0].mxu0
          %2404 = vmatprep.mubr.bf16.mxu0 0
          %2405 = vmatmul.mubr.bf16.gmra.mrb[0].mxu0 %v992
          %v2406 = vpop.f32.mrb[0].mxu0
          %v2407 = vadd.f32 0.0, %v2406
          %v2408 = vpop.f32.mrb[0].mxu0
          %v2409 = vpop.f32.mrb[0].mxu0
          %v2410 = vadd.f32 0.0, %v2409
          %v2411 = vpop.f32.mrb[0].mxu0
          %2412 = vmatprep.mubr.bf16.mxu0 0
          %2413 = vmatmul.mubr.bf16.gmra.mrb[0].mxu0 %v993
          %v2414 = vpop.f32.mrb[0].mxu0
          %v2415 = vadd.f32 0.0, %v2414
          %v2416 = vpop.f32.mrb[0].mxu0
          %v2417 = vpop.f32.mrb[0].mxu0
          %v2418 = vadd.f32 0.0, %v2417
          %v2419 = vpop.f32.mrb[0].mxu0
          %2420 = vmatprep.mubr.bf16.mxu0 0
          %2421 = vmatmul.mubr.bf16.gmra.mrb[0].mxu0 %v994
          %v2422 = vpop.f32.mrb[0].mxu0
          %v2423 = vadd.f32 0.0, %v2422
          %v2424 = vpop.f32.mrb[0].mxu0
          %v2425 = vpop.f32.mrb[0].mxu0
          %v2426 = vadd.f32 0.0, %v2425
          %v2427 = vpop.f32.mrb[0].mxu0
          %2428 = vmatprep.mubr.bf16.mxu0 0
          %2429 = vmatmul.mubr.bf16.gmra.mrb[0].mxu0 %v995
          %v2430 = vpop.f32.mrb[0].mxu0
          %v2431 = vadd.f32 0.0, %v2430
          %v2432 = vpop.f32.mrb[0].mxu0
          %v2433 = vpop.f32.mrb[0].mxu0
          %v2434 = vadd.f32 0.0, %v2433
          %v2435 = vpop.f32.mrb[0].mxu0
          %2436 = vmatprep.mubr.bf16.mxu0 0
          %2437 = vmatmul.mubr.bf16.gmra.mrb[0].mxu0 %v996
          %v2438 = vpop.f32.mrb[0].mxu0
          %v2439 = vadd.f32 0.0, %v2438
          %v2440 = vpop.f32.mrb[0].mxu0
          %v2441 = vpop.f32.mrb[0].mxu0
          %v2442 = vadd.f32 0.0, %v2441
          %v2443 = vpop.f32.mrb[0].mxu0
          %2444 = vmatprep.mubr.bf16.mxu0 0
          %2445 = vmatmul.mubr.bf16.gmra.mrb[0].mxu0 %v997
          %v2446 = vpop.f32.mrb[0].mxu0
          %v2447 = vadd.f32 0.0, %v2446
          %v2448 = vpop.f32.mrb[0].mxu0
          %v2449 = vpop.f32.mrb[0].mxu0
          %v2450 = vadd.f32 0.0, %v2449
          %v2451 = vpop.f32.mrb[0].mxu0
          %2452 = vmatprep.mubr.bf16.mxu0 0
          %2453 = vmatmul.mubr.bf16.gmra.mrb[0].mxu0 %v998
          %v2454 = vpop.f32.mrb[0].mxu0
          %v2455 = vadd.f32 0.0, %v2454
          %v2456 = vpop.f32.mrb[0].mxu0
          %v2457 = vpop.f32.mrb[0].mxu0
          %v2458 = vadd.f32 0.0, %v2457
          %v2459 = vpop.f32.mrb[0].mxu0
          %2460 = vmatprep.mubr.bf16.mxu0 0
          %2461 = vmatmul.mubr.bf16.gmra.mrb[0].mxu0 %v999
          %v2462 = vpop.f32.mrb[0].mxu0
          %v2463 = vadd.f32 0.0, %v2462
          %v2464 = vpop.f32.mrb[0].mxu0
          %v2465 = vpop.f32.mrb[0].mxu0
          %v2466 = vadd.f32 0.0, %v2465
          %v2467 = vpop.f32.mrb[0].mxu0
          %2468 = vmatprep.mubr.bf16.mxu0 0
          %2469 = vmatmul.mubr.bf16.gmra.mrb[0].mxu0 %v1000
          %v2470 = vpop.f32.mrb[0].mxu0
          %v2471 = vadd.f32 0.0, %v2470
          %v2472 = vpop.f32.mrb[0].mxu0
          %v2473 = vpop.f32.mrb[0].mxu0
          %v2474 = vadd.f32 0.0, %v2473
          %v2475 = vpop.f32.mrb[0].mxu0
          %2476 = vmatprep.mubr.bf16.mxu0 0
          %2477 = vmatmul.mubr.bf16.gmra.mrb[0].mxu0 %v1001
          %v2478 = vpop.f32.mrb[0].mxu0
          %v2479 = vadd.f32 0.0, %v2478
          %v2480 = vpop.f32.mrb[0].mxu0
          %v2481 = vpop.f32.mrb[0].mxu0
          %v2482 = vadd.f32 0.0, %v2481
          %v2483 = vpop.f32.mrb[0].mxu0
          %2484 = vmatprep.mubr.bf16.mxu0 0
          %2485 = vmatmul.mubr.bf16.gmra.mrb[0].mxu0 %v1002
          %v2486 = vpop.f32.mrb[0].mxu0
          %v2487 = vadd.f32 0.0, %v2486
          %v2488 = vpop.f32.mrb[0].mxu0
          %v2489 = vpop.f32.mrb[0].mxu0
          %v2490 = vadd.f32 0.0, %v2489
          %v2491 = vpop.f32.mrb[0].mxu0
          %2492 = vmatprep.mubr.bf16.mxu0 0
          %2493 = vmatmul.mubr.bf16.gmra.mrb[0].mxu0 %v1003
          %v2494 = vpop.f32.mrb[0].mxu0
          %v2495 = vadd.f32 0.0, %v2494
          %v2496 = vpop.f32.mrb[0].mxu0
          %v2497 = vpop.f32.mrb[0].mxu0
          %v2498 = vadd.f32 0.0, %v2497
          %v2499 = vpop.f32.mrb[0].mxu0
          %2500 = vmatprep.mubr.bf16.mxu0 0
          %2501 = vmatmul.mubr.bf16.gmra.mrb[0].mxu0 %v1004
          %v2502 = vpop.f32.mrb[0].mxu0
          %v2503 = vadd.f32 0.0, %v2502
          %v2504 = vpop.f32.mrb[0].mxu0
          %v2505 = vpop.f32.mrb[0].mxu0
          %v2506 = vadd.f32 0.0, %v2505
          %v2507 = vpop.f32.mrb[0].mxu0
          %2508 = vmatprep.mubr.bf16.mxu0 0
          %2509 = vmatmul.mubr.bf16.gmra.mrb[0].mxu0 %v1005
          %v2510 = vpop.f32.mrb[0].mxu0
          %v2511 = vadd.f32 0.0, %v2510
          %v2512 = vpop.f32.mrb[0].mxu0
          %v2513 = vpop.f32.mrb[0].mxu0
          %v2514 = vadd.f32 0.0, %v2513
          %v2515 = vpop.f32.mrb[0].mxu0
          %2516 = vmatprep.mubr.bf16.mxu0 0
          %2517 = vmatmul.mubr.bf16.gmra.mrb[0].mxu0 %v1006
          %v2518 = vpop.f32.mrb[0].mxu0
          %v2519 = vadd.f32 0.0, %v2518
          %v2520 = vpop.f32.mrb[0].mxu0
          %v2521 = vpop.f32.mrb[0].mxu0
          %v2522 = vadd.f32 0.0, %v2521
          %v2523 = vpop.f32.mrb[0].mxu0
          %2524 = vdwg.mxu0
          %v2525 = vpack.c.bf16 %v2402, %v2399
          %v2526 = vpack.c.bf16 %v2410, %v2407
          %v2527 = vpack.c.bf16 %v2418, %v2415
          %v2528 = vpack.c.bf16 %v2426, %v2423
          %v2529 = vpack.c.bf16 %v2434, %v2431
          %v2530 = vpack.c.bf16 %v2442, %v2439
          %v2531 = vpack.c.bf16 %v2450, %v2447
          %v2532 = vpack.c.bf16 %v2458, %v2455
          %v2533 = vpack.c.bf16 %v2466, %v2463
          %v2534 = vpack.c.bf16 %v2474, %v2471
          %v2535 = vpack.c.bf16 %v2482, %v2479
          %v2536 = vpack.c.bf16 %v2490, %v2487
          %v2537 = vpack.c.bf16 %v2498, %v2495
          %v2538 = vpack.c.bf16 %v2506, %v2503
          %v2539 = vpack.c.bf16 %v2514, %v2511
          %v2540 = vpack.c.bf16 %v2522, %v2519
          %s2541 = scalar_lea.vmem [#allocation3], 256
          %2542 = vst.msk [vmem:[%s2541] sm:$0xff] %vm1248, %v2525
          %2543 = vst.msk [vmem:[%s2541 + $0x8] sm:$0xff] %vm1248, %v2526
          %2544 = vst.msk [vmem:[%s2541 + $0x10] sm:$0xff] %vm1248, %v2527
          %2545 = vst.msk [vmem:[%s2541 + $0x18] sm:$0xff] %vm1248, %v2528
          %2546 = vst.msk [vmem:[%s2541 + $0x20] sm:$0xff] %vm1248, %v2529
          %2547 = vst.msk [vmem:[%s2541 + $0x28] sm:$0xff] %vm1248, %v2530
          %2548 = vst.msk [vmem:[%s2541 + $0x30] sm:$0xff] %vm1248, %v2531
          %2549 = vst.msk [vmem:[%s2541 + $0x38] sm:$0xff] %vm1248, %v2532
          %2550 = vst.msk [vmem:[%s2541 + $0x40] sm:$0xff] %vm1248, %v2533
          %2551 = vst.msk [vmem:[%s2541 + $0x48] sm:$0xff] %vm1248, %v2534
          %2552 = vst.msk [vmem:[%s2541 + $0x50] sm:$0xff] %vm1248, %v2535
          %2553 = vst.msk [vmem:[%s2541 + $0x58] sm:$0xff] %vm1248, %v2536
          %2554 = vst.msk [vmem:[%s2541 + $0x60] sm:$0xff] %vm1248, %v2537
          %2555 = vst.msk [vmem:[%s2541 + $0x68] sm:$0xff] %vm1248, %v2538
          %2556 = vst.msk [vmem:[%s2541 + $0x70] sm:$0xff] %vm1248, %v2539
          %2557 = vst.msk [vmem:[%s2541 + $0x78] sm:$0xff] %vm1248, %v2540
          %s2558 = scalar_lea.vmem %s4, 192
          %v2559 = vld [vmem:[%s2558] sm:$0xf]
          %v2560 = vld [vmem:[%s2558 + $0x4] sm:$0xf]
          %v2561 = vld [vmem:[%s2558 + $0x8] sm:$0xf]
          %v2562 = vld [vmem:[%s2558 + $0xc] sm:$0xf]
          %v2563 = vld [vmem:[%s2558 + $0x10] sm:$0xf]
          %v2564 = vld [vmem:[%s2558 + $0x14] sm:$0xf]
          %v2565 = vld [vmem:[%s2558 + $0x18] sm:$0xf]
          %v2566 = vld [vmem:[%s2558 + $0x1c] sm:$0xf]
          %v2567 = vld [vmem:[%s2558 + $0x20] sm:$0xf]
          %v2568 = vld [vmem:[%s2558 + $0x24] sm:$0xf]
          %v2569 = vld [vmem:[%s2558 + $0x28] sm:$0xf]
          %v2570 = vld [vmem:[%s2558 + $0x2c] sm:$0xf]
          %v2571 = vld [vmem:[%s2558 + $0x30] sm:$0xf]
          %v2572 = vld [vmem:[%s2558 + $0x34] sm:$0xf]
          %v2573 = vld [vmem:[%s2558 + $0x38] sm:$0xf]
          %v2574 = vld [vmem:[%s2558 + $0x3c] sm:$0xf]
          %v2591 = vunpack.c.l.b16 %v2559
          %v2592 = vunpack.c.l.b16 %v2560
          %v2593 = vunpack.c.l.b16 %v2561
          %v2594 = vunpack.c.l.b16 %v2562
          %v2595 = vunpack.c.l.b16 %v2563
          %v2596 = vunpack.c.l.b16 %v2564
          %v2597 = vunpack.c.l.b16 %v2565
          %v2598 = vunpack.c.l.b16 %v2566
          %v2599 = vunpack.c.l.b16 %v2567
          %v2600 = vunpack.c.l.b16 %v2568
          %v2601 = vunpack.c.l.b16 %v2569
          %v2602 = vunpack.c.l.b16 %v2570
          %v2603 = vunpack.c.l.b16 %v2571
          %v2604 = vunpack.c.l.b16 %v2572
          %v2605 = vunpack.c.l.b16 %v2573
          %v2606 = vunpack.c.l.b16 %v2574
          %v2607 = vpack.c.b16 %v2592, %v2591
          %v2608 = vpack.c.b16 %v2594, %v2593
          %v2609 = vpack.c.b16 %v2596, %v2595
          %v2610 = vpack.c.b16 %v2598, %v2597
          %v2611 = vpack.c.b16 %v2600, %v2599
          %v2612 = vpack.c.b16 %v2602, %v2601
          %v2613 = vpack.c.b16 %v2604, %v2603
          %v2614 = vpack.c.b16 %v2606, %v2605
          %2623 = vmatprep.subr.bf16.mxu0 0
          %2624 = vmatpush1.bf16.msra.mxu0 %v2607
          %2625 = vmatprep.subr.bf16.mxu0 0
          %2626 = vmatpush1.bf16.msra.mxu0 %v2608
          %2627 = vmatprep.subr.bf16.mxu0 0
          %2628 = vmatpush1.bf16.msra.mxu0 %v2609
          %2629 = vmatprep.subr.bf16.mxu0 0
          %2630 = vmatpush1.bf16.msra.mxu0 %v2610
          %2631 = vmatprep.subr.bf16.mxu0 0
          %2632 = vmatpush1.bf16.msra.mxu0 %v2611
          %2633 = vmatprep.subr.bf16.mxu0 0
          %2634 = vmatpush1.bf16.msra.mxu0 %v2612
          %2635 = vmatprep.subr.bf16.mxu0 0
          %2636 = vmatpush1.bf16.msra.mxu0 %v2613
          %2637 = vmatprep.subr.bf16.mxu0 0
          %2638 = vmatpush1.bf16.msra.mxu0 %v2614
          %2639 = vmatprep.subr.bf16.mxu0 0
          %2640 = vmatpush1.bf16.msra.mxu0 0
          %2641 = vmatprep.subr.bf16.mxu0 0
          %2642 = vmatpush1.bf16.msra.mxu0 0
          %2643 = vmatprep.subr.bf16.mxu0 0
          %2644 = vmatpush1.bf16.msra.mxu0 0
          %2645 = vmatprep.subr.bf16.mxu0 0
          %2646 = vmatpush1.bf16.msra.mxu0 0
          %2647 = vmatprep.subr.bf16.mxu0 0
          %2648 = vmatpush1.bf16.msra.mxu0 0
          %2649 = vmatprep.subr.bf16.mxu0 0
          %2650 = vmatpush1.bf16.msra.mxu0 0
          %2651 = vmatprep.subr.bf16.mxu0 0
          %2652 = vmatpush1.bf16.msra.mxu0 0
          %2653 = vmatprep.subr.bf16.mxu0 0
          %2654 = vmatpush1.bf16.msra.mxu0 0
          %2655 = vmatprep.mubr.bf16.mxu0 0
          %2656 = vmatmul.mubr.bf16.gmra.mrb[0].mxu0 %v991
          %v2657 = vpop.f32.mrb[0].mxu0
          %v2658 = vadd.f32 0.0, %v2657
          %v2659 = vpop.f32.mrb[0].mxu0
          %v2660 = vpop.f32.mrb[0].mxu0
          %v2661 = vadd.f32 0.0, %v2660
          %v2662 = vpop.f32.mrb[0].mxu0
          %2663 = vmatprep.mubr.bf16.mxu0 0
          %2664 = vmatmul.mubr.bf16.gmra.mrb[0].mxu0 %v992
          %v2665 = vpop.f32.mrb[0].mxu0
          %v2666 = vadd.f32 0.0, %v2665
          %v2667 = vpop.f32.mrb[0].mxu0
          %v2668 = vpop.f32.mrb[0].mxu0
          %v2669 = vadd.f32 0.0, %v2668
          %v2670 = vpop.f32.mrb[0].mxu0
          %2671 = vmatprep.mubr.bf16.mxu0 0
          %2672 = vmatmul.mubr.bf16.gmra.mrb[0].mxu0 %v993
          %v2673 = vpop.f32.mrb[0].mxu0
          %v2674 = vadd.f32 0.0, %v2673
          %v2675 = vpop.f32.mrb[0].mxu0
          %v2676 = vpop.f32.mrb[0].mxu0
          %v2677 = vadd.f32 0.0, %v2676
          %v2678 = vpop.f32.mrb[0].mxu0
          %2679 = vmatprep.mubr.bf16.mxu0 0
          %2680 = vmatmul.mubr.bf16.gmra.mrb[0].mxu0 %v994
          %v2681 = vpop.f32.mrb[0].mxu0
          %v2682 = vadd.f32 0.0, %v2681
          %v2683 = vpop.f32.mrb[0].mxu0
          %v2684 = vpop.f32.mrb[0].mxu0
          %v2685 = vadd.f32 0.0, %v2684
          %v2686 = vpop.f32.mrb[0].mxu0
          %2687 = vmatprep.mubr.bf16.mxu0 0
          %2688 = vmatmul.mubr.bf16.gmra.mrb[0].mxu0 %v995
          %v2689 = vpop.f32.mrb[0].mxu0
          %v2690 = vadd.f32 0.0, %v2689
          %v2691 = vpop.f32.mrb[0].mxu0
          %v2692 = vpop.f32.mrb[0].mxu0
          %v2693 = vadd.f32 0.0, %v2692
          %v2694 = vpop.f32.mrb[0].mxu0
          %2695 = vmatprep.mubr.bf16.mxu0 0
          %2696 = vmatmul.mubr.bf16.gmra.mrb[0].mxu0 %v996
          %v2697 = vpop.f32.mrb[0].mxu0
          %v2698 = vadd.f32 0.0, %v2697
          %v2699 = vpop.f32.mrb[0].mxu0
          %v2700 = vpop.f32.mrb[0].mxu0
          %v2701 = vadd.f32 0.0, %v2700
          %v2702 = vpop.f32.mrb[0].mxu0
          %2703 = vmatprep.mubr.bf16.mxu0 0
          %2704 = vmatmul.mubr.bf16.gmra.mrb[0].mxu0 %v997
          %v2705 = vpop.f32.mrb[0].mxu0
          %v2706 = vadd.f32 0.0, %v2705
          %v2707 = vpop.f32.mrb[0].mxu0
          %v2708 = vpop.f32.mrb[0].mxu0
          %v2709 = vadd.f32 0.0, %v2708
          %v2710 = vpop.f32.mrb[0].mxu0
          %2711 = vmatprep.mubr.bf16.mxu0 0
          %2712 = vmatmul.mubr.bf16.gmra.mrb[0].mxu0 %v998
          %v2713 = vpop.f32.mrb[0].mxu0
          %v2714 = vadd.f32 0.0, %v2713
          %v2715 = vpop.f32.mrb[0].mxu0
          %v2716 = vpop.f32.mrb[0].mxu0
          %v2717 = vadd.f32 0.0, %v2716
          %v2718 = vpop.f32.mrb[0].mxu0
          %2719 = vmatprep.mubr.bf16.mxu0 0
          %2720 = vmatmul.mubr.bf16.gmra.mrb[0].mxu0 %v999
          %v2721 = vpop.f32.mrb[0].mxu0
          %v2722 = vadd.f32 0.0, %v2721
          %v2723 = vpop.f32.mrb[0].mxu0
          %v2724 = vpop.f32.mrb[0].mxu0
          %v2725 = vadd.f32 0.0, %v2724
          %v2726 = vpop.f32.mrb[0].mxu0
          %2727 = vmatprep.mubr.bf16.mxu0 0
          %2728 = vmatmul.mubr.bf16.gmra.mrb[0].mxu0 %v1000
          %v2729 = vpop.f32.mrb[0].mxu0
          %v2730 = vadd.f32 0.0, %v2729
          %v2731 = vpop.f32.mrb[0].mxu0
          %v2732 = vpop.f32.mrb[0].mxu0
          %v2733 = vadd.f32 0.0, %v2732
          %v2734 = vpop.f32.mrb[0].mxu0
          %2735 = vmatprep.mubr.bf16.mxu0 0
          %2736 = vmatmul.mubr.bf16.gmra.mrb[0].mxu0 %v1001
          %v2737 = vpop.f32.mrb[0].mxu0
          %v2738 = vadd.f32 0.0, %v2737
          %v2739 = vpop.f32.mrb[0].mxu0
          %v2740 = vpop.f32.mrb[0].mxu0
          %v2741 = vadd.f32 0.0, %v2740
          %v2742 = vpop.f32.mrb[0].mxu0
          %2743 = vmatprep.mubr.bf16.mxu0 0
          %2744 = vmatmul.mubr.bf16.gmra.mrb[0].mxu0 %v1002
          %v2745 = vpop.f32.mrb[0].mxu0
          %v2746 = vadd.f32 0.0, %v2745
          %v2747 = vpop.f32.mrb[0].mxu0
          %v2748 = vpop.f32.mrb[0].mxu0
          %v2749 = vadd.f32 0.0, %v2748
          %v2750 = vpop.f32.mrb[0].mxu0
          %2751 = vmatprep.mubr.bf16.mxu0 0
          %2752 = vmatmul.mubr.bf16.gmra.mrb[0].mxu0 %v1003
          %v2753 = vpop.f32.mrb[0].mxu0
          %v2754 = vadd.f32 0.0, %v2753
          %v2755 = vpop.f32.mrb[0].mxu0
          %v2756 = vpop.f32.mrb[0].mxu0
          %v2757 = vadd.f32 0.0, %v2756
          %v2758 = vpop.f32.mrb[0].mxu0
          %2759 = vmatprep.mubr.bf16.mxu0 0
          %2760 = vmatmul.mubr.bf16.gmra.mrb[0].mxu0 %v1004
          %v2761 = vpop.f32.mrb[0].mxu0
          %v2762 = vadd.f32 0.0, %v2761
          %v2763 = vpop.f32.mrb[0].mxu0
          %v2764 = vpop.f32.mrb[0].mxu0
          %v2765 = vadd.f32 0.0, %v2764
          %v2766 = vpop.f32.mrb[0].mxu0
          %2767 = vmatprep.mubr.bf16.mxu0 0
          %2768 = vmatmul.mubr.bf16.gmra.mrb[0].mxu0 %v1005
          %v2769 = vpop.f32.mrb[0].mxu0
          %v2770 = vadd.f32 0.0, %v2769
          %v2771 = vpop.f32.mrb[0].mxu0
          %v2772 = vpop.f32.mrb[0].mxu0
          %v2773 = vadd.f32 0.0, %v2772
          %v2774 = vpop.f32.mrb[0].mxu0
          %2775 = vmatprep.mubr.bf16.mxu0 0
          %2776 = vmatmul.mubr.bf16.gmra.mrb[0].mxu0 %v1006
          %v2777 = vpop.f32.mrb[0].mxu0
          %v2778 = vadd.f32 0.0, %v2777
          %v2779 = vpop.f32.mrb[0].mxu0
          %v2780 = vpop.f32.mrb[0].mxu0
          %v2781 = vadd.f32 0.0, %v2780
          %v2782 = vpop.f32.mrb[0].mxu0
          %2783 = vdwg.mxu0
          %v2784 = vpack.c.bf16 %v2661, %v2658
          %v2785 = vpack.c.bf16 %v2669, %v2666
          %v2786 = vpack.c.bf16 %v2677, %v2674
          %v2787 = vpack.c.bf16 %v2685, %v2682
          %v2788 = vpack.c.bf16 %v2693, %v2690
          %v2789 = vpack.c.bf16 %v2701, %v2698
          %v2790 = vpack.c.bf16 %v2709, %v2706
          %v2791 = vpack.c.bf16 %v2717, %v2714
          %v2792 = vpack.c.bf16 %v2725, %v2722
          %v2793 = vpack.c.bf16 %v2733, %v2730
          %v2794 = vpack.c.bf16 %v2741, %v2738
          %v2795 = vpack.c.bf16 %v2749, %v2746
          %v2796 = vpack.c.bf16 %v2757, %v2754
          %v2797 = vpack.c.bf16 %v2765, %v2762
          %v2798 = vpack.c.bf16 %v2773, %v2770
          %v2799 = vpack.c.bf16 %v2781, %v2778
          %s2800 = scalar_lea.vmem [#allocation2], 384
          %2801 = vst.msk [vmem:[%s2800] sm:$0xff] %vm1248, %v2784
          %2802 = vst.msk [vmem:[%s2800 + $0x8] sm:$0xff] %vm1248, %v2785
          %2803 = vst.msk [vmem:[%s2800 + $0x10] sm:$0xff] %vm1248, %v2786
          %2804 = vst.msk [vmem:[%s2800 + $0x18] sm:$0xff] %vm1248, %v2787
          %2805 = vst.msk [vmem:[%s2800 + $0x20] sm:$0xff] %vm1248, %v2788
          %2806 = vst.msk [vmem:[%s2800 + $0x28] sm:$0xff] %vm1248, %v2789
          %2807 = vst.msk [vmem:[%s2800 + $0x30] sm:$0xff] %vm1248, %v2790
          %2808 = vst.msk [vmem:[%s2800 + $0x38] sm:$0xff] %vm1248, %v2791
          %2809 = vst.msk [vmem:[%s2800 + $0x40] sm:$0xff] %vm1248, %v2792
          %2810 = vst.msk [vmem:[%s2800 + $0x48] sm:$0xff] %vm1248, %v2793
          %2811 = vst.msk [vmem:[%s2800 + $0x50] sm:$0xff] %vm1248, %v2794
          %2812 = vst.msk [vmem:[%s2800 + $0x58] sm:$0xff] %vm1248, %v2795
          %2813 = vst.msk [vmem:[%s2800 + $0x60] sm:$0xff] %vm1248, %v2796
          %2814 = vst.msk [vmem:[%s2800 + $0x68] sm:$0xff] %vm1248, %v2797
          %2815 = vst.msk [vmem:[%s2800 + $0x70] sm:$0xff] %vm1248, %v2798
          %2816 = vst.msk [vmem:[%s2800 + $0x78] sm:$0xff] %vm1248, %v2799
          %s2817 = scalar_lea.vmem %s5, 192
          %v2818 = vld [vmem:[%s2817] sm:$0xf]
          %v2819 = vld [vmem:[%s2817 + $0x4] sm:$0xf]
          %v2820 = vld [vmem:[%s2817 + $0x8] sm:$0xf]
          %v2821 = vld [vmem:[%s2817 + $0xc] sm:$0xf]
          %v2822 = vld [vmem:[%s2817 + $0x10] sm:$0xf]
          %v2823 = vld [vmem:[%s2817 + $0x14] sm:$0xf]
          %v2824 = vld [vmem:[%s2817 + $0x18] sm:$0xf]
          %v2825 = vld [vmem:[%s2817 + $0x1c] sm:$0xf]
          %v2826 = vld [vmem:[%s2817 + $0x20] sm:$0xf]
          %v2827 = vld [vmem:[%s2817 + $0x24] sm:$0xf]
          %v2828 = vld [vmem:[%s2817 + $0x28] sm:$0xf]
          %v2829 = vld [vmem:[%s2817 + $0x2c] sm:$0xf]
          %v2830 = vld [vmem:[%s2817 + $0x30] sm:$0xf]
          %v2831 = vld [vmem:[%s2817 + $0x34] sm:$0xf]
          %v2832 = vld [vmem:[%s2817 + $0x38] sm:$0xf]
          %v2833 = vld [vmem:[%s2817 + $0x3c] sm:$0xf]
          %v2850 = vunpack.c.l.b16 %v2818
          %v2851 = vunpack.c.l.b16 %v2819
          %v2852 = vunpack.c.l.b16 %v2820
          %v2853 = vunpack.c.l.b16 %v2821
          %v2854 = vunpack.c.l.b16 %v2822
          %v2855 = vunpack.c.l.b16 %v2823
          %v2856 = vunpack.c.l.b16 %v2824
          %v2857 = vunpack.c.l.b16 %v2825
          %v2858 = vunpack.c.l.b16 %v2826
          %v2859 = vunpack.c.l.b16 %v2827
          %v2860 = vunpack.c.l.b16 %v2828
          %v2861 = vunpack.c.l.b16 %v2829
          %v2862 = vunpack.c.l.b16 %v2830
          %v2863 = vunpack.c.l.b16 %v2831
          %v2864 = vunpack.c.l.b16 %v2832
          %v2865 = vunpack.c.l.b16 %v2833
          %v2866 = vpack.c.b16 %v2851, %v2850
          %v2867 = vpack.c.b16 %v2853, %v2852
          %v2868 = vpack.c.b16 %v2855, %v2854
          %v2869 = vpack.c.b16 %v2857, %v2856
          %v2870 = vpack.c.b16 %v2859, %v2858
          %v2871 = vpack.c.b16 %v2861, %v2860
          %v2872 = vpack.c.b16 %v2863, %v2862
          %v2873 = vpack.c.b16 %v2865, %v2864
          %2882 = vmatprep.subr.bf16.mxu0 0
          %2883 = vmatpush1.bf16.msra.mxu0 %v2866
          %2884 = vmatprep.subr.bf16.mxu0 0
          %2885 = vmatpush1.bf16.msra.mxu0 %v2867
          %2886 = vmatprep.subr.bf16.mxu0 0
          %2887 = vmatpush1.bf16.msra.mxu0 %v2868
          %2888 = vmatprep.subr.bf16.mxu0 0
          %2889 = vmatpush1.bf16.msra.mxu0 %v2869
          %2890 = vmatprep.subr.bf16.mxu0 0
          %2891 = vmatpush1.bf16.msra.mxu0 %v2870
          %2892 = vmatprep.subr.bf16.mxu0 0
          %2893 = vmatpush1.bf16.msra.mxu0 %v2871
          %2894 = vmatprep.subr.bf16.mxu0 0
          %2895 = vmatpush1.bf16.msra.mxu0 %v2872
          %2896 = vmatprep.subr.bf16.mxu0 0
          %2897 = vmatpush1.bf16.msra.mxu0 %v2873
          %2898 = vmatprep.subr.bf16.mxu0 0
          %2899 = vmatpush1.bf16.msra.mxu0 0
          %2900 = vmatprep.subr.bf16.mxu0 0
          %2901 = vmatpush1.bf16.msra.mxu0 0
          %2902 = vmatprep.subr.bf16.mxu0 0
          %2903 = vmatpush1.bf16.msra.mxu0 0
          %2904 = vmatprep.subr.bf16.mxu0 0
          %2905 = vmatpush1.bf16.msra.mxu0 0
          %2906 = vmatprep.subr.bf16.mxu0 0
          %2907 = vmatpush1.bf16.msra.mxu0 0
          %2908 = vmatprep.subr.bf16.mxu0 0
          %2909 = vmatpush1.bf16.msra.mxu0 0
          %2910 = vmatprep.subr.bf16.mxu0 0
          %2911 = vmatpush1.bf16.msra.mxu0 0
          %2912 = vmatprep.subr.bf16.mxu0 0
          %2913 = vmatpush1.bf16.msra.mxu0 0
          %2914 = vmatprep.mubr.bf16.mxu0 0
          %2915 = vmatmul.mubr.bf16.gmra.mrb[0].mxu0 %v991
          %v2916 = vpop.f32.mrb[0].mxu0
          %v2917 = vadd.f32 0.0, %v2916
          %v2918 = vpop.f32.mrb[0].mxu0
          %v2919 = vpop.f32.mrb[0].mxu0
          %v2920 = vadd.f32 0.0, %v2919
          %v2921 = vpop.f32.mrb[0].mxu0
          %2922 = vmatprep.mubr.bf16.mxu0 0
          %2923 = vmatmul.mubr.bf16.gmra.mrb[0].mxu0 %v992
          %v2924 = vpop.f32.mrb[0].mxu0
          %v2925 = vadd.f32 0.0, %v2924
          %v2926 = vpop.f32.mrb[0].mxu0
          %v2927 = vpop.f32.mrb[0].mxu0
          %v2928 = vadd.f32 0.0, %v2927
          %v2929 = vpop.f32.mrb[0].mxu0
          %2930 = vmatprep.mubr.bf16.mxu0 0
          %2931 = vmatmul.mubr.bf16.gmra.mrb[0].mxu0 %v993
          %v2932 = vpop.f32.mrb[0].mxu0
          %v2933 = vadd.f32 0.0, %v2932
          %v2934 = vpop.f32.mrb[0].mxu0
          %v2935 = vpop.f32.mrb[0].mxu0
          %v2936 = vadd.f32 0.0, %v2935
          %v2937 = vpop.f32.mrb[0].mxu0
          %2938 = vmatprep.mubr.bf16.mxu0 0
          %2939 = vmatmul.mubr.bf16.gmra.mrb[0].mxu0 %v994
          %v2940 = vpop.f32.mrb[0].mxu0
          %v2941 = vadd.f32 0.0, %v2940
          %v2942 = vpop.f32.mrb[0].mxu0
          %v2943 = vpop.f32.mrb[0].mxu0
          %v2944 = vadd.f32 0.0, %v2943
          %v2945 = vpop.f32.mrb[0].mxu0
          %2946 = vmatprep.mubr.bf16.mxu0 0
          %2947 = vmatmul.mubr.bf16.gmra.mrb[0].mxu0 %v995
          %v2948 = vpop.f32.mrb[0].mxu0
          %v2949 = vadd.f32 0.0, %v2948
          %v2950 = vpop.f32.mrb[0].mxu0
          %v2951 = vpop.f32.mrb[0].mxu0
          %v2952 = vadd.f32 0.0, %v2951
          %v2953 = vpop.f32.mrb[0].mxu0
          %2954 = vmatprep.mubr.bf16.mxu0 0
          %2955 = vmatmul.mubr.bf16.gmra.mrb[0].mxu0 %v996
          %v2956 = vpop.f32.mrb[0].mxu0
          %v2957 = vadd.f32 0.0, %v2956
          %v2958 = vpop.f32.mrb[0].mxu0
          %v2959 = vpop.f32.mrb[0].mxu0
          %v2960 = vadd.f32 0.0, %v2959
          %v2961 = vpop.f32.mrb[0].mxu0
          %2962 = vmatprep.mubr.bf16.mxu0 0
          %2963 = vmatmul.mubr.bf16.gmra.mrb[0].mxu0 %v997
          %v2964 = vpop.f32.mrb[0].mxu0
          %v2965 = vadd.f32 0.0, %v2964
          %v2966 = vpop.f32.mrb[0].mxu0
          %v2967 = vpop.f32.mrb[0].mxu0
          %v2968 = vadd.f32 0.0, %v2967
          %v2969 = vpop.f32.mrb[0].mxu0
          %2970 = vmatprep.mubr.bf16.mxu0 0
          %2971 = vmatmul.mubr.bf16.gmra.mrb[0].mxu0 %v998
          %v2972 = vpop.f32.mrb[0].mxu0
          %v2973 = vadd.f32 0.0, %v2972
          %v2974 = vpop.f32.mrb[0].mxu0
          %v2975 = vpop.f32.mrb[0].mxu0
          %v2976 = vadd.f32 0.0, %v2975
          %v2977 = vpop.f32.mrb[0].mxu0
          %2978 = vmatprep.mubr.bf16.mxu0 0
          %2979 = vmatmul.mubr.bf16.gmra.mrb[0].mxu0 %v999
          %v2980 = vpop.f32.mrb[0].mxu0
          %v2981 = vadd.f32 0.0, %v2980
          %v2982 = vpop.f32.mrb[0].mxu0
          %v2983 = vpop.f32.mrb[0].mxu0
          %v2984 = vadd.f32 0.0, %v2983
          %v2985 = vpop.f32.mrb[0].mxu0
          %2986 = vmatprep.mubr.bf16.mxu0 0
          %2987 = vmatmul.mubr.bf16.gmra.mrb[0].mxu0 %v1000
          %v2988 = vpop.f32.mrb[0].mxu0
          %v2989 = vadd.f32 0.0, %v2988
          %v2990 = vpop.f32.mrb[0].mxu0
          %v2991 = vpop.f32.mrb[0].mxu0
          %v2992 = vadd.f32 0.0, %v2991
          %v2993 = vpop.f32.mrb[0].mxu0
          %2994 = vmatprep.mubr.bf16.mxu0 0
          %2995 = vmatmul.mubr.bf16.gmra.mrb[0].mxu0 %v1001
          %v2996 = vpop.f32.mrb[0].mxu0
          %v2997 = vadd.f32 0.0, %v2996
          %v2998 = vpop.f32.mrb[0].mxu0
          %v2999 = vpop.f32.mrb[0].mxu0
          %v3000 = vadd.f32 0.0, %v2999
          %v3001 = vpop.f32.mrb[0].mxu0
          %3002 = vmatprep.mubr.bf16.mxu0 0
          %3003 = vmatmul.mubr.bf16.gmra.mrb[0].mxu0 %v1002
          %v3004 = vpop.f32.mrb[0].mxu0
          %v3005 = vadd.f32 0.0, %v3004
          %v3006 = vpop.f32.mrb[0].mxu0
          %v3007 = vpop.f32.mrb[0].mxu0
          %v3008 = vadd.f32 0.0, %v3007
          %v3009 = vpop.f32.mrb[0].mxu0
          %3010 = vmatprep.mubr.bf16.mxu0 0
          %3011 = vmatmul.mubr.bf16.gmra.mrb[0].mxu0 %v1003
          %v3012 = vpop.f32.mrb[0].mxu0
          %v3013 = vadd.f32 0.0, %v3012
          %v3014 = vpop.f32.mrb[0].mxu0
          %v3015 = vpop.f32.mrb[0].mxu0
          %v3016 = vadd.f32 0.0, %v3015
          %v3017 = vpop.f32.mrb[0].mxu0
          %3018 = vmatprep.mubr.bf16.mxu0 0
          %3019 = vmatmul.mubr.bf16.gmra.mrb[0].mxu0 %v1004
          %v3020 = vpop.f32.mrb[0].mxu0
          %v3021 = vadd.f32 0.0, %v3020
          %v3022 = vpop.f32.mrb[0].mxu0
          %v3023 = vpop.f32.mrb[0].mxu0
          %v3024 = vadd.f32 0.0, %v3023
          %v3025 = vpop.f32.mrb[0].mxu0
          %3026 = vmatprep.mubr.bf16.mxu0 0
          %3027 = vmatmul.mubr.bf16.gmra.mrb[0].mxu0 %v1005
          %v3028 = vpop.f32.mrb[0].mxu0
          %v3029 = vadd.f32 0.0, %v3028
          %v3030 = vpop.f32.mrb[0].mxu0
          %v3031 = vpop.f32.mrb[0].mxu0
          %v3032 = vadd.f32 0.0, %v3031
          %v3033 = vpop.f32.mrb[0].mxu0
          %3034 = vmatprep.mubr.bf16.mxu0 0
          %3035 = vmatmul.mubr.bf16.gmra.mrb[0].mxu0 %v1006
          %v3036 = vpop.f32.mrb[0].mxu0
          %v3037 = vadd.f32 0.0, %v3036
          %v3038 = vpop.f32.mrb[0].mxu0
          %v3039 = vpop.f32.mrb[0].mxu0
          %v3040 = vadd.f32 0.0, %v3039
          %v3041 = vpop.f32.mrb[0].mxu0
          %3042 = vdwg.mxu0
          %v3043 = vpack.c.bf16 %v2920, %v2917
          %v3044 = vpack.c.bf16 %v2928, %v2925
          %v3045 = vpack.c.bf16 %v2936, %v2933
          %v3046 = vpack.c.bf16 %v2944, %v2941
          %v3047 = vpack.c.bf16 %v2952, %v2949
          %v3048 = vpack.c.bf16 %v2960, %v2957
          %v3049 = vpack.c.bf16 %v2968, %v2965
          %v3050 = vpack.c.bf16 %v2976, %v2973
          %v3051 = vpack.c.bf16 %v2984, %v2981
          %v3052 = vpack.c.bf16 %v2992, %v2989
          %v3053 = vpack.c.bf16 %v3000, %v2997
          %v3054 = vpack.c.bf16 %v3008, %v3005
          %v3055 = vpack.c.bf16 %v3016, %v3013
          %v3056 = vpack.c.bf16 %v3024, %v3021
          %v3057 = vpack.c.bf16 %v3032, %v3029
          %v3058 = vpack.c.bf16 %v3040, %v3037
          %s3059 = scalar_lea.vmem [#allocation3], 384
          %3060 = vst.msk [vmem:[%s3059] sm:$0xff] %vm1248, %v3043
          %3061 = vst.msk [vmem:[%s3059 + $0x8] sm:$0xff] %vm1248, %v3044
          %3062 = vst.msk [vmem:[%s3059 + $0x10] sm:$0xff] %vm1248, %v3045
          %3063 = vst.msk [vmem:[%s3059 + $0x18] sm:$0xff] %vm1248, %v3046
          %3064 = vst.msk [vmem:[%s3059 + $0x20] sm:$0xff] %vm1248, %v3047
          %3065 = vst.msk [vmem:[%s3059 + $0x28] sm:$0xff] %vm1248, %v3048
          %3066 = vst.msk [vmem:[%s3059 + $0x30] sm:$0xff] %vm1248, %v3049
          %3067 = vst.msk [vmem:[%s3059 + $0x38] sm:$0xff] %vm1248, %v3050
          %3068 = vst.msk [vmem:[%s3059 + $0x40] sm:$0xff] %vm1248, %v3051
          %3069 = vst.msk [vmem:[%s3059 + $0x48] sm:$0xff] %vm1248, %v3052
          %3070 = vst.msk [vmem:[%s3059 + $0x50] sm:$0xff] %vm1248, %v3053
          %3071 = vst.msk [vmem:[%s3059 + $0x58] sm:$0xff] %vm1248, %v3054
          %3072 = vst.msk [vmem:[%s3059 + $0x60] sm:$0xff] %vm1248, %v3055
          %3073 = vst.msk [vmem:[%s3059 + $0x68] sm:$0xff] %vm1248, %v3056
          %3074 = vst.msk [vmem:[%s3059 + $0x70] sm:$0xff] %vm1248, %v3057
          %3075 = vst.msk [vmem:[%s3059 + $0x78] sm:$0xff] %vm1248, %v3058
        $region92: #{tpu_custom_call.1} parent=75 // pred_fallthru
          _
        %s3076 = smul.u32 %s35, 128
        %s3077 = scalar_lea.vmem %s519, %s3076
        %v3078 = vld [vmem:[%s3077] sm:$0xff]
        %v3079 = vld [vmem:[%s3077 + $0x8] sm:$0xff]
        %v3080 = vld [vmem:[%s3077 + $0x10] sm:$0xff]
        %v3081 = vld [vmem:[%s3077 + $0x18] sm:$0xff]
        %v3082 = vld [vmem:[%s3077 + $0x20] sm:$0xff]
        %v3083 = vld [vmem:[%s3077 + $0x28] sm:$0xff]
        %v3084 = vld [vmem:[%s3077 + $0x30] sm:$0xff]
        %v3085 = vld [vmem:[%s3077 + $0x38] sm:$0xff]
        %v3086 = vld [vmem:[%s3077 + $0x40] sm:$0xff]
        %v3087 = vld [vmem:[%s3077 + $0x48] sm:$0xff]
        %v3088 = vld [vmem:[%s3077 + $0x50] sm:$0xff]
        %v3089 = vld [vmem:[%s3077 + $0x58] sm:$0xff]
        %v3090 = vld [vmem:[%s3077 + $0x60] sm:$0xff]
        %v3091 = vld [vmem:[%s3077 + $0x68] sm:$0xff]
        %v3092 = vld [vmem:[%s3077 + $0x70] sm:$0xff]
        %v3093 = vld [vmem:[%s3077 + $0x78] sm:$0xff]
        %3094 = vadd.xlane.f32.xlu0 %v3078
        %v3095 = vpop.xlane.xlu0 %3094
        %3096 = vadd.xlane.f32.xlu0 %v3079
        %v3097 = vpop.xlane.xlu0 %3096
        %3098 = vadd.xlane.f32.xlu0 %v3080
        %v3099 = vpop.xlane.xlu0 %3098
        %3100 = vadd.xlane.f32.xlu0 %v3081
        %v3101 = vpop.xlane.xlu0 %3100
        %3102 = vadd.xlane.f32.xlu0 %v3082
        %v3103 = vpop.xlane.xlu0 %3102
        %3104 = vadd.xlane.f32.xlu0 %v3083
        %v3105 = vpop.xlane.xlu0 %3104
        %3106 = vadd.xlane.f32.xlu0 %v3084
        %v3107 = vpop.xlane.xlu0 %3106
        %3108 = vadd.xlane.f32.xlu0 %v3085
        %v3109 = vpop.xlane.xlu0 %3108
        %3110 = vadd.xlane.f32.xlu0 %v3086
        %v3111 = vpop.xlane.xlu0 %3110
        %3112 = vadd.xlane.f32.xlu0 %v3087
        %v3113 = vpop.xlane.xlu0 %3112
        %3114 = vadd.xlane.f32.xlu0 %v3088
        %v3115 = vpop.xlane.xlu0 %3114
        %3116 = vadd.xlane.f32.xlu0 %v3089
        %v3117 = vpop.xlane.xlu0 %3116
        %3118 = vadd.xlane.f32.xlu0 %v3090
        %v3119 = vpop.xlane.xlu0 %3118
        %3120 = vadd.xlane.f32.xlu0 %v3091
        %v3121 = vpop.xlane.xlu0 %3120
        %3122 = vadd.xlane.f32.xlu0 %v3092
        %v3123 = vpop.xlane.xlu0 %3122
        %3124 = vadd.xlane.f32.xlu0 %v3093
        %v3125 = vpop.xlane.xlu0 %3124
        %v3126 = vrcp.pop 128.0
        %v3127 = vmul.f32 %v3095, %v3126
        %v3128 = vmul.f32 %v3097, %v3126
        %v3129 = vmul.f32 %v3099, %v3126
        %v3130 = vmul.f32 %v3101, %v3126
        %v3131 = vmul.f32 %v3103, %v3126
        %v3132 = vmul.f32 %v3105, %v3126
        %v3133 = vmul.f32 %v3107, %v3126
        %v3134 = vmul.f32 %v3109, %v3126
        %v3135 = vmul.f32 %v3111, %v3126
        %v3136 = vmul.f32 %v3113, %v3126
        %v3137 = vmul.f32 %v3115, %v3126
        %v3138 = vmul.f32 %v3117, %v3126
        %v3139 = vmul.f32 %v3119, %v3126
        %v3140 = vmul.f32 %v3121, %v3126
        %v3141 = vmul.f32 %v3123, %v3126
        %v3142 = vmul.f32 %v3125, %v3126
        %v3143 = vsub.f32 %v3078, %v3127
        %v3144 = vsub.f32 %v3079, %v3128
        %v3145 = vsub.f32 %v3080, %v3129
        %v3146 = vsub.f32 %v3081, %v3130
        %v3147 = vsub.f32 %v3082, %v3131
        %v3148 = vsub.f32 %v3083, %v3132
        %v3149 = vsub.f32 %v3084, %v3133
        %v3150 = vsub.f32 %v3085, %v3134
        %v3151 = vsub.f32 %v3086, %v3135
        %v3152 = vsub.f32 %v3087, %v3136
        %v3153 = vsub.f32 %v3088, %v3137
        %v3154 = vsub.f32 %v3089, %v3138
        %v3155 = vsub.f32 %v3090, %v3139
        %v3156 = vsub.f32 %v3091, %v3140
        %v3157 = vsub.f32 %v3092, %v3141
        %v3158 = vsub.f32 %v3093, %v3142
        %v3159 = vmul.f32 %v3143, %v3143
        %v3160 = vmul.f32 %v3144, %v3144
        %v3161 = vmul.f32 %v3145, %v3145
        %v3162 = vmul.f32 %v3146, %v3146
        %v3163 = vmul.f32 %v3147, %v3147
        %v3164 = vmul.f32 %v3148, %v3148
        %v3165 = vmul.f32 %v3149, %v3149
        %v3166 = vmul.f32 %v3150, %v3150
        %v3167 = vmul.f32 %v3151, %v3151
        %v3168 = vmul.f32 %v3152, %v3152
        %v3169 = vmul.f32 %v3153, %v3153
        %v3170 = vmul.f32 %v3154, %v3154
        %v3171 = vmul.f32 %v3155, %v3155
        %v3172 = vmul.f32 %v3156, %v3156
        %v3173 = vmul.f32 %v3157, %v3157
        %v3174 = vmul.f32 %v3158, %v3158
        %3175 = vadd.xlane.f32.xlu0 %v3159
        %v3176 = vpop.xlane.xlu0 %3175
        %3177 = vadd.xlane.f32.xlu0 %v3160
        %v3178 = vpop.xlane.xlu0 %3177
        %3179 = vadd.xlane.f32.xlu0 %v3161
        %v3180 = vpop.xlane.xlu0 %3179
        %3181 = vadd.xlane.f32.xlu0 %v3162
        %v3182 = vpop.xlane.xlu0 %3181
        %3183 = vadd.xlane.f32.xlu0 %v3163
        %v3184 = vpop.xlane.xlu0 %3183
        %3185 = vadd.xlane.f32.xlu0 %v3164
        %v3186 = vpop.xlane.xlu0 %3185
        %3187 = vadd.xlane.f32.xlu0 %v3165
        %v3188 = vpop.xlane.xlu0 %3187
        %3189 = vadd.xlane.f32.xlu0 %v3166
        %v3190 = vpop.xlane.xlu0 %3189
        %3191 = vadd.xlane.f32.xlu0 %v3167
        %v3192 = vpop.xlane.xlu0 %3191
        %3193 = vadd.xlane.f32.xlu0 %v3168
        %v3194 = vpop.xlane.xlu0 %3193
        %3195 = vadd.xlane.f32.xlu0 %v3169
        %v3196 = vpop.xlane.xlu0 %3195
        %3197 = vadd.xlane.f32.xlu0 %v3170
        %v3198 = vpop.xlane.xlu0 %3197
        %3199 = vadd.xlane.f32.xlu0 %v3171
        %v3200 = vpop.xlane.xlu0 %3199
        %3201 = vadd.xlane.f32.xlu0 %v3172
        %v3202 = vpop.xlane.xlu0 %3201
        %3203 = vadd.xlane.f32.xlu0 %v3173
        %v3204 = vpop.xlane.xlu0 %3203
        %3205 = vadd.xlane.f32.xlu0 %v3174
        %v3206 = vpop.xlane.xlu0 %3205
        %v3207 = vmul.f32 %v3176, %v3126
        %v3208 = vmul.f32 %v3178, %v3126
        %v3209 = vmul.f32 %v3180, %v3126
        %v3210 = vmul.f32 %v3182, %v3126
        %v3211 = vmul.f32 %v3184, %v3126
        %v3212 = vmul.f32 %v3186, %v3126
        %v3213 = vmul.f32 %v3188, %v3126
        %v3214 = vmul.f32 %v3190, %v3126
        %v3215 = vmul.f32 %v3192, %v3126
        %v3216 = vmul.f32 %v3194, %v3126
        %v3217 = vmul.f32 %v3196, %v3126
        %v3218 = vmul.f32 %v3198, %v3126
        %v3219 = vmul.f32 %v3200, %v3126
        %v3220 = vmul.f32 %v3202, %v3126
        %v3221 = vmul.f32 %v3204, %v3126
        %v3222 = vmul.f32 %v3206, %v3126
        %v3223 = vadd.f32 %v3207, 1e-05
        %v3224 = vadd.f32 %v3208, 1e-05
        %v3225 = vadd.f32 %v3209, 1e-05
        %v3226 = vadd.f32 %v3210, 1e-05
        %v3227 = vadd.f32 %v3211, 1e-05
        %v3228 = vadd.f32 %v3212, 1e-05
        %v3229 = vadd.f32 %v3213, 1e-05
        %v3230 = vadd.f32 %v3214, 1e-05
        %v3231 = vadd.f32 %v3215, 1e-05
        %v3232 = vadd.f32 %v3216, 1e-05
        %v3233 = vadd.f32 %v3217, 1e-05
        %v3234 = vadd.f32 %v3218, 1e-05
        %v3235 = vadd.f32 %v3219, 1e-05
        %v3236 = vadd.f32 %v3220, 1e-05
        %v3237 = vadd.f32 %v3221, 1e-05
        %v3238 = vadd.f32 %v3222, 1e-05
        %v3239 = vrsqrt.pop %v3223
        %v3240 = vrsqrt.pop %v3224
        %v3241 = vrsqrt.pop %v3225
        %v3242 = vrsqrt.pop %v3226
        %v3243 = vrsqrt.pop %v3227
        %v3244 = vrsqrt.pop %v3228
        %v3245 = vrsqrt.pop %v3229
        %v3246 = vrsqrt.pop %v3230
        %v3247 = vrsqrt.pop %v3231
        %v3248 = vrsqrt.pop %v3232
        %v3249 = vrsqrt.pop %v3233
        %v3250 = vrsqrt.pop %v3234
        %v3251 = vrsqrt.pop %v3235
        %v3252 = vrsqrt.pop %v3236
        %v3253 = vrsqrt.pop %v3237
        %v3254 = vrsqrt.pop %v3238
        %v3255 = vmul.f32 %v3143, %v3239
        %v3256 = vmul.f32 %v3144, %v3240
        %v3257 = vmul.f32 %v3145, %v3241
        %v3258 = vmul.f32 %v3146, %v3242
        %v3259 = vmul.f32 %v3147, %v3243
        %v3260 = vmul.f32 %v3148, %v3244
        %v3261 = vmul.f32 %v3149, %v3245
        %v3262 = vmul.f32 %v3150, %v3246
        %v3263 = vmul.f32 %v3151, %v3247
        %v3264 = vmul.f32 %v3152, %v3248
        %v3265 = vmul.f32 %v3153, %v3249
        %v3266 = vmul.f32 %v3154, %v3250
        %v3267 = vmul.f32 %v3155, %v3251
        %v3268 = vmul.f32 %v3156, %v3252
        %v3269 = vmul.f32 %v3157, %v3253
        %v3270 = vmul.f32 %v3158, %v3254
        %v3272 = vlaneseq
        %v3273 = vshrl.u32 %v3272, 7
        %v3274 = vsub.s32 0, %v3273
        %v3275 = vrot.slane %v522, %v3274
        %v3277 = vmul.f32 %v3255, %v3275
        %v3278 = vmul.f32 %v3256, %v3275
        %v3279 = vmul.f32 %v3257, %v3275
        %v3280 = vmul.f32 %v3258, %v3275
        %v3281 = vmul.f32 %v3259, %v3275
        %v3282 = vmul.f32 %v3260, %v3275
        %v3283 = vmul.f32 %v3261, %v3275
        %v3284 = vmul.f32 %v3262, %v3275
        %v3285 = vmul.f32 %v3263, %v3275
        %v3286 = vmul.f32 %v3264, %v3275
        %v3287 = vmul.f32 %v3265, %v3275
        %v3288 = vmul.f32 %v3266, %v3275
        %v3289 = vmul.f32 %v3267, %v3275
        %v3290 = vmul.f32 %v3268, %v3275
        %v3291 = vmul.f32 %v3269, %v3275
        %v3292 = vmul.f32 %v3270, %v3275
        %v3294 = vlaneseq
        %v3295 = vshrl.u32 %v3294, 7
        %v3296 = vsub.s32 0, %v3295
        %v3297 = vrot.slane %v523, %v3296
        %v3299 = vadd.f32 %v3277, %v3297
        %v3300 = vadd.f32 %v3278, %v3297
        %v3301 = vadd.f32 %v3279, %v3297
        %v3302 = vadd.f32 %v3280, %v3297
        %v3303 = vadd.f32 %v3281, %v3297
        %v3304 = vadd.f32 %v3282, %v3297
        %v3305 = vadd.f32 %v3283, %v3297
        %v3306 = vadd.f32 %v3284, %v3297
        %v3307 = vadd.f32 %v3285, %v3297
        %v3308 = vadd.f32 %v3286, %v3297
        %v3309 = vadd.f32 %v3287, %v3297
        %v3310 = vadd.f32 %v3288, %v3297
        %v3311 = vadd.f32 %v3289, %v3297
        %v3312 = vadd.f32 %v3290, %v3297
        %v3313 = vadd.f32 %v3291, %v3297
        %v3314 = vadd.f32 %v3292, %v3297
        %v3315 = vpack.c.bf16 %v3300, %v3299
        %v3316 = vpack.c.bf16 %v3302, %v3301
        %v3317 = vpack.c.bf16 %v3304, %v3303
        %v3318 = vpack.c.bf16 %v3306, %v3305
        %v3319 = vpack.c.bf16 %v3308, %v3307
        %v3320 = vpack.c.bf16 %v3310, %v3309
        %v3321 = vpack.c.bf16 %v3312, %v3311
        %v3322 = vpack.c.bf16 %v3314, %v3313
        %v3323 = vld [vmem:[%s3] sm:$0xf]
        %v3324 = vld [vmem:[%s3 + $0x4] sm:$0xf]
        %v3325 = vld [vmem:[%s3 + $0x8] sm:$0xf]
        %v3326 = vld [vmem:[%s3 + $0xc] sm:$0xf]
        %v3327 = vld [vmem:[%s3 + $0x10] sm:$0xf]
        %v3328 = vld [vmem:[%s3 + $0x14] sm:$0xf]
        %v3329 = vld [vmem:[%s3 + $0x18] sm:$0xf]
        %v3330 = vld [vmem:[%s3 + $0x1c] sm:$0xf]
        %v3331 = vld [vmem:[%s3 + $0x20] sm:$0xf]
        %v3332 = vld [vmem:[%s3 + $0x24] sm:$0xf]
        %v3333 = vld [vmem:[%s3 + $0x28] sm:$0xf]
        %v3334 = vld [vmem:[%s3 + $0x2c] sm:$0xf]
        %v3335 = vld [vmem:[%s3 + $0x30] sm:$0xf]
        %v3336 = vld [vmem:[%s3 + $0x34] sm:$0xf]
        %v3337 = vld [vmem:[%s3 + $0x38] sm:$0xf]
        %v3338 = vld [vmem:[%s3 + $0x3c] sm:$0xf]
        %v3355 = vunpack.c.l.b16 %v3323
        %v3356 = vunpack.c.l.b16 %v3324
        %v3357 = vunpack.c.l.b16 %v3325
        %v3358 = vunpack.c.l.b16 %v3326
        %v3359 = vunpack.c.l.b16 %v3327
        %v3360 = vunpack.c.l.b16 %v3328
        %v3361 = vunpack.c.l.b16 %v3329
        %v3362 = vunpack.c.l.b16 %v3330
        %v3363 = vunpack.c.l.b16 %v3331
        %v3364 = vunpack.c.l.b16 %v3332
        %v3365 = vunpack.c.l.b16 %v3333
        %v3366 = vunpack.c.l.b16 %v3334
        %v3367 = vunpack.c.l.b16 %v3335
        %v3368 = vunpack.c.l.b16 %v3336
        %v3369 = vunpack.c.l.b16 %v3337
        %v3370 = vunpack.c.l.b16 %v3338
        %v3371 = vpack.c.b16 %v3356, %v3355
        %v3372 = vpack.c.b16 %v3358, %v3357
        %v3373 = vpack.c.b16 %v3360, %v3359
        %v3374 = vpack.c.b16 %v3362, %v3361
        %v3375 = vpack.c.b16 %v3364, %v3363
        %v3376 = vpack.c.b16 %v3366, %v3365
        %v3377 = vpack.c.b16 %v3368, %v3367
        %v3378 = vpack.c.b16 %v3370, %v3369
        %3387 = vmatprep.subr.bf16.mxu0 0
        %3388 = vmatpush1.bf16.msra.mxu0 %v3371
        %3389 = vmatprep.subr.bf16.mxu0 0
        %3390 = vmatpush1.bf16.msra.mxu0 %v3372
        %3391 = vmatprep.subr.bf16.mxu0 0
        %3392 = vmatpush1.bf16.msra.mxu0 %v3373
        %3393 = vmatprep.subr.bf16.mxu0 0
        %3394 = vmatpush1.bf16.msra.mxu0 %v3374
        %3395 = vmatprep.subr.bf16.mxu0 0
        %3396 = vmatpush1.bf16.msra.mxu0 %v3375
        %3397 = vmatprep.subr.bf16.mxu0 0
        %3398 = vmatpush1.bf16.msra.mxu0 %v3376
        %3399 = vmatprep.subr.bf16.mxu0 0
        %3400 = vmatpush1.bf16.msra.mxu0 %v3377
        %3401 = vmatprep.subr.bf16.mxu0 0
        %3402 = vmatpush1.bf16.msra.mxu0 %v3378
        %3403 = vmatprep.subr.bf16.mxu0 0
        %3404 = vmatpush1.bf16.msra.mxu0 0
        %3405 = vmatprep.subr.bf16.mxu0 0
        %3406 = vmatpush1.bf16.msra.mxu0 0
        %3407 = vmatprep.subr.bf16.mxu0 0
        %3408 = vmatpush1.bf16.msra.mxu0 0
        %3409 = vmatprep.subr.bf16.mxu0 0
        %3410 = vmatpush1.bf16.msra.mxu0 0
        %3411 = vmatprep.subr.bf16.mxu0 0
        %3412 = vmatpush1.bf16.msra.mxu0 0
        %3413 = vmatprep.subr.bf16.mxu0 0
        %3414 = vmatpush1.bf16.msra.mxu0 0
        %3415 = vmatprep.subr.bf16.mxu0 0
        %3416 = vmatpush1.bf16.msra.mxu0 0
        %3417 = vmatprep.subr.bf16.mxu0 0
        %3418 = vmatpush1.bf16.msra.mxu0 0
        %3419 = vmatprep.mubr.bf16.mxu0 0
        %3420 = vmatmul.mubr.bf16.gmra.mrb[0].mxu0 %v3315
        %v3421 = vpop.f32.mrb[0].mxu0
        %v3422 = vadd.f32 0.0, %v3421
        %v3423 = vpop.f32.mrb[0].mxu0
        %v3424 = vpop.f32.mrb[0].mxu0
        %v3425 = vadd.f32 0.0, %v3424
        %v3426 = vpop.f32.mrb[0].mxu0
        %3427 = vmatprep.mubr.bf16.mxu0 0
        %3428 = vmatmul.mubr.bf16.gmra.mrb[0].mxu0 %v3316
        %v3429 = vpop.f32.mrb[0].mxu0
        %v3430 = vadd.f32 0.0, %v3429
        %v3431 = vpop.f32.mrb[0].mxu0
        %v3432 = vpop.f32.mrb[0].mxu0
        %v3433 = vadd.f32 0.0, %v3432
        %v3434 = vpop.f32.mrb[0].mxu0
        %3435 = vmatprep.mubr.bf16.mxu0 0
        %3436 = vmatmul.mubr.bf16.gmra.mrb[0].mxu0 %v3317
        %v3437 = vpop.f32.mrb[0].mxu0
        %v3438 = vadd.f32 0.0, %v3437
        %v3439 = vpop.f32.mrb[0].mxu0
        %v3440 = vpop.f32.mrb[0].mxu0
        %v3441 = vadd.f32 0.0, %v3440
        %v3442 = vpop.f32.mrb[0].mxu0
        %3443 = vmatprep.mubr.bf16.mxu0 0
        %3444 = vmatmul.mubr.bf16.gmra.mrb[0].mxu0 %v3318
        %v3445 = vpop.f32.mrb[0].mxu0
        %v3446 = vadd.f32 0.0, %v3445
        %v3447 = vpop.f32.mrb[0].mxu0
        %v3448 = vpop.f32.mrb[0].mxu0
        %v3449 = vadd.f32 0.0, %v3448
        %v3450 = vpop.f32.mrb[0].mxu0
        %3451 = vmatprep.mubr.bf16.mxu0 0
        %3452 = vmatmul.mubr.bf16.gmra.mrb[0].mxu0 %v3319
        %v3453 = vpop.f32.mrb[0].mxu0
        %v3454 = vadd.f32 0.0, %v3453
        %v3455 = vpop.f32.mrb[0].mxu0
        %v3456 = vpop.f32.mrb[0].mxu0
        %v3457 = vadd.f32 0.0, %v3456
        %v3458 = vpop.f32.mrb[0].mxu0
        %3459 = vmatprep.mubr.bf16.mxu0 0
        %3460 = vmatmul.mubr.bf16.gmra.mrb[0].mxu0 %v3320
        %v3461 = vpop.f32.mrb[0].mxu0
        %v3462 = vadd.f32 0.0, %v3461
        %v3463 = vpop.f32.mrb[0].mxu0
        %v3464 = vpop.f32.mrb[0].mxu0
        %v3465 = vadd.f32 0.0, %v3464
        %v3466 = vpop.f32.mrb[0].mxu0
        %3467 = vmatprep.mubr.bf16.mxu0 0
        %3468 = vmatmul.mubr.bf16.gmra.mrb[0].mxu0 %v3321
        %v3469 = vpop.f32.mrb[0].mxu0
        %v3470 = vadd.f32 0.0, %v3469
        %v3471 = vpop.f32.mrb[0].mxu0
        %v3472 = vpop.f32.mrb[0].mxu0
        %v3473 = vadd.f32 0.0, %v3472
        %v3474 = vpop.f32.mrb[0].mxu0
        %3475 = vmatprep.mubr.bf16.mxu0 0
        %3476 = vmatmul.mubr.bf16.gmra.mrb[0].mxu0 %v3322
        %v3477 = vpop.f32.mrb[0].mxu0
        %v3478 = vadd.f32 0.0, %v3477
        %v3479 = vpop.f32.mrb[0].mxu0
        %v3480 = vpop.f32.mrb[0].mxu0
        %v3481 = vadd.f32 0.0, %v3480
        %v3482 = vpop.f32.mrb[0].mxu0
        %3483 = vdwg.mxu0
        %v3484 = vpack.c.bf16 %v3425, %v3422
        %v3485 = vpack.c.bf16 %v3433, %v3430
        %v3486 = vpack.c.bf16 %v3441, %v3438
        %v3487 = vpack.c.bf16 %v3449, %v3446
        %v3488 = vpack.c.bf16 %v3457, %v3454
        %v3489 = vpack.c.bf16 %v3465, %v3462
        %v3490 = vpack.c.bf16 %v3473, %v3470
        %v3491 = vpack.c.bf16 %v3481, %v3478
        %v3492 = vld [vmem:[#allocation2] sm:$0xff]
        %v3493 = vld [vmem:[#allocation2 + $0x8] sm:$0xff]
        %v3494 = vld [vmem:[#allocation2 + $0x10] sm:$0xff]
        %v3495 = vld [vmem:[#allocation2 + $0x18] sm:$0xff]
        %v3496 = vld [vmem:[#allocation2 + $0x20] sm:$0xff]
        %v3497 = vld [vmem:[#allocation2 + $0x28] sm:$0xff]
        %v3498 = vld [vmem:[#allocation2 + $0x30] sm:$0xff]
        %v3499 = vld [vmem:[#allocation2 + $0x38] sm:$0xff]
        %v3500 = vld [vmem:[#allocation2 + $0x40] sm:$0xff]
        %v3501 = vld [vmem:[#allocation2 + $0x48] sm:$0xff]
        %v3502 = vld [vmem:[#allocation2 + $0x50] sm:$0xff]
        %v3503 = vld [vmem:[#allocation2 + $0x58] sm:$0xff]
        %v3504 = vld [vmem:[#allocation2 + $0x60] sm:$0xff]
        %v3505 = vld [vmem:[#allocation2 + $0x68] sm:$0xff]
        %v3506 = vld [vmem:[#allocation2 + $0x70] sm:$0xff]
        %v3507 = vld [vmem:[#allocation2 + $0x78] sm:$0xff]
        %vm3508 = vcmask 261120
        %v3510 = vsel %vm3508, %v3484, 0
        %v3513 = vsel %vm3508, %v3485, 0
        %v3516 = vsel %vm3508, %v3486, 0
        %v3519 = vsel %vm3508, %v3487, 0
        %v3522 = vsel %vm3508, %v3488, 0
        %v3525 = vsel %vm3508, %v3489, 0
        %v3528 = vsel %vm3508, %v3490, 0
        %v3531 = vsel %vm3508, %v3491, 0
        %v3534 = vsel %vm3508, %v3492, 0
        %v3537 = vsel %vm3508, %v3493, 0
        %v3540 = vsel %vm3508, %v3494, 0
        %v3543 = vsel %vm3508, %v3495, 0
        %v3546 = vsel %vm3508, %v3496, 0
        %v3549 = vsel %vm3508, %v3497, 0
        %v3552 = vsel %vm3508, %v3498, 0
        %v3555 = vsel %vm3508, %v3499, 0
        %v3558 = vsel %vm3508, %v3500, 0
        %v3561 = vsel %vm3508, %v3501, 0
        %v3564 = vsel %vm3508, %v3502, 0
        %v3567 = vsel %vm3508, %v3503, 0
        %v3570 = vsel %vm3508, %v3504, 0
        %v3573 = vsel %vm3508, %v3505, 0
        %v3576 = vsel %vm3508, %v3506, 0
        %v3579 = vsel %vm3508, %v3507, 0
        %3581 = vmatprep.subr.bf16.mxu0 0
        %3582 = vmatpush1.bf16.xpose.msra.mxu0 %v3534
        %3583 = vmatprep.subr.bf16.mxu0 0
        %3584 = vmatpush1.bf16.xpose.msra.mxu0 %v3537
        %3585 = vmatprep.subr.bf16.mxu0 0
        %3586 = vmatpush1.bf16.xpose.msra.mxu0 %v3540
        %3587 = vmatprep.subr.bf16.mxu0 0
        %3588 = vmatpush1.bf16.xpose.msra.mxu0 %v3543
        %3589 = vmatprep.subr.bf16.mxu0 0
        %3590 = vmatpush1.bf16.xpose.msra.mxu0 %v3546
        %3591 = vmatprep.subr.bf16.mxu0 0
        %3592 = vmatpush1.bf16.xpose.msra.mxu0 %v3549
        %3593 = vmatprep.subr.bf16.mxu0 0
        %3594 = vmatpush1.bf16.xpose.msra.mxu0 %v3552
        %3595 = vmatprep.subr.bf16.mxu0 0
        %3596 = vmatpush1.bf16.xpose.msra.mxu0 %v3555
        %3597 = vmatprep.subr.bf16.mxu0 0
        %3598 = vmatpush1.bf16.xpose.msra.mxu0 %v3558
        %3599 = vmatprep.subr.bf16.mxu0 0
        %3600 = vmatpush1.bf16.xpose.msra.mxu0 %v3561
        %3601 = vmatprep.subr.bf16.mxu0 0
        %3602 = vmatpush1.bf16.xpose.msra.mxu0 %v3564
        %3603 = vmatprep.subr.bf16.mxu0 0
        %3604 = vmatpush1.bf16.xpose.msra.mxu0 %v3567
        %3605 = vmatprep.subr.bf16.mxu0 0
        %3606 = vmatpush1.bf16.xpose.msra.mxu0 %v3570
        %3607 = vmatprep.subr.bf16.mxu0 0
        %3608 = vmatpush1.bf16.xpose.msra.mxu0 %v3573
        %3609 = vmatprep.subr.bf16.mxu0 0
        %3610 = vmatpush1.bf16.xpose.msra.mxu0 %v3576
        %3611 = vmatprep.subr.bf16.mxu0 0
        %3612 = vmatpush1.bf16.xpose.msra.mxu0 %v3579
        %3613 = vmatprep.mubr.bf16.mxu0 0
        %3614 = vmatmul.mubr.bf16.gmra.mrb[0].mxu0 %v3510
        %v3615 = vpop.f32.mrb[0].mxu0
        %v3616 = vadd.f32 0.0, %v3615
        %v3617 = vpop.f32.mrb[0].mxu0
        %v3618 = vadd.f32 0.0, %v3617
        %v3619 = vpop.f32.mrb[0].mxu0
        %v3620 = vadd.f32 0.0, %v3619
        %v3621 = vpop.f32.mrb[0].mxu0
        %v3622 = vadd.f32 0.0, %v3621
        %3623 = vmatprep.mubr.bf16.mxu0 0
        %3624 = vmatmul.mubr.bf16.gmra.mrb[0].mxu0 %v3513
        %v3625 = vpop.f32.mrb[0].mxu0
        %v3626 = vadd.f32 0.0, %v3625
        %v3627 = vpop.f32.mrb[0].mxu0
        %v3628 = vadd.f32 0.0, %v3627
        %v3629 = vpop.f32.mrb[0].mxu0
        %v3630 = vadd.f32 0.0, %v3629
        %v3631 = vpop.f32.mrb[0].mxu0
        %v3632 = vadd.f32 0.0, %v3631
        %3633 = vmatprep.mubr.bf16.mxu0 0
        %3634 = vmatmul.mubr.bf16.gmra.mrb[0].mxu0 %v3516
        %v3635 = vpop.f32.mrb[0].mxu0
        %v3636 = vadd.f32 0.0, %v3635
        %v3637 = vpop.f32.mrb[0].mxu0
        %v3638 = vadd.f32 0.0, %v3637
        %v3639 = vpop.f32.mrb[0].mxu0
        %v3640 = vadd.f32 0.0, %v3639
        %v3641 = vpop.f32.mrb[0].mxu0
        %v3642 = vadd.f32 0.0, %v3641
        %3643 = vmatprep.mubr.bf16.mxu0 0
        %3644 = vmatmul.mubr.bf16.gmra.mrb[0].mxu0 %v3519
        %v3645 = vpop.f32.mrb[0].mxu0
        %v3646 = vadd.f32 0.0, %v3645
        %v3647 = vpop.f32.mrb[0].mxu0
        %v3648 = vadd.f32 0.0, %v3647
        %v3649 = vpop.f32.mrb[0].mxu0
        %v3650 = vadd.f32 0.0, %v3649
        %v3651 = vpop.f32.mrb[0].mxu0
        %v3652 = vadd.f32 0.0, %v3651
        %3653 = vmatprep.mubr.bf16.mxu0 0
        %3654 = vmatmul.mubr.bf16.gmra.mrb[0].mxu0 %v3522
        %v3655 = vpop.f32.mrb[0].mxu0
        %v3656 = vadd.f32 0.0, %v3655
        %v3657 = vpop.f32.mrb[0].mxu0
        %v3658 = vadd.f32 0.0, %v3657
        %v3659 = vpop.f32.mrb[0].mxu0
        %v3660 = vadd.f32 0.0, %v3659
        %v3661 = vpop.f32.mrb[0].mxu0
        %v3662 = vadd.f32 0.0, %v3661
        %3663 = vmatprep.mubr.bf16.mxu0 0
        %3664 = vmatmul.mubr.bf16.gmra.mrb[0].mxu0 %v3525
        %v3665 = vpop.f32.mrb[0].mxu0
        %v3666 = vadd.f32 0.0, %v3665
        %v3667 = vpop.f32.mrb[0].mxu0
        %v3668 = vadd.f32 0.0, %v3667
        %v3669 = vpop.f32.mrb[0].mxu0
        %v3670 = vadd.f32 0.0, %v3669
        %v3671 = vpop.f32.mrb[0].mxu0
        %v3672 = vadd.f32 0.0, %v3671
        %3673 = vmatprep.mubr.bf16.mxu0 0
        %3674 = vmatmul.mubr.bf16.gmra.mrb[0].mxu0 %v3528
        %v3675 = vpop.f32.mrb[0].mxu0
        %v3676 = vadd.f32 0.0, %v3675
        %v3677 = vpop.f32.mrb[0].mxu0
        %v3678 = vadd.f32 0.0, %v3677
        %v3679 = vpop.f32.mrb[0].mxu0
        %v3680 = vadd.f32 0.0, %v3679
        %v3681 = vpop.f32.mrb[0].mxu0
        %v3682 = vadd.f32 0.0, %v3681
        %3683 = vmatprep.mubr.bf16.mxu0 0
        %3684 = vmatmul.mubr.bf16.gmra.mrb[0].mxu0 %v3531
        %v3685 = vpop.f32.mrb[0].mxu0
        %v3686 = vadd.f32 0.0, %v3685
        %v3687 = vpop.f32.mrb[0].mxu0
        %v3688 = vadd.f32 0.0, %v3687
        %v3689 = vpop.f32.mrb[0].mxu0
        %v3690 = vadd.f32 0.0, %v3689
        %v3691 = vpop.f32.mrb[0].mxu0
        %v3692 = vadd.f32 0.0, %v3691
        %3693 = vdwg.mxu0
        %v3694 = vmax.f32 %v3616, %v3618
        %3695 = vmax.xlane.f32.xlu0 %v3694
        %v3696 = vpop.xlane.xlu0 %3695
        %v3697 = vmax.f32 %v3620, %v3622
        %3698 = vmax.xlane.f32.xlu0 %v3697
        %v3699 = vpop.xlane.xlu0 %3698
        %v3700 = vmax.f32 %v3626, %v3628
        %3701 = vmax.xlane.f32.xlu0 %v3700
        %v3702 = vpop.xlane.xlu0 %3701
        %v3703 = vmax.f32 %v3630, %v3632
        %3704 = vmax.xlane.f32.xlu0 %v3703
        %v3705 = vpop.xlane.xlu0 %3704
        %v3706 = vmax.f32 %v3636, %v3638
        %3707 = vmax.xlane.f32.xlu0 %v3706
        %v3708 = vpop.xlane.xlu0 %3707
        %v3709 = vmax.f32 %v3640, %v3642
        %3710 = vmax.xlane.f32.xlu0 %v3709
        %v3711 = vpop.xlane.xlu0 %3710
        %v3712 = vmax.f32 %v3646, %v3648
        %3713 = vmax.xlane.f32.xlu0 %v3712
        %v3714 = vpop.xlane.xlu0 %3713
        %v3715 = vmax.f32 %v3650, %v3652
        %3716 = vmax.xlane.f32.xlu0 %v3715
        %v3717 = vpop.xlane.xlu0 %3716
        %v3718 = vmax.f32 %v3656, %v3658
        %3719 = vmax.xlane.f32.xlu0 %v3718
        %v3720 = vpop.xlane.xlu0 %3719
        %v3721 = vmax.f32 %v3660, %v3662
        %3722 = vmax.xlane.f32.xlu0 %v3721
        %v3723 = vpop.xlane.xlu0 %3722
        %v3724 = vmax.f32 %v3666, %v3668
        %3725 = vmax.xlane.f32.xlu0 %v3724
        %v3726 = vpop.xlane.xlu0 %3725
        %v3727 = vmax.f32 %v3670, %v3672
        %3728 = vmax.xlane.f32.xlu0 %v3727
        %v3729 = vpop.xlane.xlu0 %3728
        %v3730 = vmax.f32 %v3676, %v3678
        %3731 = vmax.xlane.f32.xlu0 %v3730
        %v3732 = vpop.xlane.xlu0 %3731
        %v3733 = vmax.f32 %v3680, %v3682
        %3734 = vmax.xlane.f32.xlu0 %v3733
        %v3735 = vpop.xlane.xlu0 %3734
        %v3736 = vmax.f32 %v3686, %v3688
        %3737 = vmax.xlane.f32.xlu0 %v3736
        %v3738 = vpop.xlane.xlu0 %3737
        %v3739 = vmax.f32 %v3690, %v3692
        %3740 = vmax.xlane.f32.xlu0 %v3739
        %v3741 = vpop.xlane.xlu0 %3740
        %v3742 = vsub.f32 %v3616, %v3696
        %v3743 = vsub.f32 %v3618, %v3696
        %v3744 = vsub.f32 %v3620, %v3699
        %v3745 = vsub.f32 %v3622, %v3699
        %v3746 = vsub.f32 %v3626, %v3702
        %v3747 = vsub.f32 %v3628, %v3702
        %v3748 = vsub.f32 %v3630, %v3705
        %v3749 = vsub.f32 %v3632, %v3705
        %v3750 = vsub.f32 %v3636, %v3708
        %v3751 = vsub.f32 %v3638, %v3708
        %v3752 = vsub.f32 %v3640, %v3711
        %v3753 = vsub.f32 %v3642, %v3711
        %v3754 = vsub.f32 %v3646, %v3714
        %v3755 = vsub.f32 %v3648, %v3714
        %v3756 = vsub.f32 %v3650, %v3717
        %v3757 = vsub.f32 %v3652, %v3717
        %v3758 = vsub.f32 %v3656, %v3720
        %v3759 = vsub.f32 %v3658, %v3720
        %v3760 = vsub.f32 %v3660, %v3723
        %v3761 = vsub.f32 %v3662, %v3723
        %v3762 = vsub.f32 %v3666, %v3726
        %v3763 = vsub.f32 %v3668, %v3726
        %v3764 = vsub.f32 %v3670, %v3729
        %v3765 = vsub.f32 %v3672, %v3729
        %v3766 = vsub.f32 %v3676, %v3732
        %v3767 = vsub.f32 %v3678, %v3732
        %v3768 = vsub.f32 %v3680, %v3735
        %v3769 = vsub.f32 %v3682, %v3735
        %v3770 = vsub.f32 %v3686, %v3738
        %v3771 = vsub.f32 %v3688, %v3738
        %v3772 = vsub.f32 %v3690, %v3741
        %v3773 = vsub.f32 %v3692, %v3741
        %v3774 = vmul.f32 %v3742, 1.442695
        %v3775 = vpow.pop %v3774
        %v3776 = vmul.f32 %v3743, 1.442695
        %v3777 = vpow.pop %v3776
        %v3778 = vmul.f32 %v3744, 1.442695
        %v3779 = vpow.pop %v3778
        %v3780 = vmul.f32 %v3745, 1.442695
        %v3781 = vpow.pop %v3780
        %v3782 = vmul.f32 %v3746, 1.442695
        %v3783 = vpow.pop %v3782
        %v3784 = vmul.f32 %v3747, 1.442695
        %v3785 = vpow.pop %v3784
        %v3786 = vmul.f32 %v3748, 1.442695
        %v3787 = vpow.pop %v3786
        %v3788 = vmul.f32 %v3749, 1.442695
        %v3789 = vpow.pop %v3788
        %v3790 = vmul.f32 %v3750, 1.442695
        %v3791 = vpow.pop %v3790
        %v3792 = vmul.f32 %v3751, 1.442695
        %v3793 = vpow.pop %v3792
        %v3794 = vmul.f32 %v3752, 1.442695
        %v3795 = vpow.pop %v3794
        %v3796 = vmul.f32 %v3753, 1.442695
        %v3797 = vpow.pop %v3796
        %v3798 = vmul.f32 %v3754, 1.442695
        %v3799 = vpow.pop %v3798
        %v3800 = vmul.f32 %v3755, 1.442695
        %v3801 = vpow.pop %v3800
        %v3802 = vmul.f32 %v3756, 1.442695
        %v3803 = vpow.pop %v3802
        %v3804 = vmul.f32 %v3757, 1.442695
        %v3805 = vpow.pop %v3804
        %v3806 = vmul.f32 %v3758, 1.442695
        %v3807 = vpow.pop %v3806
        %v3808 = vmul.f32 %v3759, 1.442695
        %v3809 = vpow.pop %v3808
        %v3810 = vmul.f32 %v3760, 1.442695
        %v3811 = vpow.pop %v3810
        %v3812 = vmul.f32 %v3761, 1.442695
        %v3813 = vpow.pop %v3812
        %v3814 = vmul.f32 %v3762, 1.442695
        %v3815 = vpow.pop %v3814
        %v3816 = vmul.f32 %v3763, 1.442695
        %v3817 = vpow.pop %v3816
        %v3818 = vmul.f32 %v3764, 1.442695
        %v3819 = vpow.pop %v3818
        %v3820 = vmul.f32 %v3765, 1.442695
        %v3821 = vpow.pop %v3820
        %v3822 = vmul.f32 %v3766, 1.442695
        %v3823 = vpow.pop %v3822
        %v3824 = vmul.f32 %v3767, 1.442695
        %v3825 = vpow.pop %v3824
        %v3826 = vmul.f32 %v3768, 1.442695
        %v3827 = vpow.pop %v3826
        %v3828 = vmul.f32 %v3769, 1.442695
        %v3829 = vpow.pop %v3828
        %v3830 = vmul.f32 %v3770, 1.442695
        %v3831 = vpow.pop %v3830
        %v3832 = vmul.f32 %v3771, 1.442695
        %v3833 = vpow.pop %v3832
        %v3834 = vmul.f32 %v3772, 1.442695
        %v3835 = vpow.pop %v3834
        %v3836 = vmul.f32 %v3773, 1.442695
        %v3837 = vpow.pop %v3836
        %v3838 = vadd.f32 %v3775, %v3777
        %3839 = vadd.xlane.f32.xlu0 %v3838
        %v3840 = vpop.xlane.xlu0 %3839
        %v3841 = vadd.f32 %v3779, %v3781
        %3842 = vadd.xlane.f32.xlu0 %v3841
        %v3843 = vpop.xlane.xlu0 %3842
        %v3844 = vadd.f32 %v3783, %v3785
        %3845 = vadd.xlane.f32.xlu0 %v3844
        %v3846 = vpop.xlane.xlu0 %3845
        %v3847 = vadd.f32 %v3787, %v3789
        %3848 = vadd.xlane.f32.xlu0 %v3847
        %v3849 = vpop.xlane.xlu0 %3848
        %v3850 = vadd.f32 %v3791, %v3793
        %3851 = vadd.xlane.f32.xlu0 %v3850
        %v3852 = vpop.xlane.xlu0 %3851
        %v3853 = vadd.f32 %v3795, %v3797
        %3854 = vadd.xlane.f32.xlu0 %v3853
        %v3855 = vpop.xlane.xlu0 %3854
        %v3856 = vadd.f32 %v3799, %v3801
        %3857 = vadd.xlane.f32.xlu0 %v3856
        %v3858 = vpop.xlane.xlu0 %3857
        %v3859 = vadd.f32 %v3803, %v3805
        %3860 = vadd.xlane.f32.xlu0 %v3859
        %v3861 = vpop.xlane.xlu0 %3860
        %v3862 = vadd.f32 %v3807, %v3809
        %3863 = vadd.xlane.f32.xlu0 %v3862
        %v3864 = vpop.xlane.xlu0 %3863
        %v3865 = vadd.f32 %v3811, %v3813
        %3866 = vadd.xlane.f32.xlu0 %v3865
        %v3867 = vpop.xlane.xlu0 %3866
        %v3868 = vadd.f32 %v3815, %v3817
        %3869 = vadd.xlane.f32.xlu0 %v3868
        %v3870 = vpop.xlane.xlu0 %3869
        %v3871 = vadd.f32 %v3819, %v3821
        %3872 = vadd.xlane.f32.xlu0 %v3871
        %v3873 = vpop.xlane.xlu0 %3872
        %v3874 = vadd.f32 %v3823, %v3825
        %3875 = vadd.xlane.f32.xlu0 %v3874
        %v3876 = vpop.xlane.xlu0 %3875
        %v3877 = vadd.f32 %v3827, %v3829
        %3878 = vadd.xlane.f32.xlu0 %v3877
        %v3879 = vpop.xlane.xlu0 %3878
        %v3880 = vadd.f32 %v3831, %v3833
        %3881 = vadd.xlane.f32.xlu0 %v3880
        %v3882 = vpop.xlane.xlu0 %3881
        %v3883 = vadd.f32 %v3835, %v3837
        %3884 = vadd.xlane.f32.xlu0 %v3883
        %v3885 = vpop.xlane.xlu0 %3884
        %v3886 = vrcp.pop %v3840
        %v3887 = vrcp.pop %v3843
        %v3888 = vrcp.pop %v3846
        %v3889 = vrcp.pop %v3849
        %v3890 = vrcp.pop %v3852
        %v3891 = vrcp.pop %v3855
        %v3892 = vrcp.pop %v3858
        %v3893 = vrcp.pop %v3861
        %v3894 = vrcp.pop %v3864
        %v3895 = vrcp.pop %v3867
        %v3896 = vrcp.pop %v3870
        %v3897 = vrcp.pop %v3873
        %v3898 = vrcp.pop %v3876
        %v3899 = vrcp.pop %v3879
        %v3900 = vrcp.pop %v3882
        %v3901 = vrcp.pop %v3885
        %v3902 = vmul.f32 %v3775, %v3886
        %v3903 = vmul.f32 %v3777, %v3886
        %v3904 = vmul.f32 %v3779, %v3887
        %v3905 = vmul.f32 %v3781, %v3887
        %v3906 = vmul.f32 %v3783, %v3888
        %v3907 = vmul.f32 %v3785, %v3888
        %v3908 = vmul.f32 %v3787, %v3889
        %v3909 = vmul.f32 %v3789, %v3889
        %v3910 = vmul.f32 %v3791, %v3890
        %v3911 = vmul.f32 %v3793, %v3890
        %v3912 = vmul.f32 %v3795, %v3891
        %v3913 = vmul.f32 %v3797, %v3891
        %v3914 = vmul.f32 %v3799, %v3892
        %v3915 = vmul.f32 %v3801, %v3892
        %v3916 = vmul.f32 %v3803, %v3893
        %v3917 = vmul.f32 %v3805, %v3893
        %v3918 = vmul.f32 %v3807, %v3894
        %v3919 = vmul.f32 %v3809, %v3894
        %v3920 = vmul.f32 %v3811, %v3895
        %v3921 = vmul.f32 %v3813, %v3895
        %v3922 = vmul.f32 %v3815, %v3896
        %v3923 = vmul.f32 %v3817, %v3896
        %v3924 = vmul.f32 %v3819, %v3897
        %v3925 = vmul.f32 %v3821, %v3897
        %v3926 = vmul.f32 %v3823, %v3898
        %v3927 = vmul.f32 %v3825, %v3898
        %v3928 = vmul.f32 %v3827, %v3899
        %v3929 = vmul.f32 %v3829, %v3899
        %v3930 = vmul.f32 %v3831, %v3900
        %v3931 = vmul.f32 %v3833, %v3900
        %v3932 = vmul.f32 %v3835, %v3901
        %v3933 = vmul.f32 %v3837, %v3901
        %v3934 = vpack.c.bf16 %v3904, %v3902
        %v3935 = vpack.c.bf16 %v3905, %v3903
        %v3936 = vpack.c.bf16 %v3908, %v3906
        %v3937 = vpack.c.bf16 %v3909, %v3907
        %v3938 = vpack.c.bf16 %v3912, %v3910
        %v3939 = vpack.c.bf16 %v3913, %v3911
        %v3940 = vpack.c.bf16 %v3916, %v3914
        %v3941 = vpack.c.bf16 %v3917, %v3915
        %v3942 = vpack.c.bf16 %v3920, %v3918
        %v3943 = vpack.c.bf16 %v3921, %v3919
        %v3944 = vpack.c.bf16 %v3924, %v3922
        %v3945 = vpack.c.bf16 %v3925, %v3923
        %v3946 = vpack.c.bf16 %v3928, %v3926
        %v3947 = vpack.c.bf16 %v3929, %v3927
        %v3948 = vpack.c.bf16 %v3932, %v3930
        %v3949 = vpack.c.bf16 %v3933, %v3931
        %v3950 = vld [vmem:[#allocation3] sm:$0xff]
        %v3951 = vld [vmem:[#allocation3 + $0x8] sm:$0xff]
        %v3952 = vld [vmem:[#allocation3 + $0x10] sm:$0xff]
        %v3953 = vld [vmem:[#allocation3 + $0x18] sm:$0xff]
        %v3954 = vld [vmem:[#allocation3 + $0x20] sm:$0xff]
        %v3955 = vld [vmem:[#allocation3 + $0x28] sm:$0xff]
        %v3956 = vld [vmem:[#allocation3 + $0x30] sm:$0xff]
        %v3957 = vld [vmem:[#allocation3 + $0x38] sm:$0xff]
        %v3958 = vld [vmem:[#allocation3 + $0x40] sm:$0xff]
        %v3959 = vld [vmem:[#allocation3 + $0x48] sm:$0xff]
        %v3960 = vld [vmem:[#allocation3 + $0x50] sm:$0xff]
        %v3961 = vld [vmem:[#allocation3 + $0x58] sm:$0xff]
        %v3962 = vld [vmem:[#allocation3 + $0x60] sm:$0xff]
        %v3963 = vld [vmem:[#allocation3 + $0x68] sm:$0xff]
        %v3964 = vld [vmem:[#allocation3 + $0x70] sm:$0xff]
        %v3965 = vld [vmem:[#allocation3 + $0x78] sm:$0xff]
        %3966 = vmatprep.subr.bf16.mxu0 0
        %3967 = vmatpush1.bf16.msra.mxu0 %v3950
        %3968 = vmatprep.subr.bf16.mxu0 0
        %3969 = vmatpush1.bf16.msra.mxu0 %v3951
        %3970 = vmatprep.subr.bf16.mxu0 0
        %3971 = vmatpush1.bf16.msra.mxu0 %v3952
        %3972 = vmatprep.subr.bf16.mxu0 0
        %3973 = vmatpush1.bf16.msra.mxu0 %v3953
        %3974 = vmatprep.subr.bf16.mxu0 0
        %3975 = vmatpush1.bf16.msra.mxu0 %v3954
        %3976 = vmatprep.subr.bf16.mxu0 0
        %3977 = vmatpush1.bf16.msra.mxu0 %v3955
        %3978 = vmatprep.subr.bf16.mxu0 0
        %3979 = vmatpush1.bf16.msra.mxu0 %v3956
        %3980 = vmatprep.subr.bf16.mxu0 0
        %3981 = vmatpush1.bf16.msra.mxu0 %v3957
        %3982 = vmatprep.subr.bf16.mxu0 0
        %3983 = vmatpush1.bf16.msra.mxu0 %v3958
        %3984 = vmatprep.subr.bf16.mxu0 0
        %3985 = vmatpush1.bf16.msra.mxu0 %v3959
        %3986 = vmatprep.subr.bf16.mxu0 0
        %3987 = vmatpush1.bf16.msra.mxu0 %v3960
        %3988 = vmatprep.subr.bf16.mxu0 0
        %3989 = vmatpush1.bf16.msra.mxu0 %v3961
        %3990 = vmatprep.subr.bf16.mxu0 0
        %3991 = vmatpush1.bf16.msra.mxu0 %v3962
        %3992 = vmatprep.subr.bf16.mxu0 0
        %3993 = vmatpush1.bf16.msra.mxu0 %v3963
        %3994 = vmatprep.subr.bf16.mxu0 0
        %3995 = vmatpush1.bf16.msra.mxu0 %v3964
        %3996 = vmatprep.subr.bf16.mxu0 0
        %3997 = vmatpush1.bf16.msra.mxu0 %v3965
        %3998 = vmatprep.mubr.bf16.mxu0 %v3935
        %3999 = vmatmul.mubr.bf16.gmra.mrb[0].mxu0 %v3934
        %v4000 = vpop.f32.mrb[0].mxu0
        %v4001 = vadd.f32 0.0, %v4000
        %v4002 = vpop.f32.mrb[0].mxu0
        %v4003 = vpop.f32.mrb[0].mxu0
        %v4004 = vadd.f32 0.0, %v4003
        %v4005 = vpop.f32.mrb[0].mxu0
        %4006 = vmatprep.mubr.bf16.mxu0 %v3937
        %4007 = vmatmul.mubr.bf16.gmra.mrb[0].mxu0 %v3936
        %v4008 = vpop.f32.mrb[0].mxu0
        %v4009 = vadd.f32 0.0, %v4008
        %v4010 = vpop.f32.mrb[0].mxu0
        %v4011 = vpop.f32.mrb[0].mxu0
        %v4012 = vadd.f32 0.0, %v4011
        %v4013 = vpop.f32.mrb[0].mxu0
        %4014 = vmatprep.mubr.bf16.mxu0 %v3939
        %4015 = vmatmul.mubr.bf16.gmra.mrb[0].mxu0 %v3938
        %v4016 = vpop.f32.mrb[0].mxu0
        %v4017 = vadd.f32 0.0, %v4016
        %v4018 = vpop.f32.mrb[0].mxu0
        %v4019 = vpop.f32.mrb[0].mxu0
        %v4020 = vadd.f32 0.0, %v4019
        %v4021 = vpop.f32.mrb[0].mxu0
        %4022 = vmatprep.mubr.bf16.mxu0 %v3941
        %4023 = vmatmul.mubr.bf16.gmra.mrb[0].mxu0 %v3940
        %v4024 = vpop.f32.mrb[0].mxu0
        %v4025 = vadd.f32 0.0, %v4024
        %v4026 = vpop.f32.mrb[0].mxu0
        %v4027 = vpop.f32.mrb[0].mxu0
        %v4028 = vadd.f32 0.0, %v4027
        %v4029 = vpop.f32.mrb[0].mxu0
        %4030 = vmatprep.mubr.bf16.mxu0 %v3943
        %4031 = vmatmul.mubr.bf16.gmra.mrb[0].mxu0 %v3942
        %v4032 = vpop.f32.mrb[0].mxu0
        %v4033 = vadd.f32 0.0, %v4032
        %v4034 = vpop.f32.mrb[0].mxu0
        %v4035 = vpop.f32.mrb[0].mxu0
        %v4036 = vadd.f32 0.0, %v4035
        %v4037 = vpop.f32.mrb[0].mxu0
        %4038 = vmatprep.mubr.bf16.mxu0 %v3945
        %4039 = vmatmul.mubr.bf16.gmra.mrb[0].mxu0 %v3944
        %v4040 = vpop.f32.mrb[0].mxu0
        %v4041 = vadd.f32 0.0, %v4040
        %v4042 = vpop.f32.mrb[0].mxu0
        %v4043 = vpop.f32.mrb[0].mxu0
        %v4044 = vadd.f32 0.0, %v4043
        %v4045 = vpop.f32.mrb[0].mxu0
        %4046 = vmatprep.mubr.bf16.mxu0 %v3947
        %4047 = vmatmul.mubr.bf16.gmra.mrb[0].mxu0 %v3946
        %v4048 = vpop.f32.mrb[0].mxu0
        %v4049 = vadd.f32 0.0, %v4048
        %v4050 = vpop.f32.mrb[0].mxu0
        %v4051 = vpop.f32.mrb[0].mxu0
        %v4052 = vadd.f32 0.0, %v4051
        %v4053 = vpop.f32.mrb[0].mxu0
        %4054 = vmatprep.mubr.bf16.mxu0 %v3949
        %4055 = vmatmul.mubr.bf16.gmra.mrb[0].mxu0 %v3948
        %v4056 = vpop.f32.mrb[0].mxu0
        %v4057 = vadd.f32 0.0, %v4056
        %v4058 = vpop.f32.mrb[0].mxu0
        %v4059 = vpop.f32.mrb[0].mxu0
        %v4060 = vadd.f32 0.0, %v4059
        %v4061 = vpop.f32.mrb[0].mxu0
        %4062 = vdwg.mxu0
        %v4063 = vpack.c.bf16 %v4004, %v4001
        %v4064 = vpack.c.bf16 %v4012, %v4009
        %v4065 = vpack.c.bf16 %v4020, %v4017
        %v4066 = vpack.c.bf16 %v4028, %v4025
        %v4067 = vpack.c.bf16 %v4036, %v4033
        %v4068 = vpack.c.bf16 %v4044, %v4041
        %v4069 = vpack.c.bf16 %v4052, %v4049
        %v4070 = vpack.c.bf16 %v4060, %v4057
        %v4071 = vld [vmem:[%s6] sm:$0xf]
        %v4072 = vld [vmem:[%s6 + $0x4] sm:$0xf]
        %v4073 = vld [vmem:[%s6 + $0x8] sm:$0xf]
        %v4074 = vld [vmem:[%s6 + $0xc] sm:$0xf]
        %s4075 = scalar_lea.vmem %s3, 64
        %v4076 = vld [vmem:[%s4075] sm:$0xf]
        %v4077 = vld [vmem:[%s4075 + $0x4] sm:$0xf]
        %v4078 = vld [vmem:[%s4075 + $0x8] sm:$0xf]
        %v4079 = vld [vmem:[%s4075 + $0xc] sm:$0xf]
        %v4080 = vld [vmem:[%s4075 + $0x10] sm:$0xf]
        %v4081 = vld [vmem:[%s4075 + $0x14] sm:$0xf]
        %v4082 = vld [vmem:[%s4075 + $0x18] sm:$0xf]
        %v4083 = vld [vmem:[%s4075 + $0x1c] sm:$0xf]
        %v4084 = vld [vmem:[%s4075 + $0x20] sm:$0xf]
        %v4085 = vld [vmem:[%s4075 + $0x24] sm:$0xf]
        %v4086 = vld [vmem:[%s4075 + $0x28] sm:$0xf]
        %v4087 = vld [vmem:[%s4075 + $0x2c] sm:$0xf]
        %v4088 = vld [vmem:[%s4075 + $0x30] sm:$0xf]
        %v4089 = vld [vmem:[%s4075 + $0x34] sm:$0xf]
        %v4090 = vld [vmem:[%s4075 + $0x38] sm:$0xf]
        %v4091 = vld [vmem:[%s4075 + $0x3c] sm:$0xf]
        %v4108 = vunpack.c.l.b16 %v4076
        %v4109 = vunpack.c.l.b16 %v4077
        %v4110 = vunpack.c.l.b16 %v4078
        %v4111 = vunpack.c.l.b16 %v4079
        %v4112 = vunpack.c.l.b16 %v4080
        %v4113 = vunpack.c.l.b16 %v4081
        %v4114 = vunpack.c.l.b16 %v4082
        %v4115 = vunpack.c.l.b16 %v4083
        %v4116 = vunpack.c.l.b16 %v4084
        %v4117 = vunpack.c.l.b16 %v4085
        %v4118 = vunpack.c.l.b16 %v4086
        %v4119 = vunpack.c.l.b16 %v4087
        %v4120 = vunpack.c.l.b16 %v4088
        %v4121 = vunpack.c.l.b16 %v4089
        %v4122 = vunpack.c.l.b16 %v4090
        %v4123 = vunpack.c.l.b16 %v4091
        %v4124 = vpack.c.b16 %v4109, %v4108
        %v4125 = vpack.c.b16 %v4111, %v4110
        %v4126 = vpack.c.b16 %v4113, %v4112
        %v4127 = vpack.c.b16 %v4115, %v4114
        %v4128 = vpack.c.b16 %v4117, %v4116
        %v4129 = vpack.c.b16 %v4119, %v4118
        %v4130 = vpack.c.b16 %v4121, %v4120
        %v4131 = vpack.c.b16 %v4123, %v4122
        %4140 = vmatprep.subr.bf16.mxu0 0
        %4141 = vmatpush1.bf16.msra.mxu0 %v4124
        %4142 = vmatprep.subr.bf16.mxu0 0
        %4143 = vmatpush1.bf16.msra.mxu0 %v4125
        %4144 = vmatprep.subr.bf16.mxu0 0
        %4145 = vmatpush1.bf16.msra.mxu0 %v4126
        %4146 = vmatprep.subr.bf16.mxu0 0
        %4147 = vmatpush1.bf16.msra.mxu0 %v4127
        %4148 = vmatprep.subr.bf16.mxu0 0
        %4149 = vmatpush1.bf16.msra.mxu0 %v4128
        %4150 = vmatprep.subr.bf16.mxu0 0
        %4151 = vmatpush1.bf16.msra.mxu0 %v4129
        %4152 = vmatprep.subr.bf16.mxu0 0
        %4153 = vmatpush1.bf16.msra.mxu0 %v4130
        %4154 = vmatprep.subr.bf16.mxu0 0
        %4155 = vmatpush1.bf16.msra.mxu0 %v4131
        %4156 = vmatprep.subr.bf16.mxu0 0
        %4157 = vmatpush1.bf16.msra.mxu0 0
        %4158 = vmatprep.subr.bf16.mxu0 0
        %4159 = vmatpush1.bf16.msra.mxu0 0
        %4160 = vmatprep.subr.bf16.mxu0 0
        %4161 = vmatpush1.bf16.msra.mxu0 0
        %4162 = vmatprep.subr.bf16.mxu0 0
        %4163 = vmatpush1.bf16.msra.mxu0 0
        %4164 = vmatprep.subr.bf16.mxu0 0
        %4165 = vmatpush1.bf16.msra.mxu0 0
        %4166 = vmatprep.subr.bf16.mxu0 0
        %4167 = vmatpush1.bf16.msra.mxu0 0
        %4168 = vmatprep.subr.bf16.mxu0 0
        %4169 = vmatpush1.bf16.msra.mxu0 0
        %4170 = vmatprep.subr.bf16.mxu0 0
        %4171 = vmatpush1.bf16.msra.mxu0 0
        %4172 = vmatprep.mubr.bf16.mxu0 0
        %4173 = vmatmul.mubr.bf16.gmra.mrb[0].mxu0 %v3315
        %v4174 = vpop.f32.mrb[0].mxu0
        %v4175 = vadd.f32 0.0, %v4174
        %v4176 = vpop.f32.mrb[0].mxu0
        %v4177 = vpop.f32.mrb[0].mxu0
        %v4178 = vadd.f32 0.0, %v4177
        %v4179 = vpop.f32.mrb[0].mxu0
        %4180 = vmatprep.mubr.bf16.mxu0 0
        %4181 = vmatmul.mubr.bf16.gmra.mrb[0].mxu0 %v3316
        %v4182 = vpop.f32.mrb[0].mxu0
        %v4183 = vadd.f32 0.0, %v4182
        %v4184 = vpop.f32.mrb[0].mxu0
        %v4185 = vpop.f32.mrb[0].mxu0
        %v4186 = vadd.f32 0.0, %v4185
        %v4187 = vpop.f32.mrb[0].mxu0
        %4188 = vmatprep.mubr.bf16.mxu0 0
        %4189 = vmatmul.mubr.bf16.gmra.mrb[0].mxu0 %v3317
        %v4190 = vpop.f32.mrb[0].mxu0
        %v4191 = vadd.f32 0.0, %v4190
        %v4192 = vpop.f32.mrb[0].mxu0
        %v4193 = vpop.f32.mrb[0].mxu0
        %v4194 = vadd.f32 0.0, %v4193
        %v4195 = vpop.f32.mrb[0].mxu0
        %4196 = vmatprep.mubr.bf16.mxu0 0
        %4197 = vmatmul.mubr.bf16.gmra.mrb[0].mxu0 %v3318
        %v4198 = vpop.f32.mrb[0].mxu0
        %v4199 = vadd.f32 0.0, %v4198
        %v4200 = vpop.f32.mrb[0].mxu0
        %v4201 = vpop.f32.mrb[0].mxu0
        %v4202 = vadd.f32 0.0, %v4201
        %v4203 = vpop.f32.mrb[0].mxu0
        %4204 = vmatprep.mubr.bf16.mxu0 0
        %4205 = vmatmul.mubr.bf16.gmra.mrb[0].mxu0 %v3319
        %v4206 = vpop.f32.mrb[0].mxu0
        %v4207 = vadd.f32 0.0, %v4206
        %v4208 = vpop.f32.mrb[0].mxu0
        %v4209 = vpop.f32.mrb[0].mxu0
        %v4210 = vadd.f32 0.0, %v4209
        %v4211 = vpop.f32.mrb[0].mxu0
        %4212 = vmatprep.mubr.bf16.mxu0 0
        %4213 = vmatmul.mubr.bf16.gmra.mrb[0].mxu0 %v3320
        %v4214 = vpop.f32.mrb[0].mxu0
        %v4215 = vadd.f32 0.0, %v4214
        %v4216 = vpop.f32.mrb[0].mxu0
        %v4217 = vpop.f32.mrb[0].mxu0
        %v4218 = vadd.f32 0.0, %v4217
        %v4219 = vpop.f32.mrb[0].mxu0
        %4220 = vmatprep.mubr.bf16.mxu0 0
        %4221 = vmatmul.mubr.bf16.gmra.mrb[0].mxu0 %v3321
        %v4222 = vpop.f32.mrb[0].mxu0
        %v4223 = vadd.f32 0.0, %v4222
        %v4224 = vpop.f32.mrb[0].mxu0
        %v4225 = vpop.f32.mrb[0].mxu0
        %v4226 = vadd.f32 0.0, %v4225
        %v4227 = vpop.f32.mrb[0].mxu0
        %4228 = vmatprep.mubr.bf16.mxu0 0
        %4229 = vmatmul.mubr.bf16.gmra.mrb[0].mxu0 %v3322
        %v4230 = vpop.f32.mrb[0].mxu0
        %v4231 = vadd.f32 0.0, %v4230
        %v4232 = vpop.f32.mrb[0].mxu0
        %v4233 = vpop.f32.mrb[0].mxu0
        %v4234 = vadd.f32 0.0, %v4233
        %v4235 = vpop.f32.mrb[0].mxu0
        %4236 = vdwg.mxu0
        %v4237 = vpack.c.bf16 %v4178, %v4175
        %v4238 = vpack.c.bf16 %v4186, %v4183
        %v4239 = vpack.c.bf16 %v4194, %v4191
        %v4240 = vpack.c.bf16 %v4202, %v4199
        %v4241 = vpack.c.bf16 %v4210, %v4207
        %v4242 = vpack.c.bf16 %v4218, %v4215
        %v4243 = vpack.c.bf16 %v4226, %v4223
        %v4244 = vpack.c.bf16 %v4234, %v4231
        %s4245 = scalar_lea.vmem [#allocation2], 128
        %v4246 = vld [vmem:[%s4245] sm:$0xff]
        %v4247 = vld [vmem:[%s4245 + $0x8] sm:$0xff]
        %v4248 = vld [vmem:[%s4245 + $0x10] sm:$0xff]
        %v4249 = vld [vmem:[%s4245 + $0x18] sm:$0xff]
        %v4250 = vld [vmem:[%s4245 + $0x20] sm:$0xff]
        %v4251 = vld [vmem:[%s4245 + $0x28] sm:$0xff]
        %v4252 = vld [vmem:[%s4245 + $0x30] sm:$0xff]
        %v4253 = vld [vmem:[%s4245 + $0x38] sm:$0xff]
        %v4254 = vld [vmem:[%s4245 + $0x40] sm:$0xff]
        %v4255 = vld [vmem:[%s4245 + $0x48] sm:$0xff]
        %v4256 = vld [vmem:[%s4245 + $0x50] sm:$0xff]
        %v4257 = vld [vmem:[%s4245 + $0x58] sm:$0xff]
        %v4258 = vld [vmem:[%s4245 + $0x60] sm:$0xff]
        %v4259 = vld [vmem:[%s4245 + $0x68] sm:$0xff]
        %v4260 = vld [vmem:[%s4245 + $0x70] sm:$0xff]
        %v4261 = vld [vmem:[%s4245 + $0x78] sm:$0xff]
        %v4263 = vsel %vm3508, %v4237, 0
        %v4266 = vsel %vm3508, %v4238, 0
        %v4269 = vsel %vm3508, %v4239, 0
        %v4272 = vsel %vm3508, %v4240, 0
        %v4275 = vsel %vm3508, %v4241, 0
        %v4278 = vsel %vm3508, %v4242, 0
        %v4281 = vsel %vm3508, %v4243, 0
        %v4284 = vsel %vm3508, %v4244, 0
        %v4287 = vsel %vm3508, %v4246, 0
        %v4290 = vsel %vm3508, %v4247, 0
        %v4293 = vsel %vm3508, %v4248, 0
        %v4296 = vsel %vm3508, %v4249, 0
        %v4299 = vsel %vm3508, %v4250, 0
        %v4302 = vsel %vm3508, %v4251, 0
        %v4305 = vsel %vm3508, %v4252, 0
        %v4308 = vsel %vm3508, %v4253, 0
        %v4311 = vsel %vm3508, %v4254, 0
        %v4314 = vsel %vm3508, %v4255, 0
        %v4317 = vsel %vm3508, %v4256, 0
        %v4320 = vsel %vm3508, %v4257, 0
        %v4323 = vsel %vm3508, %v4258, 0
        %v4326 = vsel %vm3508, %v4259, 0
        %v4329 = vsel %vm3508, %v4260, 0
        %v4332 = vsel %vm3508, %v4261, 0
        %4334 = vmatprep.subr.bf16.mxu0 0
        %4335 = vmatpush1.bf16.xpose.msra.mxu0 %v4287
        %4336 = vmatprep.subr.bf16.mxu0 0
        %4337 = vmatpush1.bf16.xpose.msra.mxu0 %v4290
        %4338 = vmatprep.subr.bf16.mxu0 0
        %4339 = vmatpush1.bf16.xpose.msra.mxu0 %v4293
        %4340 = vmatprep.subr.bf16.mxu0 0
        %4341 = vmatpush1.bf16.xpose.msra.mxu0 %v4296
        %4342 = vmatprep.subr.bf16.mxu0 0
        %4343 = vmatpush1.bf16.xpose.msra.mxu0 %v4299
        %4344 = vmatprep.subr.bf16.mxu0 0
        %4345 = vmatpush1.bf16.xpose.msra.mxu0 %v4302
        %4346 = vmatprep.subr.bf16.mxu0 0
        %4347 = vmatpush1.bf16.xpose.msra.mxu0 %v4305
        %4348 = vmatprep.subr.bf16.mxu0 0
        %4349 = vmatpush1.bf16.xpose.msra.mxu0 %v4308
        %4350 = vmatprep.subr.bf16.mxu0 0
        %4351 = vmatpush1.bf16.xpose.msra.mxu0 %v4311
        %4352 = vmatprep.subr.bf16.mxu0 0
        %4353 = vmatpush1.bf16.xpose.msra.mxu0 %v4314
        %4354 = vmatprep.subr.bf16.mxu0 0
        %4355 = vmatpush1.bf16.xpose.msra.mxu0 %v4317
        %4356 = vmatprep.subr.bf16.mxu0 0
        %4357 = vmatpush1.bf16.xpose.msra.mxu0 %v4320
        %4358 = vmatprep.subr.bf16.mxu0 0
        %4359 = vmatpush1.bf16.xpose.msra.mxu0 %v4323
        %4360 = vmatprep.subr.bf16.mxu0 0
        %4361 = vmatpush1.bf16.xpose.msra.mxu0 %v4326
        %4362 = vmatprep.subr.bf16.mxu0 0
        %4363 = vmatpush1.bf16.xpose.msra.mxu0 %v4329
        %4364 = vmatprep.subr.bf16.mxu0 0
        %4365 = vmatpush1.bf16.xpose.msra.mxu0 %v4332
        %4366 = vmatprep.mubr.bf16.mxu0 0
        %4367 = vmatmul.mubr.bf16.gmra.mrb[0].mxu0 %v4263
        %v4368 = vpop.f32.mrb[0].mxu0
        %v4369 = vadd.f32 0.0, %v4368
        %v4370 = vpop.f32.mrb[0].mxu0
        %v4371 = vadd.f32 0.0, %v4370
        %v4372 = vpop.f32.mrb[0].mxu0
        %v4373 = vadd.f32 0.0, %v4372
        %v4374 = vpop.f32.mrb[0].mxu0
        %v4375 = vadd.f32 0.0, %v4374
        %4376 = vmatprep.mubr.bf16.mxu0 0
        %4377 = vmatmul.mubr.bf16.gmra.mrb[0].mxu0 %v4266
        %v4378 = vpop.f32.mrb[0].mxu0
        %v4379 = vadd.f32 0.0, %v4378
        %v4380 = vpop.f32.mrb[0].mxu0
        %v4381 = vadd.f32 0.0, %v4380
        %v4382 = vpop.f32.mrb[0].mxu0
        %v4383 = vadd.f32 0.0, %v4382
        %v4384 = vpop.f32.mrb[0].mxu0
        %v4385 = vadd.f32 0.0, %v4384
        %4386 = vmatprep.mubr.bf16.mxu0 0
        %4387 = vmatmul.mubr.bf16.gmra.mrb[0].mxu0 %v4269
        %v4388 = vpop.f32.mrb[0].mxu0
        %v4389 = vadd.f32 0.0, %v4388
        %v4390 = vpop.f32.mrb[0].mxu0
        %v4391 = vadd.f32 0.0, %v4390
        %v4392 = vpop.f32.mrb[0].mxu0
        %v4393 = vadd.f32 0.0, %v4392
        %v4394 = vpop.f32.mrb[0].mxu0
        %v4395 = vadd.f32 0.0, %v4394
        %4396 = vmatprep.mubr.bf16.mxu0 0
        %4397 = vmatmul.mubr.bf16.gmra.mrb[0].mxu0 %v4272
        %v4398 = vpop.f32.mrb[0].mxu0
        %v4399 = vadd.f32 0.0, %v4398
        %v4400 = vpop.f32.mrb[0].mxu0
        %v4401 = vadd.f32 0.0, %v4400
        %v4402 = vpop.f32.mrb[0].mxu0
        %v4403 = vadd.f32 0.0, %v4402
        %v4404 = vpop.f32.mrb[0].mxu0
        %v4405 = vadd.f32 0.0, %v4404
        %4406 = vmatprep.mubr.bf16.mxu0 0
        %4407 = vmatmul.mubr.bf16.gmra.mrb[0].mxu0 %v4275
        %v4408 = vpop.f32.mrb[0].mxu0
        %v4409 = vadd.f32 0.0, %v4408
        %v4410 = vpop.f32.mrb[0].mxu0
        %v4411 = vadd.f32 0.0, %v4410
        %v4412 = vpop.f32.mrb[0].mxu0
        %v4413 = vadd.f32 0.0, %v4412
        %v4414 = vpop.f32.mrb[0].mxu0
        %v4415 = vadd.f32 0.0, %v4414
        %4416 = vmatprep.mubr.bf16.mxu0 0
        %4417 = vmatmul.mubr.bf16.gmra.mrb[0].mxu0 %v4278
        %v4418 = vpop.f32.mrb[0].mxu0
        %v4419 = vadd.f32 0.0, %v4418
        %v4420 = vpop.f32.mrb[0].mxu0
        %v4421 = vadd.f32 0.0, %v4420
        %v4422 = vpop.f32.mrb[0].mxu0
        %v4423 = vadd.f32 0.0, %v4422
        %v4424 = vpop.f32.mrb[0].mxu0
        %v4425 = vadd.f32 0.0, %v4424
        %4426 = vmatprep.mubr.bf16.mxu0 0
        %4427 = vmatmul.mubr.bf16.gmra.mrb[0].mxu0 %v4281
        %v4428 = vpop.f32.mrb[0].mxu0
        %v4429 = vadd.f32 0.0, %v4428
        %v4430 = vpop.f32.mrb[0].mxu0
        %v4431 = vadd.f32 0.0, %v4430
        %v4432 = vpop.f32.mrb[0].mxu0
        %v4433 = vadd.f32 0.0, %v4432
        %v4434 = vpop.f32.mrb[0].mxu0
        %v4435 = vadd.f32 0.0, %v4434
        %4436 = vmatprep.mubr.bf16.mxu0 0
        %4437 = vmatmul.mubr.bf16.gmra.mrb[0].mxu0 %v4284
        %v4438 = vpop.f32.mrb[0].mxu0
        %v4439 = vadd.f32 0.0, %v4438
        %v4440 = vpop.f32.mrb[0].mxu0
        %v4441 = vadd.f32 0.0, %v4440
        %v4442 = vpop.f32.mrb[0].mxu0
        %v4443 = vadd.f32 0.0, %v4442
        %v4444 = vpop.f32.mrb[0].mxu0
        %v4445 = vadd.f32 0.0, %v4444
        %4446 = vdwg.mxu0
        %v4447 = vmax.f32 %v4369, %v4371
        %4448 = vmax.xlane.f32.xlu0 %v4447
        %v4449 = vpop.xlane.xlu0 %4448
        %v4450 = vmax.f32 %v4373, %v4375
        %4451 = vmax.xlane.f32.xlu0 %v4450
        %v4452 = vpop.xlane.xlu0 %4451
        %v4453 = vmax.f32 %v4379, %v4381
        %4454 = vmax.xlane.f32.xlu0 %v4453
        %v4455 = vpop.xlane.xlu0 %4454
        %v4456 = vmax.f32 %v4383, %v4385
        %4457 = vmax.xlane.f32.xlu0 %v4456
        %v4458 = vpop.xlane.xlu0 %4457
        %v4459 = vmax.f32 %v4389, %v4391
        %4460 = vmax.xlane.f32.xlu0 %v4459
        %v4461 = vpop.xlane.xlu0 %4460
        %v4462 = vmax.f32 %v4393, %v4395
        %4463 = vmax.xlane.f32.xlu0 %v4462
        %v4464 = vpop.xlane.xlu0 %4463
        %v4465 = vmax.f32 %v4399, %v4401
        %4466 = vmax.xlane.f32.xlu0 %v4465
        %v4467 = vpop.xlane.xlu0 %4466
        %v4468 = vmax.f32 %v4403, %v4405
        %4469 = vmax.xlane.f32.xlu0 %v4468
        %v4470 = vpop.xlane.xlu0 %4469
        %v4471 = vmax.f32 %v4409, %v4411
        %4472 = vmax.xlane.f32.xlu0 %v4471
        %v4473 = vpop.xlane.xlu0 %4472
        %v4474 = vmax.f32 %v4413, %v4415
        %4475 = vmax.xlane.f32.xlu0 %v4474
        %v4476 = vpop.xlane.xlu0 %4475
        %v4477 = vmax.f32 %v4419, %v4421
        %4478 = vmax.xlane.f32.xlu0 %v4477
        %v4479 = vpop.xlane.xlu0 %4478
        %v4480 = vmax.f32 %v4423, %v4425
        %4481 = vmax.xlane.f32.xlu0 %v4480
        %v4482 = vpop.xlane.xlu0 %4481
        %v4483 = vmax.f32 %v4429, %v4431
        %4484 = vmax.xlane.f32.xlu0 %v4483
        %v4485 = vpop.xlane.xlu0 %4484
        %v4486 = vmax.f32 %v4433, %v4435
        %4487 = vmax.xlane.f32.xlu0 %v4486
        %v4488 = vpop.xlane.xlu0 %4487
        %v4489 = vmax.f32 %v4439, %v4441
        %4490 = vmax.xlane.f32.xlu0 %v4489
        %v4491 = vpop.xlane.xlu0 %4490
        %v4492 = vmax.f32 %v4443, %v4445
        %4493 = vmax.xlane.f32.xlu0 %v4492
        %v4494 = vpop.xlane.xlu0 %4493
        %v4495 = vsub.f32 %v4369, %v4449
        %v4496 = vsub.f32 %v4371, %v4449
        %v4497 = vsub.f32 %v4373, %v4452
        %v4498 = vsub.f32 %v4375, %v4452
        %v4499 = vsub.f32 %v4379, %v4455
        %v4500 = vsub.f32 %v4381, %v4455
        %v4501 = vsub.f32 %v4383, %v4458
        %v4502 = vsub.f32 %v4385, %v4458
        %v4503 = vsub.f32 %v4389, %v4461
        %v4504 = vsub.f32 %v4391, %v4461
        %v4505 = vsub.f32 %v4393, %v4464
        %v4506 = vsub.f32 %v4395, %v4464
        %v4507 = vsub.f32 %v4399, %v4467
        %v4508 = vsub.f32 %v4401, %v4467
        %v4509 = vsub.f32 %v4403, %v4470
        %v4510 = vsub.f32 %v4405, %v4470
        %v4511 = vsub.f32 %v4409, %v4473
        %v4512 = vsub.f32 %v4411, %v4473
        %v4513 = vsub.f32 %v4413, %v4476
        %v4514 = vsub.f32 %v4415, %v4476
        %v4515 = vsub.f32 %v4419, %v4479
        %v4516 = vsub.f32 %v4421, %v4479
        %v4517 = vsub.f32 %v4423, %v4482
        %v4518 = vsub.f32 %v4425, %v4482
        %v4519 = vsub.f32 %v4429, %v4485
        %v4520 = vsub.f32 %v4431, %v4485
        %v4521 = vsub.f32 %v4433, %v4488
        %v4522 = vsub.f32 %v4435, %v4488
        %v4523 = vsub.f32 %v4439, %v4491
        %v4524 = vsub.f32 %v4441, %v4491
        %v4525 = vsub.f32 %v4443, %v4494
        %v4526 = vsub.f32 %v4445, %v4494
        %v4527 = vmul.f32 %v4495, 1.442695
        %v4528 = vpow.pop %v4527
        %v4529 = vmul.f32 %v4496, 1.442695
        %v4530 = vpow.pop %v4529
        %v4531 = vmul.f32 %v4497, 1.442695
        %v4532 = vpow.pop %v4531
        %v4533 = vmul.f32 %v4498, 1.442695
        %v4534 = vpow.pop %v4533
        %v4535 = vmul.f32 %v4499, 1.442695
        %v4536 = vpow.pop %v4535
        %v4537 = vmul.f32 %v4500, 1.442695
        %v4538 = vpow.pop %v4537
        %v4539 = vmul.f32 %v4501, 1.442695
        %v4540 = vpow.pop %v4539
        %v4541 = vmul.f32 %v4502, 1.442695
        %v4542 = vpow.pop %v4541
        %v4543 = vmul.f32 %v4503, 1.442695
        %v4544 = vpow.pop %v4543
        %v4545 = vmul.f32 %v4504, 1.442695
        %v4546 = vpow.pop %v4545
        %v4547 = vmul.f32 %v4505, 1.442695
        %v4548 = vpow.pop %v4547
        %v4549 = vmul.f32 %v4506, 1.442695
        %v4550 = vpow.pop %v4549
        %v4551 = vmul.f32 %v4507, 1.442695
        %v4552 = vpow.pop %v4551
        %v4553 = vmul.f32 %v4508, 1.442695
        %v4554 = vpow.pop %v4553
        %v4555 = vmul.f32 %v4509, 1.442695
        %v4556 = vpow.pop %v4555
        %v4557 = vmul.f32 %v4510, 1.442695
        %v4558 = vpow.pop %v4557
        %v4559 = vmul.f32 %v4511, 1.442695
        %v4560 = vpow.pop %v4559
        %v4561 = vmul.f32 %v4512, 1.442695
        %v4562 = vpow.pop %v4561
        %v4563 = vmul.f32 %v4513, 1.442695
        %v4564 = vpow.pop %v4563
        %v4565 = vmul.f32 %v4514, 1.442695
        %v4566 = vpow.pop %v4565
        %v4567 = vmul.f32 %v4515, 1.442695
        %v4568 = vpow.pop %v4567
        %v4569 = vmul.f32 %v4516, 1.442695
        %v4570 = vpow.pop %v4569
        %v4571 = vmul.f32 %v4517, 1.442695
        %v4572 = vpow.pop %v4571
        %v4573 = vmul.f32 %v4518, 1.442695
        %v4574 = vpow.pop %v4573
        %v4575 = vmul.f32 %v4519, 1.442695
        %v4576 = vpow.pop %v4575
        %v4577 = vmul.f32 %v4520, 1.442695
        %v4578 = vpow.pop %v4577
        %v4579 = vmul.f32 %v4521, 1.442695
        %v4580 = vpow.pop %v4579
        %v4581 = vmul.f32 %v4522, 1.442695
        %v4582 = vpow.pop %v4581
        %v4583 = vmul.f32 %v4523, 1.442695
        %v4584 = vpow.pop %v4583
        %v4585 = vmul.f32 %v4524, 1.442695
        %v4586 = vpow.pop %v4585
        %v4587 = vmul.f32 %v4525, 1.442695
        %v4588 = vpow.pop %v4587
        %v4589 = vmul.f32 %v4526, 1.442695
        %v4590 = vpow.pop %v4589
        %v4591 = vadd.f32 %v4528, %v4530
        %4592 = vadd.xlane.f32.xlu0 %v4591
        %v4593 = vpop.xlane.xlu0 %4592
        %v4594 = vadd.f32 %v4532, %v4534
        %4595 = vadd.xlane.f32.xlu0 %v4594
        %v4596 = vpop.xlane.xlu0 %4595
        %v4597 = vadd.f32 %v4536, %v4538
        %4598 = vadd.xlane.f32.xlu0 %v4597
        %v4599 = vpop.xlane.xlu0 %4598
        %v4600 = vadd.f32 %v4540, %v4542
        %4601 = vadd.xlane.f32.xlu0 %v4600
        %v4602 = vpop.xlane.xlu0 %4601
        %v4603 = vadd.f32 %v4544, %v4546
        %4604 = vadd.xlane.f32.xlu0 %v4603
        %v4605 = vpop.xlane.xlu0 %4604
        %v4606 = vadd.f32 %v4548, %v4550
        %4607 = vadd.xlane.f32.xlu0 %v4606
        %v4608 = vpop.xlane.xlu0 %4607
        %v4609 = vadd.f32 %v4552, %v4554
        %4610 = vadd.xlane.f32.xlu0 %v4609
        %v4611 = vpop.xlane.xlu0 %4610
        %v4612 = vadd.f32 %v4556, %v4558
        %4613 = vadd.xlane.f32.xlu0 %v4612
        %v4614 = vpop.xlane.xlu0 %4613
        %v4615 = vadd.f32 %v4560, %v4562
        %4616 = vadd.xlane.f32.xlu0 %v4615
        %v4617 = vpop.xlane.xlu0 %4616
        %v4618 = vadd.f32 %v4564, %v4566
        %4619 = vadd.xlane.f32.xlu0 %v4618
        %v4620 = vpop.xlane.xlu0 %4619
        %v4621 = vadd.f32 %v4568, %v4570
        %4622 = vadd.xlane.f32.xlu0 %v4621
        %v4623 = vpop.xlane.xlu0 %4622
        %v4624 = vadd.f32 %v4572, %v4574
        %4625 = vadd.xlane.f32.xlu0 %v4624
        %v4626 = vpop.xlane.xlu0 %4625
        %v4627 = vadd.f32 %v4576, %v4578
        %4628 = vadd.xlane.f32.xlu0 %v4627
        %v4629 = vpop.xlane.xlu0 %4628
        %v4630 = vadd.f32 %v4580, %v4582
        %4631 = vadd.xlane.f32.xlu0 %v4630
        %v4632 = vpop.xlane.xlu0 %4631
        %v4633 = vadd.f32 %v4584, %v4586
        %4634 = vadd.xlane.f32.xlu0 %v4633
        %v4635 = vpop.xlane.xlu0 %4634
        %v4636 = vadd.f32 %v4588, %v4590
        %4637 = vadd.xlane.f32.xlu0 %v4636
        %v4638 = vpop.xlane.xlu0 %4637
        %v4639 = vrcp.pop %v4593
        %v4640 = vrcp.pop %v4596
        %v4641 = vrcp.pop %v4599
        %v4642 = vrcp.pop %v4602
        %v4643 = vrcp.pop %v4605
        %v4644 = vrcp.pop %v4608
        %v4645 = vrcp.pop %v4611
        %v4646 = vrcp.pop %v4614
        %v4647 = vrcp.pop %v4617
        %v4648 = vrcp.pop %v4620
        %v4649 = vrcp.pop %v4623
        %v4650 = vrcp.pop %v4626
        %v4651 = vrcp.pop %v4629
        %v4652 = vrcp.pop %v4632
        %v4653 = vrcp.pop %v4635
        %v4654 = vrcp.pop %v4638
        %v4655 = vmul.f32 %v4528, %v4639
        %v4656 = vmul.f32 %v4530, %v4639
        %v4657 = vmul.f32 %v4532, %v4640
        %v4658 = vmul.f32 %v4534, %v4640
        %v4659 = vmul.f32 %v4536, %v4641
        %v4660 = vmul.f32 %v4538, %v4641
        %v4661 = vmul.f32 %v4540, %v4642
        %v4662 = vmul.f32 %v4542, %v4642
        %v4663 = vmul.f32 %v4544, %v4643
        %v4664 = vmul.f32 %v4546, %v4643
        %v4665 = vmul.f32 %v4548, %v4644
        %v4666 = vmul.f32 %v4550, %v4644
        %v4667 = vmul.f32 %v4552, %v4645
        %v4668 = vmul.f32 %v4554, %v4645
        %v4669 = vmul.f32 %v4556, %v4646
        %v4670 = vmul.f32 %v4558, %v4646
        %v4671 = vmul.f32 %v4560, %v4647
        %v4672 = vmul.f32 %v4562, %v4647
        %v4673 = vmul.f32 %v4564, %v4648
        %v4674 = vmul.f32 %v4566, %v4648
        %v4675 = vmul.f32 %v4568, %v4649
        %v4676 = vmul.f32 %v4570, %v4649
        %v4677 = vmul.f32 %v4572, %v4650
        %v4678 = vmul.f32 %v4574, %v4650
        %v4679 = vmul.f32 %v4576, %v4651
        %v4680 = vmul.f32 %v4578, %v4651
        %v4681 = vmul.f32 %v4580, %v4652
        %v4682 = vmul.f32 %v4582, %v4652
        %v4683 = vmul.f32 %v4584, %v4653
        %v4684 = vmul.f32 %v4586, %v4653
        %v4685 = vmul.f32 %v4588, %v4654
        %v4686 = vmul.f32 %v4590, %v4654
        %v4687 = vpack.c.bf16 %v4657, %v4655
        %v4688 = vpack.c.bf16 %v4658, %v4656
        %v4689 = vpack.c.bf16 %v4661, %v4659
        %v4690 = vpack.c.bf16 %v4662, %v4660
        %v4691 = vpack.c.bf16 %v4665, %v4663
        %v4692 = vpack.c.bf16 %v4666, %v4664
        %v4693 = vpack.c.bf16 %v4669, %v4667
        %v4694 = vpack.c.bf16 %v4670, %v4668
        %v4695 = vpack.c.bf16 %v4673, %v4671
        %v4696 = vpack.c.bf16 %v4674, %v4672
        %v4697 = vpack.c.bf16 %v4677, %v4675
        %v4698 = vpack.c.bf16 %v4678, %v4676
        %v4699 = vpack.c.bf16 %v4681, %v4679
        %v4700 = vpack.c.bf16 %v4682, %v4680
        %v4701 = vpack.c.bf16 %v4685, %v4683
        %v4702 = vpack.c.bf16 %v4686, %v4684
        %s4703 = scalar_lea.vmem [#allocation3], 128
        %v4704 = vld [vmem:[%s4703] sm:$0xff]
        %v4705 = vld [vmem:[%s4703 + $0x8] sm:$0xff]
        %v4706 = vld [vmem:[%s4703 + $0x10] sm:$0xff]
        %v4707 = vld [vmem:[%s4703 + $0x18] sm:$0xff]
        %v4708 = vld [vmem:[%s4703 + $0x20] sm:$0xff]
        %v4709 = vld [vmem:[%s4703 + $0x28] sm:$0xff]
        %v4710 = vld [vmem:[%s4703 + $0x30] sm:$0xff]
        %v4711 = vld [vmem:[%s4703 + $0x38] sm:$0xff]
        %v4712 = vld [vmem:[%s4703 + $0x40] sm:$0xff]
        %v4713 = vld [vmem:[%s4703 + $0x48] sm:$0xff]
        %v4714 = vld [vmem:[%s4703 + $0x50] sm:$0xff]
        %v4715 = vld [vmem:[%s4703 + $0x58] sm:$0xff]
        %v4716 = vld [vmem:[%s4703 + $0x60] sm:$0xff]
        %v4717 = vld [vmem:[%s4703 + $0x68] sm:$0xff]
        %v4718 = vld [vmem:[%s4703 + $0x70] sm:$0xff]
        %v4719 = vld [vmem:[%s4703 + $0x78] sm:$0xff]
        %4720 = vmatprep.subr.bf16.mxu0 0
        %4721 = vmatpush1.bf16.msra.mxu0 %v4704
        %4722 = vmatprep.subr.bf16.mxu0 0
        %4723 = vmatpush1.bf16.msra.mxu0 %v4705
        %4724 = vmatprep.subr.bf16.mxu0 0
        %4725 = vmatpush1.bf16.msra.mxu0 %v4706
        %4726 = vmatprep.subr.bf16.mxu0 0
        %4727 = vmatpush1.bf16.msra.mxu0 %v4707
        %4728 = vmatprep.subr.bf16.mxu0 0
        %4729 = vmatpush1.bf16.msra.mxu0 %v4708
        %4730 = vmatprep.subr.bf16.mxu0 0
        %4731 = vmatpush1.bf16.msra.mxu0 %v4709
        %4732 = vmatprep.subr.bf16.mxu0 0
        %4733 = vmatpush1.bf16.msra.mxu0 %v4710
        %4734 = vmatprep.subr.bf16.mxu0 0
        %4735 = vmatpush1.bf16.msra.mxu0 %v4711
        %4736 = vmatprep.subr.bf16.mxu0 0
        %4737 = vmatpush1.bf16.msra.mxu0 %v4712
        %4738 = vmatprep.subr.bf16.mxu0 0
        %4739 = vmatpush1.bf16.msra.mxu0 %v4713
        %4740 = vmatprep.subr.bf16.mxu0 0
        %4741 = vmatpush1.bf16.msra.mxu0 %v4714
        %4742 = vmatprep.subr.bf16.mxu0 0
        %4743 = vmatpush1.bf16.msra.mxu0 %v4715
        %4744 = vmatprep.subr.bf16.mxu0 0
        %4745 = vmatpush1.bf16.msra.mxu0 %v4716
        %4746 = vmatprep.subr.bf16.mxu0 0
        %4747 = vmatpush1.bf16.msra.mxu0 %v4717
        %4748 = vmatprep.subr.bf16.mxu0 0
        %4749 = vmatpush1.bf16.msra.mxu0 %v4718
        %4750 = vmatprep.subr.bf16.mxu0 0
        %4751 = vmatpush1.bf16.msra.mxu0 %v4719
        %4752 = vmatprep.mubr.bf16.mxu0 %v4688
        %4753 = vmatmul.mubr.bf16.gmra.mrb[0].mxu0 %v4687
        %v4754 = vpop.f32.mrb[0].mxu0
        %v4755 = vadd.f32 0.0, %v4754
        %v4756 = vpop.f32.mrb[0].mxu0
        %v4757 = vpop.f32.mrb[0].mxu0
        %v4758 = vadd.f32 0.0, %v4757
        %v4759 = vpop.f32.mrb[0].mxu0
        %4760 = vmatprep.mubr.bf16.mxu0 %v4690
        %4761 = vmatmul.mubr.bf16.gmra.mrb[0].mxu0 %v4689
        %v4762 = vpop.f32.mrb[0].mxu0
        %v4763 = vadd.f32 0.0, %v4762
        %v4764 = vpop.f32.mrb[0].mxu0
        %v4765 = vpop.f32.mrb[0].mxu0
        %v4766 = vadd.f32 0.0, %v4765
        %v4767 = vpop.f32.mrb[0].mxu0
        %4768 = vmatprep.mubr.bf16.mxu0 %v4692
        %4769 = vmatmul.mubr.bf16.gmra.mrb[0].mxu0 %v4691
        %v4770 = vpop.f32.mrb[0].mxu0
        %v4771 = vadd.f32 0.0, %v4770
        %v4772 = vpop.f32.mrb[0].mxu0
        %v4773 = vpop.f32.mrb[0].mxu0
        %v4774 = vadd.f32 0.0, %v4773
        %v4775 = vpop.f32.mrb[0].mxu0
        %4776 = vmatprep.mubr.bf16.mxu0 %v4694
        %4777 = vmatmul.mubr.bf16.gmra.mrb[0].mxu0 %v4693
        %v4778 = vpop.f32.mrb[0].mxu0
        %v4779 = vadd.f32 0.0, %v4778
        %v4780 = vpop.f32.mrb[0].mxu0
        %v4781 = vpop.f32.mrb[0].mxu0
        %v4782 = vadd.f32 0.0, %v4781
        %v4783 = vpop.f32.mrb[0].mxu0
        %4784 = vmatprep.mubr.bf16.mxu0 %v4696
        %4785 = vmatmul.mubr.bf16.gmra.mrb[0].mxu0 %v4695
        %v4786 = vpop.f32.mrb[0].mxu0
        %v4787 = vadd.f32 0.0, %v4786
        %v4788 = vpop.f32.mrb[0].mxu0
        %v4789 = vpop.f32.mrb[0].mxu0
        %v4790 = vadd.f32 0.0, %v4789
        %v4791 = vpop.f32.mrb[0].mxu0
        %4792 = vmatprep.mubr.bf16.mxu0 %v4698
        %4793 = vmatmul.mubr.bf16.gmra.mrb[0].mxu0 %v4697
        %v4794 = vpop.f32.mrb[0].mxu0
        %v4795 = vadd.f32 0.0, %v4794
        %v4796 = vpop.f32.mrb[0].mxu0
        %v4797 = vpop.f32.mrb[0].mxu0
        %v4798 = vadd.f32 0.0, %v4797
        %v4799 = vpop.f32.mrb[0].mxu0
        %4800 = vmatprep.mubr.bf16.mxu0 %v4700
        %4801 = vmatmul.mubr.bf16.gmra.mrb[0].mxu0 %v4699
        %v4802 = vpop.f32.mrb[0].mxu0
        %v4803 = vadd.f32 0.0, %v4802
        %v4804 = vpop.f32.mrb[0].mxu0
        %v4805 = vpop.f32.mrb[0].mxu0
        %v4806 = vadd.f32 0.0, %v4805
        %v4807 = vpop.f32.mrb[0].mxu0
        %4808 = vmatprep.mubr.bf16.mxu0 %v4702
        %4809 = vmatmul.mubr.bf16.gmra.mrb[0].mxu0 %v4701
        %v4810 = vpop.f32.mrb[0].mxu0
        %v4811 = vadd.f32 0.0, %v4810
        %v4812 = vpop.f32.mrb[0].mxu0
        %v4813 = vpop.f32.mrb[0].mxu0
        %v4814 = vadd.f32 0.0, %v4813
        %v4815 = vpop.f32.mrb[0].mxu0
        %4816 = vdwg.mxu0
        %v4817 = vpack.c.bf16 %v4758, %v4755
        %v4818 = vpack.c.bf16 %v4766, %v4763
        %v4819 = vpack.c.bf16 %v4774, %v4771
        %v4820 = vpack.c.bf16 %v4782, %v4779
        %v4821 = vpack.c.bf16 %v4790, %v4787
        %v4822 = vpack.c.bf16 %v4798, %v4795
        %v4823 = vpack.c.bf16 %v4806, %v4803
        %v4824 = vpack.c.bf16 %v4814, %v4811
        %s4825 = scalar_lea.vmem %s6, 16
        %v4826 = vld [vmem:[%s4825] sm:$0xf]
        %v4827 = vld [vmem:[%s4825 + $0x4] sm:$0xf]
        %v4828 = vld [vmem:[%s4825 + $0x8] sm:$0xf]
        %v4829 = vld [vmem:[%s4825 + $0xc] sm:$0xf]
        %v4834 = vunpack.c.l.b16 %v4826
        %v4835 = vunpack.c.l.b16 %v4827
        %v4836 = vunpack.c.l.b16 %v4828
        %v4837 = vunpack.c.l.b16 %v4829
        %v4838 = vpack.c.b16 %v4835, %v4834
        %v4839 = vpack.c.b16 %v4837, %v4836
        %v4843 = vsel %vm3508, %v4817, 0
        %v4846 = vsel %vm3508, %v4818, 0
        %v4849 = vsel %vm3508, %v4819, 0
        %v4852 = vsel %vm3508, %v4820, 0
        %v4855 = vsel %vm3508, %v4821, 0
        %v4858 = vsel %vm3508, %v4822, 0
        %v4861 = vsel %vm3508, %v4823, 0
        %v4864 = vsel %vm3508, %v4824, 0
        %4866 = vmatprep.subr.bf16.mxu0 0
        %4867 = vmatpush1.bf16.msra.mxu0 %v4838
        %4868 = vmatprep.subr.bf16.mxu0 0
        %4869 = vmatpush1.bf16.msra.mxu0 %v4839
        %4870 = vmatprep.subr.bf16.mxu0 0
        %4871 = vmatpush1.bf16.msra.mxu0 0
        %4872 = vmatprep.subr.bf16.mxu0 0
        %4873 = vmatpush1.bf16.msra.mxu0 0
        %4874 = vmatprep.subr.bf16.mxu0 0
        %4875 = vmatpush1.bf16.msra.mxu0 0
        %4876 = vmatprep.subr.bf16.mxu0 0
        %4877 = vmatpush1.bf16.msra.mxu0 0
        %4878 = vmatprep.subr.bf16.mxu0 0
        %4879 = vmatpush1.bf16.msra.mxu0 0
        %4880 = vmatprep.subr.bf16.mxu0 0
        %4881 = vmatpush1.bf16.msra.mxu0 0
        %4882 = vmatprep.subr.bf16.mxu0 0
        %4883 = vmatpush1.bf16.msra.mxu0 0
        %4884 = vmatprep.subr.bf16.mxu0 0
        %4885 = vmatpush1.bf16.msra.mxu0 0
        %4886 = vmatprep.subr.bf16.mxu0 0
        %4887 = vmatpush1.bf16.msra.mxu0 0
        %4888 = vmatprep.subr.bf16.mxu0 0
        %4889 = vmatpush1.bf16.msra.mxu0 0
        %4890 = vmatprep.subr.bf16.mxu0 0
        %4891 = vmatpush1.bf16.msra.mxu0 0
        %4892 = vmatprep.subr.bf16.mxu0 0
        %4893 = vmatpush1.bf16.msra.mxu0 0
        %4894 = vmatprep.subr.bf16.mxu0 0
        %4895 = vmatpush1.bf16.msra.mxu0 0
        %4896 = vmatprep.subr.bf16.mxu0 0
        %4897 = vmatpush1.bf16.msra.mxu0 0
        %4898 = vmatprep.mubr.bf16.mxu0 0
        %4899 = vmatmul.mubr.bf16.gmra.mrb[0].mxu0 %v4843
        %v4900 = vpop.f32.mrb[0].mxu0
        %v4901 = vadd.f32 0.0, %v4900
        %v4902 = vpop.f32.mrb[0].mxu0
        %v4903 = vpop.f32.mrb[0].mxu0
        %v4904 = vadd.f32 0.0, %v4903
        %v4905 = vpop.f32.mrb[0].mxu0
        %4906 = vmatprep.mubr.bf16.mxu0 0
        %4907 = vmatmul.mubr.bf16.gmra.mrb[0].mxu0 %v4846
        %v4908 = vpop.f32.mrb[0].mxu0
        %v4909 = vadd.f32 0.0, %v4908
        %v4910 = vpop.f32.mrb[0].mxu0
        %v4911 = vpop.f32.mrb[0].mxu0
        %v4912 = vadd.f32 0.0, %v4911
        %v4913 = vpop.f32.mrb[0].mxu0
        %4914 = vmatprep.mubr.bf16.mxu0 0
        %4915 = vmatmul.mubr.bf16.gmra.mrb[0].mxu0 %v4849
        %v4916 = vpop.f32.mrb[0].mxu0
        %v4917 = vadd.f32 0.0, %v4916
        %v4918 = vpop.f32.mrb[0].mxu0
        %v4919 = vpop.f32.mrb[0].mxu0
        %v4920 = vadd.f32 0.0, %v4919
        %v4921 = vpop.f32.mrb[0].mxu0
        %4922 = vmatprep.mubr.bf16.mxu0 0
        %4923 = vmatmul.mubr.bf16.gmra.mrb[0].mxu0 %v4852
        %v4924 = vpop.f32.mrb[0].mxu0
        %v4925 = vadd.f32 0.0, %v4924
        %v4926 = vpop.f32.mrb[0].mxu0
        %v4927 = vpop.f32.mrb[0].mxu0
        %v4928 = vadd.f32 0.0, %v4927
        %v4929 = vpop.f32.mrb[0].mxu0
        %4930 = vmatprep.mubr.bf16.mxu0 0
        %4931 = vmatmul.mubr.bf16.gmra.mrb[0].mxu0 %v4855
        %v4932 = vpop.f32.mrb[0].mxu0
        %v4933 = vadd.f32 0.0, %v4932
        %v4934 = vpop.f32.mrb[0].mxu0
        %v4935 = vpop.f32.mrb[0].mxu0
        %v4936 = vadd.f32 0.0, %v4935
        %v4937 = vpop.f32.mrb[0].mxu0
        %4938 = vmatprep.mubr.bf16.mxu0 0
        %4939 = vmatmul.mubr.bf16.gmra.mrb[0].mxu0 %v4858
        %v4940 = vpop.f32.mrb[0].mxu0
        %v4941 = vadd.f32 0.0, %v4940
        %v4942 = vpop.f32.mrb[0].mxu0
        %v4943 = vpop.f32.mrb[0].mxu0
        %v4944 = vadd.f32 0.0, %v4943
        %v4945 = vpop.f32.mrb[0].mxu0
        %4946 = vmatprep.mubr.bf16.mxu0 0
        %4947 = vmatmul.mubr.bf16.gmra.mrb[0].mxu0 %v4861
        %v4948 = vpop.f32.mrb[0].mxu0
        %v4949 = vadd.f32 0.0, %v4948
        %v4950 = vpop.f32.mrb[0].mxu0
        %v4951 = vpop.f32.mrb[0].mxu0
        %v4952 = vadd.f32 0.0, %v4951
        %v4953 = vpop.f32.mrb[0].mxu0
        %4954 = vmatprep.mubr.bf16.mxu0 0
        %4955 = vmatmul.mubr.bf16.gmra.mrb[0].mxu0 %v4864
        %v4956 = vpop.f32.mrb[0].mxu0
        %v4957 = vadd.f32 0.0, %v4956
        %v4958 = vpop.f32.mrb[0].mxu0
        %v4959 = vpop.f32.mrb[0].mxu0
        %v4960 = vadd.f32 0.0, %v4959
        %v4961 = vpop.f32.mrb[0].mxu0
        %4962 = vdwg.mxu0
        %v4967 = vunpack.c.l.b16 %v4071
        %v4968 = vunpack.c.l.b16 %v4072
        %v4969 = vunpack.c.l.b16 %v4073
        %v4970 = vunpack.c.l.b16 %v4074
        %v4971 = vpack.c.b16 %v4968, %v4967
        %v4972 = vpack.c.b16 %v4970, %v4969
        %v4976 = vsel %vm3508, %v4063, 0
        %v4979 = vsel %vm3508, %v4064, 0
        %v4982 = vsel %vm3508, %v4065, 0
        %v4985 = vsel %vm3508, %v4066, 0
        %v4988 = vsel %vm3508, %v4067, 0
        %v4991 = vsel %vm3508, %v4068, 0
        %v4994 = vsel %vm3508, %v4069, 0
        %v4997 = vsel %vm3508, %v4070, 0
        %4999 = vmatprep.subr.bf16.mxu0 0
        %5000 = vmatpush1.bf16.msra.mxu0 %v4971
        %5001 = vmatprep.subr.bf16.mxu0 0
        %5002 = vmatpush1.bf16.msra.mxu0 %v4972
        %5003 = vmatprep.subr.bf16.mxu0 0
        %5004 = vmatpush1.bf16.msra.mxu0 0
        %5005 = vmatprep.subr.bf16.mxu0 0
        %5006 = vmatpush1.bf16.msra.mxu0 0
        %5007 = vmatprep.subr.bf16.mxu0 0
        %5008 = vmatpush1.bf16.msra.mxu0 0
        %5009 = vmatprep.subr.bf16.mxu0 0
        %5010 = vmatpush1.bf16.msra.mxu0 0
        %5011 = vmatprep.subr.bf16.mxu0 0
        %5012 = vmatpush1.bf16.msra.mxu0 0
        %5013 = vmatprep.subr.bf16.mxu0 0
        %5014 = vmatpush1.bf16.msra.mxu0 0
        %5015 = vmatprep.subr.bf16.mxu0 0
        %5016 = vmatpush1.bf16.msra.mxu0 0
        %5017 = vmatprep.subr.bf16.mxu0 0
        %5018 = vmatpush1.bf16.msra.mxu0 0
        %5019 = vmatprep.subr.bf16.mxu0 0
        %5020 = vmatpush1.bf16.msra.mxu0 0
        %5021 = vmatprep.subr.bf16.mxu0 0
        %5022 = vmatpush1.bf16.msra.mxu0 0
        %5023 = vmatprep.subr.bf16.mxu0 0
        %5024 = vmatpush1.bf16.msra.mxu0 0
        %5025 = vmatprep.subr.bf16.mxu0 0
        %5026 = vmatpush1.bf16.msra.mxu0 0
        %5027 = vmatprep.subr.bf16.mxu0 0
        %5028 = vmatpush1.bf16.msra.mxu0 0
        %5029 = vmatprep.subr.bf16.mxu0 0
        %5030 = vmatpush1.bf16.msra.mxu0 0
        %5031 = vmatprep.mubr.bf16.mxu0 0
        %5032 = vmatmul.mubr.bf16.gmra.mrb[0].mxu0 %v4976
        %v5033 = vpop.f32.mrb[0].mxu0
        %v5034 = vadd.f32 %v4901, %v5033
        %v5035 = vpop.f32.mrb[0].mxu0
        %v5036 = vpop.f32.mrb[0].mxu0
        %v5037 = vadd.f32 %v4904, %v5036
        %v5038 = vpop.f32.mrb[0].mxu0
        %5039 = vmatprep.mubr.bf16.mxu0 0
        %5040 = vmatmul.mubr.bf16.gmra.mrb[0].mxu0 %v4979
        %v5041 = vpop.f32.mrb[0].mxu0
        %v5042 = vadd.f32 %v4909, %v5041
        %v5043 = vpop.f32.mrb[0].mxu0
        %v5044 = vpop.f32.mrb[0].mxu0
        %v5045 = vadd.f32 %v4912, %v5044
        %v5046 = vpop.f32.mrb[0].mxu0
        %5047 = vmatprep.mubr.bf16.mxu0 0
        %5048 = vmatmul.mubr.bf16.gmra.mrb[0].mxu0 %v4982
        %v5049 = vpop.f32.mrb[0].mxu0
        %v5050 = vadd.f32 %v4917, %v5049
        %v5051 = vpop.f32.mrb[0].mxu0
        %v5052 = vpop.f32.mrb[0].mxu0
        %v5053 = vadd.f32 %v4920, %v5052
        %v5054 = vpop.f32.mrb[0].mxu0
        %5055 = vmatprep.mubr.bf16.mxu0 0
        %5056 = vmatmul.mubr.bf16.gmra.mrb[0].mxu0 %v4985
        %v5057 = vpop.f32.mrb[0].mxu0
        %v5058 = vadd.f32 %v4925, %v5057
        %v5059 = vpop.f32.mrb[0].mxu0
        %v5060 = vpop.f32.mrb[0].mxu0
        %v5061 = vadd.f32 %v4928, %v5060
        %v5062 = vpop.f32.mrb[0].mxu0
        %5063 = vmatprep.mubr.bf16.mxu0 0
        %5064 = vmatmul.mubr.bf16.gmra.mrb[0].mxu0 %v4988
        %v5065 = vpop.f32.mrb[0].mxu0
        %v5066 = vadd.f32 %v4933, %v5065
        %v5067 = vpop.f32.mrb[0].mxu0
        %v5068 = vpop.f32.mrb[0].mxu0
        %v5069 = vadd.f32 %v4936, %v5068
        %v5070 = vpop.f32.mrb[0].mxu0
        %5071 = vmatprep.mubr.bf16.mxu0 0
        %5072 = vmatmul.mubr.bf16.gmra.mrb[0].mxu0 %v4991
        %v5073 = vpop.f32.mrb[0].mxu0
        %v5074 = vadd.f32 %v4941, %v5073
        %v5075 = vpop.f32.mrb[0].mxu0
        %v5076 = vpop.f32.mrb[0].mxu0
        %v5077 = vadd.f32 %v4944, %v5076
        %v5078 = vpop.f32.mrb[0].mxu0
        %5079 = vmatprep.mubr.bf16.mxu0 0
        %5080 = vmatmul.mubr.bf16.gmra.mrb[0].mxu0 %v4994
        %v5081 = vpop.f32.mrb[0].mxu0
        %v5082 = vadd.f32 %v4949, %v5081
        %v5083 = vpop.f32.mrb[0].mxu0
        %v5084 = vpop.f32.mrb[0].mxu0
        %v5085 = vadd.f32 %v4952, %v5084
        %v5086 = vpop.f32.mrb[0].mxu0
        %5087 = vmatprep.mubr.bf16.mxu0 0
        %5088 = vmatmul.mubr.bf16.gmra.mrb[0].mxu0 %v4997
        %v5089 = vpop.f32.mrb[0].mxu0
        %v5090 = vadd.f32 %v4957, %v5089
        %v5091 = vpop.f32.mrb[0].mxu0
        %v5092 = vpop.f32.mrb[0].mxu0
        %v5093 = vadd.f32 %v4960, %v5092
        %v5094 = vpop.f32.mrb[0].mxu0
        %5095 = vdwg.mxu0
        %s5096 = scalar_lea.vmem %s3, 128
        %v5097 = vld [vmem:[%s5096] sm:$0xf]
        %v5098 = vld [vmem:[%s5096 + $0x4] sm:$0xf]
        %v5099 = vld [vmem:[%s5096 + $0x8] sm:$0xf]
        %v5100 = vld [vmem:[%s5096 + $0xc] sm:$0xf]
        %v5101 = vld [vmem:[%s5096 + $0x10] sm:$0xf]
        %v5102 = vld [vmem:[%s5096 + $0x14] sm:$0xf]
        %v5103 = vld [vmem:[%s5096 + $0x18] sm:$0xf]
        %v5104 = vld [vmem:[%s5096 + $0x1c] sm:$0xf]
        %v5105 = vld [vmem:[%s5096 + $0x20] sm:$0xf]
        %v5106 = vld [vmem:[%s5096 + $0x24] sm:$0xf]
        %v5107 = vld [vmem:[%s5096 + $0x28] sm:$0xf]
        %v5108 = vld [vmem:[%s5096 + $0x2c] sm:$0xf]
        %v5109 = vld [vmem:[%s5096 + $0x30] sm:$0xf]
        %v5110 = vld [vmem:[%s5096 + $0x34] sm:$0xf]
        %v5111 = vld [vmem:[%s5096 + $0x38] sm:$0xf]
        %v5112 = vld [vmem:[%s5096 + $0x3c] sm:$0xf]
        %v5129 = vunpack.c.l.b16 %v5097
        %v5130 = vunpack.c.l.b16 %v5098
        %v5131 = vunpack.c.l.b16 %v5099
        %v5132 = vunpack.c.l.b16 %v5100
        %v5133 = vunpack.c.l.b16 %v5101
        %v5134 = vunpack.c.l.b16 %v5102
        %v5135 = vunpack.c.l.b16 %v5103
        %v5136 = vunpack.c.l.b16 %v5104
        %v5137 = vunpack.c.l.b16 %v5105
        %v5138 = vunpack.c.l.b16 %v5106
        %v5139 = vunpack.c.l.b16 %v5107
        %v5140 = vunpack.c.l.b16 %v5108
        %v5141 = vunpack.c.l.b16 %v5109
        %v5142 = vunpack.c.l.b16 %v5110
        %v5143 = vunpack.c.l.b16 %v5111
        %v5144 = vunpack.c.l.b16 %v5112
        %v5145 = vpack.c.b16 %v5130, %v5129
        %v5146 = vpack.c.b16 %v5132, %v5131
        %v5147 = vpack.c.b16 %v5134, %v5133
        %v5148 = vpack.c.b16 %v5136, %v5135
        %v5149 = vpack.c.b16 %v5138, %v5137
        %v5150 = vpack.c.b16 %v5140, %v5139
        %v5151 = vpack.c.b16 %v5142, %v5141
        %v5152 = vpack.c.b16 %v5144, %v5143
        %5161 = vmatprep.subr.bf16.mxu0 0
        %5162 = vmatpush1.bf16.msra.mxu0 %v5145
        %5163 = vmatprep.subr.bf16.mxu0 0
        %5164 = vmatpush1.bf16.msra.mxu0 %v5146
        %5165 = vmatprep.subr.bf16.mxu0 0
        %5166 = vmatpush1.bf16.msra.mxu0 %v5147
        %5167 = vmatprep.subr.bf16.mxu0 0
        %5168 = vmatpush1.bf16.msra.mxu0 %v5148
        %5169 = vmatprep.subr.bf16.mxu0 0
        %5170 = vmatpush1.bf16.msra.mxu0 %v5149
        %5171 = vmatprep.subr.bf16.mxu0 0
        %5172 = vmatpush1.bf16.msra.mxu0 %v5150
        %5173 = vmatprep.subr.bf16.mxu0 0
        %5174 = vmatpush1.bf16.msra.mxu0 %v5151
        %5175 = vmatprep.subr.bf16.mxu0 0
        %5176 = vmatpush1.bf16.msra.mxu0 %v5152
        %5177 = vmatprep.subr.bf16.mxu0 0
        %5178 = vmatpush1.bf16.msra.mxu0 0
        %5179 = vmatprep.subr.bf16.mxu0 0
        %5180 = vmatpush1.bf16.msra.mxu0 0
        %5181 = vmatprep.subr.bf16.mxu0 0
        %5182 = vmatpush1.bf16.msra.mxu0 0
        %5183 = vmatprep.subr.bf16.mxu0 0
        %5184 = vmatpush1.bf16.msra.mxu0 0
        %5185 = vmatprep.subr.bf16.mxu0 0
        %5186 = vmatpush1.bf16.msra.mxu0 0
        %5187 = vmatprep.subr.bf16.mxu0 0
        %5188 = vmatpush1.bf16.msra.mxu0 0
        %5189 = vmatprep.subr.bf16.mxu0 0
        %5190 = vmatpush1.bf16.msra.mxu0 0
        %5191 = vmatprep.subr.bf16.mxu0 0
        %5192 = vmatpush1.bf16.msra.mxu0 0
        %5193 = vmatprep.mubr.bf16.mxu0 0
        %5194 = vmatmul.mubr.bf16.gmra.mrb[0].mxu0 %v3315
        %v5195 = vpop.f32.mrb[0].mxu0
        %v5196 = vadd.f32 0.0, %v5195
        %v5197 = vpop.f32.mrb[0].mxu0
        %v5198 = vpop.f32.mrb[0].mxu0
        %v5199 = vadd.f32 0.0, %v5198
        %v5200 = vpop.f32.mrb[0].mxu0
        %5201 = vmatprep.mubr.bf16.mxu0 0
        %5202 = vmatmul.mubr.bf16.gmra.mrb[0].mxu0 %v3316
        %v5203 = vpop.f32.mrb[0].mxu0
        %v5204 = vadd.f32 0.0, %v5203
        %v5205 = vpop.f32.mrb[0].mxu0
        %v5206 = vpop.f32.mrb[0].mxu0
        %v5207 = vadd.f32 0.0, %v5206
        %v5208 = vpop.f32.mrb[0].mxu0
        %5209 = vmatprep.mubr.bf16.mxu0 0
        %5210 = vmatmul.mubr.bf16.gmra.mrb[0].mxu0 %v3317
        %v5211 = vpop.f32.mrb[0].mxu0
        %v5212 = vadd.f32 0.0, %v5211
        %v5213 = vpop.f32.mrb[0].mxu0
        %v5214 = vpop.f32.mrb[0].mxu0
        %v5215 = vadd.f32 0.0, %v5214
        %v5216 = vpop.f32.mrb[0].mxu0
        %5217 = vmatprep.mubr.bf16.mxu0 0
        %5218 = vmatmul.mubr.bf16.gmra.mrb[0].mxu0 %v3318
        %v5219 = vpop.f32.mrb[0].mxu0
        %v5220 = vadd.f32 0.0, %v5219
        %v5221 = vpop.f32.mrb[0].mxu0
        %v5222 = vpop.f32.mrb[0].mxu0
        %v5223 = vadd.f32 0.0, %v5222
        %v5224 = vpop.f32.mrb[0].mxu0
        %5225 = vmatprep.mubr.bf16.mxu0 0
        %5226 = vmatmul.mubr.bf16.gmra.mrb[0].mxu0 %v3319
        %v5227 = vpop.f32.mrb[0].mxu0
        %v5228 = vadd.f32 0.0, %v5227
        %v5229 = vpop.f32.mrb[0].mxu0
        %v5230 = vpop.f32.mrb[0].mxu0
        %v5231 = vadd.f32 0.0, %v5230
        %v5232 = vpop.f32.mrb[0].mxu0
        %5233 = vmatprep.mubr.bf16.mxu0 0
        %5234 = vmatmul.mubr.bf16.gmra.mrb[0].mxu0 %v3320
        %v5235 = vpop.f32.mrb[0].mxu0
        %v5236 = vadd.f32 0.0, %v5235
        %v5237 = vpop.f32.mrb[0].mxu0
        %v5238 = vpop.f32.mrb[0].mxu0
        %v5239 = vadd.f32 0.0, %v5238
        %v5240 = vpop.f32.mrb[0].mxu0
        %5241 = vmatprep.mubr.bf16.mxu0 0
        %5242 = vmatmul.mubr.bf16.gmra.mrb[0].mxu0 %v3321
        %v5243 = vpop.f32.mrb[0].mxu0
        %v5244 = vadd.f32 0.0, %v5243
        %v5245 = vpop.f32.mrb[0].mxu0
        %v5246 = vpop.f32.mrb[0].mxu0
        %v5247 = vadd.f32 0.0, %v5246
        %v5248 = vpop.f32.mrb[0].mxu0
        %5249 = vmatprep.mubr.bf16.mxu0 0
        %5250 = vmatmul.mubr.bf16.gmra.mrb[0].mxu0 %v3322
        %v5251 = vpop.f32.mrb[0].mxu0
        %v5252 = vadd.f32 0.0, %v5251
        %v5253 = vpop.f32.mrb[0].mxu0
        %v5254 = vpop.f32.mrb[0].mxu0
        %v5255 = vadd.f32 0.0, %v5254
        %v5256 = vpop.f32.mrb[0].mxu0
        %5257 = vdwg.mxu0
        %v5258 = vpack.c.bf16 %v5199, %v5196
        %v5259 = vpack.c.bf16 %v5207, %v5204
        %v5260 = vpack.c.bf16 %v5215, %v5212
        %v5261 = vpack.c.bf16 %v5223, %v5220
        %v5262 = vpack.c.bf16 %v5231, %v5228
        %v5263 = vpack.c.bf16 %v5239, %v5236
        %v5264 = vpack.c.bf16 %v5247, %v5244
        %v5265 = vpack.c.bf16 %v5255, %v5252
        %s5266 = scalar_lea.vmem [#allocation2], 256
        %v5267 = vld [vmem:[%s5266] sm:$0xff]
        %v5268 = vld [vmem:[%s5266 + $0x8] sm:$0xff]
        %v5269 = vld [vmem:[%s5266 + $0x10] sm:$0xff]
        %v5270 = vld [vmem:[%s5266 + $0x18] sm:$0xff]
        %v5271 = vld [vmem:[%s5266 + $0x20] sm:$0xff]
        %v5272 = vld [vmem:[%s5266 + $0x28] sm:$0xff]
        %v5273 = vld [vmem:[%s5266 + $0x30] sm:$0xff]
        %v5274 = vld [vmem:[%s5266 + $0x38] sm:$0xff]
        %v5275 = vld [vmem:[%s5266 + $0x40] sm:$0xff]
        %v5276 = vld [vmem:[%s5266 + $0x48] sm:$0xff]
        %v5277 = vld [vmem:[%s5266 + $0x50] sm:$0xff]
        %v5278 = vld [vmem:[%s5266 + $0x58] sm:$0xff]
        %v5279 = vld [vmem:[%s5266 + $0x60] sm:$0xff]
        %v5280 = vld [vmem:[%s5266 + $0x68] sm:$0xff]
        %v5281 = vld [vmem:[%s5266 + $0x70] sm:$0xff]
        %v5282 = vld [vmem:[%s5266 + $0x78] sm:$0xff]
        %v5284 = vsel %vm3508, %v5258, 0
        %v5287 = vsel %vm3508, %v5259, 0
        %v5290 = vsel %vm3508, %v5260, 0
        %v5293 = vsel %vm3508, %v5261, 0
        %v5296 = vsel %vm3508, %v5262, 0
        %v5299 = vsel %vm3508, %v5263, 0
        %v5302 = vsel %vm3508, %v5264, 0
        %v5305 = vsel %vm3508, %v5265, 0
        %v5308 = vsel %vm3508, %v5267, 0
        %v5311 = vsel %vm3508, %v5268, 0
        %v5314 = vsel %vm3508, %v5269, 0
        %v5317 = vsel %vm3508, %v5270, 0
        %v5320 = vsel %vm3508, %v5271, 0
        %v5323 = vsel %vm3508, %v5272, 0
        %v5326 = vsel %vm3508, %v5273, 0
        %v5329 = vsel %vm3508, %v5274, 0
        %v5332 = vsel %vm3508, %v5275, 0
        %v5335 = vsel %vm3508, %v5276, 0
        %v5338 = vsel %vm3508, %v5277, 0
        %v5341 = vsel %vm3508, %v5278, 0
        %v5344 = vsel %vm3508, %v5279, 0
        %v5347 = vsel %vm3508, %v5280, 0
        %v5350 = vsel %vm3508, %v5281, 0
        %v5353 = vsel %vm3508, %v5282, 0
        %5355 = vmatprep.subr.bf16.mxu0 0
        %5356 = vmatpush1.bf16.xpose.msra.mxu0 %v5308
        %5357 = vmatprep.subr.bf16.mxu0 0
        %5358 = vmatpush1.bf16.xpose.msra.mxu0 %v5311
        %5359 = vmatprep.subr.bf16.mxu0 0
        %5360 = vmatpush1.bf16.xpose.msra.mxu0 %v5314
        %5361 = vmatprep.subr.bf16.mxu0 0
        %5362 = vmatpush1.bf16.xpose.msra.mxu0 %v5317
        %5363 = vmatprep.subr.bf16.mxu0 0
        %5364 = vmatpush1.bf16.xpose.msra.mxu0 %v5320
        %5365 = vmatprep.subr.bf16.mxu0 0
        %5366 = vmatpush1.bf16.xpose.msra.mxu0 %v5323
        %5367 = vmatprep.subr.bf16.mxu0 0
        %5368 = vmatpush1.bf16.xpose.msra.mxu0 %v5326
        %5369 = vmatprep.subr.bf16.mxu0 0
        %5370 = vmatpush1.bf16.xpose.msra.mxu0 %v5329
        %5371 = vmatprep.subr.bf16.mxu0 0
        %5372 = vmatpush1.bf16.xpose.msra.mxu0 %v5332
        %5373 = vmatprep.subr.bf16.mxu0 0
        %5374 = vmatpush1.bf16.xpose.msra.mxu0 %v5335
        %5375 = vmatprep.subr.bf16.mxu0 0
        %5376 = vmatpush1.bf16.xpose.msra.mxu0 %v5338
        %5377 = vmatprep.subr.bf16.mxu0 0
        %5378 = vmatpush1.bf16.xpose.msra.mxu0 %v5341
        %5379 = vmatprep.subr.bf16.mxu0 0
        %5380 = vmatpush1.bf16.xpose.msra.mxu0 %v5344
        %5381 = vmatprep.subr.bf16.mxu0 0
        %5382 = vmatpush1.bf16.xpose.msra.mxu0 %v5347
        %5383 = vmatprep.subr.bf16.mxu0 0
        %5384 = vmatpush1.bf16.xpose.msra.mxu0 %v5350
        %5385 = vmatprep.subr.bf16.mxu0 0
        %5386 = vmatpush1.bf16.xpose.msra.mxu0 %v5353
        %5387 = vmatprep.mubr.bf16.mxu0 0
        %5388 = vmatmul.mubr.bf16.gmra.mrb[0].mxu0 %v5284
        %v5389 = vpop.f32.mrb[0].mxu0
        %v5390 = vadd.f32 0.0, %v5389
        %v5391 = vpop.f32.mrb[0].mxu0
        %v5392 = vadd.f32 0.0, %v5391
        %v5393 = vpop.f32.mrb[0].mxu0
        %v5394 = vadd.f32 0.0, %v5393
        %v5395 = vpop.f32.mrb[0].mxu0
        %v5396 = vadd.f32 0.0, %v5395
        %5397 = vmatprep.mubr.bf16.mxu0 0
        %5398 = vmatmul.mubr.bf16.gmra.mrb[0].mxu0 %v5287
        %v5399 = vpop.f32.mrb[0].mxu0
        %v5400 = vadd.f32 0.0, %v5399
        %v5401 = vpop.f32.mrb[0].mxu0
        %v5402 = vadd.f32 0.0, %v5401
        %v5403 = vpop.f32.mrb[0].mxu0
        %v5404 = vadd.f32 0.0, %v5403
        %v5405 = vpop.f32.mrb[0].mxu0
        %v5406 = vadd.f32 0.0, %v5405
        %5407 = vmatprep.mubr.bf16.mxu0 0
        %5408 = vmatmul.mubr.bf16.gmra.mrb[0].mxu0 %v5290
        %v5409 = vpop.f32.mrb[0].mxu0
        %v5410 = vadd.f32 0.0, %v5409
        %v5411 = vpop.f32.mrb[0].mxu0
        %v5412 = vadd.f32 0.0, %v5411
        %v5413 = vpop.f32.mrb[0].mxu0
        %v5414 = vadd.f32 0.0, %v5413
        %v5415 = vpop.f32.mrb[0].mxu0
        %v5416 = vadd.f32 0.0, %v5415
        %5417 = vmatprep.mubr.bf16.mxu0 0
        %5418 = vmatmul.mubr.bf16.gmra.mrb[0].mxu0 %v5293
        %v5419 = vpop.f32.mrb[0].mxu0
        %v5420 = vadd.f32 0.0, %v5419
        %v5421 = vpop.f32.mrb[0].mxu0
        %v5422 = vadd.f32 0.0, %v5421
        %v5423 = vpop.f32.mrb[0].mxu0
        %v5424 = vadd.f32 0.0, %v5423
        %v5425 = vpop.f32.mrb[0].mxu0
        %v5426 = vadd.f32 0.0, %v5425
        %5427 = vmatprep.mubr.bf16.mxu0 0
        %5428 = vmatmul.mubr.bf16.gmra.mrb[0].mxu0 %v5296
        %v5429 = vpop.f32.mrb[0].mxu0
        %v5430 = vadd.f32 0.0, %v5429
        %v5431 = vpop.f32.mrb[0].mxu0
        %v5432 = vadd.f32 0.0, %v5431
        %v5433 = vpop.f32.mrb[0].mxu0
        %v5434 = vadd.f32 0.0, %v5433
        %v5435 = vpop.f32.mrb[0].mxu0
        %v5436 = vadd.f32 0.0, %v5435
        %5437 = vmatprep.mubr.bf16.mxu0 0
        %5438 = vmatmul.mubr.bf16.gmra.mrb[0].mxu0 %v5299
        %v5439 = vpop.f32.mrb[0].mxu0
        %v5440 = vadd.f32 0.0, %v5439
        %v5441 = vpop.f32.mrb[0].mxu0
        %v5442 = vadd.f32 0.0, %v5441
        %v5443 = vpop.f32.mrb[0].mxu0
        %v5444 = vadd.f32 0.0, %v5443
        %v5445 = vpop.f32.mrb[0].mxu0
        %v5446 = vadd.f32 0.0, %v5445
        %5447 = vmatprep.mubr.bf16.mxu0 0
        %5448 = vmatmul.mubr.bf16.gmra.mrb[0].mxu0 %v5302
        %v5449 = vpop.f32.mrb[0].mxu0
        %v5450 = vadd.f32 0.0, %v5449
        %v5451 = vpop.f32.mrb[0].mxu0
        %v5452 = vadd.f32 0.0, %v5451
        %v5453 = vpop.f32.mrb[0].mxu0
        %v5454 = vadd.f32 0.0, %v5453
        %v5455 = vpop.f32.mrb[0].mxu0
        %v5456 = vadd.f32 0.0, %v5455
        %5457 = vmatprep.mubr.bf16.mxu0 0
        %5458 = vmatmul.mubr.bf16.gmra.mrb[0].mxu0 %v5305
        %v5459 = vpop.f32.mrb[0].mxu0
        %v5460 = vadd.f32 0.0, %v5459
        %v5461 = vpop.f32.mrb[0].mxu0
        %v5462 = vadd.f32 0.0, %v5461
        %v5463 = vpop.f32.mrb[0].mxu0
        %v5464 = vadd.f32 0.0, %v5463
        %v5465 = vpop.f32.mrb[0].mxu0
        %v5466 = vadd.f32 0.0, %v5465
        %5467 = vdwg.mxu0
        %v5468 = vmax.f32 %v5390, %v5392
        %5469 = vmax.xlane.f32.xlu0 %v5468
        %v5470 = vpop.xlane.xlu0 %5469
        %v5471 = vmax.f32 %v5394, %v5396
        %5472 = vmax.xlane.f32.xlu0 %v5471
        %v5473 = vpop.xlane.xlu0 %5472
        %v5474 = vmax.f32 %v5400, %v5402
        %5475 = vmax.xlane.f32.xlu0 %v5474
        %v5476 = vpop.xlane.xlu0 %5475
        %v5477 = vmax.f32 %v5404, %v5406
        %5478 = vmax.xlane.f32.xlu0 %v5477
        %v5479 = vpop.xlane.xlu0 %5478
        %v5480 = vmax.f32 %v5410, %v5412
        %5481 = vmax.xlane.f32.xlu0 %v5480
        %v5482 = vpop.xlane.xlu0 %5481
        %v5483 = vmax.f32 %v5414, %v5416
        %5484 = vmax.xlane.f32.xlu0 %v5483
        %v5485 = vpop.xlane.xlu0 %5484
        %v5486 = vmax.f32 %v5420, %v5422
        %5487 = vmax.xlane.f32.xlu0 %v5486
        %v5488 = vpop.xlane.xlu0 %5487
        %v5489 = vmax.f32 %v5424, %v5426
        %5490 = vmax.xlane.f32.xlu0 %v5489
        %v5491 = vpop.xlane.xlu0 %5490
        %v5492 = vmax.f32 %v5430, %v5432
        %5493 = vmax.xlane.f32.xlu0 %v5492
        %v5494 = vpop.xlane.xlu0 %5493
        %v5495 = vmax.f32 %v5434, %v5436
        %5496 = vmax.xlane.f32.xlu0 %v5495
        %v5497 = vpop.xlane.xlu0 %5496
        %v5498 = vmax.f32 %v5440, %v5442
        %5499 = vmax.xlane.f32.xlu0 %v5498
        %v5500 = vpop.xlane.xlu0 %5499
        %v5501 = vmax.f32 %v5444, %v5446
        %5502 = vmax.xlane.f32.xlu0 %v5501
        %v5503 = vpop.xlane.xlu0 %5502
        %v5504 = vmax.f32 %v5450, %v5452
        %5505 = vmax.xlane.f32.xlu0 %v5504
        %v5506 = vpop.xlane.xlu0 %5505
        %v5507 = vmax.f32 %v5454, %v5456
        %5508 = vmax.xlane.f32.xlu0 %v5507
        %v5509 = vpop.xlane.xlu0 %5508
        %v5510 = vmax.f32 %v5460, %v5462
        %5511 = vmax.xlane.f32.xlu0 %v5510
        %v5512 = vpop.xlane.xlu0 %5511
        %v5513 = vmax.f32 %v5464, %v5466
        %5514 = vmax.xlane.f32.xlu0 %v5513
        %v5515 = vpop.xlane.xlu0 %5514
        %v5516 = vsub.f32 %v5390, %v5470
        %v5517 = vsub.f32 %v5392, %v5470
        %v5518 = vsub.f32 %v5394, %v5473
        %v5519 = vsub.f32 %v5396, %v5473
        %v5520 = vsub.f32 %v5400, %v5476
        %v5521 = vsub.f32 %v5402, %v5476
        %v5522 = vsub.f32 %v5404, %v5479
        %v5523 = vsub.f32 %v5406, %v5479
        %v5524 = vsub.f32 %v5410, %v5482
        %v5525 = vsub.f32 %v5412, %v5482
        %v5526 = vsub.f32 %v5414, %v5485
        %v5527 = vsub.f32 %v5416, %v5485
        %v5528 = vsub.f32 %v5420, %v5488
        %v5529 = vsub.f32 %v5422, %v5488
        %v5530 = vsub.f32 %v5424, %v5491
        %v5531 = vsub.f32 %v5426, %v5491
        %v5532 = vsub.f32 %v5430, %v5494
        %v5533 = vsub.f32 %v5432, %v5494
        %v5534 = vsub.f32 %v5434, %v5497
        %v5535 = vsub.f32 %v5436, %v5497
        %v5536 = vsub.f32 %v5440, %v5500
        %v5537 = vsub.f32 %v5442, %v5500
        %v5538 = vsub.f32 %v5444, %v5503
        %v5539 = vsub.f32 %v5446, %v5503
        %v5540 = vsub.f32 %v5450, %v5506
        %v5541 = vsub.f32 %v5452, %v5506
        %v5542 = vsub.f32 %v5454, %v5509
        %v5543 = vsub.f32 %v5456, %v5509
        %v5544 = vsub.f32 %v5460, %v5512
        %v5545 = vsub.f32 %v5462, %v5512
        %v5546 = vsub.f32 %v5464, %v5515
        %v5547 = vsub.f32 %v5466, %v5515
        %v5548 = vmul.f32 %v5516, 1.442695
        %v5549 = vpow.pop %v5548
        %v5550 = vmul.f32 %v5517, 1.442695
        %v5551 = vpow.pop %v5550
        %v5552 = vmul.f32 %v5518, 1.442695
        %v5553 = vpow.pop %v5552
        %v5554 = vmul.f32 %v5519, 1.442695
        %v5555 = vpow.pop %v5554
        %v5556 = vmul.f32 %v5520, 1.442695
        %v5557 = vpow.pop %v5556
        %v5558 = vmul.f32 %v5521, 1.442695
        %v5559 = vpow.pop %v5558
        %v5560 = vmul.f32 %v5522, 1.442695
        %v5561 = vpow.pop %v5560
        %v5562 = vmul.f32 %v5523, 1.442695
        %v5563 = vpow.pop %v5562
        %v5564 = vmul.f32 %v5524, 1.442695
        %v5565 = vpow.pop %v5564
        %v5566 = vmul.f32 %v5525, 1.442695
        %v5567 = vpow.pop %v5566
        %v5568 = vmul.f32 %v5526, 1.442695
        %v5569 = vpow.pop %v5568
        %v5570 = vmul.f32 %v5527, 1.442695
        %v5571 = vpow.pop %v5570
        %v5572 = vmul.f32 %v5528, 1.442695
        %v5573 = vpow.pop %v5572
        %v5574 = vmul.f32 %v5529, 1.442695
        %v5575 = vpow.pop %v5574
        %v5576 = vmul.f32 %v5530, 1.442695
        %v5577 = vpow.pop %v5576
        %v5578 = vmul.f32 %v5531, 1.442695
        %v5579 = vpow.pop %v5578
        %v5580 = vmul.f32 %v5532, 1.442695
        %v5581 = vpow.pop %v5580
        %v5582 = vmul.f32 %v5533, 1.442695
        %v5583 = vpow.pop %v5582
        %v5584 = vmul.f32 %v5534, 1.442695
        %v5585 = vpow.pop %v5584
        %v5586 = vmul.f32 %v5535, 1.442695
        %v5587 = vpow.pop %v5586
        %v5588 = vmul.f32 %v5536, 1.442695
        %v5589 = vpow.pop %v5588
        %v5590 = vmul.f32 %v5537, 1.442695
        %v5591 = vpow.pop %v5590
        %v5592 = vmul.f32 %v5538, 1.442695
        %v5593 = vpow.pop %v5592
        %v5594 = vmul.f32 %v5539, 1.442695
        %v5595 = vpow.pop %v5594
        %v5596 = vmul.f32 %v5540, 1.442695
        %v5597 = vpow.pop %v5596
        %v5598 = vmul.f32 %v5541, 1.442695
        %v5599 = vpow.pop %v5598
        %v5600 = vmul.f32 %v5542, 1.442695
        %v5601 = vpow.pop %v5600
        %v5602 = vmul.f32 %v5543, 1.442695
        %v5603 = vpow.pop %v5602
        %v5604 = vmul.f32 %v5544, 1.442695
        %v5605 = vpow.pop %v5604
        %v5606 = vmul.f32 %v5545, 1.442695
        %v5607 = vpow.pop %v5606
        %v5608 = vmul.f32 %v5546, 1.442695
        %v5609 = vpow.pop %v5608
        %v5610 = vmul.f32 %v5547, 1.442695
        %v5611 = vpow.pop %v5610
        %v5612 = vadd.f32 %v5549, %v5551
        %5613 = vadd.xlane.f32.xlu0 %v5612
        %v5614 = vpop.xlane.xlu0 %5613
        %v5615 = vadd.f32 %v5553, %v5555
        %5616 = vadd.xlane.f32.xlu0 %v5615
        %v5617 = vpop.xlane.xlu0 %5616
        %v5618 = vadd.f32 %v5557, %v5559
        %5619 = vadd.xlane.f32.xlu0 %v5618
        %v5620 = vpop.xlane.xlu0 %5619
        %v5621 = vadd.f32 %v5561, %v5563
        %5622 = vadd.xlane.f32.xlu0 %v5621
        %v5623 = vpop.xlane.xlu0 %5622
        %v5624 = vadd.f32 %v5565, %v5567
        %5625 = vadd.xlane.f32.xlu0 %v5624
        %v5626 = vpop.xlane.xlu0 %5625
        %v5627 = vadd.f32 %v5569, %v5571
        %5628 = vadd.xlane.f32.xlu0 %v5627
        %v5629 = vpop.xlane.xlu0 %5628
        %v5630 = vadd.f32 %v5573, %v5575
        %5631 = vadd.xlane.f32.xlu0 %v5630
        %v5632 = vpop.xlane.xlu0 %5631
        %v5633 = vadd.f32 %v5577, %v5579
        %5634 = vadd.xlane.f32.xlu0 %v5633
        %v5635 = vpop.xlane.xlu0 %5634
        %v5636 = vadd.f32 %v5581, %v5583
        %5637 = vadd.xlane.f32.xlu0 %v5636
        %v5638 = vpop.xlane.xlu0 %5637
        %v5639 = vadd.f32 %v5585, %v5587
        %5640 = vadd.xlane.f32.xlu0 %v5639
        %v5641 = vpop.xlane.xlu0 %5640
        %v5642 = vadd.f32 %v5589, %v5591
        %5643 = vadd.xlane.f32.xlu0 %v5642
        %v5644 = vpop.xlane.xlu0 %5643
        %v5645 = vadd.f32 %v5593, %v5595
        %5646 = vadd.xlane.f32.xlu0 %v5645
        %v5647 = vpop.xlane.xlu0 %5646
        %v5648 = vadd.f32 %v5597, %v5599
        %5649 = vadd.xlane.f32.xlu0 %v5648
        %v5650 = vpop.xlane.xlu0 %5649
        %v5651 = vadd.f32 %v5601, %v5603
        %5652 = vadd.xlane.f32.xlu0 %v5651
        %v5653 = vpop.xlane.xlu0 %5652
        %v5654 = vadd.f32 %v5605, %v5607
        %5655 = vadd.xlane.f32.xlu0 %v5654
        %v5656 = vpop.xlane.xlu0 %5655
        %v5657 = vadd.f32 %v5609, %v5611
        %5658 = vadd.xlane.f32.xlu0 %v5657
        %v5659 = vpop.xlane.xlu0 %5658
        %v5660 = vrcp.pop %v5614
        %v5661 = vrcp.pop %v5617
        %v5662 = vrcp.pop %v5620
        %v5663 = vrcp.pop %v5623
        %v5664 = vrcp.pop %v5626
        %v5665 = vrcp.pop %v5629
        %v5666 = vrcp.pop %v5632
        %v5667 = vrcp.pop %v5635
        %v5668 = vrcp.pop %v5638
        %v5669 = vrcp.pop %v5641
        %v5670 = vrcp.pop %v5644
        %v5671 = vrcp.pop %v5647
        %v5672 = vrcp.pop %v5650
        %v5673 = vrcp.pop %v5653
        %v5674 = vrcp.pop %v5656
        %v5675 = vrcp.pop %v5659
        %v5676 = vmul.f32 %v5549, %v5660
        %v5677 = vmul.f32 %v5551, %v5660
        %v5678 = vmul.f32 %v5553, %v5661
        %v5679 = vmul.f32 %v5555, %v5661
        %v5680 = vmul.f32 %v5557, %v5662
        %v5681 = vmul.f32 %v5559, %v5662
        %v5682 = vmul.f32 %v5561, %v5663
        %v5683 = vmul.f32 %v5563, %v5663
        %v5684 = vmul.f32 %v5565, %v5664
        %v5685 = vmul.f32 %v5567, %v5664
        %v5686 = vmul.f32 %v5569, %v5665
        %v5687 = vmul.f32 %v5571, %v5665
        %v5688 = vmul.f32 %v5573, %v5666
        %v5689 = vmul.f32 %v5575, %v5666
        %v5690 = vmul.f32 %v5577, %v5667
        %v5691 = vmul.f32 %v5579, %v5667
        %v5692 = vmul.f32 %v5581, %v5668
        %v5693 = vmul.f32 %v5583, %v5668
        %v5694 = vmul.f32 %v5585, %v5669
        %v5695 = vmul.f32 %v5587, %v5669
        %v5696 = vmul.f32 %v5589, %v5670
        %v5697 = vmul.f32 %v5591, %v5670
        %v5698 = vmul.f32 %v5593, %v5671
        %v5699 = vmul.f32 %v5595, %v5671
        %v5700 = vmul.f32 %v5597, %v5672
        %v5701 = vmul.f32 %v5599, %v5672
        %v5702 = vmul.f32 %v5601, %v5673
        %v5703 = vmul.f32 %v5603, %v5673
        %v5704 = vmul.f32 %v5605, %v5674
        %v5705 = vmul.f32 %v5607, %v5674
        %v5706 = vmul.f32 %v5609, %v5675
        %v5707 = vmul.f32 %v5611, %v5675
        %v5708 = vpack.c.bf16 %v5678, %v5676
        %v5709 = vpack.c.bf16 %v5679, %v5677
        %v5710 = vpack.c.bf16 %v5682, %v5680
        %v5711 = vpack.c.bf16 %v5683, %v5681
        %v5712 = vpack.c.bf16 %v5686, %v5684
        %v5713 = vpack.c.bf16 %v5687, %v5685
        %v5714 = vpack.c.bf16 %v5690, %v5688
        %v5715 = vpack.c.bf16 %v5691, %v5689
        %v5716 = vpack.c.bf16 %v5694, %v5692
        %v5717 = vpack.c.bf16 %v5695, %v5693
        %v5718 = vpack.c.bf16 %v5698, %v5696
        %v5719 = vpack.c.bf16 %v5699, %v5697
        %v5720 = vpack.c.bf16 %v5702, %v5700
        %v5721 = vpack.c.bf16 %v5703, %v5701
        %v5722 = vpack.c.bf16 %v5706, %v5704
        %v5723 = vpack.c.bf16 %v5707, %v5705
        %s5724 = scalar_lea.vmem [#allocation3], 256
        %v5725 = vld [vmem:[%s5724] sm:$0xff]
        %v5726 = vld [vmem:[%s5724 + $0x8] sm:$0xff]
        %v5727 = vld [vmem:[%s5724 + $0x10] sm:$0xff]
        %v5728 = vld [vmem:[%s5724 + $0x18] sm:$0xff]
        %v5729 = vld [vmem:[%s5724 + $0x20] sm:$0xff]
        %v5730 = vld [vmem:[%s5724 + $0x28] sm:$0xff]
        %v5731 = vld [vmem:[%s5724 + $0x30] sm:$0xff]
        %v5732 = vld [vmem:[%s5724 + $0x38] sm:$0xff]
        %v5733 = vld [vmem:[%s5724 + $0x40] sm:$0xff]
        %v5734 = vld [vmem:[%s5724 + $0x48] sm:$0xff]
        %v5735 = vld [vmem:[%s5724 + $0x50] sm:$0xff]
        %v5736 = vld [vmem:[%s5724 + $0x58] sm:$0xff]
        %v5737 = vld [vmem:[%s5724 + $0x60] sm:$0xff]
        %v5738 = vld [vmem:[%s5724 + $0x68] sm:$0xff]
        %v5739 = vld [vmem:[%s5724 + $0x70] sm:$0xff]
        %v5740 = vld [vmem:[%s5724 + $0x78] sm:$0xff]
        %5741 = vmatprep.subr.bf16.mxu0 0
        %5742 = vmatpush1.bf16.msra.mxu0 %v5725
        %5743 = vmatprep.subr.bf16.mxu0 0
        %5744 = vmatpush1.bf16.msra.mxu0 %v5726
        %5745 = vmatprep.subr.bf16.mxu0 0
        %5746 = vmatpush1.bf16.msra.mxu0 %v5727
        %5747 = vmatprep.subr.bf16.mxu0 0
        %5748 = vmatpush1.bf16.msra.mxu0 %v5728
        %5749 = vmatprep.subr.bf16.mxu0 0
        %5750 = vmatpush1.bf16.msra.mxu0 %v5729
        %5751 = vmatprep.subr.bf16.mxu0 0
        %5752 = vmatpush1.bf16.msra.mxu0 %v5730
        %5753 = vmatprep.subr.bf16.mxu0 0
        %5754 = vmatpush1.bf16.msra.mxu0 %v5731
        %5755 = vmatprep.subr.bf16.mxu0 0
        %5756 = vmatpush1.bf16.msra.mxu0 %v5732
        %5757 = vmatprep.subr.bf16.mxu0 0
        %5758 = vmatpush1.bf16.msra.mxu0 %v5733
        %5759 = vmatprep.subr.bf16.mxu0 0
        %5760 = vmatpush1.bf16.msra.mxu0 %v5734
        %5761 = vmatprep.subr.bf16.mxu0 0
        %5762 = vmatpush1.bf16.msra.mxu0 %v5735
        %5763 = vmatprep.subr.bf16.mxu0 0
        %5764 = vmatpush1.bf16.msra.mxu0 %v5736
        %5765 = vmatprep.subr.bf16.mxu0 0
        %5766 = vmatpush1.bf16.msra.mxu0 %v5737
        %5767 = vmatprep.subr.bf16.mxu0 0
        %5768 = vmatpush1.bf16.msra.mxu0 %v5738
        %5769 = vmatprep.subr.bf16.mxu0 0
        %5770 = vmatpush1.bf16.msra.mxu0 %v5739
        %5771 = vmatprep.subr.bf16.mxu0 0
        %5772 = vmatpush1.bf16.msra.mxu0 %v5740
        %5773 = vmatprep.mubr.bf16.mxu0 %v5709
        %5774 = vmatmul.mubr.bf16.gmra.mrb[0].mxu0 %v5708
        %v5775 = vpop.f32.mrb[0].mxu0
        %v5776 = vadd.f32 0.0, %v5775
        %v5777 = vpop.f32.mrb[0].mxu0
        %v5778 = vpop.f32.mrb[0].mxu0
        %v5779 = vadd.f32 0.0, %v5778
        %v5780 = vpop.f32.mrb[0].mxu0
        %5781 = vmatprep.mubr.bf16.mxu0 %v5711
        %5782 = vmatmul.mubr.bf16.gmra.mrb[0].mxu0 %v5710
        %v5783 = vpop.f32.mrb[0].mxu0
        %v5784 = vadd.f32 0.0, %v5783
        %v5785 = vpop.f32.mrb[0].mxu0
        %v5786 = vpop.f32.mrb[0].mxu0
        %v5787 = vadd.f32 0.0, %v5786
        %v5788 = vpop.f32.mrb[0].mxu0
        %5789 = vmatprep.mubr.bf16.mxu0 %v5713
        %5790 = vmatmul.mubr.bf16.gmra.mrb[0].mxu0 %v5712
        %v5791 = vpop.f32.mrb[0].mxu0
        %v5792 = vadd.f32 0.0, %v5791
        %v5793 = vpop.f32.mrb[0].mxu0
        %v5794 = vpop.f32.mrb[0].mxu0
        %v5795 = vadd.f32 0.0, %v5794
        %v5796 = vpop.f32.mrb[0].mxu0
        %5797 = vmatprep.mubr.bf16.mxu0 %v5715
        %5798 = vmatmul.mubr.bf16.gmra.mrb[0].mxu0 %v5714
        %v5799 = vpop.f32.mrb[0].mxu0
        %v5800 = vadd.f32 0.0, %v5799
        %v5801 = vpop.f32.mrb[0].mxu0
        %v5802 = vpop.f32.mrb[0].mxu0
        %v5803 = vadd.f32 0.0, %v5802
        %v5804 = vpop.f32.mrb[0].mxu0
        %5805 = vmatprep.mubr.bf16.mxu0 %v5717
        %5806 = vmatmul.mubr.bf16.gmra.mrb[0].mxu0 %v5716
        %v5807 = vpop.f32.mrb[0].mxu0
        %v5808 = vadd.f32 0.0, %v5807
        %v5809 = vpop.f32.mrb[0].mxu0
        %v5810 = vpop.f32.mrb[0].mxu0
        %v5811 = vadd.f32 0.0, %v5810
        %v5812 = vpop.f32.mrb[0].mxu0
        %5813 = vmatprep.mubr.bf16.mxu0 %v5719
        %5814 = vmatmul.mubr.bf16.gmra.mrb[0].mxu0 %v5718
        %v5815 = vpop.f32.mrb[0].mxu0
        %v5816 = vadd.f32 0.0, %v5815
        %v5817 = vpop.f32.mrb[0].mxu0
        %v5818 = vpop.f32.mrb[0].mxu0
        %v5819 = vadd.f32 0.0, %v5818
        %v5820 = vpop.f32.mrb[0].mxu0
        %5821 = vmatprep.mubr.bf16.mxu0 %v5721
        %5822 = vmatmul.mubr.bf16.gmra.mrb[0].mxu0 %v5720
        %v5823 = vpop.f32.mrb[0].mxu0
        %v5824 = vadd.f32 0.0, %v5823
        %v5825 = vpop.f32.mrb[0].mxu0
        %v5826 = vpop.f32.mrb[0].mxu0
        %v5827 = vadd.f32 0.0, %v5826
        %v5828 = vpop.f32.mrb[0].mxu0
        %5829 = vmatprep.mubr.bf16.mxu0 %v5723
        %5830 = vmatmul.mubr.bf16.gmra.mrb[0].mxu0 %v5722
        %v5831 = vpop.f32.mrb[0].mxu0
        %v5832 = vadd.f32 0.0, %v5831
        %v5833 = vpop.f32.mrb[0].mxu0
        %v5834 = vpop.f32.mrb[0].mxu0
        %v5835 = vadd.f32 0.0, %v5834
        %v5836 = vpop.f32.mrb[0].mxu0
        %5837 = vdwg.mxu0
        %v5838 = vpack.c.bf16 %v5779, %v5776
        %v5839 = vpack.c.bf16 %v5787, %v5784
        %v5840 = vpack.c.bf16 %v5795, %v5792
        %v5841 = vpack.c.bf16 %v5803, %v5800
        %v5842 = vpack.c.bf16 %v5811, %v5808
        %v5843 = vpack.c.bf16 %v5819, %v5816
        %v5844 = vpack.c.bf16 %v5827, %v5824
        %v5845 = vpack.c.bf16 %v5835, %v5832
        %s5846 = scalar_lea.vmem %s6, 32
        %v5847 = vld [vmem:[%s5846] sm:$0xf]
        %v5848 = vld [vmem:[%s5846 + $0x4] sm:$0xf]
        %v5849 = vld [vmem:[%s5846 + $0x8] sm:$0xf]
        %v5850 = vld [vmem:[%s5846 + $0xc] sm:$0xf]
        %v5855 = vunpack.c.l.b16 %v5847
        %v5856 = vunpack.c.l.b16 %v5848
        %v5857 = vunpack.c.l.b16 %v5849
        %v5858 = vunpack.c.l.b16 %v5850
        %v5859 = vpack.c.b16 %v5856, %v5855
        %v5860 = vpack.c.b16 %v5858, %v5857
        %v5864 = vsel %vm3508, %v5838, 0
        %v5867 = vsel %vm3508, %v5839, 0
        %v5870 = vsel %vm3508, %v5840, 0
        %v5873 = vsel %vm3508, %v5841, 0
        %v5876 = vsel %vm3508, %v5842, 0
        %v5879 = vsel %vm3508, %v5843, 0
        %v5882 = vsel %vm3508, %v5844, 0
        %v5885 = vsel %vm3508, %v5845, 0
        %5887 = vmatprep.subr.bf16.mxu0 0
        %5888 = vmatpush1.bf16.msra.mxu0 %v5859
        %5889 = vmatprep.subr.bf16.mxu0 0
        %5890 = vmatpush1.bf16.msra.mxu0 %v5860
        %5891 = vmatprep.subr.bf16.mxu0 0
        %5892 = vmatpush1.bf16.msra.mxu0 0
        %5893 = vmatprep.subr.bf16.mxu0 0
        %5894 = vmatpush1.bf16.msra.mxu0 0
        %5895 = vmatprep.subr.bf16.mxu0 0
        %5896 = vmatpush1.bf16.msra.mxu0 0
        %5897 = vmatprep.subr.bf16.mxu0 0
        %5898 = vmatpush1.bf16.msra.mxu0 0
        %5899 = vmatprep.subr.bf16.mxu0 0
        %5900 = vmatpush1.bf16.msra.mxu0 0
        %5901 = vmatprep.subr.bf16.mxu0 0
        %5902 = vmatpush1.bf16.msra.mxu0 0
        %5903 = vmatprep.subr.bf16.mxu0 0
        %5904 = vmatpush1.bf16.msra.mxu0 0
        %5905 = vmatprep.subr.bf16.mxu0 0
        %5906 = vmatpush1.bf16.msra.mxu0 0
        %5907 = vmatprep.subr.bf16.mxu0 0
        %5908 = vmatpush1.bf16.msra.mxu0 0
        %5909 = vmatprep.subr.bf16.mxu0 0
        %5910 = vmatpush1.bf16.msra.mxu0 0
        %5911 = vmatprep.subr.bf16.mxu0 0
        %5912 = vmatpush1.bf16.msra.mxu0 0
        %5913 = vmatprep.subr.bf16.mxu0 0
        %5914 = vmatpush1.bf16.msra.mxu0 0
        %5915 = vmatprep.subr.bf16.mxu0 0
        %5916 = vmatpush1.bf16.msra.mxu0 0
        %5917 = vmatprep.subr.bf16.mxu0 0
        %5918 = vmatpush1.bf16.msra.mxu0 0
        %5919 = vmatprep.mubr.bf16.mxu0 0
        %5920 = vmatmul.mubr.bf16.gmra.mrb[0].mxu0 %v5864
        %v5921 = vpop.f32.mrb[0].mxu0
        %v5922 = vadd.f32 0.0, %v5921
        %v5923 = vpop.f32.mrb[0].mxu0
        %v5924 = vpop.f32.mrb[0].mxu0
        %v5925 = vadd.f32 0.0, %v5924
        %v5926 = vpop.f32.mrb[0].mxu0
        %5927 = vmatprep.mubr.bf16.mxu0 0
        %5928 = vmatmul.mubr.bf16.gmra.mrb[0].mxu0 %v5867
        %v5929 = vpop.f32.mrb[0].mxu0
        %v5930 = vadd.f32 0.0, %v5929
        %v5931 = vpop.f32.mrb[0].mxu0
        %v5932 = vpop.f32.mrb[0].mxu0
        %v5933 = vadd.f32 0.0, %v5932
        %v5934 = vpop.f32.mrb[0].mxu0
        %5935 = vmatprep.mubr.bf16.mxu0 0
        %5936 = vmatmul.mubr.bf16.gmra.mrb[0].mxu0 %v5870
        %v5937 = vpop.f32.mrb[0].mxu0
        %v5938 = vadd.f32 0.0, %v5937
        %v5939 = vpop.f32.mrb[0].mxu0
        %v5940 = vpop.f32.mrb[0].mxu0
        %v5941 = vadd.f32 0.0, %v5940
        %v5942 = vpop.f32.mrb[0].mxu0
        %5943 = vmatprep.mubr.bf16.mxu0 0
        %5944 = vmatmul.mubr.bf16.gmra.mrb[0].mxu0 %v5873
        %v5945 = vpop.f32.mrb[0].mxu0
        %v5946 = vadd.f32 0.0, %v5945
        %v5947 = vpop.f32.mrb[0].mxu0
        %v5948 = vpop.f32.mrb[0].mxu0
        %v5949 = vadd.f32 0.0, %v5948
        %v5950 = vpop.f32.mrb[0].mxu0
        %5951 = vmatprep.mubr.bf16.mxu0 0
        %5952 = vmatmul.mubr.bf16.gmra.mrb[0].mxu0 %v5876
        %v5953 = vpop.f32.mrb[0].mxu0
        %v5954 = vadd.f32 0.0, %v5953
        %v5955 = vpop.f32.mrb[0].mxu0
        %v5956 = vpop.f32.mrb[0].mxu0
        %v5957 = vadd.f32 0.0, %v5956
        %v5958 = vpop.f32.mrb[0].mxu0
        %5959 = vmatprep.mubr.bf16.mxu0 0
        %5960 = vmatmul.mubr.bf16.gmra.mrb[0].mxu0 %v5879
        %v5961 = vpop.f32.mrb[0].mxu0
        %v5962 = vadd.f32 0.0, %v5961
        %v5963 = vpop.f32.mrb[0].mxu0
        %v5964 = vpop.f32.mrb[0].mxu0
        %v5965 = vadd.f32 0.0, %v5964
        %v5966 = vpop.f32.mrb[0].mxu0
        %5967 = vmatprep.mubr.bf16.mxu0 0
        %5968 = vmatmul.mubr.bf16.gmra.mrb[0].mxu0 %v5882
        %v5969 = vpop.f32.mrb[0].mxu0
        %v5970 = vadd.f32 0.0, %v5969
        %v5971 = vpop.f32.mrb[0].mxu0
        %v5972 = vpop.f32.mrb[0].mxu0
        %v5973 = vadd.f32 0.0, %v5972
        %v5974 = vpop.f32.mrb[0].mxu0
        %5975 = vmatprep.mubr.bf16.mxu0 0
        %5976 = vmatmul.mubr.bf16.gmra.mrb[0].mxu0 %v5885
        %v5977 = vpop.f32.mrb[0].mxu0
        %v5978 = vadd.f32 0.0, %v5977
        %v5979 = vpop.f32.mrb[0].mxu0
        %v5980 = vpop.f32.mrb[0].mxu0
        %v5981 = vadd.f32 0.0, %v5980
        %v5982 = vpop.f32.mrb[0].mxu0
        %5983 = vdwg.mxu0
        %v5984 = vadd.f32 %v5034, %v5922
        %v5985 = vadd.f32 %v5037, %v5925
        %v5986 = vadd.f32 %v5042, %v5930
        %v5987 = vadd.f32 %v5045, %v5933
        %v5988 = vadd.f32 %v5050, %v5938
        %v5989 = vadd.f32 %v5053, %v5941
        %v5990 = vadd.f32 %v5058, %v5946
        %v5991 = vadd.f32 %v5061, %v5949
        %v5992 = vadd.f32 %v5066, %v5954
        %v5993 = vadd.f32 %v5069, %v5957
        %v5994 = vadd.f32 %v5074, %v5962
        %v5995 = vadd.f32 %v5077, %v5965
        %v5996 = vadd.f32 %v5082, %v5970
        %v5997 = vadd.f32 %v5085, %v5973
        %v5998 = vadd.f32 %v5090, %v5978
        %v5999 = vadd.f32 %v5093, %v5981
        %s6000 = scalar_lea.vmem %s3, 192
        %v6001 = vld [vmem:[%s6000] sm:$0xf]
        %v6002 = vld [vmem:[%s6000 + $0x4] sm:$0xf]
        %v6003 = vld [vmem:[%s6000 + $0x8] sm:$0xf]
        %v6004 = vld [vmem:[%s6000 + $0xc] sm:$0xf]
        %v6005 = vld [vmem:[%s6000 + $0x10] sm:$0xf]
        %v6006 = vld [vmem:[%s6000 + $0x14] sm:$0xf]
        %v6007 = vld [vmem:[%s6000 + $0x18] sm:$0xf]
        %v6008 = vld [vmem:[%s6000 + $0x1c] sm:$0xf]
        %v6009 = vld [vmem:[%s6000 + $0x20] sm:$0xf]
        %v6010 = vld [vmem:[%s6000 + $0x24] sm:$0xf]
        %v6011 = vld [vmem:[%s6000 + $0x28] sm:$0xf]
        %v6012 = vld [vmem:[%s6000 + $0x2c] sm:$0xf]
        %v6013 = vld [vmem:[%s6000 + $0x30] sm:$0xf]
        %v6014 = vld [vmem:[%s6000 + $0x34] sm:$0xf]
        %v6015 = vld [vmem:[%s6000 + $0x38] sm:$0xf]
        %v6016 = vld [vmem:[%s6000 + $0x3c] sm:$0xf]
        %v6033 = vunpack.c.l.b16 %v6001
        %v6034 = vunpack.c.l.b16 %v6002
        %v6035 = vunpack.c.l.b16 %v6003
        %v6036 = vunpack.c.l.b16 %v6004
        %v6037 = vunpack.c.l.b16 %v6005
        %v6038 = vunpack.c.l.b16 %v6006
        %v6039 = vunpack.c.l.b16 %v6007
        %v6040 = vunpack.c.l.b16 %v6008
        %v6041 = vunpack.c.l.b16 %v6009
        %v6042 = vunpack.c.l.b16 %v6010
        %v6043 = vunpack.c.l.b16 %v6011
        %v6044 = vunpack.c.l.b16 %v6012
        %v6045 = vunpack.c.l.b16 %v6013
        %v6046 = vunpack.c.l.b16 %v6014
        %v6047 = vunpack.c.l.b16 %v6015
        %v6048 = vunpack.c.l.b16 %v6016
        %v6049 = vpack.c.b16 %v6034, %v6033
        %v6050 = vpack.c.b16 %v6036, %v6035
        %v6051 = vpack.c.b16 %v6038, %v6037
        %v6052 = vpack.c.b16 %v6040, %v6039
        %v6053 = vpack.c.b16 %v6042, %v6041
        %v6054 = vpack.c.b16 %v6044, %v6043
        %v6055 = vpack.c.b16 %v6046, %v6045
        %v6056 = vpack.c.b16 %v6048, %v6047
        %6065 = vmatprep.subr.bf16.mxu0 0
        %6066 = vmatpush1.bf16.msra.mxu0 %v6049
        %6067 = vmatprep.subr.bf16.mxu0 0
        %6068 = vmatpush1.bf16.msra.mxu0 %v6050
        %6069 = vmatprep.subr.bf16.mxu0 0
        %6070 = vmatpush1.bf16.msra.mxu0 %v6051
        %6071 = vmatprep.subr.bf16.mxu0 0
        %6072 = vmatpush1.bf16.msra.mxu0 %v6052
        %6073 = vmatprep.subr.bf16.mxu0 0
        %6074 = vmatpush1.bf16.msra.mxu0 %v6053
        %6075 = vmatprep.subr.bf16.mxu0 0
        %6076 = vmatpush1.bf16.msra.mxu0 %v6054
        %6077 = vmatprep.subr.bf16.mxu0 0
        %6078 = vmatpush1.bf16.msra.mxu0 %v6055
        %6079 = vmatprep.subr.bf16.mxu0 0
        %6080 = vmatpush1.bf16.msra.mxu0 %v6056
        %6081 = vmatprep.subr.bf16.mxu0 0
        %6082 = vmatpush1.bf16.msra.mxu0 0
        %6083 = vmatprep.subr.bf16.mxu0 0
        %6084 = vmatpush1.bf16.msra.mxu0 0
        %6085 = vmatprep.subr.bf16.mxu0 0
        %6086 = vmatpush1.bf16.msra.mxu0 0
        %6087 = vmatprep.subr.bf16.mxu0 0
        %6088 = vmatpush1.bf16.msra.mxu0 0
        %6089 = vmatprep.subr.bf16.mxu0 0
        %6090 = vmatpush1.bf16.msra.mxu0 0
        %6091 = vmatprep.subr.bf16.mxu0 0
        %6092 = vmatpush1.bf16.msra.mxu0 0
        %6093 = vmatprep.subr.bf16.mxu0 0
        %6094 = vmatpush1.bf16.msra.mxu0 0
        %6095 = vmatprep.subr.bf16.mxu0 0
        %6096 = vmatpush1.bf16.msra.mxu0 0
        %6097 = vmatprep.mubr.bf16.mxu0 0
        %6098 = vmatmul.mubr.bf16.gmra.mrb[0].mxu0 %v3315
        %v6099 = vpop.f32.mrb[0].mxu0
        %v6100 = vadd.f32 0.0, %v6099
        %v6101 = vpop.f32.mrb[0].mxu0
        %v6102 = vpop.f32.mrb[0].mxu0
        %v6103 = vadd.f32 0.0, %v6102
        %v6104 = vpop.f32.mrb[0].mxu0
        %6105 = vmatprep.mubr.bf16.mxu0 0
        %6106 = vmatmul.mubr.bf16.gmra.mrb[0].mxu0 %v3316
        %v6107 = vpop.f32.mrb[0].mxu0
        %v6108 = vadd.f32 0.0, %v6107
        %v6109 = vpop.f32.mrb[0].mxu0
        %v6110 = vpop.f32.mrb[0].mxu0
        %v6111 = vadd.f32 0.0, %v6110
        %v6112 = vpop.f32.mrb[0].mxu0
        %6113 = vmatprep.mubr.bf16.mxu0 0
        %6114 = vmatmul.mubr.bf16.gmra.mrb[0].mxu0 %v3317
        %v6115 = vpop.f32.mrb[0].mxu0
        %v6116 = vadd.f32 0.0, %v6115
        %v6117 = vpop.f32.mrb[0].mxu0
        %v6118 = vpop.f32.mrb[0].mxu0
        %v6119 = vadd.f32 0.0, %v6118
        %v6120 = vpop.f32.mrb[0].mxu0
        %6121 = vmatprep.mubr.bf16.mxu0 0
        %6122 = vmatmul.mubr.bf16.gmra.mrb[0].mxu0 %v3318
        %v6123 = vpop.f32.mrb[0].mxu0
        %v6124 = vadd.f32 0.0, %v6123
        %v6125 = vpop.f32.mrb[0].mxu0
        %v6126 = vpop.f32.mrb[0].mxu0
        %v6127 = vadd.f32 0.0, %v6126
        %v6128 = vpop.f32.mrb[0].mxu0
        %6129 = vmatprep.mubr.bf16.mxu0 0
        %6130 = vmatmul.mubr.bf16.gmra.mrb[0].mxu0 %v3319
        %v6131 = vpop.f32.mrb[0].mxu0
        %v6132 = vadd.f32 0.0, %v6131
        %v6133 = vpop.f32.mrb[0].mxu0
        %v6134 = vpop.f32.mrb[0].mxu0
        %v6135 = vadd.f32 0.0, %v6134
        %v6136 = vpop.f32.mrb[0].mxu0
        %6137 = vmatprep.mubr.bf16.mxu0 0
        %6138 = vmatmul.mubr.bf16.gmra.mrb[0].mxu0 %v3320
        %v6139 = vpop.f32.mrb[0].mxu0
        %v6140 = vadd.f32 0.0, %v6139
        %v6141 = vpop.f32.mrb[0].mxu0
        %v6142 = vpop.f32.mrb[0].mxu0
        %v6143 = vadd.f32 0.0, %v6142
        %v6144 = vpop.f32.mrb[0].mxu0
        %6145 = vmatprep.mubr.bf16.mxu0 0
        %6146 = vmatmul.mubr.bf16.gmra.mrb[0].mxu0 %v3321
        %v6147 = vpop.f32.mrb[0].mxu0
        %v6148 = vadd.f32 0.0, %v6147
        %v6149 = vpop.f32.mrb[0].mxu0
        %v6150 = vpop.f32.mrb[0].mxu0
        %v6151 = vadd.f32 0.0, %v6150
        %v6152 = vpop.f32.mrb[0].mxu0
        %6153 = vmatprep.mubr.bf16.mxu0 0
        %6154 = vmatmul.mubr.bf16.gmra.mrb[0].mxu0 %v3322
        %v6155 = vpop.f32.mrb[0].mxu0
        %v6156 = vadd.f32 0.0, %v6155
        %v6157 = vpop.f32.mrb[0].mxu0
        %v6158 = vpop.f32.mrb[0].mxu0
        %v6159 = vadd.f32 0.0, %v6158
        %v6160 = vpop.f32.mrb[0].mxu0
        %6161 = vdwg.mxu0
        %v6162 = vpack.c.bf16 %v6103, %v6100
        %v6163 = vpack.c.bf16 %v6111, %v6108
        %v6164 = vpack.c.bf16 %v6119, %v6116
        %v6165 = vpack.c.bf16 %v6127, %v6124
        %v6166 = vpack.c.bf16 %v6135, %v6132
        %v6167 = vpack.c.bf16 %v6143, %v6140
        %v6168 = vpack.c.bf16 %v6151, %v6148
        %v6169 = vpack.c.bf16 %v6159, %v6156
        %s6170 = scalar_lea.vmem [#allocation2], 384
        %v6171 = vld [vmem:[%s6170] sm:$0xff]
        %v6172 = vld [vmem:[%s6170 + $0x8] sm:$0xff]
        %v6173 = vld [vmem:[%s6170 + $0x10] sm:$0xff]
        %v6174 = vld [vmem:[%s6170 + $0x18] sm:$0xff]
        %v6175 = vld [vmem:[%s6170 + $0x20] sm:$0xff]
        %v6176 = vld [vmem:[%s6170 + $0x28] sm:$0xff]
        %v6177 = vld [vmem:[%s6170 + $0x30] sm:$0xff]
        %v6178 = vld [vmem:[%s6170 + $0x38] sm:$0xff]
        %v6179 = vld [vmem:[%s6170 + $0x40] sm:$0xff]
        %v6180 = vld [vmem:[%s6170 + $0x48] sm:$0xff]
        %v6181 = vld [vmem:[%s6170 + $0x50] sm:$0xff]
        %v6182 = vld [vmem:[%s6170 + $0x58] sm:$0xff]
        %v6183 = vld [vmem:[%s6170 + $0x60] sm:$0xff]
        %v6184 = vld [vmem:[%s6170 + $0x68] sm:$0xff]
        %v6185 = vld [vmem:[%s6170 + $0x70] sm:$0xff]
        %v6186 = vld [vmem:[%s6170 + $0x78] sm:$0xff]
        %v6188 = vsel %vm3508, %v6162, 0
        %v6191 = vsel %vm3508, %v6163, 0
        %v6194 = vsel %vm3508, %v6164, 0
        %v6197 = vsel %vm3508, %v6165, 0
        %v6200 = vsel %vm3508, %v6166, 0
        %v6203 = vsel %vm3508, %v6167, 0
        %v6206 = vsel %vm3508, %v6168, 0
        %v6209 = vsel %vm3508, %v6169, 0
        %v6212 = vsel %vm3508, %v6171, 0
        %v6215 = vsel %vm3508, %v6172, 0
        %v6218 = vsel %vm3508, %v6173, 0
        %v6221 = vsel %vm3508, %v6174, 0
        %v6224 = vsel %vm3508, %v6175, 0
        %v6227 = vsel %vm3508, %v6176, 0
        %v6230 = vsel %vm3508, %v6177, 0
        %v6233 = vsel %vm3508, %v6178, 0
        %v6236 = vsel %vm3508, %v6179, 0
        %v6239 = vsel %vm3508, %v6180, 0
        %v6242 = vsel %vm3508, %v6181, 0
        %v6245 = vsel %vm3508, %v6182, 0
        %v6248 = vsel %vm3508, %v6183, 0
        %v6251 = vsel %vm3508, %v6184, 0
        %v6254 = vsel %vm3508, %v6185, 0
        %v6257 = vsel %vm3508, %v6186, 0
        %6259 = vmatprep.subr.bf16.mxu0 0
        %6260 = vmatpush1.bf16.xpose.msra.mxu0 %v6212
        %6261 = vmatprep.subr.bf16.mxu0 0
        %6262 = vmatpush1.bf16.xpose.msra.mxu0 %v6215
        %6263 = vmatprep.subr.bf16.mxu0 0
        %6264 = vmatpush1.bf16.xpose.msra.mxu0 %v6218
        %6265 = vmatprep.subr.bf16.mxu0 0
        %6266 = vmatpush1.bf16.xpose.msra.mxu0 %v6221
        %6267 = vmatprep.subr.bf16.mxu0 0
        %6268 = vmatpush1.bf16.xpose.msra.mxu0 %v6224
        %6269 = vmatprep.subr.bf16.mxu0 0
        %6270 = vmatpush1.bf16.xpose.msra.mxu0 %v6227
        %6271 = vmatprep.subr.bf16.mxu0 0
        %6272 = vmatpush1.bf16.xpose.msra.mxu0 %v6230
        %6273 = vmatprep.subr.bf16.mxu0 0
        %6274 = vmatpush1.bf16.xpose.msra.mxu0 %v6233
        %6275 = vmatprep.subr.bf16.mxu0 0
        %6276 = vmatpush1.bf16.xpose.msra.mxu0 %v6236
        %6277 = vmatprep.subr.bf16.mxu0 0
        %6278 = vmatpush1.bf16.xpose.msra.mxu0 %v6239
        %6279 = vmatprep.subr.bf16.mxu0 0
        %6280 = vmatpush1.bf16.xpose.msra.mxu0 %v6242
        %6281 = vmatprep.subr.bf16.mxu0 0
        %6282 = vmatpush1.bf16.xpose.msra.mxu0 %v6245
        %6283 = vmatprep.subr.bf16.mxu0 0
        %6284 = vmatpush1.bf16.xpose.msra.mxu0 %v6248
        %6285 = vmatprep.subr.bf16.mxu0 0
        %6286 = vmatpush1.bf16.xpose.msra.mxu0 %v6251
        %6287 = vmatprep.subr.bf16.mxu0 0
        %6288 = vmatpush1.bf16.xpose.msra.mxu0 %v6254
        %6289 = vmatprep.subr.bf16.mxu0 0
        %6290 = vmatpush1.bf16.xpose.msra.mxu0 %v6257
        %6291 = vmatprep.mubr.bf16.mxu0 0
        %6292 = vmatmul.mubr.bf16.gmra.mrb[0].mxu0 %v6188
        %v6293 = vpop.f32.mrb[0].mxu0
        %v6294 = vadd.f32 0.0, %v6293
        %v6295 = vpop.f32.mrb[0].mxu0
        %v6296 = vadd.f32 0.0, %v6295
        %v6297 = vpop.f32.mrb[0].mxu0
        %v6298 = vadd.f32 0.0, %v6297
        %v6299 = vpop.f32.mrb[0].mxu0
        %v6300 = vadd.f32 0.0, %v6299
        %6301 = vmatprep.mubr.bf16.mxu0 0
        %6302 = vmatmul.mubr.bf16.gmra.mrb[0].mxu0 %v6191
        %v6303 = vpop.f32.mrb[0].mxu0
        %v6304 = vadd.f32 0.0, %v6303
        %v6305 = vpop.f32.mrb[0].mxu0
        %v6306 = vadd.f32 0.0, %v6305
        %v6307 = vpop.f32.mrb[0].mxu0
        %v6308 = vadd.f32 0.0, %v6307
        %v6309 = vpop.f32.mrb[0].mxu0
        %v6310 = vadd.f32 0.0, %v6309
        %6311 = vmatprep.mubr.bf16.mxu0 0
        %6312 = vmatmul.mubr.bf16.gmra.mrb[0].mxu0 %v6194
        %v6313 = vpop.f32.mrb[0].mxu0
        %v6314 = vadd.f32 0.0, %v6313
        %v6315 = vpop.f32.mrb[0].mxu0
        %v6316 = vadd.f32 0.0, %v6315
        %v6317 = vpop.f32.mrb[0].mxu0
        %v6318 = vadd.f32 0.0, %v6317
        %v6319 = vpop.f32.mrb[0].mxu0
        %v6320 = vadd.f32 0.0, %v6319
        %6321 = vmatprep.mubr.bf16.mxu0 0
        %6322 = vmatmul.mubr.bf16.gmra.mrb[0].mxu0 %v6197
        %v6323 = vpop.f32.mrb[0].mxu0
        %v6324 = vadd.f32 0.0, %v6323
        %v6325 = vpop.f32.mrb[0].mxu0
        %v6326 = vadd.f32 0.0, %v6325
        %v6327 = vpop.f32.mrb[0].mxu0
        %v6328 = vadd.f32 0.0, %v6327
        %v6329 = vpop.f32.mrb[0].mxu0
        %v6330 = vadd.f32 0.0, %v6329
        %6331 = vmatprep.mubr.bf16.mxu0 0
        %6332 = vmatmul.mubr.bf16.gmra.mrb[0].mxu0 %v6200
        %v6333 = vpop.f32.mrb[0].mxu0
        %v6334 = vadd.f32 0.0, %v6333
        %v6335 = vpop.f32.mrb[0].mxu0
        %v6336 = vadd.f32 0.0, %v6335
        %v6337 = vpop.f32.mrb[0].mxu0
        %v6338 = vadd.f32 0.0, %v6337
        %v6339 = vpop.f32.mrb[0].mxu0
        %v6340 = vadd.f32 0.0, %v6339
        %6341 = vmatprep.mubr.bf16.mxu0 0
        %6342 = vmatmul.mubr.bf16.gmra.mrb[0].mxu0 %v6203
        %v6343 = vpop.f32.mrb[0].mxu0
        %v6344 = vadd.f32 0.0, %v6343
        %v6345 = vpop.f32.mrb[0].mxu0
        %v6346 = vadd.f32 0.0, %v6345
        %v6347 = vpop.f32.mrb[0].mxu0
        %v6348 = vadd.f32 0.0, %v6347
        %v6349 = vpop.f32.mrb[0].mxu0
        %v6350 = vadd.f32 0.0, %v6349
        %6351 = vmatprep.mubr.bf16.mxu0 0
        %6352 = vmatmul.mubr.bf16.gmra.mrb[0].mxu0 %v6206
        %v6353 = vpop.f32.mrb[0].mxu0
        %v6354 = vadd.f32 0.0, %v6353
        %v6355 = vpop.f32.mrb[0].mxu0
        %v6356 = vadd.f32 0.0, %v6355
        %v6357 = vpop.f32.mrb[0].mxu0
        %v6358 = vadd.f32 0.0, %v6357
        %v6359 = vpop.f32.mrb[0].mxu0
        %v6360 = vadd.f32 0.0, %v6359
        %6361 = vmatprep.mubr.bf16.mxu0 0
        %6362 = vmatmul.mubr.bf16.gmra.mrb[0].mxu0 %v6209
        %v6363 = vpop.f32.mrb[0].mxu0
        %v6364 = vadd.f32 0.0, %v6363
        %v6365 = vpop.f32.mrb[0].mxu0
        %v6366 = vadd.f32 0.0, %v6365
        %v6367 = vpop.f32.mrb[0].mxu0
        %v6368 = vadd.f32 0.0, %v6367
        %v6369 = vpop.f32.mrb[0].mxu0
        %v6370 = vadd.f32 0.0, %v6369
        %6371 = vdwg.mxu0
        %v6372 = vmax.f32 %v6294, %v6296
        %6373 = vmax.xlane.f32.xlu0 %v6372
        %v6374 = vpop.xlane.xlu0 %6373
        %v6375 = vmax.f32 %v6298, %v6300
        %6376 = vmax.xlane.f32.xlu0 %v6375
        %v6377 = vpop.xlane.xlu0 %6376
        %v6378 = vmax.f32 %v6304, %v6306
        %6379 = vmax.xlane.f32.xlu0 %v6378
        %v6380 = vpop.xlane.xlu0 %6379
        %v6381 = vmax.f32 %v6308, %v6310
        %6382 = vmax.xlane.f32.xlu0 %v6381
        %v6383 = vpop.xlane.xlu0 %6382
        %v6384 = vmax.f32 %v6314, %v6316
        %6385 = vmax.xlane.f32.xlu0 %v6384
        %v6386 = vpop.xlane.xlu0 %6385
        %v6387 = vmax.f32 %v6318, %v6320
        %6388 = vmax.xlane.f32.xlu0 %v6387
        %v6389 = vpop.xlane.xlu0 %6388
        %v6390 = vmax.f32 %v6324, %v6326
        %6391 = vmax.xlane.f32.xlu0 %v6390
        %v6392 = vpop.xlane.xlu0 %6391
        %v6393 = vmax.f32 %v6328, %v6330
        %6394 = vmax.xlane.f32.xlu0 %v6393
        %v6395 = vpop.xlane.xlu0 %6394
        %v6396 = vmax.f32 %v6334, %v6336
        %6397 = vmax.xlane.f32.xlu0 %v6396
        %v6398 = vpop.xlane.xlu0 %6397
        %v6399 = vmax.f32 %v6338, %v6340
        %6400 = vmax.xlane.f32.xlu0 %v6399
        %v6401 = vpop.xlane.xlu0 %6400
        %v6402 = vmax.f32 %v6344, %v6346
        %6403 = vmax.xlane.f32.xlu0 %v6402
        %v6404 = vpop.xlane.xlu0 %6403
        %v6405 = vmax.f32 %v6348, %v6350
        %6406 = vmax.xlane.f32.xlu0 %v6405
        %v6407 = vpop.xlane.xlu0 %6406
        %v6408 = vmax.f32 %v6354, %v6356
        %6409 = vmax.xlane.f32.xlu0 %v6408
        %v6410 = vpop.xlane.xlu0 %6409
        %v6411 = vmax.f32 %v6358, %v6360
        %6412 = vmax.xlane.f32.xlu0 %v6411
        %v6413 = vpop.xlane.xlu0 %6412
        %v6414 = vmax.f32 %v6364, %v6366
        %6415 = vmax.xlane.f32.xlu0 %v6414
        %v6416 = vpop.xlane.xlu0 %6415
        %v6417 = vmax.f32 %v6368, %v6370
        %6418 = vmax.xlane.f32.xlu0 %v6417
        %v6419 = vpop.xlane.xlu0 %6418
        %v6420 = vsub.f32 %v6294, %v6374
        %v6421 = vsub.f32 %v6296, %v6374
        %v6422 = vsub.f32 %v6298, %v6377
        %v6423 = vsub.f32 %v6300, %v6377
        %v6424 = vsub.f32 %v6304, %v6380
        %v6425 = vsub.f32 %v6306, %v6380
        %v6426 = vsub.f32 %v6308, %v6383
        %v6427 = vsub.f32 %v6310, %v6383
        %v6428 = vsub.f32 %v6314, %v6386
        %v6429 = vsub.f32 %v6316, %v6386
        %v6430 = vsub.f32 %v6318, %v6389
        %v6431 = vsub.f32 %v6320, %v6389
        %v6432 = vsub.f32 %v6324, %v6392
        %v6433 = vsub.f32 %v6326, %v6392
        %v6434 = vsub.f32 %v6328, %v6395
        %v6435 = vsub.f32 %v6330, %v6395
        %v6436 = vsub.f32 %v6334, %v6398
        %v6437 = vsub.f32 %v6336, %v6398
        %v6438 = vsub.f32 %v6338, %v6401
        %v6439 = vsub.f32 %v6340, %v6401
        %v6440 = vsub.f32 %v6344, %v6404
        %v6441 = vsub.f32 %v6346, %v6404
        %v6442 = vsub.f32 %v6348, %v6407
        %v6443 = vsub.f32 %v6350, %v6407
        %v6444 = vsub.f32 %v6354, %v6410
        %v6445 = vsub.f32 %v6356, %v6410
        %v6446 = vsub.f32 %v6358, %v6413
        %v6447 = vsub.f32 %v6360, %v6413
        %v6448 = vsub.f32 %v6364, %v6416
        %v6449 = vsub.f32 %v6366, %v6416
        %v6450 = vsub.f32 %v6368, %v6419
        %v6451 = vsub.f32 %v6370, %v6419
        %v6452 = vmul.f32 %v6420, 1.442695
        %v6453 = vpow.pop %v6452
        %v6454 = vmul.f32 %v6421, 1.442695
        %v6455 = vpow.pop %v6454
        %v6456 = vmul.f32 %v6422, 1.442695
        %v6457 = vpow.pop %v6456
        %v6458 = vmul.f32 %v6423, 1.442695
        %v6459 = vpow.pop %v6458
        %v6460 = vmul.f32 %v6424, 1.442695
        %v6461 = vpow.pop %v6460
        %v6462 = vmul.f32 %v6425, 1.442695
        %v6463 = vpow.pop %v6462
        %v6464 = vmul.f32 %v6426, 1.442695
        %v6465 = vpow.pop %v6464
        %v6466 = vmul.f32 %v6427, 1.442695
        %v6467 = vpow.pop %v6466
        %v6468 = vmul.f32 %v6428, 1.442695
        %v6469 = vpow.pop %v6468
        %v6470 = vmul.f32 %v6429, 1.442695
        %v6471 = vpow.pop %v6470
        %v6472 = vmul.f32 %v6430, 1.442695
        %v6473 = vpow.pop %v6472
        %v6474 = vmul.f32 %v6431, 1.442695
        %v6475 = vpow.pop %v6474
        %v6476 = vmul.f32 %v6432, 1.442695
        %v6477 = vpow.pop %v6476
        %v6478 = vmul.f32 %v6433, 1.442695
        %v6479 = vpow.pop %v6478
        %v6480 = vmul.f32 %v6434, 1.442695
        %v6481 = vpow.pop %v6480
        %v6482 = vmul.f32 %v6435, 1.442695
        %v6483 = vpow.pop %v6482
        %v6484 = vmul.f32 %v6436, 1.442695
        %v6485 = vpow.pop %v6484
        %v6486 = vmul.f32 %v6437, 1.442695
        %v6487 = vpow.pop %v6486
        %v6488 = vmul.f32 %v6438, 1.442695
        %v6489 = vpow.pop %v6488
        %v6490 = vmul.f32 %v6439, 1.442695
        %v6491 = vpow.pop %v6490
        %v6492 = vmul.f32 %v6440, 1.442695
        %v6493 = vpow.pop %v6492
        %v6494 = vmul.f32 %v6441, 1.442695
        %v6495 = vpow.pop %v6494
        %v6496 = vmul.f32 %v6442, 1.442695
        %v6497 = vpow.pop %v6496
        %v6498 = vmul.f32 %v6443, 1.442695
        %v6499 = vpow.pop %v6498
        %v6500 = vmul.f32 %v6444, 1.442695
        %v6501 = vpow.pop %v6500
        %v6502 = vmul.f32 %v6445, 1.442695
        %v6503 = vpow.pop %v6502
        %v6504 = vmul.f32 %v6446, 1.442695
        %v6505 = vpow.pop %v6504
        %v6506 = vmul.f32 %v6447, 1.442695
        %v6507 = vpow.pop %v6506
        %v6508 = vmul.f32 %v6448, 1.442695
        %v6509 = vpow.pop %v6508
        %v6510 = vmul.f32 %v6449, 1.442695
        %v6511 = vpow.pop %v6510
        %v6512 = vmul.f32 %v6450, 1.442695
        %v6513 = vpow.pop %v6512
        %v6514 = vmul.f32 %v6451, 1.442695
        %v6515 = vpow.pop %v6514
        %v6516 = vadd.f32 %v6453, %v6455
        %6517 = vadd.xlane.f32.xlu0 %v6516
        %v6518 = vpop.xlane.xlu0 %6517
        %v6519 = vadd.f32 %v6457, %v6459
        %6520 = vadd.xlane.f32.xlu0 %v6519
        %v6521 = vpop.xlane.xlu0 %6520
        %v6522 = vadd.f32 %v6461, %v6463
        %6523 = vadd.xlane.f32.xlu0 %v6522
        %v6524 = vpop.xlane.xlu0 %6523
        %v6525 = vadd.f32 %v6465, %v6467
        %6526 = vadd.xlane.f32.xlu0 %v6525
        %v6527 = vpop.xlane.xlu0 %6526
        %v6528 = vadd.f32 %v6469, %v6471
        %6529 = vadd.xlane.f32.xlu0 %v6528
        %v6530 = vpop.xlane.xlu0 %6529
        %v6531 = vadd.f32 %v6473, %v6475
        %6532 = vadd.xlane.f32.xlu0 %v6531
        %v6533 = vpop.xlane.xlu0 %6532
        %v6534 = vadd.f32 %v6477, %v6479
        %6535 = vadd.xlane.f32.xlu0 %v6534
        %v6536 = vpop.xlane.xlu0 %6535
        %v6537 = vadd.f32 %v6481, %v6483
        %6538 = vadd.xlane.f32.xlu0 %v6537
        %v6539 = vpop.xlane.xlu0 %6538
        %v6540 = vadd.f32 %v6485, %v6487
        %6541 = vadd.xlane.f32.xlu0 %v6540
        %v6542 = vpop.xlane.xlu0 %6541
        %v6543 = vadd.f32 %v6489, %v6491
        %6544 = vadd.xlane.f32.xlu0 %v6543
        %v6545 = vpop.xlane.xlu0 %6544
        %v6546 = vadd.f32 %v6493, %v6495
        %6547 = vadd.xlane.f32.xlu0 %v6546
        %v6548 = vpop.xlane.xlu0 %6547
        %v6549 = vadd.f32 %v6497, %v6499
        %6550 = vadd.xlane.f32.xlu0 %v6549
        %v6551 = vpop.xlane.xlu0 %6550
        %v6552 = vadd.f32 %v6501, %v6503
        %6553 = vadd.xlane.f32.xlu0 %v6552
        %v6554 = vpop.xlane.xlu0 %6553
        %v6555 = vadd.f32 %v6505, %v6507
        %6556 = vadd.xlane.f32.xlu0 %v6555
        %v6557 = vpop.xlane.xlu0 %6556
        %v6558 = vadd.f32 %v6509, %v6511
        %6559 = vadd.xlane.f32.xlu0 %v6558
        %v6560 = vpop.xlane.xlu0 %6559
        %v6561 = vadd.f32 %v6513, %v6515
        %6562 = vadd.xlane.f32.xlu0 %v6561
        %v6563 = vpop.xlane.xlu0 %6562
        %v6564 = vrcp.pop %v6518
        %v6565 = vrcp.pop %v6521
        %v6566 = vrcp.pop %v6524
        %v6567 = vrcp.pop %v6527
        %v6568 = vrcp.pop %v6530
        %v6569 = vrcp.pop %v6533
        %v6570 = vrcp.pop %v6536
        %v6571 = vrcp.pop %v6539
        %v6572 = vrcp.pop %v6542
        %v6573 = vrcp.pop %v6545
        %v6574 = vrcp.pop %v6548
        %v6575 = vrcp.pop %v6551
        %v6576 = vrcp.pop %v6554
        %v6577 = vrcp.pop %v6557
        %v6578 = vrcp.pop %v6560
        %v6579 = vrcp.pop %v6563
        %v6580 = vmul.f32 %v6453, %v6564
        %v6581 = vmul.f32 %v6455, %v6564
        %v6582 = vmul.f32 %v6457, %v6565
        %v6583 = vmul.f32 %v6459, %v6565
        %v6584 = vmul.f32 %v6461, %v6566
        %v6585 = vmul.f32 %v6463, %v6566
        %v6586 = vmul.f32 %v6465, %v6567
        %v6587 = vmul.f32 %v6467, %v6567
        %v6588 = vmul.f32 %v6469, %v6568
        %v6589 = vmul.f32 %v6471, %v6568
        %v6590 = vmul.f32 %v6473, %v6569
        %v6591 = vmul.f32 %v6475, %v6569
        %v6592 = vmul.f32 %v6477, %v6570
        %v6593 = vmul.f32 %v6479, %v6570
        %v6594 = vmul.f32 %v6481, %v6571
        %v6595 = vmul.f32 %v6483, %v6571
        %v6596 = vmul.f32 %v6485, %v6572
        %v6597 = vmul.f32 %v6487, %v6572
        %v6598 = vmul.f32 %v6489, %v6573
        %v6599 = vmul.f32 %v6491, %v6573
        %v6600 = vmul.f32 %v6493, %v6574
        %v6601 = vmul.f32 %v6495, %v6574
        %v6602 = vmul.f32 %v6497, %v6575
        %v6603 = vmul.f32 %v6499, %v6575
        %v6604 = vmul.f32 %v6501, %v6576
        %v6605 = vmul.f32 %v6503, %v6576
        %v6606 = vmul.f32 %v6505, %v6577
        %v6607 = vmul.f32 %v6507, %v6577
        %v6608 = vmul.f32 %v6509, %v6578
        %v6609 = vmul.f32 %v6511, %v6578
        %v6610 = vmul.f32 %v6513, %v6579
        %v6611 = vmul.f32 %v6515, %v6579
        %v6612 = vpack.c.bf16 %v6582, %v6580
        %v6613 = vpack.c.bf16 %v6583, %v6581
        %v6614 = vpack.c.bf16 %v6586, %v6584
        %v6615 = vpack.c.bf16 %v6587, %v6585
        %v6616 = vpack.c.bf16 %v6590, %v6588
        %v6617 = vpack.c.bf16 %v6591, %v6589
        %v6618 = vpack.c.bf16 %v6594, %v6592
        %v6619 = vpack.c.bf16 %v6595, %v6593
        %v6620 = vpack.c.bf16 %v6598, %v6596
        %v6621 = vpack.c.bf16 %v6599, %v6597
        %v6622 = vpack.c.bf16 %v6602, %v6600
        %v6623 = vpack.c.bf16 %v6603, %v6601
        %v6624 = vpack.c.bf16 %v6606, %v6604
        %v6625 = vpack.c.bf16 %v6607, %v6605
        %v6626 = vpack.c.bf16 %v6610, %v6608
        %v6627 = vpack.c.bf16 %v6611, %v6609
        %s6628 = scalar_lea.vmem [#allocation3], 384
        %v6629 = vld [vmem:[%s6628] sm:$0xff]
        %v6630 = vld [vmem:[%s6628 + $0x8] sm:$0xff]
        %v6631 = vld [vmem:[%s6628 + $0x10] sm:$0xff]
        %v6632 = vld [vmem:[%s6628 + $0x18] sm:$0xff]
        %v6633 = vld [vmem:[%s6628 + $0x20] sm:$0xff]
        %v6634 = vld [vmem:[%s6628 + $0x28] sm:$0xff]
        %v6635 = vld [vmem:[%s6628 + $0x30] sm:$0xff]
        %v6636 = vld [vmem:[%s6628 + $0x38] sm:$0xff]
        %v6637 = vld [vmem:[%s6628 + $0x40] sm:$0xff]
        %v6638 = vld [vmem:[%s6628 + $0x48] sm:$0xff]
        %v6639 = vld [vmem:[%s6628 + $0x50] sm:$0xff]
        %v6640 = vld [vmem:[%s6628 + $0x58] sm:$0xff]
        %v6641 = vld [vmem:[%s6628 + $0x60] sm:$0xff]
        %v6642 = vld [vmem:[%s6628 + $0x68] sm:$0xff]
        %v6643 = vld [vmem:[%s6628 + $0x70] sm:$0xff]
        %v6644 = vld [vmem:[%s6628 + $0x78] sm:$0xff]
        %6645 = vmatprep.subr.bf16.mxu0 0
        %6646 = vmatpush1.bf16.msra.mxu0 %v6629
        %6647 = vmatprep.subr.bf16.mxu0 0
        %6648 = vmatpush1.bf16.msra.mxu0 %v6630
        %6649 = vmatprep.subr.bf16.mxu0 0
        %6650 = vmatpush1.bf16.msra.mxu0 %v6631
        %6651 = vmatprep.subr.bf16.mxu0 0
        %6652 = vmatpush1.bf16.msra.mxu0 %v6632
        %6653 = vmatprep.subr.bf16.mxu0 0
        %6654 = vmatpush1.bf16.msra.mxu0 %v6633
        %6655 = vmatprep.subr.bf16.mxu0 0
        %6656 = vmatpush1.bf16.msra.mxu0 %v6634
        %6657 = vmatprep.subr.bf16.mxu0 0
        %6658 = vmatpush1.bf16.msra.mxu0 %v6635
        %6659 = vmatprep.subr.bf16.mxu0 0
        %6660 = vmatpush1.bf16.msra.mxu0 %v6636
        %6661 = vmatprep.subr.bf16.mxu0 0
        %6662 = vmatpush1.bf16.msra.mxu0 %v6637
        %6663 = vmatprep.subr.bf16.mxu0 0
        %6664 = vmatpush1.bf16.msra.mxu0 %v6638
        %6665 = vmatprep.subr.bf16.mxu0 0
        %6666 = vmatpush1.bf16.msra.mxu0 %v6639
        %6667 = vmatprep.subr.bf16.mxu0 0
        %6668 = vmatpush1.bf16.msra.mxu0 %v6640
        %6669 = vmatprep.subr.bf16.mxu0 0
        %6670 = vmatpush1.bf16.msra.mxu0 %v6641
        %6671 = vmatprep.subr.bf16.mxu0 0
        %6672 = vmatpush1.bf16.msra.mxu0 %v6642
        %6673 = vmatprep.subr.bf16.mxu0 0
        %6674 = vmatpush1.bf16.msra.mxu0 %v6643
        %6675 = vmatprep.subr.bf16.mxu0 0
        %6676 = vmatpush1.bf16.msra.mxu0 %v6644
        %6677 = vmatprep.mubr.bf16.mxu0 %v6613
        %6678 = vmatmul.mubr.bf16.gmra.mrb[0].mxu0 %v6612
        %v6679 = vpop.f32.mrb[0].mxu0
        %v6680 = vadd.f32 0.0, %v6679
        %v6681 = vpop.f32.mrb[0].mxu0
        %v6682 = vpop.f32.mrb[0].mxu0
        %v6683 = vadd.f32 0.0, %v6682
        %v6684 = vpop.f32.mrb[0].mxu0
        %6685 = vmatprep.mubr.bf16.mxu0 %v6615
        %6686 = vmatmul.mubr.bf16.gmra.mrb[0].mxu0 %v6614
        %v6687 = vpop.f32.mrb[0].mxu0
        %v6688 = vadd.f32 0.0, %v6687
        %v6689 = vpop.f32.mrb[0].mxu0
        %v6690 = vpop.f32.mrb[0].mxu0
        %v6691 = vadd.f32 0.0, %v6690
        %v6692 = vpop.f32.mrb[0].mxu0
        %6693 = vmatprep.mubr.bf16.mxu0 %v6617
        %6694 = vmatmul.mubr.bf16.gmra.mrb[0].mxu0 %v6616
        %v6695 = vpop.f32.mrb[0].mxu0
        %v6696 = vadd.f32 0.0, %v6695
        %v6697 = vpop.f32.mrb[0].mxu0
        %v6698 = vpop.f32.mrb[0].mxu0
        %v6699 = vadd.f32 0.0, %v6698
        %v6700 = vpop.f32.mrb[0].mxu0
        %6701 = vmatprep.mubr.bf16.mxu0 %v6619
        %6702 = vmatmul.mubr.bf16.gmra.mrb[0].mxu0 %v6618
        %v6703 = vpop.f32.mrb[0].mxu0
        %v6704 = vadd.f32 0.0, %v6703
        %v6705 = vpop.f32.mrb[0].mxu0
        %v6706 = vpop.f32.mrb[0].mxu0
        %v6707 = vadd.f32 0.0, %v6706
        %v6708 = vpop.f32.mrb[0].mxu0
        %6709 = vmatprep.mubr.bf16.mxu0 %v6621
        %6710 = vmatmul.mubr.bf16.gmra.mrb[0].mxu0 %v6620
        %v6711 = vpop.f32.mrb[0].mxu0
        %v6712 = vadd.f32 0.0, %v6711
        %v6713 = vpop.f32.mrb[0].mxu0
        %v6714 = vpop.f32.mrb[0].mxu0
        %v6715 = vadd.f32 0.0, %v6714
        %v6716 = vpop.f32.mrb[0].mxu0
        %6717 = vmatprep.mubr.bf16.mxu0 %v6623
        %6718 = vmatmul.mubr.bf16.gmra.mrb[0].mxu0 %v6622
        %v6719 = vpop.f32.mrb[0].mxu0
        %v6720 = vadd.f32 0.0, %v6719
        %v6721 = vpop.f32.mrb[0].mxu0
        %v6722 = vpop.f32.mrb[0].mxu0
        %v6723 = vadd.f32 0.0, %v6722
        %v6724 = vpop.f32.mrb[0].mxu0
        %6725 = vmatprep.mubr.bf16.mxu0 %v6625
        %6726 = vmatmul.mubr.bf16.gmra.mrb[0].mxu0 %v6624
        %v6727 = vpop.f32.mrb[0].mxu0
        %v6728 = vadd.f32 0.0, %v6727
        %v6729 = vpop.f32.mrb[0].mxu0
        %v6730 = vpop.f32.mrb[0].mxu0
        %v6731 = vadd.f32 0.0, %v6730
        %v6732 = vpop.f32.mrb[0].mxu0
        %6733 = vmatprep.mubr.bf16.mxu0 %v6627
        %6734 = vmatmul.mubr.bf16.gmra.mrb[0].mxu0 %v6626
        %v6735 = vpop.f32.mrb[0].mxu0
        %v6736 = vadd.f32 0.0, %v6735
        %v6737 = vpop.f32.mrb[0].mxu0
        %v6738 = vpop.f32.mrb[0].mxu0
        %v6739 = vadd.f32 0.0, %v6738
        %v6740 = vpop.f32.mrb[0].mxu0
        %6741 = vdwg.mxu0
        %v6742 = vpack.c.bf16 %v6683, %v6680
        %v6743 = vpack.c.bf16 %v6691, %v6688
        %v6744 = vpack.c.bf16 %v6699, %v6696
        %v6745 = vpack.c.bf16 %v6707, %v6704
        %v6746 = vpack.c.bf16 %v6715, %v6712
        %v6747 = vpack.c.bf16 %v6723, %v6720
        %v6748 = vpack.c.bf16 %v6731, %v6728
        %v6749 = vpack.c.bf16 %v6739, %v6736
        %s6750 = scalar_lea.vmem %s6, 48
        %v6751 = vld [vmem:[%s6750] sm:$0xf]
        %v6752 = vld [vmem:[%s6750 + $0x4] sm:$0xf]
        %v6753 = vld [vmem:[%s6750 + $0x8] sm:$0xf]
        %v6754 = vld [vmem:[%s6750 + $0xc] sm:$0xf]
        %v6759 = vunpack.c.l.b16 %v6751
        %v6760 = vunpack.c.l.b16 %v6752
        %v6761 = vunpack.c.l.b16 %v6753
        %v6762 = vunpack.c.l.b16 %v6754
        %v6763 = vpack.c.b16 %v6760, %v6759
        %v6764 = vpack.c.b16 %v6762, %v6761
        %v6768 = vsel %vm3508, %v6742, 0
        %v6771 = vsel %vm3508, %v6743, 0
        %v6774 = vsel %vm3508, %v6744, 0
        %v6777 = vsel %vm3508, %v6745, 0
        %v6780 = vsel %vm3508, %v6746, 0
        %v6783 = vsel %vm3508, %v6747, 0
        %v6786 = vsel %vm3508, %v6748, 0
        %v6789 = vsel %vm3508, %v6749, 0
        %6791 = vmatprep.subr.bf16.mxu0 0
        %6792 = vmatpush1.bf16.msra.mxu0 %v6763
        %6793 = vmatprep.subr.bf16.mxu0 0
        %6794 = vmatpush1.bf16.msra.mxu0 %v6764
        %6795 = vmatprep.subr.bf16.mxu0 0
        %6796 = vmatpush1.bf16.msra.mxu0 0
        %6797 = vmatprep.subr.bf16.mxu0 0
        %6798 = vmatpush1.bf16.msra.mxu0 0
        %6799 = vmatprep.subr.bf16.mxu0 0
        %6800 = vmatpush1.bf16.msra.mxu0 0
        %6801 = vmatprep.subr.bf16.mxu0 0
        %6802 = vmatpush1.bf16.msra.mxu0 0
        %6803 = vmatprep.subr.bf16.mxu0 0
        %6804 = vmatpush1.bf16.msra.mxu0 0
        %6805 = vmatprep.subr.bf16.mxu0 0
        %6806 = vmatpush1.bf16.msra.mxu0 0
        %6807 = vmatprep.subr.bf16.mxu0 0
        %6808 = vmatpush1.bf16.msra.mxu0 0
        %6809 = vmatprep.subr.bf16.mxu0 0
        %6810 = vmatpush1.bf16.msra.mxu0 0
        %6811 = vmatprep.subr.bf16.mxu0 0
        %6812 = vmatpush1.bf16.msra.mxu0 0
        %6813 = vmatprep.subr.bf16.mxu0 0
        %6814 = vmatpush1.bf16.msra.mxu0 0
        %6815 = vmatprep.subr.bf16.mxu0 0
        %6816 = vmatpush1.bf16.msra.mxu0 0
        %6817 = vmatprep.subr.bf16.mxu0 0
        %6818 = vmatpush1.bf16.msra.mxu0 0
        %6819 = vmatprep.subr.bf16.mxu0 0
        %6820 = vmatpush1.bf16.msra.mxu0 0
        %6821 = vmatprep.subr.bf16.mxu0 0
        %6822 = vmatpush1.bf16.msra.mxu0 0
        %6823 = vmatprep.mubr.bf16.mxu0 0
        %6824 = vmatmul.mubr.bf16.gmra.mrb[0].mxu0 %v6768
        %v6825 = vpop.f32.mrb[0].mxu0
        %v6826 = vadd.f32 0.0, %v6825
        %v6827 = vpop.f32.mrb[0].mxu0
        %v6828 = vpop.f32.mrb[0].mxu0
        %v6829 = vadd.f32 0.0, %v6828
        %v6830 = vpop.f32.mrb[0].mxu0
        %6831 = vmatprep.mubr.bf16.mxu0 0
        %6832 = vmatmul.mubr.bf16.gmra.mrb[0].mxu0 %v6771
        %v6833 = vpop.f32.mrb[0].mxu0
        %v6834 = vadd.f32 0.0, %v6833
        %v6835 = vpop.f32.mrb[0].mxu0
        %v6836 = vpop.f32.mrb[0].mxu0
        %v6837 = vadd.f32 0.0, %v6836
        %v6838 = vpop.f32.mrb[0].mxu0
        %6839 = vmatprep.mubr.bf16.mxu0 0
        %6840 = vmatmul.mubr.bf16.gmra.mrb[0].mxu0 %v6774
        %v6841 = vpop.f32.mrb[0].mxu0
        %v6842 = vadd.f32 0.0, %v6841
        %v6843 = vpop.f32.mrb[0].mxu0
        %v6844 = vpop.f32.mrb[0].mxu0
        %v6845 = vadd.f32 0.0, %v6844
        %v6846 = vpop.f32.mrb[0].mxu0
        %6847 = vmatprep.mubr.bf16.mxu0 0
        %6848 = vmatmul.mubr.bf16.gmra.mrb[0].mxu0 %v6777
        %v6849 = vpop.f32.mrb[0].mxu0
        %v6850 = vadd.f32 0.0, %v6849
        %v6851 = vpop.f32.mrb[0].mxu0
        %v6852 = vpop.f32.mrb[0].mxu0
        %v6853 = vadd.f32 0.0, %v6852
        %v6854 = vpop.f32.mrb[0].mxu0
        %6855 = vmatprep.mubr.bf16.mxu0 0
        %6856 = vmatmul.mubr.bf16.gmra.mrb[0].mxu0 %v6780
        %v6857 = vpop.f32.mrb[0].mxu0
        %v6858 = vadd.f32 0.0, %v6857
        %v6859 = vpop.f32.mrb[0].mxu0
        %v6860 = vpop.f32.mrb[0].mxu0
        %v6861 = vadd.f32 0.0, %v6860
        %v6862 = vpop.f32.mrb[0].mxu0
        %6863 = vmatprep.mubr.bf16.mxu0 0
        %6864 = vmatmul.mubr.bf16.gmra.mrb[0].mxu0 %v6783
        %v6865 = vpop.f32.mrb[0].mxu0
        %v6866 = vadd.f32 0.0, %v6865
        %v6867 = vpop.f32.mrb[0].mxu0
        %v6868 = vpop.f32.mrb[0].mxu0
        %v6869 = vadd.f32 0.0, %v6868
        %v6870 = vpop.f32.mrb[0].mxu0
        %6871 = vmatprep.mubr.bf16.mxu0 0
        %6872 = vmatmul.mubr.bf16.gmra.mrb[0].mxu0 %v6786
        %v6873 = vpop.f32.mrb[0].mxu0
        %v6874 = vadd.f32 0.0, %v6873
        %v6875 = vpop.f32.mrb[0].mxu0
        %v6876 = vpop.f32.mrb[0].mxu0
        %v6877 = vadd.f32 0.0, %v6876
        %v6878 = vpop.f32.mrb[0].mxu0
        %6879 = vmatprep.mubr.bf16.mxu0 0
        %6880 = vmatmul.mubr.bf16.gmra.mrb[0].mxu0 %v6789
        %v6881 = vpop.f32.mrb[0].mxu0
        %v6882 = vadd.f32 0.0, %v6881
        %v6883 = vpop.f32.mrb[0].mxu0
        %v6884 = vpop.f32.mrb[0].mxu0
        %v6885 = vadd.f32 0.0, %v6884
        %v6886 = vpop.f32.mrb[0].mxu0
        %6887 = vdwg.mxu0
        %v6888 = vadd.f32 %v5984, %v6826
        %v6889 = vadd.f32 %v5985, %v6829
        %v6890 = vadd.f32 %v5986, %v6834
        %v6891 = vadd.f32 %v5987, %v6837
        %v6892 = vadd.f32 %v5988, %v6842
        %v6893 = vadd.f32 %v5989, %v6845
        %v6894 = vadd.f32 %v5990, %v6850
        %v6895 = vadd.f32 %v5991, %v6853
        %v6896 = vadd.f32 %v5992, %v6858
        %v6897 = vadd.f32 %v5993, %v6861
        %v6898 = vadd.f32 %v5994, %v6866
        %v6899 = vadd.f32 %v5995, %v6869
        %v6900 = vadd.f32 %v5996, %v6874
        %v6901 = vadd.f32 %v5997, %v6877
        %v6902 = vadd.f32 %v5998, %v6882
        %v6903 = vadd.f32 %v5999, %v6885
        %v6904 = vadd.f32 %v3078, %v6888
        %v6905 = vadd.f32 %v3079, %v6889
        %v6906 = vadd.f32 %v3080, %v6890
        %v6907 = vadd.f32 %v3081, %v6891
        %v6908 = vadd.f32 %v3082, %v6892
        %v6909 = vadd.f32 %v3083, %v6893
        %v6910 = vadd.f32 %v3084, %v6894
        %v6911 = vadd.f32 %v3085, %v6895
        %v6912 = vadd.f32 %v3086, %v6896
        %v6913 = vadd.f32 %v3087, %v6897
        %v6914 = vadd.f32 %v3088, %v6898
        %v6915 = vadd.f32 %v3089, %v6899
        %v6916 = vadd.f32 %v3090, %v6900
        %v6917 = vadd.f32 %v3091, %v6901
        %v6918 = vadd.f32 %v3092, %v6902
        %v6919 = vadd.f32 %v3093, %v6903
        %v6920 = vld [vmem:[%s7] sm:$0x1]
        %v6922 = vlaneseq
        %v6923 = vshrl.u32 %v6922, 7
        %v6924 = vsub.s32 0, %v6923
        %v6925 = vrot.slane %v6920, %v6924
        %v6927 = vadd.f32 %v6904, %v6925
        %v6928 = vadd.f32 %v6905, %v6925
        %v6929 = vadd.f32 %v6906, %v6925
        %v6930 = vadd.f32 %v6907, %v6925
        %v6931 = vadd.f32 %v6908, %v6925
        %v6932 = vadd.f32 %v6909, %v6925
        %v6933 = vadd.f32 %v6910, %v6925
        %v6934 = vadd.f32 %v6911, %v6925
        %v6935 = vadd.f32 %v6912, %v6925
        %v6936 = vadd.f32 %v6913, %v6925
        %v6937 = vadd.f32 %v6914, %v6925
        %v6938 = vadd.f32 %v6915, %v6925
        %v6939 = vadd.f32 %v6916, %v6925
        %v6940 = vadd.f32 %v6917, %v6925
        %v6941 = vadd.f32 %v6918, %v6925
        %v6942 = vadd.f32 %v6919, %v6925
        %6943 = vadd.xlane.f32.xlu0 %v6927
        %v6944 = vpop.xlane.xlu0 %6943
        %6945 = vadd.xlane.f32.xlu0 %v6928
        %v6946 = vpop.xlane.xlu0 %6945
        %6947 = vadd.xlane.f32.xlu0 %v6929
        %v6948 = vpop.xlane.xlu0 %6947
        %6949 = vadd.xlane.f32.xlu0 %v6930
        %v6950 = vpop.xlane.xlu0 %6949
        %6951 = vadd.xlane.f32.xlu0 %v6931
        %v6952 = vpop.xlane.xlu0 %6951
        %6953 = vadd.xlane.f32.xlu0 %v6932
        %v6954 = vpop.xlane.xlu0 %6953
        %6955 = vadd.xlane.f32.xlu0 %v6933
        %v6956 = vpop.xlane.xlu0 %6955
        %6957 = vadd.xlane.f32.xlu0 %v6934
        %v6958 = vpop.xlane.xlu0 %6957
        %6959 = vadd.xlane.f32.xlu0 %v6935
        %v6960 = vpop.xlane.xlu0 %6959
        %6961 = vadd.xlane.f32.xlu0 %v6936
        %v6962 = vpop.xlane.xlu0 %6961
        %6963 = vadd.xlane.f32.xlu0 %v6937
        %v6964 = vpop.xlane.xlu0 %6963
        %6965 = vadd.xlane.f32.xlu0 %v6938
        %v6966 = vpop.xlane.xlu0 %6965
        %6967 = vadd.xlane.f32.xlu0 %v6939
        %v6968 = vpop.xlane.xlu0 %6967
        %6969 = vadd.xlane.f32.xlu0 %v6940
        %v6970 = vpop.xlane.xlu0 %6969
        %6971 = vadd.xlane.f32.xlu0 %v6941
        %v6972 = vpop.xlane.xlu0 %6971
        %6973 = vadd.xlane.f32.xlu0 %v6942
        %v6974 = vpop.xlane.xlu0 %6973
        %v6975 = vmul.f32 %v6944, %v3126
        %v6976 = vmul.f32 %v6946, %v3126
        %v6977 = vmul.f32 %v6948, %v3126
        %v6978 = vmul.f32 %v6950, %v3126
        %v6979 = vmul.f32 %v6952, %v3126
        %v6980 = vmul.f32 %v6954, %v3126
        %v6981 = vmul.f32 %v6956, %v3126
        %v6982 = vmul.f32 %v6958, %v3126
        %v6983 = vmul.f32 %v6960, %v3126
        %v6984 = vmul.f32 %v6962, %v3126
        %v6985 = vmul.f32 %v6964, %v3126
        %v6986 = vmul.f32 %v6966, %v3126
        %v6987 = vmul.f32 %v6968, %v3126
        %v6988 = vmul.f32 %v6970, %v3126
        %v6989 = vmul.f32 %v6972, %v3126
        %v6990 = vmul.f32 %v6974, %v3126
        %v6991 = vsub.f32 %v6927, %v6975
        %v6992 = vsub.f32 %v6928, %v6976
        %v6993 = vsub.f32 %v6929, %v6977
        %v6994 = vsub.f32 %v6930, %v6978
        %v6995 = vsub.f32 %v6931, %v6979
        %v6996 = vsub.f32 %v6932, %v6980
        %v6997 = vsub.f32 %v6933, %v6981
        %v6998 = vsub.f32 %v6934, %v6982
        %v6999 = vsub.f32 %v6935, %v6983
        %v7000 = vsub.f32 %v6936, %v6984
        %v7001 = vsub.f32 %v6937, %v6985
        %v7002 = vsub.f32 %v6938, %v6986
        %v7003 = vsub.f32 %v6939, %v6987
        %v7004 = vsub.f32 %v6940, %v6988
        %v7005 = vsub.f32 %v6941, %v6989
        %v7006 = vsub.f32 %v6942, %v6990
        %v7007 = vmul.f32 %v6991, %v6991
        %v7008 = vmul.f32 %v6992, %v6992
        %v7009 = vmul.f32 %v6993, %v6993
        %v7010 = vmul.f32 %v6994, %v6994
        %v7011 = vmul.f32 %v6995, %v6995
        %v7012 = vmul.f32 %v6996, %v6996
        %v7013 = vmul.f32 %v6997, %v6997
        %v7014 = vmul.f32 %v6998, %v6998
        %v7015 = vmul.f32 %v6999, %v6999
        %v7016 = vmul.f32 %v7000, %v7000
        %v7017 = vmul.f32 %v7001, %v7001
        %v7018 = vmul.f32 %v7002, %v7002
        %v7019 = vmul.f32 %v7003, %v7003
        %v7020 = vmul.f32 %v7004, %v7004
        %v7021 = vmul.f32 %v7005, %v7005
        %v7022 = vmul.f32 %v7006, %v7006
        %7023 = vadd.xlane.f32.xlu0 %v7007
        %v7024 = vpop.xlane.xlu0 %7023
        %7025 = vadd.xlane.f32.xlu0 %v7008
        %v7026 = vpop.xlane.xlu0 %7025
        %7027 = vadd.xlane.f32.xlu0 %v7009
        %v7028 = vpop.xlane.xlu0 %7027
        %7029 = vadd.xlane.f32.xlu0 %v7010
        %v7030 = vpop.xlane.xlu0 %7029
        %7031 = vadd.xlane.f32.xlu0 %v7011
        %v7032 = vpop.xlane.xlu0 %7031
        %7033 = vadd.xlane.f32.xlu0 %v7012
        %v7034 = vpop.xlane.xlu0 %7033
        %7035 = vadd.xlane.f32.xlu0 %v7013
        %v7036 = vpop.xlane.xlu0 %7035
        %7037 = vadd.xlane.f32.xlu0 %v7014
        %v7038 = vpop.xlane.xlu0 %7037
        %7039 = vadd.xlane.f32.xlu0 %v7015
        %v7040 = vpop.xlane.xlu0 %7039
        %7041 = vadd.xlane.f32.xlu0 %v7016
        %v7042 = vpop.xlane.xlu0 %7041
        %7043 = vadd.xlane.f32.xlu0 %v7017
        %v7044 = vpop.xlane.xlu0 %7043
        %7045 = vadd.xlane.f32.xlu0 %v7018
        %v7046 = vpop.xlane.xlu0 %7045
        %7047 = vadd.xlane.f32.xlu0 %v7019
        %v7048 = vpop.xlane.xlu0 %7047
        %7049 = vadd.xlane.f32.xlu0 %v7020
        %v7050 = vpop.xlane.xlu0 %7049
        %7051 = vadd.xlane.f32.xlu0 %v7021
        %v7052 = vpop.xlane.xlu0 %7051
        %7053 = vadd.xlane.f32.xlu0 %v7022
        %v7054 = vpop.xlane.xlu0 %7053
        %v7055 = vmul.f32 %v7024, %v3126
        %v7056 = vmul.f32 %v7026, %v3126
        %v7057 = vmul.f32 %v7028, %v3126
        %v7058 = vmul.f32 %v7030, %v3126
        %v7059 = vmul.f32 %v7032, %v3126
        %v7060 = vmul.f32 %v7034, %v3126
        %v7061 = vmul.f32 %v7036, %v3126
        %v7062 = vmul.f32 %v7038, %v3126
        %v7063 = vmul.f32 %v7040, %v3126
        %v7064 = vmul.f32 %v7042, %v3126
        %v7065 = vmul.f32 %v7044, %v3126
        %v7066 = vmul.f32 %v7046, %v3126
        %v7067 = vmul.f32 %v7048, %v3126
        %v7068 = vmul.f32 %v7050, %v3126
        %v7069 = vmul.f32 %v7052, %v3126
        %v7070 = vmul.f32 %v7054, %v3126
        %v7071 = vadd.f32 %v7055, 1e-05
        %v7072 = vadd.f32 %v7056, 1e-05
        %v7073 = vadd.f32 %v7057, 1e-05
        %v7074 = vadd.f32 %v7058, 1e-05
        %v7075 = vadd.f32 %v7059, 1e-05
        %v7076 = vadd.f32 %v7060, 1e-05
        %v7077 = vadd.f32 %v7061, 1e-05
        %v7078 = vadd.f32 %v7062, 1e-05
        %v7079 = vadd.f32 %v7063, 1e-05
        %v7080 = vadd.f32 %v7064, 1e-05
        %v7081 = vadd.f32 %v7065, 1e-05
        %v7082 = vadd.f32 %v7066, 1e-05
        %v7083 = vadd.f32 %v7067, 1e-05
        %v7084 = vadd.f32 %v7068, 1e-05
        %v7085 = vadd.f32 %v7069, 1e-05
        %v7086 = vadd.f32 %v7070, 1e-05
        %v7087 = vrsqrt.pop %v7071
        %v7088 = vrsqrt.pop %v7072
        %v7089 = vrsqrt.pop %v7073
        %v7090 = vrsqrt.pop %v7074
        %v7091 = vrsqrt.pop %v7075
        %v7092 = vrsqrt.pop %v7076
        %v7093 = vrsqrt.pop %v7077
        %v7094 = vrsqrt.pop %v7078
        %v7095 = vrsqrt.pop %v7079
        %v7096 = vrsqrt.pop %v7080
        %v7097 = vrsqrt.pop %v7081
        %v7098 = vrsqrt.pop %v7082
        %v7099 = vrsqrt.pop %v7083
        %v7100 = vrsqrt.pop %v7084
        %v7101 = vrsqrt.pop %v7085
        %v7102 = vrsqrt.pop %v7086
        %v7103 = vmul.f32 %v6991, %v7087
        %v7104 = vmul.f32 %v6992, %v7088
        %v7105 = vmul.f32 %v6993, %v7089
        %v7106 = vmul.f32 %v6994, %v7090
        %v7107 = vmul.f32 %v6995, %v7091
        %v7108 = vmul.f32 %v6996, %v7092
        %v7109 = vmul.f32 %v6997, %v7093
        %v7110 = vmul.f32 %v6998, %v7094
        %v7111 = vmul.f32 %v6999, %v7095
        %v7112 = vmul.f32 %v7000, %v7096
        %v7113 = vmul.f32 %v7001, %v7097
        %v7114 = vmul.f32 %v7002, %v7098
        %v7115 = vmul.f32 %v7003, %v7099
        %v7116 = vmul.f32 %v7004, %v7100
        %v7117 = vmul.f32 %v7005, %v7101
        %v7118 = vmul.f32 %v7006, %v7102
        %v7120 = vlaneseq
        %v7121 = vshrl.u32 %v7120, 7
        %v7122 = vsub.s32 0, %v7121
        %v7123 = vrot.slane %v524, %v7122
        %v7125 = vmul.f32 %v7103, %v7123
        %v7126 = vmul.f32 %v7104, %v7123
        %v7127 = vmul.f32 %v7105, %v7123
        %v7128 = vmul.f32 %v7106, %v7123
        %v7129 = vmul.f32 %v7107, %v7123
        %v7130 = vmul.f32 %v7108, %v7123
        %v7131 = vmul.f32 %v7109, %v7123
        %v7132 = vmul.f32 %v7110, %v7123
        %v7133 = vmul.f32 %v7111, %v7123
        %v7134 = vmul.f32 %v7112, %v7123
        %v7135 = vmul.f32 %v7113, %v7123
        %v7136 = vmul.f32 %v7114, %v7123
        %v7137 = vmul.f32 %v7115, %v7123
        %v7138 = vmul.f32 %v7116, %v7123
        %v7139 = vmul.f32 %v7117, %v7123
        %v7140 = vmul.f32 %v7118, %v7123
        %v7142 = vlaneseq
        %v7143 = vshrl.u32 %v7142, 7
        %v7144 = vsub.s32 0, %v7143
        %v7145 = vrot.slane %v525, %v7144
        %v7147 = vadd.f32 %v7125, %v7145
        %v7148 = vadd.f32 %v7126, %v7145
        %v7149 = vadd.f32 %v7127, %v7145
        %v7150 = vadd.f32 %v7128, %v7145
        %v7151 = vadd.f32 %v7129, %v7145
        %v7152 = vadd.f32 %v7130, %v7145
        %v7153 = vadd.f32 %v7131, %v7145
        %v7154 = vadd.f32 %v7132, %v7145
        %v7155 = vadd.f32 %v7133, %v7145
        %v7156 = vadd.f32 %v7134, %v7145
        %v7157 = vadd.f32 %v7135, %v7145
        %v7158 = vadd.f32 %v7136, %v7145
        %v7159 = vadd.f32 %v7137, %v7145
        %v7160 = vadd.f32 %v7138, %v7145
        %v7161 = vadd.f32 %v7139, %v7145
        %v7162 = vadd.f32 %v7140, %v7145
        %v7163 = vpack.c.bf16 %v7148, %v7147
        %v7164 = vpack.c.bf16 %v7150, %v7149
        %v7165 = vpack.c.bf16 %v7152, %v7151
        %v7166 = vpack.c.bf16 %v7154, %v7153
        %v7167 = vpack.c.bf16 %v7156, %v7155
        %v7168 = vpack.c.bf16 %v7158, %v7157
        %v7169 = vpack.c.bf16 %v7160, %v7159
        %v7170 = vpack.c.bf16 %v7162, %v7161
        %v7171 = vld [vmem:[%s10] sm:$0xff]
        %v7172 = vld [vmem:[%s10 + $0x8] sm:$0xff]
        %v7173 = vld [vmem:[%s10 + $0x10] sm:$0xff]
        %v7174 = vld [vmem:[%s10 + $0x18] sm:$0xff]
        %v7175 = vld [vmem:[%s10 + $0x20] sm:$0xff]
        %v7176 = vld [vmem:[%s10 + $0x28] sm:$0xff]
        %v7177 = vld [vmem:[%s10 + $0x30] sm:$0xff]
        %v7178 = vld [vmem:[%s10 + $0x38] sm:$0xff]
        %v7179 = vld [vmem:[%s10 + $0x40] sm:$0xff]
        %v7180 = vld [vmem:[%s10 + $0x48] sm:$0xff]
        %v7181 = vld [vmem:[%s10 + $0x50] sm:$0xff]
        %v7182 = vld [vmem:[%s10 + $0x58] sm:$0xff]
        %v7183 = vld [vmem:[%s10 + $0x60] sm:$0xff]
        %v7184 = vld [vmem:[%s10 + $0x68] sm:$0xff]
        %v7185 = vld [vmem:[%s10 + $0x70] sm:$0xff]
        %v7186 = vld [vmem:[%s10 + $0x78] sm:$0xff]
        %v7187 = vld [vmem:[%s10 + $0x80] sm:$0xff]
        %v7188 = vld [vmem:[%s10 + $0x88] sm:$0xff]
        %v7189 = vld [vmem:[%s10 + $0x90] sm:$0xff]
        %v7190 = vld [vmem:[%s10 + $0x98] sm:$0xff]
        %v7191 = vld [vmem:[%s10 + $0xa0] sm:$0xff]
        %v7192 = vld [vmem:[%s10 + $0xa8] sm:$0xff]
        %v7193 = vld [vmem:[%s10 + $0xb0] sm:$0xff]
        %v7194 = vld [vmem:[%s10 + $0xb8] sm:$0xff]
        %v7195 = vld [vmem:[%s10 + $0xc0] sm:$0xff]
        %v7196 = vld [vmem:[%s10 + $0xc8] sm:$0xff]
        %v7197 = vld [vmem:[%s10 + $0xd0] sm:$0xff]
        %v7198 = vld [vmem:[%s10 + $0xd8] sm:$0xff]
        %v7199 = vld [vmem:[%s10 + $0xe0] sm:$0xff]
        %v7200 = vld [vmem:[%s10 + $0xe8] sm:$0xff]
        %v7201 = vld [vmem:[%s10 + $0xf0] sm:$0xff]
        %v7202 = vld [vmem:[%s10 + $0xf8] sm:$0xff]
        %v7203 = vld [vmem:[%s11] sm:$0xf]
        %v7205 = vlaneseq
        %v7206 = vshrl.u32 %v7205, 7
        %v7207 = vsub.s32 0, %v7206
        %v7208 = vrot.slane %v7203, %v7207
        %v7209 = vlaneseq
        %v7210 = vshrl.u32 %v7209, 7
        %v7211 = vsub.s32 1, %v7210
        %v7212 = vrot.slane %v7203, %v7211
        %v7213 = vlaneseq
        %v7214 = vshrl.u32 %v7213, 7
        %v7215 = vsub.s32 2, %v7214
        %v7216 = vrot.slane %v7203, %v7215
        %v7217 = vlaneseq
        %v7218 = vshrl.u32 %v7217, 7
        %v7219 = vsub.s32 3, %v7218
        %v7220 = vrot.slane %v7203, %v7219
        %v7257 = vunpack.c.l.b16 %v7171
        %v7258 = vunpack.c.h.b16 %v7171
        %v7259 = vunpack.c.l.b16 %v7172
        %v7260 = vunpack.c.h.b16 %v7172
        %v7261 = vunpack.c.l.b16 %v7173
        %v7262 = vunpack.c.h.b16 %v7173
        %v7263 = vunpack.c.l.b16 %v7174
        %v7264 = vunpack.c.h.b16 %v7174
        %v7265 = vunpack.c.l.b16 %v7175
        %v7266 = vunpack.c.h.b16 %v7175
        %v7267 = vunpack.c.l.b16 %v7176
        %v7268 = vunpack.c.h.b16 %v7176
        %v7269 = vunpack.c.l.b16 %v7177
        %v7270 = vunpack.c.h.b16 %v7177
        %v7271 = vunpack.c.l.b16 %v7178
        %v7272 = vunpack.c.h.b16 %v7178
        %v7273 = vunpack.c.l.b16 %v7179
        %v7274 = vunpack.c.h.b16 %v7179
        %v7275 = vunpack.c.l.b16 %v7180
        %v7276 = vunpack.c.h.b16 %v7180
        %v7277 = vunpack.c.l.b16 %v7181
        %v7278 = vunpack.c.h.b16 %v7181
        %v7279 = vunpack.c.l.b16 %v7182
        %v7280 = vunpack.c.h.b16 %v7182
        %v7281 = vunpack.c.l.b16 %v7183
        %v7282 = vunpack.c.h.b16 %v7183
        %v7283 = vunpack.c.l.b16 %v7184
        %v7284 = vunpack.c.h.b16 %v7184
        %v7285 = vunpack.c.l.b16 %v7185
        %v7286 = vunpack.c.h.b16 %v7185
        %v7287 = vunpack.c.l.b16 %v7186
        %v7288 = vunpack.c.h.b16 %v7186
        %v7289 = vunpack.c.l.b16 %v7187
        %v7290 = vunpack.c.h.b16 %v7187
        %v7291 = vunpack.c.l.b16 %v7188
        %v7292 = vunpack.c.h.b16 %v7188
        %v7293 = vunpack.c.l.b16 %v7189
        %v7294 = vunpack.c.h.b16 %v7189
        %v7295 = vunpack.c.l.b16 %v7190
        %v7296 = vunpack.c.h.b16 %v7190
        %v7297 = vunpack.c.l.b16 %v7191
        %v7298 = vunpack.c.h.b16 %v7191
        %v7299 = vunpack.c.l.b16 %v7192
        %v7300 = vunpack.c.h.b16 %v7192
        %v7301 = vunpack.c.l.b16 %v7193
        %v7302 = vunpack.c.h.b16 %v7193
        %v7303 = vunpack.c.l.b16 %v7194
        %v7304 = vunpack.c.h.b16 %v7194
        %v7305 = vunpack.c.l.b16 %v7195
        %v7306 = vunpack.c.h.b16 %v7195
        %v7307 = vunpack.c.l.b16 %v7196
        %v7308 = vunpack.c.h.b16 %v7196
        %v7309 = vunpack.c.l.b16 %v7197
        %v7310 = vunpack.c.h.b16 %v7197
        %v7311 = vunpack.c.l.b16 %v7198
        %v7312 = vunpack.c.h.b16 %v7198
        %v7313 = vunpack.c.l.b16 %v7199
        %v7314 = vunpack.c.h.b16 %v7199
        %v7315 = vunpack.c.l.b16 %v7200
        %v7316 = vunpack.c.h.b16 %v7200
        %v7317 = vunpack.c.l.b16 %v7201
        %v7318 = vunpack.c.h.b16 %v7201
        %v7319 = vunpack.c.l.b16 %v7202
        %v7320 = vunpack.c.h.b16 %v7202
        %v7321 = vpack.c.b16 %v7261, %v7257
        %v7322 = vpack.c.b16 %v7262, %v7258
        %v7323 = vpack.c.b16 %v7263, %v7259
        %v7324 = vpack.c.b16 %v7264, %v7260
        %v7325 = vpack.c.b16 %v7269, %v7265
        %v7326 = vpack.c.b16 %v7270, %v7266
        %v7327 = vpack.c.b16 %v7271, %v7267
        %v7328 = vpack.c.b16 %v7272, %v7268
        %v7329 = vpack.c.b16 %v7277, %v7273
        %v7330 = vpack.c.b16 %v7278, %v7274
        %v7331 = vpack.c.b16 %v7279, %v7275
        %v7332 = vpack.c.b16 %v7280, %v7276
        %v7333 = vpack.c.b16 %v7285, %v7281
        %v7334 = vpack.c.b16 %v7286, %v7282
        %v7335 = vpack.c.b16 %v7287, %v7283
        %v7336 = vpack.c.b16 %v7288, %v7284
        %v7337 = vpack.c.b16 %v7293, %v7289
        %v7338 = vpack.c.b16 %v7294, %v7290
        %v7339 = vpack.c.b16 %v7295, %v7291
        %v7340 = vpack.c.b16 %v7296, %v7292
        %v7341 = vpack.c.b16 %v7301, %v7297
        %v7342 = vpack.c.b16 %v7302, %v7298
        %v7343 = vpack.c.b16 %v7303, %v7299
        %v7344 = vpack.c.b16 %v7304, %v7300
        %v7345 = vpack.c.b16 %v7309, %v7305
        %v7346 = vpack.c.b16 %v7310, %v7306
        %v7347 = vpack.c.b16 %v7311, %v7307
        %v7348 = vpack.c.b16 %v7312, %v7308
        %v7349 = vpack.c.b16 %v7317, %v7313
        %v7350 = vpack.c.b16 %v7318, %v7314
        %v7351 = vpack.c.b16 %v7319, %v7315
        %v7352 = vpack.c.b16 %v7320, %v7316
        %7385 = vmatprep.subr.bf16.mxu0 %v7322
        %7386 = vmatpush1.bf16.msra.mxu0 %v7321
        %7387 = vmatprep.subr.bf16.mxu0 %v7326
        %7388 = vmatpush1.bf16.msra.mxu0 %v7325
        %7389 = vmatprep.subr.bf16.mxu0 %v7330
        %7390 = vmatpush1.bf16.msra.mxu0 %v7329
        %7391 = vmatprep.subr.bf16.mxu0 %v7334
        %7392 = vmatpush1.bf16.msra.mxu0 %v7333
        %7393 = vmatprep.subr.bf16.mxu0 %v7338
        %7394 = vmatpush1.bf16.msra.mxu0 %v7337
        %7395 = vmatprep.subr.bf16.mxu0 %v7342
        %7396 = vmatpush1.bf16.msra.mxu0 %v7341
        %7397 = vmatprep.subr.bf16.mxu0 %v7346
        %7398 = vmatpush1.bf16.msra.mxu0 %v7345
        %7399 = vmatprep.subr.bf16.mxu0 %v7350
        %7400 = vmatpush1.bf16.msra.mxu0 %v7349
        %7401 = vmatprep.subr.bf16.mxu0 0
        %7402 = vmatpush1.bf16.msra.mxu0 0
        %7403 = vmatprep.subr.bf16.mxu0 0
        %7404 = vmatpush1.bf16.msra.mxu0 0
        %7405 = vmatprep.subr.bf16.mxu0 0
        %7406 = vmatpush1.bf16.msra.mxu0 0
        %7407 = vmatprep.subr.bf16.mxu0 0
        %7408 = vmatpush1.bf16.msra.mxu0 0
        %7409 = vmatprep.subr.bf16.mxu0 0
        %7410 = vmatpush1.bf16.msra.mxu0 0
        %7411 = vmatprep.subr.bf16.mxu0 0
        %7412 = vmatpush1.bf16.msra.mxu0 0
        %7413 = vmatprep.subr.bf16.mxu0 0
        %7414 = vmatpush1.bf16.msra.mxu0 0
        %7415 = vmatprep.subr.bf16.mxu0 0
        %7416 = vmatpush1.bf16.msra.mxu0 0
        %7417 = vmatprep.mubr.bf16.mxu0 0
        %7418 = vmatmul.mubr.bf16.gmra.mrb[0].mxu0 %v7163
        %v7419 = vpop.f32.mrb[0].mxu0
        %v7420 = vadd.f32 %v7208, %v7419
        %v7421 = vpop.f32.mrb[0].mxu0
        %v7422 = vadd.f32 %v7212, %v7421
        %v7423 = vpop.f32.mrb[0].mxu0
        %v7424 = vadd.f32 %v7208, %v7423
        %v7425 = vpop.f32.mrb[0].mxu0
        %v7426 = vadd.f32 %v7212, %v7425
        %7427 = vmatprep.mubr.bf16.mxu0 0
        %7428 = vmatmul.mubr.bf16.gmra.mrb[0].mxu0 %v7164
        %v7429 = vpop.f32.mrb[0].mxu0
        %v7430 = vadd.f32 %v7208, %v7429
        %v7431 = vpop.f32.mrb[0].mxu0
        %v7432 = vadd.f32 %v7212, %v7431
        %v7433 = vpop.f32.mrb[0].mxu0
        %v7434 = vadd.f32 %v7208, %v7433
        %v7435 = vpop.f32.mrb[0].mxu0
        %v7436 = vadd.f32 %v7212, %v7435
        %7437 = vmatprep.mubr.bf16.mxu0 0
        %7438 = vmatmul.mubr.bf16.gmra.mrb[0].mxu0 %v7165
        %v7439 = vpop.f32.mrb[0].mxu0
        %v7440 = vadd.f32 %v7208, %v7439
        %v7441 = vpop.f32.mrb[0].mxu0
        %v7442 = vadd.f32 %v7212, %v7441
        %v7443 = vpop.f32.mrb[0].mxu0
        %v7444 = vadd.f32 %v7208, %v7443
        %v7445 = vpop.f32.mrb[0].mxu0
        %v7446 = vadd.f32 %v7212, %v7445
        %7447 = vmatprep.mubr.bf16.mxu0 0
        %7448 = vmatmul.mubr.bf16.gmra.mrb[0].mxu0 %v7166
        %v7449 = vpop.f32.mrb[0].mxu0
        %v7450 = vadd.f32 %v7208, %v7449
        %v7451 = vpop.f32.mrb[0].mxu0
        %v7452 = vadd.f32 %v7212, %v7451
        %v7453 = vpop.f32.mrb[0].mxu0
        %v7454 = vadd.f32 %v7208, %v7453
        %v7455 = vpop.f32.mrb[0].mxu0
        %v7456 = vadd.f32 %v7212, %v7455
        %7457 = vmatprep.mubr.bf16.mxu0 0
        %7458 = vmatmul.mubr.bf16.gmra.mrb[0].mxu0 %v7167
        %v7459 = vpop.f32.mrb[0].mxu0
        %v7460 = vadd.f32 %v7208, %v7459
        %v7461 = vpop.f32.mrb[0].mxu0
        %v7462 = vadd.f32 %v7212, %v7461
        %v7463 = vpop.f32.mrb[0].mxu0
        %v7464 = vadd.f32 %v7208, %v7463
        %v7465 = vpop.f32.mrb[0].mxu0
        %v7466 = vadd.f32 %v7212, %v7465
        %7467 = vmatprep.mubr.bf16.mxu0 0
        %7468 = vmatmul.mubr.bf16.gmra.mrb[0].mxu0 %v7168
        %v7469 = vpop.f32.mrb[0].mxu0
        %v7470 = vadd.f32 %v7208, %v7469
        %v7471 = vpop.f32.mrb[0].mxu0
        %v7472 = vadd.f32 %v7212, %v7471
        %v7473 = vpop.f32.mrb[0].mxu0
        %v7474 = vadd.f32 %v7208, %v7473
        %v7475 = vpop.f32.mrb[0].mxu0
        %v7476 = vadd.f32 %v7212, %v7475
        %7477 = vmatprep.mubr.bf16.mxu0 0
        %7478 = vmatmul.mubr.bf16.gmra.mrb[0].mxu0 %v7169
        %v7479 = vpop.f32.mrb[0].mxu0
        %v7480 = vadd.f32 %v7208, %v7479
        %v7481 = vpop.f32.mrb[0].mxu0
        %v7482 = vadd.f32 %v7212, %v7481
        %v7483 = vpop.f32.mrb[0].mxu0
        %v7484 = vadd.f32 %v7208, %v7483
        %v7485 = vpop.f32.mrb[0].mxu0
        %v7486 = vadd.f32 %v7212, %v7485
        %7487 = vmatprep.mubr.bf16.mxu0 0
        %7488 = vmatmul.mubr.bf16.gmra.mrb[0].mxu0 %v7170
        %v7489 = vpop.f32.mrb[0].mxu0
        %v7490 = vadd.f32 %v7208, %v7489
        %v7491 = vpop.f32.mrb[0].mxu0
        %v7492 = vadd.f32 %v7212, %v7491
        %v7493 = vpop.f32.mrb[0].mxu0
        %v7494 = vadd.f32 %v7208, %v7493
        %v7495 = vpop.f32.mrb[0].mxu0
        %v7496 = vadd.f32 %v7212, %v7495
        %7497 = vdwg.mxu0
        %7498 = vmatprep.subr.bf16.mxu0 %v7324
        %7499 = vmatpush1.bf16.msra.mxu0 %v7323
        %7500 = vmatprep.subr.bf16.mxu0 %v7328
        %7501 = vmatpush1.bf16.msra.mxu0 %v7327
        %7502 = vmatprep.subr.bf16.mxu0 %v7332
        %7503 = vmatpush1.bf16.msra.mxu0 %v7331
        %7504 = vmatprep.subr.bf16.mxu0 %v7336
        %7505 = vmatpush1.bf16.msra.mxu0 %v7335
        %7506 = vmatprep.subr.bf16.mxu0 %v7340
        %7507 = vmatpush1.bf16.msra.mxu0 %v7339
        %7508 = vmatprep.subr.bf16.mxu0 %v7344
        %7509 = vmatpush1.bf16.msra.mxu0 %v7343
        %7510 = vmatprep.subr.bf16.mxu0 %v7348
        %7511 = vmatpush1.bf16.msra.mxu0 %v7347
        %7512 = vmatprep.subr.bf16.mxu0 %v7352
        %7513 = vmatpush1.bf16.msra.mxu0 %v7351
        %7514 = vmatprep.subr.bf16.mxu0 0
        %7515 = vmatpush1.bf16.msra.mxu0 0
        %7516 = vmatprep.subr.bf16.mxu0 0
        %7517 = vmatpush1.bf16.msra.mxu0 0
        %7518 = vmatprep.subr.bf16.mxu0 0
        %7519 = vmatpush1.bf16.msra.mxu0 0
        %7520 = vmatprep.subr.bf16.mxu0 0
        %7521 = vmatpush1.bf16.msra.mxu0 0
        %7522 = vmatprep.subr.bf16.mxu0 0
        %7523 = vmatpush1.bf16.msra.mxu0 0
        %7524 = vmatprep.subr.bf16.mxu0 0
        %7525 = vmatpush1.bf16.msra.mxu0 0
        %7526 = vmatprep.subr.bf16.mxu0 0
        %7527 = vmatpush1.bf16.msra.mxu0 0
        %7528 = vmatprep.subr.bf16.mxu0 0
        %7529 = vmatpush1.bf16.msra.mxu0 0
        %7530 = vmatprep.mubr.bf16.mxu0 0
        %7531 = vmatmul.mubr.bf16.gmra.mrb[0].mxu0 %v7163
        %v7532 = vpop.f32.mrb[0].mxu0
        %v7533 = vadd.f32 %v7216, %v7532
        %v7534 = vpop.f32.mrb[0].mxu0
        %v7535 = vadd.f32 %v7220, %v7534
        %v7536 = vpop.f32.mrb[0].mxu0
        %v7537 = vadd.f32 %v7216, %v7536
        %v7538 = vpop.f32.mrb[0].mxu0
        %v7539 = vadd.f32 %v7220, %v7538
        %7540 = vmatprep.mubr.bf16.mxu0 0
        %7541 = vmatmul.mubr.bf16.gmra.mrb[0].mxu0 %v7164
        %v7542 = vpop.f32.mrb[0].mxu0
        %v7543 = vadd.f32 %v7216, %v7542
        %v7544 = vpop.f32.mrb[0].mxu0
        %v7545 = vadd.f32 %v7220, %v7544
        %v7546 = vpop.f32.mrb[0].mxu0
        %v7547 = vadd.f32 %v7216, %v7546
        %v7548 = vpop.f32.mrb[0].mxu0
        %v7549 = vadd.f32 %v7220, %v7548
        %7550 = vmatprep.mubr.bf16.mxu0 0
        %7551 = vmatmul.mubr.bf16.gmra.mrb[0].mxu0 %v7165
        %v7552 = vpop.f32.mrb[0].mxu0
        %v7553 = vadd.f32 %v7216, %v7552
        %v7554 = vpop.f32.mrb[0].mxu0
        %v7555 = vadd.f32 %v7220, %v7554
        %v7556 = vpop.f32.mrb[0].mxu0
        %v7557 = vadd.f32 %v7216, %v7556
        %v7558 = vpop.f32.mrb[0].mxu0
        %v7559 = vadd.f32 %v7220, %v7558
        %7560 = vmatprep.mubr.bf16.mxu0 0
        %7561 = vmatmul.mubr.bf16.gmra.mrb[0].mxu0 %v7166
        %v7562 = vpop.f32.mrb[0].mxu0
        %v7563 = vadd.f32 %v7216, %v7562
        %v7564 = vpop.f32.mrb[0].mxu0
        %v7565 = vadd.f32 %v7220, %v7564
        %v7566 = vpop.f32.mrb[0].mxu0
        %v7567 = vadd.f32 %v7216, %v7566
        %v7568 = vpop.f32.mrb[0].mxu0
        %v7569 = vadd.f32 %v7220, %v7568
        %7570 = vmatprep.mubr.bf16.mxu0 0
        %7571 = vmatmul.mubr.bf16.gmra.mrb[0].mxu0 %v7167
        %v7572 = vpop.f32.mrb[0].mxu0
        %v7573 = vadd.f32 %v7216, %v7572
        %v7574 = vpop.f32.mrb[0].mxu0
        %v7575 = vadd.f32 %v7220, %v7574
        %v7576 = vpop.f32.mrb[0].mxu0
        %v7577 = vadd.f32 %v7216, %v7576
        %v7578 = vpop.f32.mrb[0].mxu0
        %v7579 = vadd.f32 %v7220, %v7578
        %7580 = vmatprep.mubr.bf16.mxu0 0
        %7581 = vmatmul.mubr.bf16.gmra.mrb[0].mxu0 %v7168
        %v7582 = vpop.f32.mrb[0].mxu0
        %v7583 = vadd.f32 %v7216, %v7582
        %v7584 = vpop.f32.mrb[0].mxu0
        %v7585 = vadd.f32 %v7220, %v7584
        %v7586 = vpop.f32.mrb[0].mxu0
        %v7587 = vadd.f32 %v7216, %v7586
        %v7588 = vpop.f32.mrb[0].mxu0
        %v7589 = vadd.f32 %v7220, %v7588
        %7590 = vmatprep.mubr.bf16.mxu0 0
        %7591 = vmatmul.mubr.bf16.gmra.mrb[0].mxu0 %v7169
        %v7592 = vpop.f32.mrb[0].mxu0
        %v7593 = vadd.f32 %v7216, %v7592
        %v7594 = vpop.f32.mrb[0].mxu0
        %v7595 = vadd.f32 %v7220, %v7594
        %v7596 = vpop.f32.mrb[0].mxu0
        %v7597 = vadd.f32 %v7216, %v7596
        %v7598 = vpop.f32.mrb[0].mxu0
        %v7599 = vadd.f32 %v7220, %v7598
        %7600 = vmatprep.mubr.bf16.mxu0 0
        %7601 = vmatmul.mubr.bf16.gmra.mrb[0].mxu0 %v7170
        %v7602 = vpop.f32.mrb[0].mxu0
        %v7603 = vadd.f32 %v7216, %v7602
        %v7604 = vpop.f32.mrb[0].mxu0
        %v7605 = vadd.f32 %v7220, %v7604
        %v7606 = vpop.f32.mrb[0].mxu0
        %v7607 = vadd.f32 %v7216, %v7606
        %v7608 = vpop.f32.mrb[0].mxu0
        %v7609 = vadd.f32 %v7220, %v7608
        %7610 = vdwg.mxu0
        %v7611 = vmul.f32 %v7420, 0.5
        %v7612 = vmul.f32 %v7422, 0.5
        %v7613 = vmul.f32 %v7533, 0.5
        %v7614 = vmul.f32 %v7535, 0.5
        %v7615 = vmul.f32 %v7424, 0.5
        %v7616 = vmul.f32 %v7426, 0.5
        %v7617 = vmul.f32 %v7537, 0.5
        %v7618 = vmul.f32 %v7539, 0.5
        %v7619 = vmul.f32 %v7430, 0.5
        %v7620 = vmul.f32 %v7432, 0.5
        %v7621 = vmul.f32 %v7543, 0.5
        %v7622 = vmul.f32 %v7545, 0.5
        %v7623 = vmul.f32 %v7434, 0.5
        %v7624 = vmul.f32 %v7436, 0.5
        %v7625 = vmul.f32 %v7547, 0.5
        %v7626 = vmul.f32 %v7549, 0.5
        %v7627 = vmul.f32 %v7440, 0.5
        %v7628 = vmul.f32 %v7442, 0.5
        %v7629 = vmul.f32 %v7553, 0.5
        %v7630 = vmul.f32 %v7555, 0.5
        %v7631 = vmul.f32 %v7444, 0.5
        %v7632 = vmul.f32 %v7446, 0.5
        %v7633 = vmul.f32 %v7557, 0.5
        %v7634 = vmul.f32 %v7559, 0.5
        %v7635 = vmul.f32 %v7450, 0.5
        %v7636 = vmul.f32 %v7452, 0.5
        %v7637 = vmul.f32 %v7563, 0.5
        %v7638 = vmul.f32 %v7565, 0.5
        %v7639 = vmul.f32 %v7454, 0.5
        %v7640 = vmul.f32 %v7456, 0.5
        %v7641 = vmul.f32 %v7567, 0.5
        %v7642 = vmul.f32 %v7569, 0.5
        %v7643 = vmul.f32 %v7460, 0.5
        %v7644 = vmul.f32 %v7462, 0.5
        %v7645 = vmul.f32 %v7573, 0.5
        %v7646 = vmul.f32 %v7575, 0.5
        %v7647 = vmul.f32 %v7464, 0.5
        %v7648 = vmul.f32 %v7466, 0.5
        %v7649 = vmul.f32 %v7577, 0.5
        %v7650 = vmul.f32 %v7579, 0.5
        %v7651 = vmul.f32 %v7470, 0.5
        %v7652 = vmul.f32 %v7472, 0.5
        %v7653 = vmul.f32 %v7583, 0.5
        %v7654 = vmul.f32 %v7585, 0.5
        %v7655 = vmul.f32 %v7474, 0.5
        %v7656 = vmul.f32 %v7476, 0.5
        %v7657 = vmul.f32 %v7587, 0.5
        %v7658 = vmul.f32 %v7589, 0.5
        %v7659 = vmul.f32 %v7480, 0.5
        %v7660 = vmul.f32 %v7482, 0.5
        %v7661 = vmul.f32 %v7593, 0.5
        %v7662 = vmul.f32 %v7595, 0.5
        %v7663 = vmul.f32 %v7484, 0.5
        %v7664 = vmul.f32 %v7486, 0.5
        %v7665 = vmul.f32 %v7597, 0.5
        %v7666 = vmul.f32 %v7599, 0.5
        %v7667 = vmul.f32 %v7490, 0.5
        %v7668 = vmul.f32 %v7492, 0.5
        %v7669 = vmul.f32 %v7603, 0.5
        %v7670 = vmul.f32 %v7605, 0.5
        %v7671 = vmul.f32 %v7494, 0.5
        %v7672 = vmul.f32 %v7496, 0.5
        %v7673 = vmul.f32 %v7607, 0.5
        %v7674 = vmul.f32 %v7609, 0.5
        %v7675 = vmul.f32 %v7420, 0.70710677
        %v7676 = vmul.f32 %v7422, 0.70710677
        %v7677 = vmul.f32 %v7533, 0.70710677
        %v7678 = vmul.f32 %v7535, 0.70710677
        %v7679 = vmul.f32 %v7424, 0.70710677
        %v7680 = vmul.f32 %v7426, 0.70710677
        %v7681 = vmul.f32 %v7537, 0.70710677
        %v7682 = vmul.f32 %v7539, 0.70710677
        %v7683 = vmul.f32 %v7430, 0.70710677
        %v7684 = vmul.f32 %v7432, 0.70710677
        %v7685 = vmul.f32 %v7543, 0.70710677
        %v7686 = vmul.f32 %v7545, 0.70710677
        %v7687 = vmul.f32 %v7434, 0.70710677
        %v7688 = vmul.f32 %v7436, 0.70710677
        %v7689 = vmul.f32 %v7547, 0.70710677
        %v7690 = vmul.f32 %v7549, 0.70710677
        %v7691 = vmul.f32 %v7440, 0.70710677
        %v7692 = vmul.f32 %v7442, 0.70710677
        %v7693 = vmul.f32 %v7553, 0.70710677
        %v7694 = vmul.f32 %v7555, 0.70710677
        %v7695 = vmul.f32 %v7444, 0.70710677
        %v7696 = vmul.f32 %v7446, 0.70710677
        %v7697 = vmul.f32 %v7557, 0.70710677
        %v7698 = vmul.f32 %v7559, 0.70710677
        %v7699 = vmul.f32 %v7450, 0.70710677
        %v7700 = vmul.f32 %v7452, 0.70710677
        %v7701 = vmul.f32 %v7563, 0.70710677
        %v7702 = vmul.f32 %v7565, 0.70710677
        %v7703 = vmul.f32 %v7454, 0.70710677
        %v7704 = vmul.f32 %v7456, 0.70710677
        %v7705 = vmul.f32 %v7567, 0.70710677
        %v7706 = vmul.f32 %v7569, 0.70710677
        %v7707 = vmul.f32 %v7460, 0.70710677
        %v7708 = vmul.f32 %v7462, 0.70710677
        %v7709 = vmul.f32 %v7573, 0.70710677
        %v7710 = vmul.f32 %v7575, 0.70710677
        %v7711 = vmul.f32 %v7464, 0.70710677
        %v7712 = vmul.f32 %v7466, 0.70710677
        %v7713 = vmul.f32 %v7577, 0.70710677
        %v7714 = vmul.f32 %v7579, 0.70710677
        %v7715 = vmul.f32 %v7470, 0.70710677
        %v7716 = vmul.f32 %v7472, 0.70710677
        %v7717 = vmul.f32 %v7583, 0.70710677
        %v7718 = vmul.f32 %v7585, 0.70710677
        %v7719 = vmul.f32 %v7474, 0.70710677
        %v7720 = vmul.f32 %v7476, 0.70710677
        %v7721 = vmul.f32 %v7587, 0.70710677
        %v7722 = vmul.f32 %v7589, 0.70710677
        %v7723 = vmul.f32 %v7480, 0.70710677
        %v7724 = vmul.f32 %v7482, 0.70710677
        %v7725 = vmul.f32 %v7593, 0.70710677
        %v7726 = vmul.f32 %v7595, 0.70710677
        %v7727 = vmul.f32 %v7484, 0.70710677
        %v7728 = vmul.f32 %v7486, 0.70710677
        %v7729 = vmul.f32 %v7597, 0.70710677
        %v7730 = vmul.f32 %v7599, 0.70710677
        %v7731 = vmul.f32 %v7490, 0.70710677
        %v7732 = vmul.f32 %v7492, 0.70710677
        %v7733 = vmul.f32 %v7603, 0.70710677
        %v7734 = vmul.f32 %v7605, 0.70710677
        %v7735 = vmul.f32 %v7494, 0.70710677
        %v7736 = vmul.f32 %v7496, 0.70710677
        %v7737 = vmul.f32 %v7607, 0.70710677
        %v7738 = vmul.f32 %v7609, 0.70710677
        %v7739 = verf.f32.pop %v7675
        %v7740 = verf.f32.pop %v7676
        %v7741 = verf.f32.pop %v7677
        %v7742 = verf.f32.pop %v7678
        %v7743 = verf.f32.pop %v7679
        %v7744 = verf.f32.pop %v7680
        %v7745 = verf.f32.pop %v7681
        %v7746 = verf.f32.pop %v7682
        %v7747 = verf.f32.pop %v7683
        %v7748 = verf.f32.pop %v7684
        %v7749 = verf.f32.pop %v7685
        %v7750 = verf.f32.pop %v7686
        %v7751 = verf.f32.pop %v7687
        %v7752 = verf.f32.pop %v7688
        %v7753 = verf.f32.pop %v7689
        %v7754 = verf.f32.pop %v7690
        %v7755 = verf.f32.pop %v7691
        %v7756 = verf.f32.pop %v7692
        %v7757 = verf.f32.pop %v7693
        %v7758 = verf.f32.pop %v7694
        %v7759 = verf.f32.pop %v7695
        %v7760 = verf.f32.pop %v7696
        %v7761 = verf.f32.pop %v7697
        %v7762 = verf.f32.pop %v7698
        %v7763 = verf.f32.pop %v7699
        %v7764 = verf.f32.pop %v7700
        %v7765 = verf.f32.pop %v7701
        %v7766 = verf.f32.pop %v7702
        %v7767 = verf.f32.pop %v7703
        %v7768 = verf.f32.pop %v7704
        %v7769 = verf.f32.pop %v7705
        %v7770 = verf.f32.pop %v7706
        %v7771 = verf.f32.pop %v7707
        %v7772 = verf.f32.pop %v7708
        %v7773 = verf.f32.pop %v7709
        %v7774 = verf.f32.pop %v7710
        %v7775 = verf.f32.pop %v7711
        %v7776 = verf.f32.pop %v7712
        %v7777 = verf.f32.pop %v7713
        %v7778 = verf.f32.pop %v7714
        %v7779 = verf.f32.pop %v7715
        %v7780 = verf.f32.pop %v7716
        %v7781 = verf.f32.pop %v7717
        %v7782 = verf.f32.pop %v7718
        %v7783 = verf.f32.pop %v7719
        %v7784 = verf.f32.pop %v7720
        %v7785 = verf.f32.pop %v7721
        %v7786 = verf.f32.pop %v7722
        %v7787 = verf.f32.pop %v7723
        %v7788 = verf.f32.pop %v7724
        %v7789 = verf.f32.pop %v7725
        %v7790 = verf.f32.pop %v7726
        %v7791 = verf.f32.pop %v7727
        %v7792 = verf.f32.pop %v7728
        %v7793 = verf.f32.pop %v7729
        %v7794 = verf.f32.pop %v7730
        %v7795 = verf.f32.pop %v7731
        %v7796 = verf.f32.pop %v7732
        %v7797 = verf.f32.pop %v7733
        %v7798 = verf.f32.pop %v7734
        %v7799 = verf.f32.pop %v7735
        %v7800 = verf.f32.pop %v7736
        %v7801 = verf.f32.pop %v7737
        %v7802 = verf.f32.pop %v7738
        %v7803 = vadd.f32 %v7739, 1.0
        %v7804 = vadd.f32 %v7740, 1.0
        %v7805 = vadd.f32 %v7741, 1.0
        %v7806 = vadd.f32 %v7742, 1.0
        %v7807 = vadd.f32 %v7743, 1.0
        %v7808 = vadd.f32 %v7744, 1.0
        %v7809 = vadd.f32 %v7745, 1.0
        %v7810 = vadd.f32 %v7746, 1.0
        %v7811 = vadd.f32 %v7747, 1.0
        %v7812 = vadd.f32 %v7748, 1.0
        %v7813 = vadd.f32 %v7749, 1.0
        %v7814 = vadd.f32 %v7750, 1.0
        %v7815 = vadd.f32 %v7751, 1.0
        %v7816 = vadd.f32 %v7752, 1.0
        %v7817 = vadd.f32 %v7753, 1.0
        %v7818 = vadd.f32 %v7754, 1.0
        %v7819 = vadd.f32 %v7755, 1.0
        %v7820 = vadd.f32 %v7756, 1.0
        %v7821 = vadd.f32 %v7757, 1.0
        %v7822 = vadd.f32 %v7758, 1.0
        %v7823 = vadd.f32 %v7759, 1.0
        %v7824 = vadd.f32 %v7760, 1.0
        %v7825 = vadd.f32 %v7761, 1.0
        %v7826 = vadd.f32 %v7762, 1.0
        %v7827 = vadd.f32 %v7763, 1.0
        %v7828 = vadd.f32 %v7764, 1.0
        %v7829 = vadd.f32 %v7765, 1.0
        %v7830 = vadd.f32 %v7766, 1.0
        %v7831 = vadd.f32 %v7767, 1.0
        %v7832 = vadd.f32 %v7768, 1.0
        %v7833 = vadd.f32 %v7769, 1.0
        %v7834 = vadd.f32 %v7770, 1.0
        %v7835 = vadd.f32 %v7771, 1.0
        %v7836 = vadd.f32 %v7772, 1.0
        %v7837 = vadd.f32 %v7773, 1.0
        %v7838 = vadd.f32 %v7774, 1.0
        %v7839 = vadd.f32 %v7775, 1.0
        %v7840 = vadd.f32 %v7776, 1.0
        %v7841 = vadd.f32 %v7777, 1.0
        %v7842 = vadd.f32 %v7778, 1.0
        %v7843 = vadd.f32 %v7779, 1.0
        %v7844 = vadd.f32 %v7780, 1.0
        %v7845 = vadd.f32 %v7781, 1.0
        %v7846 = vadd.f32 %v7782, 1.0
        %v7847 = vadd.f32 %v7783, 1.0
        %v7848 = vadd.f32 %v7784, 1.0
        %v7849 = vadd.f32 %v7785, 1.0
        %v7850 = vadd.f32 %v7786, 1.0
        %v7851 = vadd.f32 %v7787, 1.0
        %v7852 = vadd.f32 %v7788, 1.0
        %v7853 = vadd.f32 %v7789, 1.0
        %v7854 = vadd.f32 %v7790, 1.0
        %v7855 = vadd.f32 %v7791, 1.0
        %v7856 = vadd.f32 %v7792, 1.0
        %v7857 = vadd.f32 %v7793, 1.0
        %v7858 = vadd.f32 %v7794, 1.0
        %v7859 = vadd.f32 %v7795, 1.0
        %v7860 = vadd.f32 %v7796, 1.0
        %v7861 = vadd.f32 %v7797, 1.0
        %v7862 = vadd.f32 %v7798, 1.0
        %v7863 = vadd.f32 %v7799, 1.0
        %v7864 = vadd.f32 %v7800, 1.0
        %v7865 = vadd.f32 %v7801, 1.0
        %v7866 = vadd.f32 %v7802, 1.0
        %v7867 = vmul.f32 %v7611, %v7803
        %v7868 = vmul.f32 %v7612, %v7804
        %v7869 = vmul.f32 %v7613, %v7805
        %v7870 = vmul.f32 %v7614, %v7806
        %v7871 = vmul.f32 %v7615, %v7807
        %v7872 = vmul.f32 %v7616, %v7808
        %v7873 = vmul.f32 %v7617, %v7809
        %v7874 = vmul.f32 %v7618, %v7810
        %v7875 = vmul.f32 %v7619, %v7811
        %v7876 = vmul.f32 %v7620, %v7812
        %v7877 = vmul.f32 %v7621, %v7813
        %v7878 = vmul.f32 %v7622, %v7814
        %v7879 = vmul.f32 %v7623, %v7815
        %v7880 = vmul.f32 %v7624, %v7816
        %v7881 = vmul.f32 %v7625, %v7817
        %v7882 = vmul.f32 %v7626, %v7818
        %v7883 = vmul.f32 %v7627, %v7819
        %v7884 = vmul.f32 %v7628, %v7820
        %v7885 = vmul.f32 %v7629, %v7821
        %v7886 = vmul.f32 %v7630, %v7822
        %v7887 = vmul.f32 %v7631, %v7823
        %v7888 = vmul.f32 %v7632, %v7824
        %v7889 = vmul.f32 %v7633, %v7825
        %v7890 = vmul.f32 %v7634, %v7826
        %v7891 = vmul.f32 %v7635, %v7827
        %v7892 = vmul.f32 %v7636, %v7828
        %v7893 = vmul.f32 %v7637, %v7829
        %v7894 = vmul.f32 %v7638, %v7830
        %v7895 = vmul.f32 %v7639, %v7831
        %v7896 = vmul.f32 %v7640, %v7832
        %v7897 = vmul.f32 %v7641, %v7833
        %v7898 = vmul.f32 %v7642, %v7834
        %v7899 = vmul.f32 %v7643, %v7835
        %v7900 = vmul.f32 %v7644, %v7836
        %v7901 = vmul.f32 %v7645, %v7837
        %v7902 = vmul.f32 %v7646, %v7838
        %v7903 = vmul.f32 %v7647, %v7839
        %v7904 = vmul.f32 %v7648, %v7840
        %v7905 = vmul.f32 %v7649, %v7841
        %v7906 = vmul.f32 %v7650, %v7842
        %v7907 = vmul.f32 %v7651, %v7843
        %v7908 = vmul.f32 %v7652, %v7844
        %v7909 = vmul.f32 %v7653, %v7845
        %v7910 = vmul.f32 %v7654, %v7846
        %v7911 = vmul.f32 %v7655, %v7847
        %v7912 = vmul.f32 %v7656, %v7848
        %v7913 = vmul.f32 %v7657, %v7849
        %v7914 = vmul.f32 %v7658, %v7850
        %v7915 = vmul.f32 %v7659, %v7851
        %v7916 = vmul.f32 %v7660, %v7852
        %v7917 = vmul.f32 %v7661, %v7853
        %v7918 = vmul.f32 %v7662, %v7854
        %v7919 = vmul.f32 %v7663, %v7855
        %v7920 = vmul.f32 %v7664, %v7856
        %v7921 = vmul.f32 %v7665, %v7857
        %v7922 = vmul.f32 %v7666, %v7858
        %v7923 = vmul.f32 %v7667, %v7859
        %v7924 = vmul.f32 %v7668, %v7860
        %v7925 = vmul.f32 %v7669, %v7861
        %v7926 = vmul.f32 %v7670, %v7862
        %v7927 = vmul.f32 %v7671, %v7863
        %v7928 = vmul.f32 %v7672, %v7864
        %v7929 = vmul.f32 %v7673, %v7865
        %v7930 = vmul.f32 %v7674, %v7866
        %v7931 = vpack.c.bf16 %v7871, %v7867
        %v7932 = vpack.c.bf16 %v7872, %v7868
        %v7933 = vpack.c.bf16 %v7873, %v7869
        %v7934 = vpack.c.bf16 %v7874, %v7870
        %v7935 = vpack.c.bf16 %v7879, %v7875
        %v7936 = vpack.c.bf16 %v7880, %v7876
        %v7937 = vpack.c.bf16 %v7881, %v7877
        %v7938 = vpack.c.bf16 %v7882, %v7878
        %v7939 = vpack.c.bf16 %v7887, %v7883
        %v7940 = vpack.c.bf16 %v7888, %v7884
        %v7941 = vpack.c.bf16 %v7889, %v7885
        %v7942 = vpack.c.bf16 %v7890, %v7886
        %v7943 = vpack.c.bf16 %v7895, %v7891
        %v7944 = vpack.c.bf16 %v7896, %v7892
        %v7945 = vpack.c.bf16 %v7897, %v7893
        %v7946 = vpack.c.bf16 %v7898, %v7894
        %v7947 = vpack.c.bf16 %v7903, %v7899
        %v7948 = vpack.c.bf16 %v7904, %v7900
        %v7949 = vpack.c.bf16 %v7905, %v7901
        %v7950 = vpack.c.bf16 %v7906, %v7902
        %v7951 = vpack.c.bf16 %v7911, %v7907
        %v7952 = vpack.c.bf16 %v7912, %v7908
        %v7953 = vpack.c.bf16 %v7913, %v7909
        %v7954 = vpack.c.bf16 %v7914, %v7910
        %v7955 = vpack.c.bf16 %v7919, %v7915
        %v7956 = vpack.c.bf16 %v7920, %v7916
        %v7957 = vpack.c.bf16 %v7921, %v7917
        %v7958 = vpack.c.bf16 %v7922, %v7918
        %v7959 = vpack.c.bf16 %v7927, %v7923
        %v7960 = vpack.c.bf16 %v7928, %v7924
        %v7961 = vpack.c.bf16 %v7929, %v7925
        %v7962 = vpack.c.bf16 %v7930, %v7926
        %v7963 = vld [vmem:[#allocation9] sm:$0xf]
        %v7964 = vld [vmem:[#allocation9 + $0x4] sm:$0xf]
        %v7965 = vld [vmem:[#allocation9 + $0x8] sm:$0xf]
        %v7966 = vld [vmem:[#allocation9 + $0xc] sm:$0xf]
        %v7967 = vld [vmem:[#allocation9 + $0x10] sm:$0xf]
        %v7968 = vld [vmem:[#allocation9 + $0x14] sm:$0xf]
        %v7969 = vld [vmem:[#allocation9 + $0x18] sm:$0xf]
        %v7970 = vld [vmem:[#allocation9 + $0x1c] sm:$0xf]
        %v7971 = vld [vmem:[#allocation9 + $0x20] sm:$0xf]
        %v7972 = vld [vmem:[#allocation9 + $0x24] sm:$0xf]
        %v7973 = vld [vmem:[#allocation9 + $0x28] sm:$0xf]
        %v7974 = vld [vmem:[#allocation9 + $0x2c] sm:$0xf]
        %v7975 = vld [vmem:[#allocation9 + $0x30] sm:$0xf]
        %v7976 = vld [vmem:[#allocation9 + $0x34] sm:$0xf]
        %v7977 = vld [vmem:[#allocation9 + $0x38] sm:$0xf]
        %v7978 = vld [vmem:[#allocation9 + $0x3c] sm:$0xf]
        %v7979 = vld [vmem:[#allocation9 + $0x40] sm:$0xf]
        %v7980 = vld [vmem:[#allocation9 + $0x44] sm:$0xf]
        %v7981 = vld [vmem:[#allocation9 + $0x48] sm:$0xf]
        %v7982 = vld [vmem:[#allocation9 + $0x4c] sm:$0xf]
        %v7983 = vld [vmem:[#allocation9 + $0x50] sm:$0xf]
        %v7984 = vld [vmem:[#allocation9 + $0x54] sm:$0xf]
        %v7985 = vld [vmem:[#allocation9 + $0x58] sm:$0xf]
        %v7986 = vld [vmem:[#allocation9 + $0x5c] sm:$0xf]
        %v7987 = vld [vmem:[#allocation9 + $0x60] sm:$0xf]
        %v7988 = vld [vmem:[#allocation9 + $0x64] sm:$0xf]
        %v7989 = vld [vmem:[#allocation9 + $0x68] sm:$0xf]
        %v7990 = vld [vmem:[#allocation9 + $0x6c] sm:$0xf]
        %v7991 = vld [vmem:[#allocation9 + $0x70] sm:$0xf]
        %v7992 = vld [vmem:[#allocation9 + $0x74] sm:$0xf]
        %v7993 = vld [vmem:[#allocation9 + $0x78] sm:$0xf]
        %v7994 = vld [vmem:[#allocation9 + $0x7c] sm:$0xf]
        %v7995 = vld [vmem:[#allocation9 + $0x80] sm:$0xf]
        %v7996 = vld [vmem:[#allocation9 + $0x84] sm:$0xf]
        %v7997 = vld [vmem:[#allocation9 + $0x88] sm:$0xf]
        %v7998 = vld [vmem:[#allocation9 + $0x8c] sm:$0xf]
        %v7999 = vld [vmem:[#allocation9 + $0x90] sm:$0xf]
        %v8000 = vld [vmem:[#allocation9 + $0x94] sm:$0xf]
        %v8001 = vld [vmem:[#allocation9 + $0x98] sm:$0xf]
        %v8002 = vld [vmem:[#allocation9 + $0x9c] sm:$0xf]
        %v8003 = vld [vmem:[#allocation9 + $0xa0] sm:$0xf]
        %v8004 = vld [vmem:[#allocation9 + $0xa4] sm:$0xf]
        %v8005 = vld [vmem:[#allocation9 + $0xa8] sm:$0xf]
        %v8006 = vld [vmem:[#allocation9 + $0xac] sm:$0xf]
        %v8007 = vld [vmem:[#allocation9 + $0xb0] sm:$0xf]
        %v8008 = vld [vmem:[#allocation9 + $0xb4] sm:$0xf]
        %v8009 = vld [vmem:[#allocation9 + $0xb8] sm:$0xf]
        %v8010 = vld [vmem:[#allocation9 + $0xbc] sm:$0xf]
        %v8011 = vld [vmem:[#allocation9 + $0xc0] sm:$0xf]
        %v8012 = vld [vmem:[#allocation9 + $0xc4] sm:$0xf]
        %v8013 = vld [vmem:[#allocation9 + $0xc8] sm:$0xf]
        %v8014 = vld [vmem:[#allocation9 + $0xcc] sm:$0xf]
        %v8015 = vld [vmem:[#allocation9 + $0xd0] sm:$0xf]
        %v8016 = vld [vmem:[#allocation9 + $0xd4] sm:$0xf]
        %v8017 = vld [vmem:[#allocation9 + $0xd8] sm:$0xf]
        %v8018 = vld [vmem:[#allocation9 + $0xdc] sm:$0xf]
        %v8019 = vld [vmem:[#allocation9 + $0xe0] sm:$0xf]
        %v8020 = vld [vmem:[#allocation9 + $0xe4] sm:$0xf]
        %v8021 = vld [vmem:[#allocation9 + $0xe8] sm:$0xf]
        %v8022 = vld [vmem:[#allocation9 + $0xec] sm:$0xf]
        %v8023 = vld [vmem:[#allocation9 + $0xf0] sm:$0xf]
        %v8024 = vld [vmem:[#allocation9 + $0xf4] sm:$0xf]
        %v8025 = vld [vmem:[#allocation9 + $0xf8] sm:$0xf]
        %v8026 = vld [vmem:[#allocation9 + $0xfc] sm:$0xf]
        %v8027 = vld [vmem:[%s13] sm:$0x1]
        %v8029 = vlaneseq
        %v8030 = vshrl.u32 %v8029, 7
        %v8031 = vsub.s32 0, %v8030
        %v8032 = vrot.slane %v8027, %v8031
        %v8098 = vunpack.c.l.b16 %v7963
        %v8099 = vunpack.c.l.b16 %v7964
        %v8100 = vunpack.c.l.b16 %v7965
        %v8101 = vunpack.c.l.b16 %v7966
        %v8102 = vunpack.c.l.b16 %v7967
        %v8103 = vunpack.c.l.b16 %v7968
        %v8104 = vunpack.c.l.b16 %v7969
        %v8105 = vunpack.c.l.b16 %v7970
        %v8106 = vunpack.c.l.b16 %v7971
        %v8107 = vunpack.c.l.b16 %v7972
        %v8108 = vunpack.c.l.b16 %v7973
        %v8109 = vunpack.c.l.b16 %v7974
        %v8110 = vunpack.c.l.b16 %v7975
        %v8111 = vunpack.c.l.b16 %v7976
        %v8112 = vunpack.c.l.b16 %v7977
        %v8113 = vunpack.c.l.b16 %v7978
        %v8114 = vunpack.c.l.b16 %v7979
        %v8115 = vunpack.c.l.b16 %v7980
        %v8116 = vunpack.c.l.b16 %v7981
        %v8117 = vunpack.c.l.b16 %v7982
        %v8118 = vunpack.c.l.b16 %v7983
        %v8119 = vunpack.c.l.b16 %v7984
        %v8120 = vunpack.c.l.b16 %v7985
        %v8121 = vunpack.c.l.b16 %v7986
        %v8122 = vunpack.c.l.b16 %v7987
        %v8123 = vunpack.c.l.b16 %v7988
        %v8124 = vunpack.c.l.b16 %v7989
        %v8125 = vunpack.c.l.b16 %v7990
        %v8126 = vunpack.c.l.b16 %v7991
        %v8127 = vunpack.c.l.b16 %v7992
        %v8128 = vunpack.c.l.b16 %v7993
        %v8129 = vunpack.c.l.b16 %v7994
        %v8130 = vunpack.c.l.b16 %v7995
        %v8131 = vunpack.c.l.b16 %v7996
        %v8132 = vunpack.c.l.b16 %v7997
        %v8133 = vunpack.c.l.b16 %v7998
        %v8134 = vunpack.c.l.b16 %v7999
        %v8135 = vunpack.c.l.b16 %v8000
        %v8136 = vunpack.c.l.b16 %v8001
        %v8137 = vunpack.c.l.b16 %v8002
        %v8138 = vunpack.c.l.b16 %v8003
        %v8139 = vunpack.c.l.b16 %v8004
        %v8140 = vunpack.c.l.b16 %v8005
        %v8141 = vunpack.c.l.b16 %v8006
        %v8142 = vunpack.c.l.b16 %v8007
        %v8143 = vunpack.c.l.b16 %v8008
        %v8144 = vunpack.c.l.b16 %v8009
        %v8145 = vunpack.c.l.b16 %v8010
        %v8146 = vunpack.c.l.b16 %v8011
        %v8147 = vunpack.c.l.b16 %v8012
        %v8148 = vunpack.c.l.b16 %v8013
        %v8149 = vunpack.c.l.b16 %v8014
        %v8150 = vunpack.c.l.b16 %v8015
        %v8151 = vunpack.c.l.b16 %v8016
        %v8152 = vunpack.c.l.b16 %v8017
        %v8153 = vunpack.c.l.b16 %v8018
        %v8154 = vunpack.c.l.b16 %v8019
        %v8155 = vunpack.c.l.b16 %v8020
        %v8156 = vunpack.c.l.b16 %v8021
        %v8157 = vunpack.c.l.b16 %v8022
        %v8158 = vunpack.c.l.b16 %v8023
        %v8159 = vunpack.c.l.b16 %v8024
        %v8160 = vunpack.c.l.b16 %v8025
        %v8161 = vunpack.c.l.b16 %v8026
        %v8162 = vpack.c.b16 %v8099, %v8098
        %v8163 = vpack.c.b16 %v8101, %v8100
        %v8164 = vpack.c.b16 %v8103, %v8102
        %v8165 = vpack.c.b16 %v8105, %v8104
        %v8166 = vpack.c.b16 %v8107, %v8106
        %v8167 = vpack.c.b16 %v8109, %v8108
        %v8168 = vpack.c.b16 %v8111, %v8110
        %v8169 = vpack.c.b16 %v8113, %v8112
        %v8170 = vpack.c.b16 %v8115, %v8114
        %v8171 = vpack.c.b16 %v8117, %v8116
        %v8172 = vpack.c.b16 %v8119, %v8118
        %v8173 = vpack.c.b16 %v8121, %v8120
        %v8174 = vpack.c.b16 %v8123, %v8122
        %v8175 = vpack.c.b16 %v8125, %v8124
        %v8176 = vpack.c.b16 %v8127, %v8126
        %v8177 = vpack.c.b16 %v8129, %v8128
        %v8178 = vpack.c.b16 %v8131, %v8130
        %v8179 = vpack.c.b16 %v8133, %v8132
        %v8180 = vpack.c.b16 %v8135, %v8134
        %v8181 = vpack.c.b16 %v8137, %v8136
        %v8182 = vpack.c.b16 %v8139, %v8138
        %v8183 = vpack.c.b16 %v8141, %v8140
        %v8184 = vpack.c.b16 %v8143, %v8142
        %v8185 = vpack.c.b16 %v8145, %v8144
        %v8186 = vpack.c.b16 %v8147, %v8146
        %v8187 = vpack.c.b16 %v8149, %v8148
        %v8188 = vpack.c.b16 %v8151, %v8150
        %v8189 = vpack.c.b16 %v8153, %v8152
        %v8190 = vpack.c.b16 %v8155, %v8154
        %v8191 = vpack.c.b16 %v8157, %v8156
        %v8192 = vpack.c.b16 %v8159, %v8158
        %v8193 = vpack.c.b16 %v8161, %v8160
        %8226 = vmatprep.subr.bf16.mxu0 0
        %8227 = vmatpush1.bf16.msra.mxu0 %v8162
        %8228 = vmatprep.subr.bf16.mxu0 0
        %8229 = vmatpush1.bf16.msra.mxu0 %v8163
        %8230 = vmatprep.subr.bf16.mxu0 0
        %8231 = vmatpush1.bf16.msra.mxu0 %v8164
        %8232 = vmatprep.subr.bf16.mxu0 0
        %8233 = vmatpush1.bf16.msra.mxu0 %v8165
        %8234 = vmatprep.subr.bf16.mxu0 0
        %8235 = vmatpush1.bf16.msra.mxu0 %v8166
        %8236 = vmatprep.subr.bf16.mxu0 0
        %8237 = vmatpush1.bf16.msra.mxu0 %v8167
        %8238 = vmatprep.subr.bf16.mxu0 0
        %8239 = vmatpush1.bf16.msra.mxu0 %v8168
        %8240 = vmatprep.subr.bf16.mxu0 0
        %8241 = vmatpush1.bf16.msra.mxu0 %v8169
        %8242 = vmatprep.subr.bf16.mxu0 0
        %8243 = vmatpush1.bf16.msra.mxu0 %v8170
        %8244 = vmatprep.subr.bf16.mxu0 0
        %8245 = vmatpush1.bf16.msra.mxu0 %v8171
        %8246 = vmatprep.subr.bf16.mxu0 0
        %8247 = vmatpush1.bf16.msra.mxu0 %v8172
        %8248 = vmatprep.subr.bf16.mxu0 0
        %8249 = vmatpush1.bf16.msra.mxu0 %v8173
        %8250 = vmatprep.subr.bf16.mxu0 0
        %8251 = vmatpush1.bf16.msra.mxu0 %v8174
        %8252 = vmatprep.subr.bf16.mxu0 0
        %8253 = vmatpush1.bf16.msra.mxu0 %v8175
        %8254 = vmatprep.subr.bf16.mxu0 0
        %8255 = vmatpush1.bf16.msra.mxu0 %v8176
        %8256 = vmatprep.subr.bf16.mxu0 0
        %8257 = vmatpush1.bf16.msra.mxu0 %v8177
        %8258 = vmatprep.mubr.bf16.mxu0 %v7932
        %8259 = vmatmul.mubr.bf16.gmra.mrb[0].mxu0 %v7931
        %v8260 = vpop.f32.mrb[0].mxu0
        %v8261 = vadd.f32 %v8032, %v8260
        %v8262 = vpop.f32.mrb[0].mxu0
        %v8263 = vpop.f32.mrb[0].mxu0
        %v8264 = vadd.f32 %v8032, %v8263
        %v8265 = vpop.f32.mrb[0].mxu0
        %8266 = vmatprep.mubr.bf16.mxu0 %v7936
        %8267 = vmatmul.mubr.bf16.gmra.mrb[0].mxu0 %v7935
        %v8268 = vpop.f32.mrb[0].mxu0
        %v8269 = vadd.f32 %v8032, %v8268
        %v8270 = vpop.f32.mrb[0].mxu0
        %v8271 = vpop.f32.mrb[0].mxu0
        %v8272 = vadd.f32 %v8032, %v8271
        %v8273 = vpop.f32.mrb[0].mxu0
        %8274 = vmatprep.mubr.bf16.mxu0 %v7940
        %8275 = vmatmul.mubr.bf16.gmra.mrb[0].mxu0 %v7939
        %v8276 = vpop.f32.mrb[0].mxu0
        %v8277 = vadd.f32 %v8032, %v8276
        %v8278 = vpop.f32.mrb[0].mxu0
        %v8279 = vpop.f32.mrb[0].mxu0
        %v8280 = vadd.f32 %v8032, %v8279
        %v8281 = vpop.f32.mrb[0].mxu0
        %8282 = vmatprep.mubr.bf16.mxu0 %v7944
        %8283 = vmatmul.mubr.bf16.gmra.mrb[0].mxu0 %v7943
        %v8284 = vpop.f32.mrb[0].mxu0
        %v8285 = vadd.f32 %v8032, %v8284
        %v8286 = vpop.f32.mrb[0].mxu0
        %v8287 = vpop.f32.mrb[0].mxu0
        %v8288 = vadd.f32 %v8032, %v8287
        %v8289 = vpop.f32.mrb[0].mxu0
        %8290 = vmatprep.mubr.bf16.mxu0 %v7948
        %8291 = vmatmul.mubr.bf16.gmra.mrb[0].mxu0 %v7947
        %v8292 = vpop.f32.mrb[0].mxu0
        %v8293 = vadd.f32 %v8032, %v8292
        %v8294 = vpop.f32.mrb[0].mxu0
        %v8295 = vpop.f32.mrb[0].mxu0
        %v8296 = vadd.f32 %v8032, %v8295
        %v8297 = vpop.f32.mrb[0].mxu0
        %8298 = vmatprep.mubr.bf16.mxu0 %v7952
        %8299 = vmatmul.mubr.bf16.gmra.mrb[0].mxu0 %v7951
        %v8300 = vpop.f32.mrb[0].mxu0
        %v8301 = vadd.f32 %v8032, %v8300
        %v8302 = vpop.f32.mrb[0].mxu0
        %v8303 = vpop.f32.mrb[0].mxu0
        %v8304 = vadd.f32 %v8032, %v8303
        %v8305 = vpop.f32.mrb[0].mxu0
        %8306 = vmatprep.mubr.bf16.mxu0 %v7956
        %8307 = vmatmul.mubr.bf16.gmra.mrb[0].mxu0 %v7955
        %v8308 = vpop.f32.mrb[0].mxu0
        %v8309 = vadd.f32 %v8032, %v8308
        %v8310 = vpop.f32.mrb[0].mxu0
        %v8311 = vpop.f32.mrb[0].mxu0
        %v8312 = vadd.f32 %v8032, %v8311
        %v8313 = vpop.f32.mrb[0].mxu0
        %8314 = vmatprep.mubr.bf16.mxu0 %v7960
        %8315 = vmatmul.mubr.bf16.gmra.mrb[0].mxu0 %v7959
        %v8316 = vpop.f32.mrb[0].mxu0
        %v8317 = vadd.f32 %v8032, %v8316
        %v8318 = vpop.f32.mrb[0].mxu0
        %v8319 = vpop.f32.mrb[0].mxu0
        %v8320 = vadd.f32 %v8032, %v8319
        %v8321 = vpop.f32.mrb[0].mxu0
        %8322 = vdwg.mxu0
        %8323 = vmatprep.subr.bf16.mxu0 0
        %8324 = vmatpush1.bf16.msra.mxu0 %v8178
        %8325 = vmatprep.subr.bf16.mxu0 0
        %8326 = vmatpush1.bf16.msra.mxu0 %v8179
        %8327 = vmatprep.subr.bf16.mxu0 0
        %8328 = vmatpush1.bf16.msra.mxu0 %v8180
        %8329 = vmatprep.subr.bf16.mxu0 0
        %8330 = vmatpush1.bf16.msra.mxu0 %v8181
        %8331 = vmatprep.subr.bf16.mxu0 0
        %8332 = vmatpush1.bf16.msra.mxu0 %v8182
        %8333 = vmatprep.subr.bf16.mxu0 0
        %8334 = vmatpush1.bf16.msra.mxu0 %v8183
        %8335 = vmatprep.subr.bf16.mxu0 0
        %8336 = vmatpush1.bf16.msra.mxu0 %v8184
        %8337 = vmatprep.subr.bf16.mxu0 0
        %8338 = vmatpush1.bf16.msra.mxu0 %v8185
        %8339 = vmatprep.subr.bf16.mxu0 0
        %8340 = vmatpush1.bf16.msra.mxu0 %v8186
        %8341 = vmatprep.subr.bf16.mxu0 0
        %8342 = vmatpush1.bf16.msra.mxu0 %v8187
        %8343 = vmatprep.subr.bf16.mxu0 0
        %8344 = vmatpush1.bf16.msra.mxu0 %v8188
        %8345 = vmatprep.subr.bf16.mxu0 0
        %8346 = vmatpush1.bf16.msra.mxu0 %v8189
        %8347 = vmatprep.subr.bf16.mxu0 0
        %8348 = vmatpush1.bf16.msra.mxu0 %v8190
        %8349 = vmatprep.subr.bf16.mxu0 0
        %8350 = vmatpush1.bf16.msra.mxu0 %v8191
        %8351 = vmatprep.subr.bf16.mxu0 0
        %8352 = vmatpush1.bf16.msra.mxu0 %v8192
        %8353 = vmatprep.subr.bf16.mxu0 0
        %8354 = vmatpush1.bf16.msra.mxu0 %v8193
        %8355 = vmatprep.mubr.bf16.mxu0 %v7934
        %8356 = vmatmul.mubr.bf16.gmra.mrb[0].mxu0 %v7933
        %v8357 = vpop.f32.mrb[0].mxu0
        %v8358 = vadd.f32 %v8261, %v8357
        %v8359 = vpop.f32.mrb[0].mxu0
        %v8360 = vpop.f32.mrb[0].mxu0
        %v8361 = vadd.f32 %v8264, %v8360
        %v8362 = vpop.f32.mrb[0].mxu0
        %8363 = vmatprep.mubr.bf16.mxu0 %v7938
        %8364 = vmatmul.mubr.bf16.gmra.mrb[0].mxu0 %v7937
        %v8365 = vpop.f32.mrb[0].mxu0
        %v8366 = vadd.f32 %v8269, %v8365
        %v8367 = vpop.f32.mrb[0].mxu0
        %v8368 = vpop.f32.mrb[0].mxu0
        %v8369 = vadd.f32 %v8272, %v8368
        %v8370 = vpop.f32.mrb[0].mxu0
        %8371 = vmatprep.mubr.bf16.mxu0 %v7942
        %8372 = vmatmul.mubr.bf16.gmra.mrb[0].mxu0 %v7941
        %v8373 = vpop.f32.mrb[0].mxu0
        %v8374 = vadd.f32 %v8277, %v8373
        %v8375 = vpop.f32.mrb[0].mxu0
        %v8376 = vpop.f32.mrb[0].mxu0
        %v8377 = vadd.f32 %v8280, %v8376
        %v8378 = vpop.f32.mrb[0].mxu0
        %8379 = vmatprep.mubr.bf16.mxu0 %v7946
        %8380 = vmatmul.mubr.bf16.gmra.mrb[0].mxu0 %v7945
        %v8381 = vpop.f32.mrb[0].mxu0
        %v8382 = vadd.f32 %v8285, %v8381
        %v8383 = vpop.f32.mrb[0].mxu0
        %v8384 = vpop.f32.mrb[0].mxu0
        %v8385 = vadd.f32 %v8288, %v8384
        %v8386 = vpop.f32.mrb[0].mxu0
        %8387 = vmatprep.mubr.bf16.mxu0 %v7950
        %8388 = vmatmul.mubr.bf16.gmra.mrb[0].mxu0 %v7949
        %v8389 = vpop.f32.mrb[0].mxu0
        %v8390 = vadd.f32 %v8293, %v8389
        %v8391 = vpop.f32.mrb[0].mxu0
        %v8392 = vpop.f32.mrb[0].mxu0
        %v8393 = vadd.f32 %v8296, %v8392
        %v8394 = vpop.f32.mrb[0].mxu0
        %8395 = vmatprep.mubr.bf16.mxu0 %v7954
        %8396 = vmatmul.mubr.bf16.gmra.mrb[0].mxu0 %v7953
        %v8397 = vpop.f32.mrb[0].mxu0
        %v8398 = vadd.f32 %v8301, %v8397
        %v8399 = vpop.f32.mrb[0].mxu0
        %v8400 = vpop.f32.mrb[0].mxu0
        %v8401 = vadd.f32 %v8304, %v8400
        %v8402 = vpop.f32.mrb[0].mxu0
        %8403 = vmatprep.mubr.bf16.mxu0 %v7958
        %8404 = vmatmul.mubr.bf16.gmra.mrb[0].mxu0 %v7957
        %v8405 = vpop.f32.mrb[0].mxu0
        %v8406 = vadd.f32 %v8309, %v8405
        %v8407 = vpop.f32.mrb[0].mxu0
        %v8408 = vpop.f32.mrb[0].mxu0
        %v8409 = vadd.f32 %v8312, %v8408
        %v8410 = vpop.f32.mrb[0].mxu0
        %8411 = vmatprep.mubr.bf16.mxu0 %v7962
        %8412 = vmatmul.mubr.bf16.gmra.mrb[0].mxu0 %v7961
        %v8413 = vpop.f32.mrb[0].mxu0
        %v8414 = vadd.f32 %v8317, %v8413
        %v8415 = vpop.f32.mrb[0].mxu0
        %v8416 = vpop.f32.mrb[0].mxu0
        %v8417 = vadd.f32 %v8320, %v8416
        %v8418 = vpop.f32.mrb[0].mxu0
        %8419 = vdwg.mxu0
        %v8420 = vadd.f32 %v6927, %v8358
        %v8421 = vadd.f32 %v6928, %v8361
        %v8422 = vadd.f32 %v6929, %v8366
        %v8423 = vadd.f32 %v6930, %v8369
        %v8424 = vadd.f32 %v6931, %v8374
        %v8425 = vadd.f32 %v6932, %v8377
        %v8426 = vadd.f32 %v6933, %v8382
        %v8427 = vadd.f32 %v6934, %v8385
        %v8428 = vadd.f32 %v6935, %v8390
        %v8429 = vadd.f32 %v6936, %v8393
        %v8430 = vadd.f32 %v6937, %v8398
        %v8431 = vadd.f32 %v6938, %v8401
        %v8432 = vadd.f32 %v6939, %v8406
        %v8433 = vadd.f32 %v6940, %v8409
        %v8434 = vadd.f32 %v6941, %v8414
        %v8435 = vadd.f32 %v6942, %v8417
        %8436 = vst [vmem:[%s514] sm:$0xff] %v8420
        %8437 = vst [vmem:[%s514 + $0x8] sm:$0xff] %v8421
        %8438 = vst [vmem:[%s514 + $0x10] sm:$0xff] %v8422
        %8439 = vst [vmem:[%s514 + $0x18] sm:$0xff] %v8423
        %8440 = vst [vmem:[%s514 + $0x20] sm:$0xff] %v8424
        %8441 = vst [vmem:[%s514 + $0x28] sm:$0xff] %v8425
        %8442 = vst [vmem:[%s514 + $0x30] sm:$0xff] %v8426
        %8443 = vst [vmem:[%s514 + $0x38] sm:$0xff] %v8427
        %8444 = vst [vmem:[%s514 + $0x40] sm:$0xff] %v8428
        %8445 = vst [vmem:[%s514 + $0x48] sm:$0xff] %v8429
        %8446 = vst [vmem:[%s514 + $0x50] sm:$0xff] %v8430
        %8447 = vst [vmem:[%s514 + $0x58] sm:$0xff] %v8431
        %8448 = vst [vmem:[%s514 + $0x60] sm:$0xff] %v8432
        %8449 = vst [vmem:[%s514 + $0x68] sm:$0xff] %v8433
        %8450 = vst [vmem:[%s514 + $0x70] sm:$0xff] %v8434
        %8451 = vst [vmem:[%s514 + $0x78] sm:$0xff] %v8435
        %s8452 = sand.u32 %s351, 1
        %s8453 = scalar_lea.sflag [#allocation6], %s8452
        %s8454 = sand.u32 %s351, 1
        %s8455 = smul.addr %s8454, 128
        %s8456 = scalar_lea.vmem [#allocation10], %s8455
        // Predicated region
        $region93: #{tpu_custom_call.1} parent=75 // pred_check
          %p8457 = pneg %p361
        $region94: #{tpu_custom_call.1} parent=75 // pred_check_branch
          %8459 = sbr.rel (%p8457) target = $region96
        $region95: #{tpu_custom_call.1} parent=75 // pred_region
          %s8460 = smul.u32 16, %s35
          %s8462 = ssub.s32 2048, 2048
          %8463 = vsyncadd %s8453, %s8462
          %s8464 = smul.addr %s34, 32
          %s8465 = sadd.s32 %s8460, %s8464
          %s8466 = smul.addr %s8465, 128
          %s8467 = scalar_lea.hbm %s14, %s8466
          %s8468 = sshll.u32 %s8456, 4
          %s8469 = int_to_ptr.vmem [resolvable:$true] %s8468
          %8474 = dma.vmem_to_hbm [thread:$0]  %s8469, 2048, %s8467, %s8453, 128, 128, 8
        $region96: #{tpu_custom_call.1} parent=75 // pred_fallthru
          _
      $region76: #{tpu_custom_call.1} parent=5 // pred_fallthru
        _
      %p8475 = scmp.le.s32.totalorder 2, %s25
      // Predicated region
      $region97: #{tpu_custom_call.1} parent=5 // pred_check
        %p8476 = pneg %p8475
      $region98: #{tpu_custom_call.1} parent=5 // pred_check_branch
        %8478 = sbr.rel (%p8476) target = $region100
      $region99: #{tpu_custom_call.1} parent=5 // pred_region
        %s8479 = ssub.s32 %s25, 2
        // Predicated region
        $region101: #{tpu_custom_call.1} parent=99 // pred_check
          %p8480 = pneg %p367
        $region102: #{tpu_custom_call.1} parent=99 // pred_check_branch
          %8482 = sbr.rel (%p8480) target = $region104
        $region103: #{tpu_custom_call.1} parent=99 // pred_region
          %s8483 = sand.u32 %s352, 1
          %s8484 = scalar_lea.sflag [#allocation6], %s8483
          %s8485 = sand.u32 %s352, 1
          %s8486 = smul.addr %s8485, 128
          %s8487 = scalar_lea.vmem [#allocation10], %s8486
          %8488 = dma.done %s8484, 2048
        $region104: #{tpu_custom_call.1} parent=99 // pred_fallthru
          _
      $region100: #{tpu_custom_call.1} parent=5 // pred_fallthru
        _
    $region6: #{tpu_custom_call.1} parent=1 // loop_footer
      %s29 = sadd.s32 1, %s25
    $region7: #{tpu_custom_call.1} parent=1 // loop_footer_branch
      %24 = sbr.rel target = $region3
    $region8: #{tpu_custom_call.1} parent=1 // loop_exit
      _
    %8489 = vsyncpa [#allocation5], 1
    %s8490 = scalar_lea.sflag [#allocation5], 1
    %8491 = vsyncpa %s8490, 1
    %8492 = vsyncpa [#allocation8], 1
    %8493 = vsyncpa [#allocation6], 1
    %s8494 = scalar_lea.sflag [#allocation6], 1
    %8495 = vsyncpa %s8494, 1

</llo_original>
